<compile_context>
chip_gen: v6e
topology: v6e:2x2x1
jax: 0.10.0
libtpu: 0.0.40
codegen_flags: <defaults>
</compile_context>

<pallas_src>
import functools
import math

import jax
import jax.numpy as jnp
import numpy as np
from jax.experimental import pallas as pl
from jax.experimental.pallas import tpu as pltpu

BN_EPS = 1e-5


# ------------------------------ Pallas kernel -------------------------------

def _basic_block_kernel(x_ref, w1_ref, b1_ref, w2_ref, b2_ref, mask_ref, *rest,
                        H, W, has_proj):
    """Fused BasicBlock: conv1+BN+ReLU -> conv2+BN+ReLU -> (+identity) -> ReLU.

    x_ref:    ((H+3)*(W+2), Cin) bf16 -- zero-padded image, spatially flattened.
    w*_ref:   (9, Cin, Cout) bf16     -- BN-scale folded 3x3 conv taps.
    b*_ref:   (1, Cout) f32           -- folded BN bias.
    mask_ref: (H*(W+2), 1) f32        -- 1 on real columns, 0 on wrap-around cols.
    """
    if has_proj:
        ws_ref, bs_ref, o_ref, acc_ref, y_ref, xf_ref = rest
    else:
        o_ref, acc_ref, y_ref, xf_ref = rest

    Wp = W + 2          # flattened row stride (includes the 1+1 column padding)
    M = H * Wp          # flattened conv-output rows (incl. 2 garbage cols / row)

    # bf16 HBM stream -> f32 VMEM working copy (keeps all unaligned row slices
    # below on 32-bit data; only this aligned full-block load touches bf16).
    xf_ref[...] = x_ref[...].astype(jnp.float32)

    # ---------------- conv1 (+ folded BN + ReLU) ----------------
    acc_ref[...] = jnp.zeros_like(acc_ref)
    for kh in range(3):
        for kw in range(3):
            lhs = xf_ref[pl.ds(kh * Wp + kw, M), :].astype(jnp.bfloat16)
            acc_ref[...] += jnp.dot(lhs, w1_ref[kh * 3 + kw],
                                    preferred_element_type=jnp.float32)
    y1 = jnp.maximum(acc_ref[...] + b1_ref[...], 0.0)
    y1 = y1 * mask_ref[...]          # zero the wrap-around cols (conv2's padding)

    # Place conv1 output into a zero-padded flattened grid for conv2.
    y_ref[...] = jnp.zeros_like(y_ref)
    y_ref[pl.ds(Wp + 1, M), :] = y1

    # ---------------- conv2 (+ folded BN + ReLU) ----------------
    acc_ref[...] = jnp.zeros_like(acc_ref)
    for kh in range(3):
        for kw in range(3):
            lhs = y_ref[pl.ds(kh * Wp + kw, M), :].astype(jnp.bfloat16)
            acc_ref[...] += jnp.dot(lhs, w2_ref[kh * 3 + kw],
                                    preferred_element_type=jnp.float32)
    out = jnp.maximum(acc_ref[...] + b2_ref[...], 0.0)     # convBNLayer2 ReLU

    # ---------------- residual add + final ReLU ----------------
    x_center = xf_ref[pl.ds(Wp + 1, M), :]                  # original x, flattened
    if has_proj:
        identity = jnp.maximum(
            jnp.dot(x_center.astype(jnp.bfloat16), ws_ref[...],
                    preferred_element_type=jnp.float32) + bs_ref[...], 0.0)
    else:
        identity = x_center
    o_ref[...] = jnp.maximum(out + identity, 0.0).astype(o_ref.dtype)


# ------------------------------- JAX wrapper ---------------------------------

def _fold_bn(p, ksize):
    """Fold inference BatchNorm into the conv weight (scale) + per-channel bias."""
    cout, cin = p["w"].shape[0], p["w"].shape[1]
    inv_std = 1.0 / jnp.sqrt(p["rvar"].astype(jnp.float32) + BN_EPS)
    scale = p["gamma"].astype(jnp.float32) * inv_std
    bias = p["beta"].astype(jnp.float32) - p["rmean"].astype(jnp.float32) * scale
    # (Cout, Cin, kh, kw) -> (kh, kw, Cin, Cout), scale folded into the weight.
    w = jnp.transpose(p["w"].astype(jnp.float32), (2, 3, 1, 0)) * scale
    w = w.reshape(ksize * ksize, cin, cout).astype(jnp.bfloat16)
    return w, bias.reshape(1, cout).astype(jnp.float32)


def basic_block_forward(x_nhwc, params, *, stride=(1, 1), shortcut=True):
    """BasicBlock.forward, NHWC in/out.  One fused pallas_call per block."""
    # TODO(synk): strided conv1 (stride != (1,1)) and the is_vd_mode
    # (ceil-mode AvgPool) shortcut branch are not implemented in the fused kernel.
    assert tuple(stride) == (1, 1)
    n, h, w, cin = x_nhwc.shape
    cout = params["conv1"]["w"].shape[0]
    if shortcut:
        assert cin == cout, "identity shortcut needs in_channels == out_channels"

    wp = w + 2                  # flattened row stride
    m = h * wp                  # flattened conv-output rows per image
    r = (h + 3) * wp            # flattened padded-input rows per image

    # Zero-pad (top 1, bottom 2, left 1, right 1), flatten spatial, cast bf16.
    x_pad = jnp.pad(x_nhwc, ((0, 0), (1, 2), (1, 1), (0, 0)))
    x2d = x_pad.reshape(n, r, cin).astype(jnp.bfloat16)

    w1, b1 = _fold_bn(params["conv1"], 3)
    w2, b2 = _fold_bn(params["conv2"], 3)

    # 1.0 on real output columns, 0.0 on the 2 wrap-around columns per row.
    mask = (jnp.arange(m, dtype=jnp.int32) % wp < w).astype(jnp.float32)
    mask = mask.reshape(m, 1)

    args = [x2d, w1, b1, w2, b2, mask]
    in_specs = [
        pl.BlockSpec((None, r, cin), lambda i: (i, 0, 0)),
        pl.BlockSpec((9, cin, cout), lambda i: (0, 0, 0)),
        pl.BlockSpec((1, cout), lambda i: (0, 0)),
        pl.BlockSpec((9, cout, cout), lambda i: (0, 0, 0)),
        pl.BlockSpec((1, cout), lambda i: (0, 0)),
        pl.BlockSpec((m, 1), lambda i: (0, 0)),
    ]
    proj_flops = 0
    if not shortcut:
        ws, bs = _fold_bn(params["short"], 1)
        args += [ws.reshape(cin, cout), bs]
        in_specs += [pl.BlockSpec((cin, cout), lambda i: (0, 0)),
                     pl.BlockSpec((1, cout), lambda i: (0, 0))]
        proj_flops = 2 * m * cin * cout

    kernel = functools.partial(_basic_block_kernel, H=h, W=w,
                               has_proj=not shortcut)

    flops = n * (2 * m * 9 * cin * cout + 2 * m * 9 * cout * cout + proj_flops)
    bytes_accessed = (x2d.size * 2 + n * m * cout * 4
                      + (w1.size + w2.size) * 2
                      + (b1.size + b2.size + mask.size) * 4)

    # VMEM working set (double-buffered streams + scratch); raise the scoped
    # limit past the 16/32 MiB defaults while staying under v7x's 64 MiB.
    work_set = (2 * r * cin * 2 + 2 * m * cout * 4            # x / out blocks
                + (w1.size + w2.size) * 2 + (m + 2 * cout) * 4
                + m * cout * 4 + r * cout * 4 + r * cin * 4)  # scratch
    vmem_limit = int(min(max(4 * work_set, 32 * 1024 * 1024), 48 * 1024 * 1024))

    out = pl.pallas_call(
        kernel,
        out_shape=jax.ShapeDtypeStruct((n, m, cout), jnp.float32),
        grid=(n,),
        in_specs=in_specs,
        out_specs=pl.BlockSpec((None, m, cout), lambda i: (i, 0, 0)),
        scratch_shapes=[pltpu.VMEM((m, cout), jnp.float32),    # f32 accumulator
                        pltpu.VMEM((r, cout), jnp.float32),    # padded conv1 out
                        pltpu.VMEM((r, cin), jnp.float32)],    # f32 copy of input
        compiler_params=pltpu.CompilerParams(
            dimension_semantics=("parallel",),
            vmem_limit_bytes=vmem_limit),
        cost_estimate=pl.CostEstimate(flops=int(flops), transcendentals=0,
                                      bytes_accessed=int(bytes_accessed)),
    )(*args)

    # Drop the 2 wrap-around columns per row -> (N, H, W, Cout).
    return out.reshape(n, h, wp, cout)[:, :, :w, :]


# --------------------------- deterministic params ---------------------------

def init_conv_bn_params(key, cin, cout, ksize):
    k1, k2, k3, k4, k5 = jax.random.split(key, 5)
    fan_in = cin * ksize * ksize
    return dict(
        w=jax.random.normal(k1, (cout, cin, ksize, ksize), jnp.float32) / math.sqrt(fan_in),
        gamma=1.0 + 0.1 * jax.random.normal(k2, (cout,), jnp.float32),
        beta=0.1 * jax.random.normal(k3, (cout,), jnp.float32),
        rmean=0.1 * jax.random.normal(k4, (cout,), jnp.float32),
        rvar=jnp.abs(jax.random.normal(k5, (cout,), jnp.float32)) + 0.5,
    )


# ----------------------------- pure-JAX reference ----------------------------

def _ref_conv_bn(x, p, ksize, stride, relu=True):
    pad = (ksize - 1) // 2
    y = jax.lax.conv_general_dilated(
        x, jnp.transpose(p["w"], (2, 3, 1, 0)),
        window_strides=stride, padding=[(pad, pad), (pad, pad)],
        dimension_numbers=("NHWC", "HWIO", "NHWC"))
    scale = p["gamma"] / jnp.sqrt(p["rvar"] + BN_EPS)
    y = y * scale + (p["beta"] - p["rmean"] * scale)
    return jnp.maximum(y, 0.0) if relu else y


def _ref_basic_block(x, params, stride):
    out = _ref_conv_bn(x, params["conv1"], 3, stride)     # act='relu'
    out = _ref_conv_bn(out, params["conv2"], 3, (1, 1))   # act='relu'
    return jnp.maximum(out + x, 0.0)                       # add + final ReLU


# ---------------------------------- main -------------------------------------

if __name__ == "__main__":
    key = jax.random.PRNGKey(0)
    kx, k1, k2 = jax.random.split(key, 3)

    N, C, H, W = 2, 4, 16, 16                        # PyTorch NCHW input shape
    stride = (1, 1)                                   # shortcut=True config
    x_nchw = jax.random.normal(kx, (N, C, H, W), jnp.float32)
    x_nhwc = jnp.transpose(x_nchw, (0, 2, 3, 1))      # kernel layout: NHWC

    params = {
        "conv1": init_conv_bn_params(k1, C, C, 3),
        "conv2": init_conv_bn_params(k2, C, C, 3),
    }

    fwd = jax.jit(functools.partial(basic_block_forward, stride=stride,
                                    shortcut=True))
    out_nhwc = jax.block_until_ready(fwd(x_nhwc, params))
    out_nchw = jnp.transpose(out_nhwc, (0, 3, 1, 2))  # back to PyTorch NCHW

    # sanity check vs. f32 reference (bf16 MXU inputs -> lenient tolerance)
    ref = jnp.transpose(_ref_basic_block(x_nhwc, params, stride), (0, 3, 1, 2))
    np.testing.assert_allclose(np.asarray(out_nchw), np.asarray(ref),
                               rtol=5e-2, atol=5e-2)

    print("KERNEL_OK")
</pallas_src>

<mosaic_0001>
module attributes {stable_mosaic.version = 11 : i64} {
  func.func @_basic_block_kernel(%arg0: i32, %arg1: memref<1x342x4xbf16, #tpu.memory_space<vmem>>, %arg2: memref<9x4x4xbf16, #tpu.memory_space<vmem>>, %arg3: memref<1x4xf32, #tpu.memory_space<vmem>>, %arg4: memref<9x4x4xbf16, #tpu.memory_space<vmem>>, %arg5: memref<1x4xf32, #tpu.memory_space<vmem>>, %arg6: memref<288x1xf32, #tpu.memory_space<vmem>>, %arg7: memref<1x288x4xf32, #tpu.memory_space<vmem>>, %arg8: memref<288x4xf32, #tpu.memory_space<vmem>>, %arg9: memref<342x4xf32, #tpu.memory_space<vmem>>, %arg10: memref<342x4xf32, #tpu.memory_space<vmem>>) attributes {dimension_semantics = [#tpu.dimension_semantics<parallel>], iteration_bounds = array<i64: 2>, scalar_prefetch = 0 : i64, scratch_operands = 3 : i64, tpu.core_type = #tpu.core_type<tc>, window_params = [{transform_indices = @transform_0, window_bounds = array<i64: 1, 342, 4>}, {pipeline_mode = #tpu.pipeline_mode<synchronous>, transform_indices = @transform_1, window_bounds = array<i64: 9, 4, 4>}, {pipeline_mode = #tpu.pipeline_mode<synchronous>, transform_indices = @transform_2, window_bounds = array<i64: 1, 4>}, {pipeline_mode = #tpu.pipeline_mode<synchronous>, transform_indices = @transform_3, window_bounds = array<i64: 9, 4, 4>}, {pipeline_mode = #tpu.pipeline_mode<synchronous>, transform_indices = @transform_4, window_bounds = array<i64: 1, 4>}, {pipeline_mode = #tpu.pipeline_mode<synchronous>, transform_indices = @transform_5, window_bounds = array<i64: 288, 1>}, {transform_indices = @transform_6, window_bounds = array<i64: 1, 288, 4>}]} {
    %c0 = arith.constant 0 : index
    %c0_0 = arith.constant 0 : index
    %c0_1 = arith.constant 0 : index
    %0 = vector.load %arg1[%c0, %c0_0, %c0_1] : memref<1x342x4xbf16, #tpu.memory_space<vmem>>, vector<1x342x4xbf16>
    %1 = vector.shape_cast %0 : vector<1x342x4xbf16> to vector<342x4xbf16>
    %2 = arith.extf %1 : vector<342x4xbf16> to vector<342x4xf32>
    %c0_2 = arith.constant 0 : index
    %c0_3 = arith.constant 0 : index
    %3 = vector.load %arg10[%c0_2, %c0_3] : memref<342x4xf32, #tpu.memory_space<vmem>>, vector<342x4xf32>
    tpu.vector_store %arg10[%c0_2, %c0_3], %2 {strides = array<i32>} : memref<342x4xf32, #tpu.memory_space<vmem>>, vector<342x4xf32>,
    %cst = arith.constant 0.000000e+00 : f32
    %4 = vector.broadcast %cst : f32 to vector<288x4xf32>
    %c0_4 = arith.constant 0 : index
    %c0_5 = arith.constant 0 : index
    %5 = vector.load %arg8[%c0_4, %c0_5] : memref<288x4xf32, #tpu.memory_space<vmem>>, vector<288x4xf32>
    tpu.vector_store %arg8[%c0_4, %c0_5], %4 {strides = array<i32>} : memref<288x4xf32, #tpu.memory_space<vmem>>, vector<288x4xf32>,
    %c0_6 = arith.constant 0 : index
    %c0_7 = arith.constant 0 : index
    %6 = vector.load %arg10[%c0_6, %c0_7] : memref<342x4xf32, #tpu.memory_space<vmem>>, vector<288x4xf32>
    %7 = arith.truncf %6 : vector<288x4xf32> to vector<288x4xbf16>
    %c0_8 = arith.constant 0 : index
    %c0_9 = arith.constant 0 : index
    %8 = vector.load %arg8[%c0_8, %c0_9] : memref<288x4xf32, #tpu.memory_space<vmem>>, vector<288x4xf32>
    %c0_10 = arith.constant 0 : index
    %c0_11 = arith.constant 0 : index
    %c0_12 = arith.constant 0 : index
    %9 = vector.load %arg2[%c0_10, %c0_11, %c0_12] : memref<9x4x4xbf16, #tpu.memory_space<vmem>>, vector<1x4x4xbf16>
    %10 = vector.shape_cast %9 : vector<1x4x4xbf16> to vector<4x4xbf16>
    %cst_13 = arith.constant dense<0.000000e+00> : vector<288x4xf32>
    %11 = tpu.matmul %7, %10, %cst_13 {dimension_numbers = #tpu.dot_dimension_numbers<[1], [0], [0], [1], [0, 0, 1, 1], [], []>} : vector<288x4xbf16>, vector<4x4xbf16>, vector<288x4xf32> -> vector<288x4xf32>
    %12 = arith.addf %8, %11 : vector<288x4xf32>
    %c0_14 = arith.constant 0 : index
    %c0_15 = arith.constant 0 : index
    %13 = vector.load %arg8[%c0_14, %c0_15] : memref<288x4xf32, #tpu.memory_space<vmem>>, vector<288x4xf32>
    tpu.vector_store %arg8[%c0_14, %c0_15], %12 {strides = array<i32>} : memref<288x4xf32, #tpu.memory_space<vmem>>, vector<288x4xf32>,
    %c1 = arith.constant 1 : index
    %c0_16 = arith.constant 0 : index
    %14 = vector.load %arg10[%c1, %c0_16] : memref<342x4xf32, #tpu.memory_space<vmem>>, vector<288x4xf32>
    %15 = arith.truncf %14 : vector<288x4xf32> to vector<288x4xbf16>
    %c0_17 = arith.constant 0 : index
    %c0_18 = arith.constant 0 : index
    %16 = vector.load %arg8[%c0_17, %c0_18] : memref<288x4xf32, #tpu.memory_space<vmem>>, vector<288x4xf32>
    %c1_19 = arith.constant 1 : index
    %c0_20 = arith.constant 0 : index
    %c0_21 = arith.constant 0 : index
    %17 = vector.load %arg2[%c1_19, %c0_20, %c0_21] : memref<9x4x4xbf16, #tpu.memory_space<vmem>>, vector<1x4x4xbf16>
    %18 = vector.shape_cast %17 : vector<1x4x4xbf16> to vector<4x4xbf16>
    %cst_22 = arith.constant dense<0.000000e+00> : vector<288x4xf32>
    %19 = tpu.matmul %15, %18, %cst_22 {dimension_numbers = #tpu.dot_dimension_numbers<[1], [0], [0], [1], [0, 0, 1, 1], [], []>} : vector<288x4xbf16>, vector<4x4xbf16>, vector<288x4xf32> -> vector<288x4xf32>
    %20 = arith.addf %16, %19 : vector<288x4xf32>
    %c0_23 = arith.constant 0 : index
    %c0_24 = arith.constant 0 : index
    %21 = vector.load %arg8[%c0_23, %c0_24] : memref<288x4xf32, #tpu.memory_space<vmem>>, vector<288x4xf32>
    tpu.vector_store %arg8[%c0_23, %c0_24], %20 {strides = array<i32>} : memref<288x4xf32, #tpu.memory_space<vmem>>, vector<288x4xf32>,
    %c2 = arith.constant 2 : index
    %c0_25 = arith.constant 0 : index
    %22 = vector.load %arg10[%c2, %c0_25] : memref<342x4xf32, #tpu.memory_space<vmem>>, vector<288x4xf32>
    %23 = arith.truncf %22 : vector<288x4xf32> to vector<288x4xbf16>
    %c0_26 = arith.constant 0 : index
    %c0_27 = arith.constant 0 : index
    %24 = vector.load %arg8[%c0_26, %c0_27] : memref<288x4xf32, #tpu.memory_space<vmem>>, vector<288x4xf32>
    %c2_28 = arith.constant 2 : index
    %c0_29 = arith.constant 0 : index
    %c0_30 = arith.constant 0 : index
    %25 = vector.load %arg2[%c2_28, %c0_29, %c0_30] : memref<9x4x4xbf16, #tpu.memory_space<vmem>>, vector<1x4x4xbf16>
    %26 = vector.shape_cast %25 : vector<1x4x4xbf16> to vector<4x4xbf16>
    %cst_31 = arith.constant dense<0.000000e+00> : vector<288x4xf32>
    %27 = tpu.matmul %23, %26, %cst_31 {dimension_numbers = #tpu.dot_dimension_numbers<[1], [0], [0], [1], [0, 0, 1, 1], [], []>} : vector<288x4xbf16>, vector<4x4xbf16>, vector<288x4xf32> -> vector<288x4xf32>
    %28 = arith.addf %24, %27 : vector<288x4xf32>
    %c0_32 = arith.constant 0 : index
    %c0_33 = arith.constant 0 : index
    %29 = vector.load %arg8[%c0_32, %c0_33] : memref<288x4xf32, #tpu.memory_space<vmem>>, vector<288x4xf32>
    tpu.vector_store %arg8[%c0_32, %c0_33], %28 {strides = array<i32>} : memref<288x4xf32, #tpu.memory_space<vmem>>, vector<288x4xf32>,
    %c18 = arith.constant 18 : index
    %c0_34 = arith.constant 0 : index
    %30 = vector.load %arg10[%c18, %c0_34] : memref<342x4xf32, #tpu.memory_space<vmem>>, vector<288x4xf32>
    %31 = arith.truncf %30 : vector<288x4xf32> to vector<288x4xbf16>
    %c0_35 = arith.constant 0 : index
    %c0_36 = arith.constant 0 : index
    %32 = vector.load %arg8[%c0_35, %c0_36] : memref<288x4xf32, #tpu.memory_space<vmem>>, vector<288x4xf32>
    %c3 = arith.constant 3 : index
    %c0_37 = arith.constant 0 : index
    %c0_38 = arith.constant 0 : index
    %33 = vector.load %arg2[%c3, %c0_37, %c0_38] : memref<9x4x4xbf16, #tpu.memory_space<vmem>>, vector<1x4x4xbf16>
    %34 = vector.shape_cast %33 : vector<1x4x4xbf16> to vector<4x4xbf16>
    %cst_39 = arith.constant dense<0.000000e+00> : vector<288x4xf32>
    %35 = tpu.matmul %31, %34, %cst_39 {dimension_numbers = #tpu.dot_dimension_numbers<[1], [0], [0], [1], [0, 0, 1, 1], [], []>} : vector<288x4xbf16>, vector<4x4xbf16>, vector<288x4xf32> -> vector<288x4xf32>
    %36 = arith.addf %32, %35 : vector<288x4xf32>
    %c0_40 = arith.constant 0 : index
    %c0_41 = arith.constant 0 : index
    %37 = vector.load %arg8[%c0_40, %c0_41] : memref<288x4xf32, #tpu.memory_space<vmem>>, vector<288x4xf32>
    tpu.vector_store %arg8[%c0_40, %c0_41], %36 {strides = array<i32>} : memref<288x4xf32, #tpu.memory_space<vmem>>, vector<288x4xf32>,
    %c19 = arith.constant 19 : index
    %c0_42 = arith.constant 0 : index
    %38 = vector.load %arg10[%c19, %c0_42] : memref<342x4xf32, #tpu.memory_space<vmem>>, vector<288x4xf32>
    %39 = arith.truncf %38 : vector<288x4xf32> to vector<288x4xbf16>
    %c0_43 = arith.constant 0 : index
    %c0_44 = arith.constant 0 : index
    %40 = vector.load %arg8[%c0_43, %c0_44] : memref<288x4xf32, #tpu.memory_space<vmem>>, vector<288x4xf32>
    %c4 = arith.constant 4 : index
    %c0_45 = arith.constant 0 : index
    %c0_46 = arith.constant 0 : index
    %41 = vector.load %arg2[%c4, %c0_45, %c0_46] : memref<9x4x4xbf16, #tpu.memory_space<vmem>>, vector<1x4x4xbf16>
    %42 = vector.shape_cast %41 : vector<1x4x4xbf16> to vector<4x4xbf16>
    %cst_47 = arith.constant dense<0.000000e+00> : vector<288x4xf32>
    %43 = tpu.matmul %39, %42, %cst_47 {dimension_numbers = #tpu.dot_dimension_numbers<[1], [0], [0], [1], [0, 0, 1, 1], [], []>} : vector<288x4xbf16>, vector<4x4xbf16>, vector<288x4xf32> -> vector<288x4xf32>
    %44 = arith.addf %40, %43 : vector<288x4xf32>
    %c0_48 = arith.constant 0 : index
    %c0_49 = arith.constant 0 : index
    %45 = vector.load %arg8[%c0_48, %c0_49] : memref<288x4xf32, #tpu.memory_space<vmem>>, vector<288x4xf32>
    tpu.vector_store %arg8[%c0_48, %c0_49], %44 {strides = array<i32>} : memref<288x4xf32, #tpu.memory_space<vmem>>, vector<288x4xf32>,
    %c20 = arith.constant 20 : index
    %c0_50 = arith.constant 0 : index
    %46 = vector.load %arg10[%c20, %c0_50] : memref<342x4xf32, #tpu.memory_space<vmem>>, vector<288x4xf32>
    %47 = arith.truncf %46 : vector<288x4xf32> to vector<288x4xbf16>
    %c0_51 = arith.constant 0 : index
    %c0_52 = arith.constant 0 : index
    %48 = vector.load %arg8[%c0_51, %c0_52] : memref<288x4xf32, #tpu.memory_space<vmem>>, vector<288x4xf32>
    %c5 = arith.constant 5 : index
    %c0_53 = arith.constant 0 : index
    %c0_54 = arith.constant 0 : index
    %49 = vector.load %arg2[%c5, %c0_53, %c0_54] : memref<9x4x4xbf16, #tpu.memory_space<vmem>>, vector<1x4x4xbf16>
    %50 = vector.shape_cast %49 : vector<1x4x4xbf16> to vector<4x4xbf16>
    %cst_55 = arith.constant dense<0.000000e+00> : vector<288x4xf32>
    %51 = tpu.matmul %47, %50, %cst_55 {dimension_numbers = #tpu.dot_dimension_numbers<[1], [0], [0], [1], [0, 0, 1, 1], [], []>} : vector<288x4xbf16>, vector<4x4xbf16>, vector<288x4xf32> -> vector<288x4xf32>
    %52 = arith.addf %48, %51 : vector<288x4xf32>
    %c0_56 = arith.constant 0 : index
    %c0_57 = arith.constant 0 : index
    %53 = vector.load %arg8[%c0_56, %c0_57] : memref<288x4xf32, #tpu.memory_space<vmem>>, vector<288x4xf32>
    tpu.vector_store %arg8[%c0_56, %c0_57], %52 {strides = array<i32>} : memref<288x4xf32, #tpu.memory_space<vmem>>, vector<288x4xf32>,
    %c36 = arith.constant 36 : index
    %c0_58 = arith.constant 0 : index
    %54 = vector.load %arg10[%c36, %c0_58] : memref<342x4xf32, #tpu.memory_space<vmem>>, vector<288x4xf32>
    %55 = arith.truncf %54 : vector<288x4xf32> to vector<288x4xbf16>
    %c0_59 = arith.constant 0 : index
    %c0_60 = arith.constant 0 : index
    %56 = vector.load %arg8[%c0_59, %c0_60] : memref<288x4xf32, #tpu.memory_space<vmem>>, vector<288x4xf32>
    %c6 = arith.constant 6 : index
    %c0_61 = arith.constant 0 : index
    %c0_62 = arith.constant 0 : index
    %57 = vector.load %arg2[%c6, %c0_61, %c0_62] : memref<9x4x4xbf16, #tpu.memory_space<vmem>>, vector<1x4x4xbf16>
    %58 = vector.shape_cast %57 : vector<1x4x4xbf16> to vector<4x4xbf16>
    %cst_63 = arith.constant dense<0.000000e+00> : vector<288x4xf32>
    %59 = tpu.matmul %55, %58, %cst_63 {dimension_numbers = #tpu.dot_dimension_numbers<[1], [0], [0], [1], [0, 0, 1, 1], [], []>} : vector<288x4xbf16>, vector<4x4xbf16>, vector<288x4xf32> -> vector<288x4xf32>
    %60 = arith.addf %56, %59 : vector<288x4xf32>
    %c0_64 = arith.constant 0 : index
    %c0_65 = arith.constant 0 : index
    %61 = vector.load %arg8[%c0_64, %c0_65] : memref<288x4xf32, #tpu.memory_space<vmem>>, vector<288x4xf32>
    tpu.vector_store %arg8[%c0_64, %c0_65], %60 {strides = array<i32>} : memref<288x4xf32, #tpu.memory_space<vmem>>, vector<288x4xf32>,
    %c37 = arith.constant 37 : index
    %c0_66 = arith.constant 0 : index
    %62 = vector.load %arg10[%c37, %c0_66] : memref<342x4xf32, #tpu.memory_space<vmem>>, vector<288x4xf32>
    %63 = arith.truncf %62 : vector<288x4xf32> to vector<288x4xbf16>
    %c0_67 = arith.constant 0 : index
    %c0_68 = arith.constant 0 : index
    %64 = vector.load %arg8[%c0_67, %c0_68] : memref<288x4xf32, #tpu.memory_space<vmem>>, vector<288x4xf32>
    %c7 = arith.constant 7 : index
    %c0_69 = arith.constant 0 : index
    %c0_70 = arith.constant 0 : index
    %65 = vector.load %arg2[%c7, %c0_69, %c0_70] : memref<9x4x4xbf16, #tpu.memory_space<vmem>>, vector<1x4x4xbf16>
    %66 = vector.shape_cast %65 : vector<1x4x4xbf16> to vector<4x4xbf16>
    %cst_71 = arith.constant dense<0.000000e+00> : vector<288x4xf32>
    %67 = tpu.matmul %63, %66, %cst_71 {dimension_numbers = #tpu.dot_dimension_numbers<[1], [0], [0], [1], [0, 0, 1, 1], [], []>} : vector<288x4xbf16>, vector<4x4xbf16>, vector<288x4xf32> -> vector<288x4xf32>
    %68 = arith.addf %64, %67 : vector<288x4xf32>
    %c0_72 = arith.constant 0 : index
    %c0_73 = arith.constant 0 : index
    %69 = vector.load %arg8[%c0_72, %c0_73] : memref<288x4xf32, #tpu.memory_space<vmem>>, vector<288x4xf32>
    tpu.vector_store %arg8[%c0_72, %c0_73], %68 {strides = array<i32>} : memref<288x4xf32, #tpu.memory_space<vmem>>, vector<288x4xf32>,
    %c38 = arith.constant 38 : index
    %c0_74 = arith.constant 0 : index
    %70 = vector.load %arg10[%c38, %c0_74] : memref<342x4xf32, #tpu.memory_space<vmem>>, vector<288x4xf32>
    %71 = arith.truncf %70 : vector<288x4xf32> to vector<288x4xbf16>
    %c0_75 = arith.constant 0 : index
    %c0_76 = arith.constant 0 : index
    %72 = vector.load %arg8[%c0_75, %c0_76] : memref<288x4xf32, #tpu.memory_space<vmem>>, vector<288x4xf32>
    %c8 = arith.constant 8 : index
    %c0_77 = arith.constant 0 : index
    %c0_78 = arith.constant 0 : index
    %73 = vector.load %arg2[%c8, %c0_77, %c0_78] : memref<9x4x4xbf16, #tpu.memory_space<vmem>>, vector<1x4x4xbf16>
    %74 = vector.shape_cast %73 : vector<1x4x4xbf16> to vector<4x4xbf16>
    %cst_79 = arith.constant dense<0.000000e+00> : vector<288x4xf32>
    %75 = tpu.matmul %71, %74, %cst_79 {dimension_numbers = #tpu.dot_dimension_numbers<[1], [0], [0], [1], [0, 0, 1, 1], [], []>} : vector<288x4xbf16>, vector<4x4xbf16>, vector<288x4xf32> -> vector<288x4xf32>
    %76 = arith.addf %72, %75 : vector<288x4xf32>
    %c0_80 = arith.constant 0 : index
    %c0_81 = arith.constant 0 : index
    %77 = vector.load %arg8[%c0_80, %c0_81] : memref<288x4xf32, #tpu.memory_space<vmem>>, vector<288x4xf32>
    tpu.vector_store %arg8[%c0_80, %c0_81], %76 {strides = array<i32>} : memref<288x4xf32, #tpu.memory_space<vmem>>, vector<288x4xf32>,
    %c0_82 = arith.constant 0 : index
    %c0_83 = arith.constant 0 : index
    %78 = vector.load %arg8[%c0_82, %c0_83] : memref<288x4xf32, #tpu.memory_space<vmem>>, vector<288x4xf32>
    %c0_84 = arith.constant 0 : index
    %c0_85 = arith.constant 0 : index
    %79 = vector.load %arg3[%c0_84, %c0_85] : memref<1x4xf32, #tpu.memory_space<vmem>>, vector<1x4xf32>
    %80 = vector.broadcast %79 : vector<1x4xf32> to vector<288x4xf32>
    %81 = arith.addf %78, %80 : vector<288x4xf32>
    %cst_86 = arith.constant 0.000000e+00 : f32
    %82 = vector.broadcast %cst_86 : f32 to vector<288x4xf32>
    %83 = arith.maximumf %81, %82 : vector<288x4xf32>
    %c0_87 = arith.constant 0 : index
    %c0_88 = arith.constant 0 : index
    %84 = vector.load %arg6[%c0_87, %c0_88] : memref<288x1xf32, #tpu.memory_space<vmem>>, vector<288x1xf32>
    %85 = vector.broadcast %84 : vector<288x1xf32> to vector<288x4xf32>
    %86 = arith.mulf %83, %85 : vector<288x4xf32>
    %cst_89 = arith.constant 0.000000e+00 : f32
    %87 = vector.broadcast %cst_89 : f32 to vector<342x4xf32>
    %c0_90 = arith.constant 0 : index
    %c0_91 = arith.constant 0 : index
    %88 = vector.load %arg9[%c0_90, %c0_91] : memref<342x4xf32, #tpu.memory_space<vmem>>, vector<342x4xf32>
    tpu.vector_store %arg9[%c0_90, %c0_91], %87 {strides = array<i32>} : memref<342x4xf32, #tpu.memory_space<vmem>>, vector<342x4xf32>,
    %c19_92 = arith.constant 19 : index
    %c0_93 = arith.constant 0 : index
    %89 = vector.load %arg9[%c19_92, %c0_93] : memref<342x4xf32, #tpu.memory_space<vmem>>, vector<288x4xf32>
    tpu.vector_store %arg9[%c19_92, %c0_93], %86 {strides = array<i32>} : memref<342x4xf32, #tpu.memory_space<vmem>>, vector<288x4xf32>,
    %cst_94 = arith.constant 0.000000e+00 : f32
    %90 = vector.broadcast %cst_94 : f32 to vector<288x4xf32>
    %c0_95 = arith.constant 0 : index
    %c0_96 = arith.constant 0 : index
    %91 = vector.load %arg8[%c0_95, %c0_96] : memref<288x4xf32, #tpu.memory_space<vmem>>, vector<288x4xf32>
    tpu.vector_store %arg8[%c0_95, %c0_96], %90 {strides = array<i32>} : memref<288x4xf32, #tpu.memory_space<vmem>>, vector<288x4xf32>,
    %c0_97 = arith.constant 0 : index
    %c0_98 = arith.constant 0 : index
    %92 = vector.load %arg9[%c0_97, %c0_98] : memref<342x4xf32, #tpu.memory_space<vmem>>, vector<288x4xf32>
    %93 = arith.truncf %92 : vector<288x4xf32> to vector<288x4xbf16>
    %c0_99 = arith.constant 0 : index
    %c0_100 = arith.constant 0 : index
    %94 = vector.load %arg8[%c0_99, %c0_100] : memref<288x4xf32, #tpu.memory_space<vmem>>, vector<288x4xf32>
    %c0_101 = arith.constant 0 : index
    %c0_102 = arith.constant 0 : index
    %c0_103 = arith.constant 0 : index
    %95 = vector.load %arg4[%c0_101, %c0_102, %c0_103] : memref<9x4x4xbf16, #tpu.memory_space<vmem>>, vector<1x4x4xbf16>
    %96 = vector.shape_cast %95 : vector<1x4x4xbf16> to vector<4x4xbf16>
    %cst_104 = arith.constant dense<0.000000e+00> : vector<288x4xf32>
    %97 = tpu.matmul %93, %96, %cst_104 {dimension_numbers = #tpu.dot_dimension_numbers<[1], [0], [0], [1], [0, 0, 1, 1], [], []>} : vector<288x4xbf16>, vector<4x4xbf16>, vector<288x4xf32> -> vector<288x4xf32>
    %98 = arith.addf %94, %97 : vector<288x4xf32>
    %c0_105 = arith.constant 0 : index
    %c0_106 = arith.constant 0 : index
    %99 = vector.load %arg8[%c0_105, %c0_106] : memref<288x4xf32, #tpu.memory_space<vmem>>, vector<288x4xf32>
    tpu.vector_store %arg8[%c0_105, %c0_106], %98 {strides = array<i32>} : memref<288x4xf32, #tpu.memory_space<vmem>>, vector<288x4xf32>,
    %c1_107 = arith.constant 1 : index
    %c0_108 = arith.constant 0 : index
    %100 = vector.load %arg9[%c1_107, %c0_108] : memref<342x4xf32, #tpu.memory_space<vmem>>, vector<288x4xf32>
    %101 = arith.truncf %100 : vector<288x4xf32> to vector<288x4xbf16>
    %c0_109 = arith.constant 0 : index
    %c0_110 = arith.constant 0 : index
    %102 = vector.load %arg8[%c0_109, %c0_110] : memref<288x4xf32, #tpu.memory_space<vmem>>, vector<288x4xf32>
    %c1_111 = arith.constant 1 : index
    %c0_112 = arith.constant 0 : index
    %c0_113 = arith.constant 0 : index
    %103 = vector.load %arg4[%c1_111, %c0_112, %c0_113] : memref<9x4x4xbf16, #tpu.memory_space<vmem>>, vector<1x4x4xbf16>
    %104 = vector.shape_cast %103 : vector<1x4x4xbf16> to vector<4x4xbf16>
    %cst_114 = arith.constant dense<0.000000e+00> : vector<288x4xf32>
    %105 = tpu.matmul %101, %104, %cst_114 {dimension_numbers = #tpu.dot_dimension_numbers<[1], [0], [0], [1], [0, 0, 1, 1], [], []>} : vector<288x4xbf16>, vector<4x4xbf16>, vector<288x4xf32> -> vector<288x4xf32>
    %106 = arith.addf %102, %105 : vector<288x4xf32>
    %c0_115 = arith.constant 0 : index
    %c0_116 = arith.constant 0 : index
    %107 = vector.load %arg8[%c0_115, %c0_116] : memref<288x4xf32, #tpu.memory_space<vmem>>, vector<288x4xf32>
    tpu.vector_store %arg8[%c0_115, %c0_116], %106 {strides = array<i32>} : memref<288x4xf32, #tpu.memory_space<vmem>>, vector<288x4xf32>,
    %c2_117 = arith.constant 2 : index
    %c0_118 = arith.constant 0 : index
    %108 = vector.load %arg9[%c2_117, %c0_118] : memref<342x4xf32, #tpu.memory_space<vmem>>, vector<288x4xf32>
    %109 = arith.truncf %108 : vector<288x4xf32> to vector<288x4xbf16>
    %c0_119 = arith.constant 0 : index
    %c0_120 = arith.constant 0 : index
    %110 = vector.load %arg8[%c0_119, %c0_120] : memref<288x4xf32, #tpu.memory_space<vmem>>, vector<288x4xf32>
    %c2_121 = arith.constant 2 : index
    %c0_122 = arith.constant 0 : index
    %c0_123 = arith.constant 0 : index
    %111 = vector.load %arg4[%c2_121, %c0_122, %c0_123] : memref<9x4x4xbf16, #tpu.memory_space<vmem>>, vector<1x4x4xbf16>
    %112 = vector.shape_cast %111 : vector<1x4x4xbf16> to vector<4x4xbf16>
    %cst_124 = arith.constant dense<0.000000e+00> : vector<288x4xf32>
    %113 = tpu.matmul %109, %112, %cst_124 {dimension_numbers = #tpu.dot_dimension_numbers<[1], [0], [0], [1], [0, 0, 1, 1], [], []>} : vector<288x4xbf16>, vector<4x4xbf16>, vector<288x4xf32> -> vector<288x4xf32>
    %114 = arith.addf %110, %113 : vector<288x4xf32>
    %c0_125 = arith.constant 0 : index
    %c0_126 = arith.constant 0 : index
    %115 = vector.load %arg8[%c0_125, %c0_126] : memref<288x4xf32, #tpu.memory_space<vmem>>, vector<288x4xf32>
    tpu.vector_store %arg8[%c0_125, %c0_126], %114 {strides = array<i32>} : memref<288x4xf32, #tpu.memory_space<vmem>>, vector<288x4xf32>,
    %c18_127 = arith.constant 18 : index
    %c0_128 = arith.constant 0 : index
    %116 = vector.load %arg9[%c18_127, %c0_128] : memref<342x4xf32, #tpu.memory_space<vmem>>, vector<288x4xf32>
    %117 = arith.truncf %116 : vector<288x4xf32> to vector<288x4xbf16>
    %c0_129 = arith.constant 0 : index
    %c0_130 = arith.constant 0 : index
    %118 = vector.load %arg8[%c0_129, %c0_130] : memref<288x4xf32, #tpu.memory_space<vmem>>, vector<288x4xf32>
    %c3_131 = arith.constant 3 : index
    %c0_132 = arith.constant 0 : index
    %c0_133 = arith.constant 0 : index
    %119 = vector.load %arg4[%c3_131, %c0_132, %c0_133] : memref<9x4x4xbf16, #tpu.memory_space<vmem>>, vector<1x4x4xbf16>
    %120 = vector.shape_cast %119 : vector<1x4x4xbf16> to vector<4x4xbf16>
    %cst_134 = arith.constant dense<0.000000e+00> : vector<288x4xf32>
    %121 = tpu.matmul %117, %120, %cst_134 {dimension_numbers = #tpu.dot_dimension_numbers<[1], [0], [0], [1], [0, 0, 1, 1], [], []>} : vector<288x4xbf16>, vector<4x4xbf16>, vector<288x4xf32> -> vector<288x4xf32>
    %122 = arith.addf %118, %121 : vector<288x4xf32>
    %c0_135 = arith.constant 0 : index
    %c0_136 = arith.constant 0 : index
    %123 = vector.load %arg8[%c0_135, %c0_136] : memref<288x4xf32, #tpu.memory_space<vmem>>, vector<288x4xf32>
    tpu.vector_store %arg8[%c0_135, %c0_136], %122 {strides = array<i32>} : memref<288x4xf32, #tpu.memory_space<vmem>>, vector<288x4xf32>,
    %c19_137 = arith.constant 19 : index
    %c0_138 = arith.constant 0 : index
    %124 = vector.load %arg9[%c19_137, %c0_138] : memref<342x4xf32, #tpu.memory_space<vmem>>, vector<288x4xf32>
    %125 = arith.truncf %124 : vector<288x4xf32> to vector<288x4xbf16>
    %c0_139 = arith.constant 0 : index
    %c0_140 = arith.constant 0 : index
    %126 = vector.load %arg8[%c0_139, %c0_140] : memref<288x4xf32, #tpu.memory_space<vmem>>, vector<288x4xf32>
    %c4_141 = arith.constant 4 : index
    %c0_142 = arith.constant 0 : index
    %c0_143 = arith.constant 0 : index
    %127 = vector.load %arg4[%c4_141, %c0_142, %c0_143] : memref<9x4x4xbf16, #tpu.memory_space<vmem>>, vector<1x4x4xbf16>
    %128 = vector.shape_cast %127 : vector<1x4x4xbf16> to vector<4x4xbf16>
    %cst_144 = arith.constant dense<0.000000e+00> : vector<288x4xf32>
    %129 = tpu.matmul %125, %128, %cst_144 {dimension_numbers = #tpu.dot_dimension_numbers<[1], [0], [0], [1], [0, 0, 1, 1], [], []>} : vector<288x4xbf16>, vector<4x4xbf16>, vector<288x4xf32> -> vector<288x4xf32>
    %130 = arith.addf %126, %129 : vector<288x4xf32>
    %c0_145 = arith.constant 0 : index
    %c0_146 = arith.constant 0 : index
    %131 = vector.load %arg8[%c0_145, %c0_146] : memref<288x4xf32, #tpu.memory_space<vmem>>, vector<288x4xf32>
    tpu.vector_store %arg8[%c0_145, %c0_146], %130 {strides = array<i32>} : memref<288x4xf32, #tpu.memory_space<vmem>>, vector<288x4xf32>,
    %c20_147 = arith.constant 20 : index
    %c0_148 = arith.constant 0 : index
    %132 = vector.load %arg9[%c20_147, %c0_148] : memref<342x4xf32, #tpu.memory_space<vmem>>, vector<288x4xf32>
    %133 = arith.truncf %132 : vector<288x4xf32> to vector<288x4xbf16>
    %c0_149 = arith.constant 0 : index
    %c0_150 = arith.constant 0 : index
    %134 = vector.load %arg8[%c0_149, %c0_150] : memref<288x4xf32, #tpu.memory_space<vmem>>, vector<288x4xf32>
    %c5_151 = arith.constant 5 : index
    %c0_152 = arith.constant 0 : index
    %c0_153 = arith.constant 0 : index
    %135 = vector.load %arg4[%c5_151, %c0_152, %c0_153] : memref<9x4x4xbf16, #tpu.memory_space<vmem>>, vector<1x4x4xbf16>
    %136 = vector.shape_cast %135 : vector<1x4x4xbf16> to vector<4x4xbf16>
    %cst_154 = arith.constant dense<0.000000e+00> : vector<288x4xf32>
    %137 = tpu.matmul %133, %136, %cst_154 {dimension_numbers = #tpu.dot_dimension_numbers<[1], [0], [0], [1], [0, 0, 1, 1], [], []>} : vector<288x4xbf16>, vector<4x4xbf16>, vector<288x4xf32> -> vector<288x4xf32>
    %138 = arith.addf %134, %137 : vector<288x4xf32>
    %c0_155 = arith.constant 0 : index
    %c0_156 = arith.constant 0 : index
    %139 = vector.load %arg8[%c0_155, %c0_156] : memref<288x4xf32, #tpu.memory_space<vmem>>, vector<288x4xf32>
    tpu.vector_store %arg8[%c0_155, %c0_156], %138 {strides = array<i32>} : memref<288x4xf32, #tpu.memory_space<vmem>>, vector<288x4xf32>,
    %c36_157 = arith.constant 36 : index
    %c0_158 = arith.constant 0 : index
    %140 = vector.load %arg9[%c36_157, %c0_158] : memref<342x4xf32, #tpu.memory_space<vmem>>, vector<288x4xf32>
    %141 = arith.truncf %140 : vector<288x4xf32> to vector<288x4xbf16>
    %c0_159 = arith.constant 0 : index
    %c0_160 = arith.constant 0 : index
    %142 = vector.load %arg8[%c0_159, %c0_160] : memref<288x4xf32, #tpu.memory_space<vmem>>, vector<288x4xf32>
    %c6_161 = arith.constant 6 : index
    %c0_162 = arith.constant 0 : index
    %c0_163 = arith.constant 0 : index
    %143 = vector.load %arg4[%c6_161, %c0_162, %c0_163] : memref<9x4x4xbf16, #tpu.memory_space<vmem>>, vector<1x4x4xbf16>
    %144 = vector.shape_cast %143 : vector<1x4x4xbf16> to vector<4x4xbf16>
    %cst_164 = arith.constant dense<0.000000e+00> : vector<288x4xf32>
    %145 = tpu.matmul %141, %144, %cst_164 {dimension_numbers = #tpu.dot_dimension_numbers<[1], [0], [0], [1], [0, 0, 1, 1], [], []>} : vector<288x4xbf16>, vector<4x4xbf16>, vector<288x4xf32> -> vector<288x4xf32>
    %146 = arith.addf %142, %145 : vector<288x4xf32>
    %c0_165 = arith.constant 0 : index
    %c0_166 = arith.constant 0 : index
    %147 = vector.load %arg8[%c0_165, %c0_166] : memref<288x4xf32, #tpu.memory_space<vmem>>, vector<288x4xf32>
    tpu.vector_store %arg8[%c0_165, %c0_166], %146 {strides = array<i32>} : memref<288x4xf32, #tpu.memory_space<vmem>>, vector<288x4xf32>,
    %c37_167 = arith.constant 37 : index
    %c0_168 = arith.constant 0 : index
    %148 = vector.load %arg9[%c37_167, %c0_168] : memref<342x4xf32, #tpu.memory_space<vmem>>, vector<288x4xf32>
    %149 = arith.truncf %148 : vector<288x4xf32> to vector<288x4xbf16>
    %c0_169 = arith.constant 0 : index
    %c0_170 = arith.constant 0 : index
    %150 = vector.load %arg8[%c0_169, %c0_170] : memref<288x4xf32, #tpu.memory_space<vmem>>, vector<288x4xf32>
    %c7_171 = arith.constant 7 : index
    %c0_172 = arith.constant 0 : index
    %c0_173 = arith.constant 0 : index
    %151 = vector.load %arg4[%c7_171, %c0_172, %c0_173] : memref<9x4x4xbf16, #tpu.memory_space<vmem>>, vector<1x4x4xbf16>
    %152 = vector.shape_cast %151 : vector<1x4x4xbf16> to vector<4x4xbf16>
    %cst_174 = arith.constant dense<0.000000e+00> : vector<288x4xf32>
    %153 = tpu.matmul %149, %152, %cst_174 {dimension_numbers = #tpu.dot_dimension_numbers<[1], [0], [0], [1], [0, 0, 1, 1], [], []>} : vector<288x4xbf16>, vector<4x4xbf16>, vector<288x4xf32> -> vector<288x4xf32>
    %154 = arith.addf %150, %153 : vector<288x4xf32>
    %c0_175 = arith.constant 0 : index
    %c0_176 = arith.constant 0 : index
    %155 = vector.load %arg8[%c0_175, %c0_176] : memref<288x4xf32, #tpu.memory_space<vmem>>, vector<288x4xf32>
    tpu.vector_store %arg8[%c0_175, %c0_176], %154 {strides = array<i32>} : memref<288x4xf32, #tpu.memory_space<vmem>>, vector<288x4xf32>,
    %c38_177 = arith.constant 38 : index
    %c0_178 = arith.constant 0 : index
    %156 = vector.load %arg9[%c38_177, %c0_178] : memref<342x4xf32, #tpu.memory_space<vmem>>, vector<288x4xf32>
    %157 = arith.truncf %156 : vector<288x4xf32> to vector<288x4xbf16>
    %c0_179 = arith.constant 0 : index
    %c0_180 = arith.constant 0 : index
    %158 = vector.load %arg8[%c0_179, %c0_180] : memref<288x4xf32, #tpu.memory_space<vmem>>, vector<288x4xf32>
    %c8_181 = arith.constant 8 : index
    %c0_182 = arith.constant 0 : index
    %c0_183 = arith.constant 0 : index
    %159 = vector.load %arg4[%c8_181, %c0_182, %c0_183] : memref<9x4x4xbf16, #tpu.memory_space<vmem>>, vector<1x4x4xbf16>
    %160 = vector.shape_cast %159 : vector<1x4x4xbf16> to vector<4x4xbf16>
    %cst_184 = arith.constant dense<0.000000e+00> : vector<288x4xf32>
    %161 = tpu.matmul %157, %160, %cst_184 {dimension_numbers = #tpu.dot_dimension_numbers<[1], [0], [0], [1], [0, 0, 1, 1], [], []>} : vector<288x4xbf16>, vector<4x4xbf16>, vector<288x4xf32> -> vector<288x4xf32>
    %162 = arith.addf %158, %161 : vector<288x4xf32>
    %c0_185 = arith.constant 0 : index
    %c0_186 = arith.constant 0 : index
    %163 = vector.load %arg8[%c0_185, %c0_186] : memref<288x4xf32, #tpu.memory_space<vmem>>, vector<288x4xf32>
    tpu.vector_store %arg8[%c0_185, %c0_186], %162 {strides = array<i32>} : memref<288x4xf32, #tpu.memory_space<vmem>>, vector<288x4xf32>,
    %c0_187 = arith.constant 0 : index
    %c0_188 = arith.constant 0 : index
    %164 = vector.load %arg8[%c0_187, %c0_188] : memref<288x4xf32, #tpu.memory_space<vmem>>, vector<288x4xf32>
    %c0_189 = arith.constant 0 : index
    %c0_190 = arith.constant 0 : index
    %165 = vector.load %arg5[%c0_189, %c0_190] : memref<1x4xf32, #tpu.memory_space<vmem>>, vector<1x4xf32>
    %166 = vector.broadcast %165 : vector<1x4xf32> to vector<288x4xf32>
    %167 = arith.addf %164, %166 : vector<288x4xf32>
    %cst_191 = arith.constant 0.000000e+00 : f32
    %168 = vector.broadcast %cst_191 : f32 to vector<288x4xf32>
    %169 = arith.maximumf %167, %168 : vector<288x4xf32>
    %c19_192 = arith.constant 19 : index
    %c0_193 = arith.constant 0 : index
    %170 = vector.load %arg10[%c19_192, %c0_193] : memref<342x4xf32, #tpu.memory_space<vmem>>, vector<288x4xf32>
    %171 = arith.addf %169, %170 : vector<288x4xf32>
    %cst_194 = arith.constant 0.000000e+00 : f32
    %172 = vector.broadcast %cst_194 : f32 to vector<288x4xf32>
    %173 = arith.maximumf %171, %172 : vector<288x4xf32>
    %c0_195 = arith.constant 0 : index
    %c0_196 = arith.constant 0 : index
    %c0_197 = arith.constant 0 : index
    %174 = vector.load %arg7[%c0_195, %c0_196, %c0_197] : memref<1x288x4xf32, #tpu.memory_space<vmem>>, vector<1x288x4xf32>
    %175 = vector.shape_cast %174 : vector<1x288x4xf32> to vector<288x4xf32>
    %176 = vector.shape_cast %173 : vector<288x4xf32> to vector<1x288x4xf32>
    tpu.vector_store %arg7[%c0_195, %c0_196, %c0_197], %176 {strides = array<i32>} : memref<1x288x4xf32, #tpu.memory_space<vmem>>, vector<1x288x4xf32>,
    return
  }
  func.func @transform_0(%arg0: i32) -> (i32, i32, i32) {
    %c0_i32 = arith.constant 0 : i32
    %c0_i32_0 = arith.constant 0 : i32
    %c0_i32_1 = arith.constant 0 : i32
    return %arg0, %c0_i32, %c0_i32_0 : i32, i32, i32
  }
  func.func @transform_1(%arg0: i32) -> (i32, i32, i32) {
    %c0_i32 = arith.constant 0 : i32
    %c0_i32_0 = arith.constant 0 : i32
    %c0_i32_1 = arith.constant 0 : i32
    %c0_i32_2 = arith.constant 0 : i32
    return %c0_i32, %c0_i32_0, %c0_i32_1 : i32, i32, i32
  }
  func.func @transform_2(%arg0: i32) -> (i32, i32) {
    %c0_i32 = arith.constant 0 : i32
    %c0_i32_0 = arith.constant 0 : i32
    %c0_i32_1 = arith.constant 0 : i32
    return %c0_i32, %c0_i32_0 : i32, i32
  }
  func.func @transform_3(%arg0: i32) -> (i32, i32, i32) {
    %c0_i32 = arith.constant 0 : i32
    %c0_i32_0 = arith.constant 0 : i32
    %c0_i32_1 = arith.constant 0 : i32
    %c0_i32_2 = arith.constant 0 : i32
    return %c0_i32, %c0_i32_0, %c0_i32_1 : i32, i32, i32
  }
  func.func @transform_4(%arg0: i32) -> (i32, i32) {
    %c0_i32 = arith.constant 0 : i32
    %c0_i32_0 = arith.constant 0 : i32
    %c0_i32_1 = arith.constant 0 : i32
    return %c0_i32, %c0_i32_0 : i32, i32
  }
  func.func @transform_5(%arg0: i32) -> (i32, i32) {
    %c0_i32 = arith.constant 0 : i32
    %c0_i32_0 = arith.constant 0 : i32
    %c0_i32_1 = arith.constant 0 : i32
    return %c0_i32, %c0_i32_0 : i32, i32
  }
  func.func @transform_6(%arg0: i32) -> (i32, i32, i32) {
    %c0_i32 = arith.constant 0 : i32
    %c0_i32_0 = arith.constant 0 : i32
    %c0_i32_1 = arith.constant 0 : i32
    return %arg0, %c0_i32, %c0_i32_0 : i32, i32, i32
  }
}

</mosaic_0001>

<llo_original>
// kernel: basic_block_forward.1
$region0: #{basic_block_forward.1}
  #allocation0 [shape = 'u32[]', space=smem, size = 0x4, offset = 0x4, fixed_abs, tag = 'smem constant byte address 0x4 - core index']
  #allocation1 [shape = 'u32[144,128]{1,0:T(1,128)}', space=vmem, size = 0x12000, scoped, tag = 'internal scratch']
  #allocation2 [shape = 'f32[288,4]{1,0:T(8,128)}', space=vmem, size = 0x24000, scoped, tag = 'scratch operand']
  #allocation3 [shape = 'f32[342,4]{1,0:T(8,128)}', space=vmem, size = 0x2b000, scoped, tag = 'scratch operand']
  #allocation4 [shape = 'f32[342,4]{1,0:T(8,128)}', space=vmem, size = 0x2b000, scoped, tag = 'scratch operand']
  %s0 = inlined_call_operand.vmem [shape: bf16[2,342,4], index: 0, kind: input, shape index: {}]
  %s1 = inlined_call_operand.vmem [shape: bf16[9,4,4], index: 1, kind: input, shape index: {}]
  %s2 = inlined_call_operand.vmem [shape: f32[1,4], index: 2, kind: input, shape index: {}]
  %s3 = inlined_call_operand.vmem [shape: bf16[9,4,4], index: 3, kind: input, shape index: {}]
  %s4 = inlined_call_operand.vmem [shape: f32[1,4], index: 4, kind: input, shape index: {}]
  %s5 = inlined_call_operand.vmem [shape: f32[288,1], index: 5, kind: input, shape index: {}]
  %s6 = inlined_call_operand.vmem [shape: f32[2,288,4], index: 6, kind: output, shape index: {}]
  %s7 = sld [smem:[#allocation0]]
  $region57: #{basic_block_forward.1} parent=0
    _
  %s9 = ssub.s32 1, %s7
  %s10 = scalar_select 0, %s9, %s7
  loop: start=0, step=1, limit=4
  $region2: #{basic_block_forward.1} parent=0 // loop_pre_header
    _
  $region3: #{basic_block_forward.1} parent=0 // loop_header
    %s12 = sphi 0, %s16
    %p13 = scmp.ge.s32.totalorder %s12, 4
    %s22 = sphi 0, %s24
    %s25 = sphi 0, %s22
    %s26 = sphi 0, %s25
    %s42 = sphi 0, %s26
    %s46 = sphi 0, %s46
    %s48 = sphi 0, %s46
    %s49 = sphi 0, %s48
    %s63 = sphi 0, %s49
    %s67 = sphi 0, %s67
    %s69 = sphi 0, %s67
    %s70 = sphi 0, %s69
    %s84 = sphi 0, %s70
    %s88 = sphi 0, %s88
    %s90 = sphi 0, %s88
    %s91 = sphi 0, %s90
    %s105 = sphi 0, %s91
    %s109 = sphi 0, %s109
    %s111 = sphi 0, %s109
    %s112 = sphi 0, %s111
    %s126 = sphi 0, %s112
    %s130 = sphi 0, %s130
    %s132 = sphi 0, %s130
    %s133 = sphi 0, %s132
    %s147 = sphi 0, %s133
    %s153 = sphi 0, %s155
    %s156 = sphi 0, %s153
    %s157 = sphi 0, %s156
    %s173 = sphi 0, %s157
  $region4: #{basic_block_forward.1} parent=0 // loop_header_branch
    %15 = sbr.rel (%p13) target = $region8
  $region5: #{basic_block_forward.1} parent=0 // loop_body
    %s17 = ssub.s32 %s12, 1
    %s18 = ssub.s32 %s12, 2
    %s19 = sadd.s32 %s12, 1
    %s20 = ssub.s32 %s12, %s19
    %p21 = scmp.eq.s32.totalorder %s20, 0
    %s23 = sadd.s32 %s22, 1
    %s24 = scalar_select %p21, %s22, %s23
    %p27 = pneg %p21
    %p28 = scmp.eq.s32.totalorder %s12, 1
    %p29 = por %p27, %p28
    %p30 = scmp.ne.s32.totalorder %s22, %s25
    %p31 = scmp.eq.s32.totalorder %s12, 0
    %p32 = por %p30, %p31
    %p33 = scmp.ne.s32.totalorder %s22, %s25
    %p34 = scmp.eq.s32.totalorder %s17, 1
    %p35 = por %p33, %p34
    %p36 = scmp.ne.s32.totalorder %s25, %s26
    %p37 = scmp.eq.s32.totalorder %s17, 0
    %p38 = por %p36, %p37
    %p39 = scmp.ne.s32.totalorder %s25, %s26
    %p40 = scmp.eq.s32.totalorder %s18, 1
    %p41 = por %p39, %p40
    %p43 = scmp.ne.s32.totalorder %s26, %s42
    %p44 = scmp.eq.s32.totalorder %s18, 0
    %p45 = por %p43, %p44
    %s47 = sadd.s32 %s46, 1
    %p50 = scmp.eq.s32.totalorder %s12, 1
    %p51 = scmp.ne.s32.totalorder %s46, %s48
    %p52 = scmp.eq.s32.totalorder %s12, 0
    %p53 = por %p51, %p52
    %p54 = scmp.ne.s32.totalorder %s46, %s48
    %p55 = scmp.eq.s32.totalorder %s17, 1
    %p56 = por %p54, %p55
    %p57 = scmp.ne.s32.totalorder %s48, %s49
    %p58 = scmp.eq.s32.totalorder %s17, 0
    %p59 = por %p57, %p58
    %p60 = scmp.ne.s32.totalorder %s48, %s49
    %p61 = scmp.eq.s32.totalorder %s18, 1
    %p62 = por %p60, %p61
    %p64 = scmp.ne.s32.totalorder %s49, %s63
    %p65 = scmp.eq.s32.totalorder %s18, 0
    %p66 = por %p64, %p65
    %s68 = sadd.s32 %s67, 1
    %p71 = scmp.eq.s32.totalorder %s12, 1
    %p72 = scmp.ne.s32.totalorder %s67, %s69
    %p73 = scmp.eq.s32.totalorder %s12, 0
    %p74 = por %p72, %p73
    %p75 = scmp.ne.s32.totalorder %s67, %s69
    %p76 = scmp.eq.s32.totalorder %s17, 1
    %p77 = por %p75, %p76
    %p78 = scmp.ne.s32.totalorder %s69, %s70
    %p79 = scmp.eq.s32.totalorder %s17, 0
    %p80 = por %p78, %p79
    %p81 = scmp.ne.s32.totalorder %s69, %s70
    %p82 = scmp.eq.s32.totalorder %s18, 1
    %p83 = por %p81, %p82
    %p85 = scmp.ne.s32.totalorder %s70, %s84
    %p86 = scmp.eq.s32.totalorder %s18, 0
    %p87 = por %p85, %p86
    %s89 = sadd.s32 %s88, 1
    %p92 = scmp.eq.s32.totalorder %s12, 1
    %p93 = scmp.ne.s32.totalorder %s88, %s90
    %p94 = scmp.eq.s32.totalorder %s12, 0
    %p95 = por %p93, %p94
    %p96 = scmp.ne.s32.totalorder %s88, %s90
    %p97 = scmp.eq.s32.totalorder %s17, 1
    %p98 = por %p96, %p97
    %p99 = scmp.ne.s32.totalorder %s90, %s91
    %p100 = scmp.eq.s32.totalorder %s17, 0
    %p101 = por %p99, %p100
    %p102 = scmp.ne.s32.totalorder %s90, %s91
    %p103 = scmp.eq.s32.totalorder %s18, 1
    %p104 = por %p102, %p103
    %p106 = scmp.ne.s32.totalorder %s91, %s105
    %p107 = scmp.eq.s32.totalorder %s18, 0
    %p108 = por %p106, %p107
    %s110 = sadd.s32 %s109, 1
    %p113 = scmp.eq.s32.totalorder %s12, 1
    %p114 = scmp.ne.s32.totalorder %s109, %s111
    %p115 = scmp.eq.s32.totalorder %s12, 0
    %p116 = por %p114, %p115
    %p117 = scmp.ne.s32.totalorder %s109, %s111
    %p118 = scmp.eq.s32.totalorder %s17, 1
    %p119 = por %p117, %p118
    %p120 = scmp.ne.s32.totalorder %s111, %s112
    %p121 = scmp.eq.s32.totalorder %s17, 0
    %p122 = por %p120, %p121
    %p123 = scmp.ne.s32.totalorder %s111, %s112
    %p124 = scmp.eq.s32.totalorder %s18, 1
    %p125 = por %p123, %p124
    %p127 = scmp.ne.s32.totalorder %s112, %s126
    %p128 = scmp.eq.s32.totalorder %s18, 0
    %p129 = por %p127, %p128
    %s131 = sadd.s32 %s130, 1
    %p134 = scmp.eq.s32.totalorder %s12, 1
    %p135 = scmp.ne.s32.totalorder %s130, %s132
    %p136 = scmp.eq.s32.totalorder %s12, 0
    %p137 = por %p135, %p136
    %p138 = scmp.ne.s32.totalorder %s130, %s132
    %p139 = scmp.eq.s32.totalorder %s17, 1
    %p140 = por %p138, %p139
    %p141 = scmp.ne.s32.totalorder %s132, %s133
    %p142 = scmp.eq.s32.totalorder %s17, 0
    %p143 = por %p141, %p142
    %p144 = scmp.ne.s32.totalorder %s132, %s133
    %p145 = scmp.eq.s32.totalorder %s18, 1
    %p146 = por %p144, %p145
    %p148 = scmp.ne.s32.totalorder %s133, %s147
    %p149 = scmp.eq.s32.totalorder %s18, 0
    %p150 = por %p148, %p149
    %s151 = ssub.s32 %s12, %s19
    %p152 = scmp.eq.s32.totalorder %s151, 0
    %s154 = sadd.s32 %s153, 1
    %s155 = scalar_select %p152, %s153, %s154
    %p158 = pneg %p152
    %p159 = scmp.eq.s32.totalorder %s12, 1
    %p160 = por %p158, %p159
    %p161 = scmp.ne.s32.totalorder %s153, %s156
    %p162 = scmp.eq.s32.totalorder %s12, 0
    %p163 = por %p161, %p162
    %p164 = scmp.ne.s32.totalorder %s153, %s156
    %p165 = scmp.eq.s32.totalorder %s17, 1
    %p166 = por %p164, %p165
    %p167 = scmp.ne.s32.totalorder %s156, %s157
    %p168 = scmp.eq.s32.totalorder %s17, 0
    %p169 = por %p167, %p168
    %p170 = scmp.ne.s32.totalorder %s156, %s157
    %p171 = scmp.eq.s32.totalorder %s18, 1
    %p172 = por %p170, %p171
    %p174 = scmp.ne.s32.totalorder %s157, %s173
    %p175 = scmp.eq.s32.totalorder %s18, 0
    %p176 = por %p174, %p175
    %p177 = scmp.le.s32.totalorder 1, %s12
    %p178 = scmp.lt.s32.totalorder %s12, 3
    %p179 = pnand %p177, %p178
    %p180 = pneg %p179
    // Predicated region
    $region9: #{basic_block_forward.1} parent=5 // pred_check
      _
    $region10: #{basic_block_forward.1} parent=5 // pred_check_branch
      %182 = sbr.rel (%p179) target = $region12
    $region11: #{basic_block_forward.1} parent=5 // pred_region
      %s183 = ssub.s32 %s12, 1
      // Predicated region
      $region13: #{basic_block_forward.1} parent=11 // pred_check
        %p184 = pneg %p59
      $region14: #{basic_block_forward.1} parent=11 // pred_check_branch
        %186 = sbr.rel (%p184) target = $region16
      $region15: #{basic_block_forward.1} parent=11 // pred_region
        _
      $region16: #{basic_block_forward.1} parent=11 // pred_fallthru
        _
      // Predicated region
      $region17: #{basic_block_forward.1} parent=11 // pred_check
        %p187 = pneg %p80
      $region18: #{basic_block_forward.1} parent=11 // pred_check_branch
        %189 = sbr.rel (%p187) target = $region20
      $region19: #{basic_block_forward.1} parent=11 // pred_region
        _
      $region20: #{basic_block_forward.1} parent=11 // pred_fallthru
        _
      // Predicated region
      $region21: #{basic_block_forward.1} parent=11 // pred_check
        %p190 = pneg %p101
      $region22: #{basic_block_forward.1} parent=11 // pred_check_branch
        %192 = sbr.rel (%p190) target = $region24
      $region23: #{basic_block_forward.1} parent=11 // pred_region
        _
      $region24: #{basic_block_forward.1} parent=11 // pred_fallthru
        _
      // Predicated region
      $region25: #{basic_block_forward.1} parent=11 // pred_check
        %p193 = pneg %p122
      $region26: #{basic_block_forward.1} parent=11 // pred_check_branch
        %195 = sbr.rel (%p193) target = $region28
      $region27: #{basic_block_forward.1} parent=11 // pred_region
        _
      $region28: #{basic_block_forward.1} parent=11 // pred_fallthru
        _
      // Predicated region
      $region29: #{basic_block_forward.1} parent=11 // pred_check
        %p196 = pneg %p143
      $region30: #{basic_block_forward.1} parent=11 // pred_check_branch
        %198 = sbr.rel (%p196) target = $region32
      $region31: #{basic_block_forward.1} parent=11 // pred_region
        _
      $region32: #{basic_block_forward.1} parent=11 // pred_fallthru
        _
    $region12: #{basic_block_forward.1} parent=5 // pred_fallthru
      _
    %p199 = scmp.lt.s32.totalorder %s12, 2
    // Predicated region
    $region33: #{basic_block_forward.1} parent=5 // pred_check
      %p200 = pneg %p199
    $region34: #{basic_block_forward.1} parent=5 // pred_check_branch
      %202 = sbr.rel (%p200) target = $region36
    $region35: #{basic_block_forward.1} parent=5 // pred_region
      // Predicated region
      $region37: #{basic_block_forward.1} parent=35 // pred_check
        %p203 = pneg %p32
      $region38: #{basic_block_forward.1} parent=35 // pred_check_branch
        %205 = sbr.rel (%p203) target = $region40
      $region39: #{basic_block_forward.1} parent=35 // pred_region
        %p206 = scmp.lt.s32.totalorder %s12, 1
        %s207 = scalar_select %p206, %s12, 1
        %s208 = smul.addr %s207, 43
        %s209 = smul.addr %s208, 4
        %s210 = scalar_lea.vmem %s0, %s209
      $region40: #{basic_block_forward.1} parent=35 // pred_fallthru
        _
    $region36: #{basic_block_forward.1} parent=5 // pred_fallthru
      _
    %p211 = scmp.le.s32.totalorder 1, %s12
    %p212 = scmp.lt.s32.totalorder %s12, 3
    %p213 = pnand %p211, %p212
    %p214 = pneg %p213
    // Predicated region
    $region41: #{basic_block_forward.1} parent=5 // pred_check
      _
    $region42: #{basic_block_forward.1} parent=5 // pred_check_branch
      %216 = sbr.rel (%p213) target = $region44
    $region43: #{basic_block_forward.1} parent=5 // pred_region
      %s217 = ssub.s32 %s12, 1
      %p218 = scmp.lt.s32.totalorder %s17, 1
      %s219 = scalar_select %p218, %s17, 1
      %s220 = smul.addr %s219, 43
      %s221 = smul.addr %s220, 4
      %s222 = scalar_lea.vmem %s0, %s221
      %p223 = pneg %p38
      %p224 = pneg %p35
      %p225 = pneg %p59
      %p226 = pneg %p56
      %p227 = pneg %p80
      %p228 = pneg %p77
      %p229 = pneg %p101
      %p230 = pneg %p98
      %p231 = pneg %p122
      %p232 = pneg %p119
      %p233 = pneg %p143
      %p234 = pneg %p140
      %p235 = pneg %p169
      %p236 = pneg %p166
      %p237 = scmp.lt.s32.totalorder %s17, 1
      %s238 = scalar_select %p237, %s17, 1
      %s239 = smul.addr %s238, 36
      %s240 = smul.addr %s239, 8
      %s241 = scalar_lea.vmem %s6, %s240
      %p242 = scmp.lt.s32.totalorder %s17, 1
      %s243 = scalar_select %p242, %s17, 1
      %s244 = smul.addr %s243, 43
      %s245 = smul.addr %s244, 4
      %s246 = scalar_lea.vmem %s0, %s245
      %p247 = scmp.lt.s32.totalorder %s17, 1
      %s248 = scalar_select %p247, %s17, 1
      %s249 = smul.addr %s248, 36
      %s250 = smul.addr %s249, 8
      %s251 = scalar_lea.vmem %s6, %s250
      %v253 = vld [vmem:[%s246] sm:$0xf]
      %v254 = vld [vmem:[%s246 + $0x4] sm:$0xf]
      %v255 = vld [vmem:[%s246 + $0x8] sm:$0xf]
      %v256 = vld [vmem:[%s246 + $0xc] sm:$0xf]
      %v257 = vld [vmem:[%s246 + $0x10] sm:$0xf]
      %v258 = vld [vmem:[%s246 + $0x14] sm:$0xf]
      %v259 = vld [vmem:[%s246 + $0x18] sm:$0xf]
      %v260 = vld [vmem:[%s246 + $0x1c] sm:$0xf]
      %v261 = vld [vmem:[%s246 + $0x20] sm:$0xf]
      %v262 = vld [vmem:[%s246 + $0x24] sm:$0xf]
      %v263 = vld [vmem:[%s246 + $0x28] sm:$0xf]
      %v264 = vld [vmem:[%s246 + $0x2c] sm:$0xf]
      %v265 = vld [vmem:[%s246 + $0x30] sm:$0xf]
      %v266 = vld [vmem:[%s246 + $0x34] sm:$0xf]
      %v267 = vld [vmem:[%s246 + $0x38] sm:$0xf]
      %v268 = vld [vmem:[%s246 + $0x3c] sm:$0xf]
      %v269 = vld [vmem:[%s246 + $0x40] sm:$0xf]
      %v270 = vld [vmem:[%s246 + $0x44] sm:$0xf]
      %v271 = vld [vmem:[%s246 + $0x48] sm:$0xf]
      %v272 = vld [vmem:[%s246 + $0x4c] sm:$0xf]
      %v273 = vld [vmem:[%s246 + $0x50] sm:$0xf]
      %v274 = vld [vmem:[%s246 + $0x54] sm:$0xf]
      %v275 = vld [vmem:[%s246 + $0x58] sm:$0xf]
      %v276 = vld [vmem:[%s246 + $0x5c] sm:$0xf]
      %v277 = vld [vmem:[%s246 + $0x60] sm:$0xf]
      %v278 = vld [vmem:[%s246 + $0x64] sm:$0xf]
      %v279 = vld [vmem:[%s246 + $0x68] sm:$0xf]
      %v280 = vld [vmem:[%s246 + $0x6c] sm:$0xf]
      %v281 = vld [vmem:[%s246 + $0x70] sm:$0xf]
      %v282 = vld [vmem:[%s246 + $0x74] sm:$0xf]
      %v283 = vld [vmem:[%s246 + $0x78] sm:$0xf]
      %v284 = vld [vmem:[%s246 + $0x7c] sm:$0xf]
      %v285 = vld [vmem:[%s246 + $0x80] sm:$0xf]
      %v286 = vld [vmem:[%s246 + $0x84] sm:$0xf]
      %v287 = vld [vmem:[%s246 + $0x88] sm:$0xf]
      %v288 = vld [vmem:[%s246 + $0x8c] sm:$0xf]
      %v289 = vld [vmem:[%s246 + $0x90] sm:$0xf]
      %v290 = vld [vmem:[%s246 + $0x94] sm:$0xf]
      %v291 = vld [vmem:[%s246 + $0x98] sm:$0xf]
      %v292 = vld [vmem:[%s246 + $0x9c] sm:$0xf]
      %v293 = vld [vmem:[%s246 + $0xa0] sm:$0xf]
      %v294 = vld [vmem:[%s246 + $0xa4] sm:$0xf]
      %v295 = vld [vmem:[%s246 + $0xa8] sm:$0x7]
      %v296 = vunpack.c.l.bf16 %v253
      %v297 = vunpack.c.l.bf16 %v254
      %v298 = vunpack.c.l.bf16 %v255
      %v299 = vunpack.c.l.bf16 %v256
      %v300 = vunpack.c.l.bf16 %v257
      %v301 = vunpack.c.l.bf16 %v258
      %v302 = vunpack.c.l.bf16 %v259
      %v303 = vunpack.c.l.bf16 %v260
      %v304 = vunpack.c.l.bf16 %v261
      %v305 = vunpack.c.l.bf16 %v262
      %v306 = vunpack.c.l.bf16 %v263
      %v307 = vunpack.c.l.bf16 %v264
      %v308 = vunpack.c.l.bf16 %v265
      %v309 = vunpack.c.l.bf16 %v266
      %v310 = vunpack.c.l.bf16 %v267
      %v311 = vunpack.c.l.bf16 %v268
      %v312 = vunpack.c.l.bf16 %v269
      %v313 = vunpack.c.l.bf16 %v270
      %v314 = vunpack.c.l.bf16 %v271
      %v315 = vunpack.c.l.bf16 %v272
      %v316 = vunpack.c.l.bf16 %v273
      %v317 = vunpack.c.l.bf16 %v274
      %v318 = vunpack.c.l.bf16 %v275
      %v319 = vunpack.c.l.bf16 %v276
      %v320 = vunpack.c.l.bf16 %v277
      %v321 = vunpack.c.l.bf16 %v278
      %v322 = vunpack.c.l.bf16 %v279
      %v323 = vunpack.c.l.bf16 %v280
      %v324 = vunpack.c.l.bf16 %v281
      %v325 = vunpack.c.l.bf16 %v282
      %v326 = vunpack.c.l.bf16 %v283
      %v327 = vunpack.c.l.bf16 %v284
      %v328 = vunpack.c.l.bf16 %v285
      %v329 = vunpack.c.l.bf16 %v286
      %v330 = vunpack.c.l.bf16 %v287
      %v331 = vunpack.c.l.bf16 %v288
      %v332 = vunpack.c.l.bf16 %v289
      %v333 = vunpack.c.l.bf16 %v290
      %v334 = vunpack.c.l.bf16 %v291
      %v335 = vunpack.c.l.bf16 %v292
      %v336 = vunpack.c.l.bf16 %v293
      %v337 = vunpack.c.l.bf16 %v294
      %v338 = vunpack.c.l.bf16 %v295
      %vm339 = vcmask 31744
      %340 = vst.msk [vmem:[#allocation4] sm:$0xff] %vm339, %v296
      %341 = vst.msk [vmem:[#allocation4 + $0x8] sm:$0xff] %vm339, %v297
      %342 = vst.msk [vmem:[#allocation4 + $0x10] sm:$0xff] %vm339, %v298
      %343 = vst.msk [vmem:[#allocation4 + $0x18] sm:$0xff] %vm339, %v299
      %344 = vst.msk [vmem:[#allocation4 + $0x20] sm:$0xff] %vm339, %v300
      %345 = vst.msk [vmem:[#allocation4 + $0x28] sm:$0xff] %vm339, %v301
      %346 = vst.msk [vmem:[#allocation4 + $0x30] sm:$0xff] %vm339, %v302
      %347 = vst.msk [vmem:[#allocation4 + $0x38] sm:$0xff] %vm339, %v303
      %348 = vst.msk [vmem:[#allocation4 + $0x40] sm:$0xff] %vm339, %v304
      %349 = vst.msk [vmem:[#allocation4 + $0x48] sm:$0xff] %vm339, %v305
      %350 = vst.msk [vmem:[#allocation4 + $0x50] sm:$0xff] %vm339, %v306
      %351 = vst.msk [vmem:[#allocation4 + $0x58] sm:$0xff] %vm339, %v307
      %352 = vst.msk [vmem:[#allocation4 + $0x60] sm:$0xff] %vm339, %v308
      %353 = vst.msk [vmem:[#allocation4 + $0x68] sm:$0xff] %vm339, %v309
      %354 = vst.msk [vmem:[#allocation4 + $0x70] sm:$0xff] %vm339, %v310
      %355 = vst.msk [vmem:[#allocation4 + $0x78] sm:$0xff] %vm339, %v311
      %356 = vst.msk [vmem:[#allocation4 + $0x80] sm:$0xff] %vm339, %v312
      %357 = vst.msk [vmem:[#allocation4 + $0x88] sm:$0xff] %vm339, %v313
      %358 = vst.msk [vmem:[#allocation4 + $0x90] sm:$0xff] %vm339, %v314
      %359 = vst.msk [vmem:[#allocation4 + $0x98] sm:$0xff] %vm339, %v315
      %360 = vst.msk [vmem:[#allocation4 + $0xa0] sm:$0xff] %vm339, %v316
      %361 = vst.msk [vmem:[#allocation4 + $0xa8] sm:$0xff] %vm339, %v317
      %362 = vst.msk [vmem:[#allocation4 + $0xb0] sm:$0xff] %vm339, %v318
      %363 = vst.msk [vmem:[#allocation4 + $0xb8] sm:$0xff] %vm339, %v319
      %364 = vst.msk [vmem:[#allocation4 + $0xc0] sm:$0xff] %vm339, %v320
      %365 = vst.msk [vmem:[#allocation4 + $0xc8] sm:$0xff] %vm339, %v321
      %366 = vst.msk [vmem:[#allocation4 + $0xd0] sm:$0xff] %vm339, %v322
      %367 = vst.msk [vmem:[#allocation4 + $0xd8] sm:$0xff] %vm339, %v323
      %368 = vst.msk [vmem:[#allocation4 + $0xe0] sm:$0xff] %vm339, %v324
      %369 = vst.msk [vmem:[#allocation4 + $0xe8] sm:$0xff] %vm339, %v325
      %370 = vst.msk [vmem:[#allocation4 + $0xf0] sm:$0xff] %vm339, %v326
      %371 = vst.msk [vmem:[#allocation4 + $0xf8] sm:$0xff] %vm339, %v327
      %372 = vst.msk [vmem:[#allocation4 + $0x100] sm:$0xff] %vm339, %v328
      %373 = vst.msk [vmem:[#allocation4 + $0x108] sm:$0xff] %vm339, %v329
      %374 = vst.msk [vmem:[#allocation4 + $0x110] sm:$0xff] %vm339, %v330
      %375 = vst.msk [vmem:[#allocation4 + $0x118] sm:$0xff] %vm339, %v331
      %376 = vst.msk [vmem:[#allocation4 + $0x120] sm:$0xff] %vm339, %v332
      %377 = vst.msk [vmem:[#allocation4 + $0x128] sm:$0xff] %vm339, %v333
      %378 = vst.msk [vmem:[#allocation4 + $0x130] sm:$0xff] %vm339, %v334
      %379 = vst.msk [vmem:[#allocation4 + $0x138] sm:$0xff] %vm339, %v335
      %380 = vst.msk [vmem:[#allocation4 + $0x140] sm:$0xff] %vm339, %v336
      %381 = vst.msk [vmem:[#allocation4 + $0x148] sm:$0xff] %vm339, %v337
      %vm382 = vcmask 29696
      %383 = vst.msk [vmem:[#allocation4 + $0x150] sm:$0x3f] %vm382, %v338
      %384 = vst.msk [vmem:[#allocation2] sm:$0xff] %vm339, 0.0
      %385 = vst.msk [vmem:[#allocation2 + $0x8] sm:$0xff] %vm339, 0.0
      %386 = vst.msk [vmem:[#allocation2 + $0x10] sm:$0xff] %vm339, 0.0
      %387 = vst.msk [vmem:[#allocation2 + $0x18] sm:$0xff] %vm339, 0.0
      %388 = vst.msk [vmem:[#allocation2 + $0x20] sm:$0xff] %vm339, 0.0
      %389 = vst.msk [vmem:[#allocation2 + $0x28] sm:$0xff] %vm339, 0.0
      %390 = vst.msk [vmem:[#allocation2 + $0x30] sm:$0xff] %vm339, 0.0
      %391 = vst.msk [vmem:[#allocation2 + $0x38] sm:$0xff] %vm339, 0.0
      %392 = vst.msk [vmem:[#allocation2 + $0x40] sm:$0xff] %vm339, 0.0
      %393 = vst.msk [vmem:[#allocation2 + $0x48] sm:$0xff] %vm339, 0.0
      %394 = vst.msk [vmem:[#allocation2 + $0x50] sm:$0xff] %vm339, 0.0
      %395 = vst.msk [vmem:[#allocation2 + $0x58] sm:$0xff] %vm339, 0.0
      %396 = vst.msk [vmem:[#allocation2 + $0x60] sm:$0xff] %vm339, 0.0
      %397 = vst.msk [vmem:[#allocation2 + $0x68] sm:$0xff] %vm339, 0.0
      %398 = vst.msk [vmem:[#allocation2 + $0x70] sm:$0xff] %vm339, 0.0
      %399 = vst.msk [vmem:[#allocation2 + $0x78] sm:$0xff] %vm339, 0.0
      %400 = vst.msk [vmem:[#allocation2 + $0x80] sm:$0xff] %vm339, 0.0
      %401 = vst.msk [vmem:[#allocation2 + $0x88] sm:$0xff] %vm339, 0.0
      %402 = vst.msk [vmem:[#allocation2 + $0x90] sm:$0xff] %vm339, 0.0
      %403 = vst.msk [vmem:[#allocation2 + $0x98] sm:$0xff] %vm339, 0.0
      %404 = vst.msk [vmem:[#allocation2 + $0xa0] sm:$0xff] %vm339, 0.0
      %405 = vst.msk [vmem:[#allocation2 + $0xa8] sm:$0xff] %vm339, 0.0
      %406 = vst.msk [vmem:[#allocation2 + $0xb0] sm:$0xff] %vm339, 0.0
      %407 = vst.msk [vmem:[#allocation2 + $0xb8] sm:$0xff] %vm339, 0.0
      %408 = vst.msk [vmem:[#allocation2 + $0xc0] sm:$0xff] %vm339, 0.0
      %409 = vst.msk [vmem:[#allocation2 + $0xc8] sm:$0xff] %vm339, 0.0
      %410 = vst.msk [vmem:[#allocation2 + $0xd0] sm:$0xff] %vm339, 0.0
      %411 = vst.msk [vmem:[#allocation2 + $0xd8] sm:$0xff] %vm339, 0.0
      %412 = vst.msk [vmem:[#allocation2 + $0xe0] sm:$0xff] %vm339, 0.0
      %413 = vst.msk [vmem:[#allocation2 + $0xe8] sm:$0xff] %vm339, 0.0
      %414 = vst.msk [vmem:[#allocation2 + $0xf0] sm:$0xff] %vm339, 0.0
      %415 = vst.msk [vmem:[#allocation2 + $0xf8] sm:$0xff] %vm339, 0.0
      %416 = vst.msk [vmem:[#allocation2 + $0x100] sm:$0xff] %vm339, 0.0
      %417 = vst.msk [vmem:[#allocation2 + $0x108] sm:$0xff] %vm339, 0.0
      %418 = vst.msk [vmem:[#allocation2 + $0x110] sm:$0xff] %vm339, 0.0
      %419 = vst.msk [vmem:[#allocation2 + $0x118] sm:$0xff] %vm339, 0.0
      %v420 = vld [vmem:[#allocation4] sm:$0xff]
      %v421 = vld [vmem:[#allocation4 + $0x8] sm:$0xff]
      %v422 = vld [vmem:[#allocation4 + $0x10] sm:$0xff]
      %v423 = vld [vmem:[#allocation4 + $0x18] sm:$0xff]
      %v424 = vld [vmem:[#allocation4 + $0x20] sm:$0xff]
      %v425 = vld [vmem:[#allocation4 + $0x28] sm:$0xff]
      %v426 = vld [vmem:[#allocation4 + $0x30] sm:$0xff]
      %v427 = vld [vmem:[#allocation4 + $0x38] sm:$0xff]
      %v428 = vld [vmem:[#allocation4 + $0x40] sm:$0xff]
      %v429 = vld [vmem:[#allocation4 + $0x48] sm:$0xff]
      %v430 = vld [vmem:[#allocation4 + $0x50] sm:$0xff]
      %v431 = vld [vmem:[#allocation4 + $0x58] sm:$0xff]
      %v432 = vld [vmem:[#allocation4 + $0x60] sm:$0xff]
      %v433 = vld [vmem:[#allocation4 + $0x68] sm:$0xff]
      %v434 = vld [vmem:[#allocation4 + $0x70] sm:$0xff]
      %v435 = vld [vmem:[#allocation4 + $0x78] sm:$0xff]
      %v436 = vld [vmem:[#allocation4 + $0x80] sm:$0xff]
      %v437 = vld [vmem:[#allocation4 + $0x88] sm:$0xff]
      %v438 = vld [vmem:[#allocation4 + $0x90] sm:$0xff]
      %v439 = vld [vmem:[#allocation4 + $0x98] sm:$0xff]
      %v440 = vld [vmem:[#allocation4 + $0xa0] sm:$0xff]
      %v441 = vld [vmem:[#allocation4 + $0xa8] sm:$0xff]
      %v442 = vld [vmem:[#allocation4 + $0xb0] sm:$0xff]
      %v443 = vld [vmem:[#allocation4 + $0xb8] sm:$0xff]
      %v444 = vld [vmem:[#allocation4 + $0xc0] sm:$0xff]
      %v445 = vld [vmem:[#allocation4 + $0xc8] sm:$0xff]
      %v446 = vld [vmem:[#allocation4 + $0xd0] sm:$0xff]
      %v447 = vld [vmem:[#allocation4 + $0xd8] sm:$0xff]
      %v448 = vld [vmem:[#allocation4 + $0xe0] sm:$0xff]
      %v449 = vld [vmem:[#allocation4 + $0xe8] sm:$0xff]
      %v450 = vld [vmem:[#allocation4 + $0xf0] sm:$0xff]
      %v451 = vld [vmem:[#allocation4 + $0xf8] sm:$0xff]
      %v452 = vld [vmem:[#allocation4 + $0x100] sm:$0xff]
      %v453 = vld [vmem:[#allocation4 + $0x108] sm:$0xff]
      %v454 = vld [vmem:[#allocation4 + $0x110] sm:$0xff]
      %v455 = vld [vmem:[#allocation4 + $0x118] sm:$0xff]
      %v456 = vpack.c.bf16 %v421, %v420
      %v457 = vpack.c.bf16 %v423, %v422
      %v458 = vpack.c.bf16 %v425, %v424
      %v459 = vpack.c.bf16 %v427, %v426
      %v460 = vpack.c.bf16 %v429, %v428
      %v461 = vpack.c.bf16 %v431, %v430
      %v462 = vpack.c.bf16 %v433, %v432
      %v463 = vpack.c.bf16 %v435, %v434
      %v464 = vpack.c.bf16 %v437, %v436
      %v465 = vpack.c.bf16 %v439, %v438
      %v466 = vpack.c.bf16 %v441, %v440
      %v467 = vpack.c.bf16 %v443, %v442
      %v468 = vpack.c.bf16 %v445, %v444
      %v469 = vpack.c.bf16 %v447, %v446
      %v470 = vpack.c.bf16 %v449, %v448
      %v471 = vpack.c.bf16 %v451, %v450
      %v472 = vpack.c.bf16 %v453, %v452
      %v473 = vpack.c.bf16 %v455, %v454
      %v474 = vld [vmem:[#allocation2] sm:$0xff]
      %v475 = vld [vmem:[#allocation2 + $0x8] sm:$0xff]
      %v476 = vld [vmem:[#allocation2 + $0x10] sm:$0xff]
      %v477 = vld [vmem:[#allocation2 + $0x18] sm:$0xff]
      %v478 = vld [vmem:[#allocation2 + $0x20] sm:$0xff]
      %v479 = vld [vmem:[#allocation2 + $0x28] sm:$0xff]
      %v480 = vld [vmem:[#allocation2 + $0x30] sm:$0xff]
      %v481 = vld [vmem:[#allocation2 + $0x38] sm:$0xff]
      %v482 = vld [vmem:[#allocation2 + $0x40] sm:$0xff]
      %v483 = vld [vmem:[#allocation2 + $0x48] sm:$0xff]
      %v484 = vld [vmem:[#allocation2 + $0x50] sm:$0xff]
      %v485 = vld [vmem:[#allocation2 + $0x58] sm:$0xff]
      %v486 = vld [vmem:[#allocation2 + $0x60] sm:$0xff]
      %v487 = vld [vmem:[#allocation2 + $0x68] sm:$0xff]
      %v488 = vld [vmem:[#allocation2 + $0x70] sm:$0xff]
      %v489 = vld [vmem:[#allocation2 + $0x78] sm:$0xff]
      %v490 = vld [vmem:[#allocation2 + $0x80] sm:$0xff]
      %v491 = vld [vmem:[#allocation2 + $0x88] sm:$0xff]
      %v492 = vld [vmem:[#allocation2 + $0x90] sm:$0xff]
      %v493 = vld [vmem:[#allocation2 + $0x98] sm:$0xff]
      %v494 = vld [vmem:[#allocation2 + $0xa0] sm:$0xff]
      %v495 = vld [vmem:[#allocation2 + $0xa8] sm:$0xff]
      %v496 = vld [vmem:[#allocation2 + $0xb0] sm:$0xff]
      %v497 = vld [vmem:[#allocation2 + $0xb8] sm:$0xff]
      %v498 = vld [vmem:[#allocation2 + $0xc0] sm:$0xff]
      %v499 = vld [vmem:[#allocation2 + $0xc8] sm:$0xff]
      %v500 = vld [vmem:[#allocation2 + $0xd0] sm:$0xff]
      %v501 = vld [vmem:[#allocation2 + $0xd8] sm:$0xff]
      %v502 = vld [vmem:[#allocation2 + $0xe0] sm:$0xff]
      %v503 = vld [vmem:[#allocation2 + $0xe8] sm:$0xff]
      %v504 = vld [vmem:[#allocation2 + $0xf0] sm:$0xff]
      %v505 = vld [vmem:[#allocation2 + $0xf8] sm:$0xff]
      %v506 = vld [vmem:[#allocation2 + $0x100] sm:$0xff]
      %v507 = vld [vmem:[#allocation2 + $0x108] sm:$0xff]
      %v508 = vld [vmem:[#allocation2 + $0x110] sm:$0xff]
      %v509 = vld [vmem:[#allocation2 + $0x118] sm:$0xff]
      %v510 = vld [vmem:[%s1] sm:$0x3]
      %v512 = vsel %vm339, %v456, 0
      %v515 = vsel %vm339, %v457, 0
      %v518 = vsel %vm339, %v458, 0
      %v521 = vsel %vm339, %v459, 0
      %v524 = vsel %vm339, %v460, 0
      %v527 = vsel %vm339, %v461, 0
      %v530 = vsel %vm339, %v462, 0
      %v533 = vsel %vm339, %v463, 0
      %v536 = vsel %vm339, %v464, 0
      %v539 = vsel %vm339, %v465, 0
      %v542 = vsel %vm339, %v466, 0
      %v545 = vsel %vm339, %v467, 0
      %v548 = vsel %vm339, %v468, 0
      %v551 = vsel %vm339, %v469, 0
      %v554 = vsel %vm339, %v470, 0
      %v557 = vsel %vm339, %v471, 0
      %v560 = vsel %vm339, %v472, 0
      %v563 = vsel %vm339, %v473, 0
      %vm565 = vcmask 1041408
      %v567 = vsel %vm565, %v510, 0
      %569 = vmatprep.subr.bf16.mxu0 0
      %570 = vmatpush1.bf16.msra.mxu0 0
      %571 = vmatprep.subr.bf16.mxu0 0
      %572 = vmatpush1.bf16.msra.mxu0 0
      %573 = vmatprep.subr.bf16.mxu0 0
      %574 = vmatpush1.bf16.msra.mxu0 0
      %575 = vmatprep.subr.bf16.mxu0 0
      %576 = vmatpush1.bf16.msra.mxu0 0
      %577 = vmatprep.subr.bf16.mxu0 0
      %578 = vmatpush1.bf16.msra.mxu0 0
      %579 = vmatprep.subr.bf16.mxu0 0
      %580 = vmatpush1.bf16.msra.mxu0 0
      %581 = vmatprep.subr.bf16.mxu0 0
      %582 = vmatpush1.bf16.msra.mxu0 0
      %583 = vmatprep.subr.bf16.mxu0 0
      %584 = vmatpush1.bf16.msra.mxu0 %v567
      %585 = vmatprep.subr.bf16.mxu0 0
      %586 = vmatpush2.bf16.msra.mxu0 0
      %587 = vmatprep.subr.bf16.mxu0 0
      %588 = vmatpush2.bf16.msra.mxu0 0
      %589 = vmatprep.subr.bf16.mxu0 0
      %590 = vmatpush2.bf16.msra.mxu0 0
      %591 = vmatprep.subr.bf16.mxu0 0
      %592 = vmatpush2.bf16.msra.mxu0 0
      %593 = vmatprep.subr.bf16.mxu0 0
      %594 = vmatpush2.bf16.msra.mxu0 0
      %595 = vmatprep.subr.bf16.mxu0 0
      %596 = vmatpush2.bf16.msra.mxu0 0
      %597 = vmatprep.subr.bf16.mxu0 0
      %598 = vmatpush2.bf16.msra.mxu0 0
      %599 = vmatprep.subr.bf16.mxu0 0
      %600 = vmatpush2.bf16.msra.mxu0 0
      %601 = vmatprep.mubr.bf16.mxu0 0
      %602 = vmatmul.mubr.bf16.gmra.mxu0 %v512
      %v603 = vpop.f32.mrf.mxu0
      %v604 = vadd.f32 0.0, %v603
      %v605 = vpop.f32.mrf.mxu0
      %v606 = vpop.f32.mrf.mxu0
      %v607 = vadd.f32 0.0, %v606
      %v608 = vpop.f32.mrf.mxu0
      %609 = vmatprep.mubr.bf16.mxu0 0
      %610 = vmatmul.mubr.bf16.gmra.mxu0 %v515
      %v611 = vpop.f32.mrf.mxu0
      %v612 = vadd.f32 0.0, %v611
      %v613 = vpop.f32.mrf.mxu0
      %v614 = vpop.f32.mrf.mxu0
      %v615 = vadd.f32 0.0, %v614
      %v616 = vpop.f32.mrf.mxu0
      %617 = vmatprep.mubr.bf16.mxu0 0
      %618 = vmatmul.mubr.bf16.gmra.mxu0 %v518
      %v619 = vpop.f32.mrf.mxu0
      %v620 = vadd.f32 0.0, %v619
      %v621 = vpop.f32.mrf.mxu0
      %v622 = vpop.f32.mrf.mxu0
      %v623 = vadd.f32 0.0, %v622
      %v624 = vpop.f32.mrf.mxu0
      %625 = vmatprep.mubr.bf16.mxu0 0
      %626 = vmatmul.mubr.bf16.gmra.mxu0 %v521
      %v627 = vpop.f32.mrf.mxu0
      %v628 = vadd.f32 0.0, %v627
      %v629 = vpop.f32.mrf.mxu0
      %v630 = vpop.f32.mrf.mxu0
      %v631 = vadd.f32 0.0, %v630
      %v632 = vpop.f32.mrf.mxu0
      %633 = vmatprep.mubr.bf16.mxu0 0
      %634 = vmatmul.mubr.bf16.gmra.mxu0 %v524
      %v635 = vpop.f32.mrf.mxu0
      %v636 = vadd.f32 0.0, %v635
      %v637 = vpop.f32.mrf.mxu0
      %v638 = vpop.f32.mrf.mxu0
      %v639 = vadd.f32 0.0, %v638
      %v640 = vpop.f32.mrf.mxu0
      %641 = vmatprep.mubr.bf16.mxu0 0
      %642 = vmatmul.mubr.bf16.gmra.mxu0 %v527
      %v643 = vpop.f32.mrf.mxu0
      %v644 = vadd.f32 0.0, %v643
      %v645 = vpop.f32.mrf.mxu0
      %v646 = vpop.f32.mrf.mxu0
      %v647 = vadd.f32 0.0, %v646
      %v648 = vpop.f32.mrf.mxu0
      %649 = vmatprep.mubr.bf16.mxu0 0
      %650 = vmatmul.mubr.bf16.gmra.mxu0 %v530
      %v651 = vpop.f32.mrf.mxu0
      %v652 = vadd.f32 0.0, %v651
      %v653 = vpop.f32.mrf.mxu0
      %v654 = vpop.f32.mrf.mxu0
      %v655 = vadd.f32 0.0, %v654
      %v656 = vpop.f32.mrf.mxu0
      %657 = vmatprep.mubr.bf16.mxu0 0
      %658 = vmatmul.mubr.bf16.gmra.mxu0 %v533
      %v659 = vpop.f32.mrf.mxu0
      %v660 = vadd.f32 0.0, %v659
      %v661 = vpop.f32.mrf.mxu0
      %v662 = vpop.f32.mrf.mxu0
      %v663 = vadd.f32 0.0, %v662
      %v664 = vpop.f32.mrf.mxu0
      %665 = vmatprep.mubr.bf16.mxu0 0
      %666 = vmatmul.mubr.bf16.gmra.mxu0 %v536
      %v667 = vpop.f32.mrf.mxu0
      %v668 = vadd.f32 0.0, %v667
      %v669 = vpop.f32.mrf.mxu0
      %v670 = vpop.f32.mrf.mxu0
      %v671 = vadd.f32 0.0, %v670
      %v672 = vpop.f32.mrf.mxu0
      %673 = vmatprep.mubr.bf16.mxu0 0
      %674 = vmatmul.mubr.bf16.gmra.mxu0 %v539
      %v675 = vpop.f32.mrf.mxu0
      %v676 = vadd.f32 0.0, %v675
      %v677 = vpop.f32.mrf.mxu0
      %v678 = vpop.f32.mrf.mxu0
      %v679 = vadd.f32 0.0, %v678
      %v680 = vpop.f32.mrf.mxu0
      %681 = vmatprep.mubr.bf16.mxu0 0
      %682 = vmatmul.mubr.bf16.gmra.mxu0 %v542
      %v683 = vpop.f32.mrf.mxu0
      %v684 = vadd.f32 0.0, %v683
      %v685 = vpop.f32.mrf.mxu0
      %v686 = vpop.f32.mrf.mxu0
      %v687 = vadd.f32 0.0, %v686
      %v688 = vpop.f32.mrf.mxu0
      %689 = vmatprep.mubr.bf16.mxu0 0
      %690 = vmatmul.mubr.bf16.gmra.mxu0 %v545
      %v691 = vpop.f32.mrf.mxu0
      %v692 = vadd.f32 0.0, %v691
      %v693 = vpop.f32.mrf.mxu0
      %v694 = vpop.f32.mrf.mxu0
      %v695 = vadd.f32 0.0, %v694
      %v696 = vpop.f32.mrf.mxu0
      %697 = vmatprep.mubr.bf16.mxu0 0
      %698 = vmatmul.mubr.bf16.gmra.mxu0 %v548
      %v699 = vpop.f32.mrf.mxu0
      %v700 = vadd.f32 0.0, %v699
      %v701 = vpop.f32.mrf.mxu0
      %v702 = vpop.f32.mrf.mxu0
      %v703 = vadd.f32 0.0, %v702
      %v704 = vpop.f32.mrf.mxu0
      %705 = vmatprep.mubr.bf16.mxu0 0
      %706 = vmatmul.mubr.bf16.gmra.mxu0 %v551
      %v707 = vpop.f32.mrf.mxu0
      %v708 = vadd.f32 0.0, %v707
      %v709 = vpop.f32.mrf.mxu0
      %v710 = vpop.f32.mrf.mxu0
      %v711 = vadd.f32 0.0, %v710
      %v712 = vpop.f32.mrf.mxu0
      %713 = vmatprep.mubr.bf16.mxu0 0
      %714 = vmatmul.mubr.bf16.gmra.mxu0 %v554
      %v715 = vpop.f32.mrf.mxu0
      %v716 = vadd.f32 0.0, %v715
      %v717 = vpop.f32.mrf.mxu0
      %v718 = vpop.f32.mrf.mxu0
      %v719 = vadd.f32 0.0, %v718
      %v720 = vpop.f32.mrf.mxu0
      %721 = vmatprep.mubr.bf16.mxu0 0
      %722 = vmatmul.mubr.bf16.gmra.mxu0 %v557
      %v723 = vpop.f32.mrf.mxu0
      %v724 = vadd.f32 0.0, %v723
      %v725 = vpop.f32.mrf.mxu0
      %v726 = vpop.f32.mrf.mxu0
      %v727 = vadd.f32 0.0, %v726
      %v728 = vpop.f32.mrf.mxu0
      %729 = vmatprep.mubr.bf16.mxu0 0
      %730 = vmatmul.mubr.bf16.gmra.mxu0 %v560
      %v731 = vpop.f32.mrf.mxu0
      %v732 = vadd.f32 0.0, %v731
      %v733 = vpop.f32.mrf.mxu0
      %v734 = vpop.f32.mrf.mxu0
      %v735 = vadd.f32 0.0, %v734
      %v736 = vpop.f32.mrf.mxu0
      %737 = vmatprep.mubr.bf16.mxu0 0
      %738 = vmatmul.mubr.bf16.gmra.mxu0 %v563
      %v739 = vpop.f32.mrf.mxu0
      %v740 = vadd.f32 0.0, %v739
      %v741 = vpop.f32.mrf.mxu0
      %v742 = vpop.f32.mrf.mxu0
      %v743 = vadd.f32 0.0, %v742
      %v744 = vpop.f32.mrf.mxu0
      %745 = vdwg.mxu0
      %v746 = vadd.f32 %v474, %v604
      %v747 = vadd.f32 %v475, %v607
      %v748 = vadd.f32 %v476, %v612
      %v749 = vadd.f32 %v477, %v615
      %v750 = vadd.f32 %v478, %v620
      %v751 = vadd.f32 %v479, %v623
      %v752 = vadd.f32 %v480, %v628
      %v753 = vadd.f32 %v481, %v631
      %v754 = vadd.f32 %v482, %v636
      %v755 = vadd.f32 %v483, %v639
      %v756 = vadd.f32 %v484, %v644
      %v757 = vadd.f32 %v485, %v647
      %v758 = vadd.f32 %v486, %v652
      %v759 = vadd.f32 %v487, %v655
      %v760 = vadd.f32 %v488, %v660
      %v761 = vadd.f32 %v489, %v663
      %v762 = vadd.f32 %v490, %v668
      %v763 = vadd.f32 %v491, %v671
      %v764 = vadd.f32 %v492, %v676
      %v765 = vadd.f32 %v493, %v679
      %v766 = vadd.f32 %v494, %v684
      %v767 = vadd.f32 %v495, %v687
      %v768 = vadd.f32 %v496, %v692
      %v769 = vadd.f32 %v497, %v695
      %v770 = vadd.f32 %v498, %v700
      %v771 = vadd.f32 %v499, %v703
      %v772 = vadd.f32 %v500, %v708
      %v773 = vadd.f32 %v501, %v711
      %v774 = vadd.f32 %v502, %v716
      %v775 = vadd.f32 %v503, %v719
      %v776 = vadd.f32 %v504, %v724
      %v777 = vadd.f32 %v505, %v727
      %v778 = vadd.f32 %v506, %v732
      %v779 = vadd.f32 %v507, %v735
      %v780 = vadd.f32 %v508, %v740
      %v781 = vadd.f32 %v509, %v743
      %782 = vst.msk [vmem:[#allocation2] sm:$0xff] %vm339, %v746
      %783 = vst.msk [vmem:[#allocation2 + $0x8] sm:$0xff] %vm339, %v747
      %784 = vst.msk [vmem:[#allocation2 + $0x10] sm:$0xff] %vm339, %v748
      %785 = vst.msk [vmem:[#allocation2 + $0x18] sm:$0xff] %vm339, %v749
      %786 = vst.msk [vmem:[#allocation2 + $0x20] sm:$0xff] %vm339, %v750
      %787 = vst.msk [vmem:[#allocation2 + $0x28] sm:$0xff] %vm339, %v751
      %788 = vst.msk [vmem:[#allocation2 + $0x30] sm:$0xff] %vm339, %v752
      %789 = vst.msk [vmem:[#allocation2 + $0x38] sm:$0xff] %vm339, %v753
      %790 = vst.msk [vmem:[#allocation2 + $0x40] sm:$0xff] %vm339, %v754
      %791 = vst.msk [vmem:[#allocation2 + $0x48] sm:$0xff] %vm339, %v755
      %792 = vst.msk [vmem:[#allocation2 + $0x50] sm:$0xff] %vm339, %v756
      %793 = vst.msk [vmem:[#allocation2 + $0x58] sm:$0xff] %vm339, %v757
      %794 = vst.msk [vmem:[#allocation2 + $0x60] sm:$0xff] %vm339, %v758
      %795 = vst.msk [vmem:[#allocation2 + $0x68] sm:$0xff] %vm339, %v759
      %796 = vst.msk [vmem:[#allocation2 + $0x70] sm:$0xff] %vm339, %v760
      %797 = vst.msk [vmem:[#allocation2 + $0x78] sm:$0xff] %vm339, %v761
      %798 = vst.msk [vmem:[#allocation2 + $0x80] sm:$0xff] %vm339, %v762
      %799 = vst.msk [vmem:[#allocation2 + $0x88] sm:$0xff] %vm339, %v763
      %800 = vst.msk [vmem:[#allocation2 + $0x90] sm:$0xff] %vm339, %v764
      %801 = vst.msk [vmem:[#allocation2 + $0x98] sm:$0xff] %vm339, %v765
      %802 = vst.msk [vmem:[#allocation2 + $0xa0] sm:$0xff] %vm339, %v766
      %803 = vst.msk [vmem:[#allocation2 + $0xa8] sm:$0xff] %vm339, %v767
      %804 = vst.msk [vmem:[#allocation2 + $0xb0] sm:$0xff] %vm339, %v768
      %805 = vst.msk [vmem:[#allocation2 + $0xb8] sm:$0xff] %vm339, %v769
      %806 = vst.msk [vmem:[#allocation2 + $0xc0] sm:$0xff] %vm339, %v770
      %807 = vst.msk [vmem:[#allocation2 + $0xc8] sm:$0xff] %vm339, %v771
      %808 = vst.msk [vmem:[#allocation2 + $0xd0] sm:$0xff] %vm339, %v772
      %809 = vst.msk [vmem:[#allocation2 + $0xd8] sm:$0xff] %vm339, %v773
      %810 = vst.msk [vmem:[#allocation2 + $0xe0] sm:$0xff] %vm339, %v774
      %811 = vst.msk [vmem:[#allocation2 + $0xe8] sm:$0xff] %vm339, %v775
      %812 = vst.msk [vmem:[#allocation2 + $0xf0] sm:$0xff] %vm339, %v776
      %813 = vst.msk [vmem:[#allocation2 + $0xf8] sm:$0xff] %vm339, %v777
      %814 = vst.msk [vmem:[#allocation2 + $0x100] sm:$0xff] %vm339, %v778
      %815 = vst.msk [vmem:[#allocation2 + $0x108] sm:$0xff] %vm339, %v779
      %816 = vst.msk [vmem:[#allocation2 + $0x110] sm:$0xff] %vm339, %v780
      %817 = vst.msk [vmem:[#allocation2 + $0x118] sm:$0xff] %vm339, %v781
      %v818 = vld [vmem:[#allocation4 + $0x1] sm:$0xff]
      %v819 = vld [vmem:[#allocation4 + $0x9] sm:$0xff]
      %v820 = vld [vmem:[#allocation4 + $0x11] sm:$0xff]
      %v821 = vld [vmem:[#allocation4 + $0x19] sm:$0xff]
      %v822 = vld [vmem:[#allocation4 + $0x21] sm:$0xff]
      %v823 = vld [vmem:[#allocation4 + $0x29] sm:$0xff]
      %v824 = vld [vmem:[#allocation4 + $0x31] sm:$0xff]
      %v825 = vld [vmem:[#allocation4 + $0x39] sm:$0xff]
      %v826 = vld [vmem:[#allocation4 + $0x41] sm:$0xff]
      %v827 = vld [vmem:[#allocation4 + $0x49] sm:$0xff]
      %v828 = vld [vmem:[#allocation4 + $0x51] sm:$0xff]
      %v829 = vld [vmem:[#allocation4 + $0x59] sm:$0xff]
      %v830 = vld [vmem:[#allocation4 + $0x61] sm:$0xff]
      %v831 = vld [vmem:[#allocation4 + $0x69] sm:$0xff]
      %v832 = vld [vmem:[#allocation4 + $0x71] sm:$0xff]
      %v833 = vld [vmem:[#allocation4 + $0x79] sm:$0xff]
      %v834 = vld [vmem:[#allocation4 + $0x81] sm:$0xff]
      %v835 = vld [vmem:[#allocation4 + $0x89] sm:$0xff]
      %v836 = vld [vmem:[#allocation4 + $0x91] sm:$0xff]
      %v837 = vld [vmem:[#allocation4 + $0x99] sm:$0xff]
      %v838 = vld [vmem:[#allocation4 + $0xa1] sm:$0xff]
      %v839 = vld [vmem:[#allocation4 + $0xa9] sm:$0xff]
      %v840 = vld [vmem:[#allocation4 + $0xb1] sm:$0xff]
      %v841 = vld [vmem:[#allocation4 + $0xb9] sm:$0xff]
      %v842 = vld [vmem:[#allocation4 + $0xc1] sm:$0xff]
      %v843 = vld [vmem:[#allocation4 + $0xc9] sm:$0xff]
      %v844 = vld [vmem:[#allocation4 + $0xd1] sm:$0xff]
      %v845 = vld [vmem:[#allocation4 + $0xd9] sm:$0xff]
      %v846 = vld [vmem:[#allocation4 + $0xe1] sm:$0xff]
      %v847 = vld [vmem:[#allocation4 + $0xe9] sm:$0xff]
      %v848 = vld [vmem:[#allocation4 + $0xf1] sm:$0xff]
      %v849 = vld [vmem:[#allocation4 + $0xf9] sm:$0xff]
      %v850 = vld [vmem:[#allocation4 + $0x101] sm:$0xff]
      %v851 = vld [vmem:[#allocation4 + $0x109] sm:$0xff]
      %v852 = vld [vmem:[#allocation4 + $0x111] sm:$0xff]
      %v853 = vld [vmem:[#allocation4 + $0x119] sm:$0xff]
      %v854 = vpack.c.bf16 %v819, %v818
      %v855 = vpack.c.bf16 %v821, %v820
      %v856 = vpack.c.bf16 %v823, %v822
      %v857 = vpack.c.bf16 %v825, %v824
      %v858 = vpack.c.bf16 %v827, %v826
      %v859 = vpack.c.bf16 %v829, %v828
      %v860 = vpack.c.bf16 %v831, %v830
      %v861 = vpack.c.bf16 %v833, %v832
      %v862 = vpack.c.bf16 %v835, %v834
      %v863 = vpack.c.bf16 %v837, %v836
      %v864 = vpack.c.bf16 %v839, %v838
      %v865 = vpack.c.bf16 %v841, %v840
      %v866 = vpack.c.bf16 %v843, %v842
      %v867 = vpack.c.bf16 %v845, %v844
      %v868 = vpack.c.bf16 %v847, %v846
      %v869 = vpack.c.bf16 %v849, %v848
      %v870 = vpack.c.bf16 %v851, %v850
      %v871 = vpack.c.bf16 %v853, %v852
      %v872 = vld [vmem:[#allocation2] sm:$0xff]
      %v873 = vld [vmem:[#allocation2 + $0x8] sm:$0xff]
      %v874 = vld [vmem:[#allocation2 + $0x10] sm:$0xff]
      %v875 = vld [vmem:[#allocation2 + $0x18] sm:$0xff]
      %v876 = vld [vmem:[#allocation2 + $0x20] sm:$0xff]
      %v877 = vld [vmem:[#allocation2 + $0x28] sm:$0xff]
      %v878 = vld [vmem:[#allocation2 + $0x30] sm:$0xff]
      %v879 = vld [vmem:[#allocation2 + $0x38] sm:$0xff]
      %v880 = vld [vmem:[#allocation2 + $0x40] sm:$0xff]
      %v881 = vld [vmem:[#allocation2 + $0x48] sm:$0xff]
      %v882 = vld [vmem:[#allocation2 + $0x50] sm:$0xff]
      %v883 = vld [vmem:[#allocation2 + $0x58] sm:$0xff]
      %v884 = vld [vmem:[#allocation2 + $0x60] sm:$0xff]
      %v885 = vld [vmem:[#allocation2 + $0x68] sm:$0xff]
      %v886 = vld [vmem:[#allocation2 + $0x70] sm:$0xff]
      %v887 = vld [vmem:[#allocation2 + $0x78] sm:$0xff]
      %v888 = vld [vmem:[#allocation2 + $0x80] sm:$0xff]
      %v889 = vld [vmem:[#allocation2 + $0x88] sm:$0xff]
      %v890 = vld [vmem:[#allocation2 + $0x90] sm:$0xff]
      %v891 = vld [vmem:[#allocation2 + $0x98] sm:$0xff]
      %v892 = vld [vmem:[#allocation2 + $0xa0] sm:$0xff]
      %v893 = vld [vmem:[#allocation2 + $0xa8] sm:$0xff]
      %v894 = vld [vmem:[#allocation2 + $0xb0] sm:$0xff]
      %v895 = vld [vmem:[#allocation2 + $0xb8] sm:$0xff]
      %v896 = vld [vmem:[#allocation2 + $0xc0] sm:$0xff]
      %v897 = vld [vmem:[#allocation2 + $0xc8] sm:$0xff]
      %v898 = vld [vmem:[#allocation2 + $0xd0] sm:$0xff]
      %v899 = vld [vmem:[#allocation2 + $0xd8] sm:$0xff]
      %v900 = vld [vmem:[#allocation2 + $0xe0] sm:$0xff]
      %v901 = vld [vmem:[#allocation2 + $0xe8] sm:$0xff]
      %v902 = vld [vmem:[#allocation2 + $0xf0] sm:$0xff]
      %v903 = vld [vmem:[#allocation2 + $0xf8] sm:$0xff]
      %v904 = vld [vmem:[#allocation2 + $0x100] sm:$0xff]
      %v905 = vld [vmem:[#allocation2 + $0x108] sm:$0xff]
      %v906 = vld [vmem:[#allocation2 + $0x110] sm:$0xff]
      %v907 = vld [vmem:[#allocation2 + $0x118] sm:$0xff]
      %s908 = scalar_lea.vmem %s1, 2
      %v909 = vld [vmem:[%s908] sm:$0x3]
      %v911 = vsel %vm339, %v854, 0
      %v914 = vsel %vm339, %v855, 0
      %v917 = vsel %vm339, %v856, 0
      %v920 = vsel %vm339, %v857, 0
      %v923 = vsel %vm339, %v858, 0
      %v926 = vsel %vm339, %v859, 0
      %v929 = vsel %vm339, %v860, 0
      %v932 = vsel %vm339, %v861, 0
      %v935 = vsel %vm339, %v862, 0
      %v938 = vsel %vm339, %v863, 0
      %v941 = vsel %vm339, %v864, 0
      %v944 = vsel %vm339, %v865, 0
      %v947 = vsel %vm339, %v866, 0
      %v950 = vsel %vm339, %v867, 0
      %v953 = vsel %vm339, %v868, 0
      %v956 = vsel %vm339, %v869, 0
      %v959 = vsel %vm339, %v870, 0
      %v962 = vsel %vm339, %v871, 0
      %v965 = vsel %vm565, %v909, 0
      %967 = vmatprep.subr.bf16.mxu0 0
      %968 = vmatpush1.bf16.msra.mxu0 0
      %969 = vmatprep.subr.bf16.mxu0 0
      %970 = vmatpush1.bf16.msra.mxu0 0
      %971 = vmatprep.subr.bf16.mxu0 0
      %972 = vmatpush1.bf16.msra.mxu0 0
      %973 = vmatprep.subr.bf16.mxu0 0
      %974 = vmatpush1.bf16.msra.mxu0 0
      %975 = vmatprep.subr.bf16.mxu0 0
      %976 = vmatpush1.bf16.msra.mxu0 0
      %977 = vmatprep.subr.bf16.mxu0 0
      %978 = vmatpush1.bf16.msra.mxu0 0
      %979 = vmatprep.subr.bf16.mxu0 0
      %980 = vmatpush1.bf16.msra.mxu0 0
      %981 = vmatprep.subr.bf16.mxu0 0
      %982 = vmatpush1.bf16.msra.mxu0 %v965
      %983 = vmatprep.subr.bf16.mxu0 0
      %984 = vmatpush2.bf16.msra.mxu0 0
      %985 = vmatprep.subr.bf16.mxu0 0
      %986 = vmatpush2.bf16.msra.mxu0 0
      %987 = vmatprep.subr.bf16.mxu0 0
      %988 = vmatpush2.bf16.msra.mxu0 0
      %989 = vmatprep.subr.bf16.mxu0 0
      %990 = vmatpush2.bf16.msra.mxu0 0
      %991 = vmatprep.subr.bf16.mxu0 0
      %992 = vmatpush2.bf16.msra.mxu0 0
      %993 = vmatprep.subr.bf16.mxu0 0
      %994 = vmatpush2.bf16.msra.mxu0 0
      %995 = vmatprep.subr.bf16.mxu0 0
      %996 = vmatpush2.bf16.msra.mxu0 0
      %997 = vmatprep.subr.bf16.mxu0 0
      %998 = vmatpush2.bf16.msra.mxu0 0
      %999 = vmatprep.mubr.bf16.mxu0 0
      %1000 = vmatmul.mubr.bf16.gmra.mxu0 %v911
      %v1001 = vpop.f32.mrf.mxu0
      %v1002 = vadd.f32 0.0, %v1001
      %v1003 = vpop.f32.mrf.mxu0
      %v1004 = vpop.f32.mrf.mxu0
      %v1005 = vadd.f32 0.0, %v1004
      %v1006 = vpop.f32.mrf.mxu0
      %1007 = vmatprep.mubr.bf16.mxu0 0
      %1008 = vmatmul.mubr.bf16.gmra.mxu0 %v914
      %v1009 = vpop.f32.mrf.mxu0
      %v1010 = vadd.f32 0.0, %v1009
      %v1011 = vpop.f32.mrf.mxu0
      %v1012 = vpop.f32.mrf.mxu0
      %v1013 = vadd.f32 0.0, %v1012
      %v1014 = vpop.f32.mrf.mxu0
      %1015 = vmatprep.mubr.bf16.mxu0 0
      %1016 = vmatmul.mubr.bf16.gmra.mxu0 %v917
      %v1017 = vpop.f32.mrf.mxu0
      %v1018 = vadd.f32 0.0, %v1017
      %v1019 = vpop.f32.mrf.mxu0
      %v1020 = vpop.f32.mrf.mxu0
      %v1021 = vadd.f32 0.0, %v1020
      %v1022 = vpop.f32.mrf.mxu0
      %1023 = vmatprep.mubr.bf16.mxu0 0
      %1024 = vmatmul.mubr.bf16.gmra.mxu0 %v920
      %v1025 = vpop.f32.mrf.mxu0
      %v1026 = vadd.f32 0.0, %v1025
      %v1027 = vpop.f32.mrf.mxu0
      %v1028 = vpop.f32.mrf.mxu0
      %v1029 = vadd.f32 0.0, %v1028
      %v1030 = vpop.f32.mrf.mxu0
      %1031 = vmatprep.mubr.bf16.mxu0 0
      %1032 = vmatmul.mubr.bf16.gmra.mxu0 %v923
      %v1033 = vpop.f32.mrf.mxu0
      %v1034 = vadd.f32 0.0, %v1033
      %v1035 = vpop.f32.mrf.mxu0
      %v1036 = vpop.f32.mrf.mxu0
      %v1037 = vadd.f32 0.0, %v1036
      %v1038 = vpop.f32.mrf.mxu0
      %1039 = vmatprep.mubr.bf16.mxu0 0
      %1040 = vmatmul.mubr.bf16.gmra.mxu0 %v926
      %v1041 = vpop.f32.mrf.mxu0
      %v1042 = vadd.f32 0.0, %v1041
      %v1043 = vpop.f32.mrf.mxu0
      %v1044 = vpop.f32.mrf.mxu0
      %v1045 = vadd.f32 0.0, %v1044
      %v1046 = vpop.f32.mrf.mxu0
      %1047 = vmatprep.mubr.bf16.mxu0 0
      %1048 = vmatmul.mubr.bf16.gmra.mxu0 %v929
      %v1049 = vpop.f32.mrf.mxu0
      %v1050 = vadd.f32 0.0, %v1049
      %v1051 = vpop.f32.mrf.mxu0
      %v1052 = vpop.f32.mrf.mxu0
      %v1053 = vadd.f32 0.0, %v1052
      %v1054 = vpop.f32.mrf.mxu0
      %1055 = vmatprep.mubr.bf16.mxu0 0
      %1056 = vmatmul.mubr.bf16.gmra.mxu0 %v932
      %v1057 = vpop.f32.mrf.mxu0
      %v1058 = vadd.f32 0.0, %v1057
      %v1059 = vpop.f32.mrf.mxu0
      %v1060 = vpop.f32.mrf.mxu0
      %v1061 = vadd.f32 0.0, %v1060
      %v1062 = vpop.f32.mrf.mxu0
      %1063 = vmatprep.mubr.bf16.mxu0 0
      %1064 = vmatmul.mubr.bf16.gmra.mxu0 %v935
      %v1065 = vpop.f32.mrf.mxu0
      %v1066 = vadd.f32 0.0, %v1065
      %v1067 = vpop.f32.mrf.mxu0
      %v1068 = vpop.f32.mrf.mxu0
      %v1069 = vadd.f32 0.0, %v1068
      %v1070 = vpop.f32.mrf.mxu0
      %1071 = vmatprep.mubr.bf16.mxu0 0
      %1072 = vmatmul.mubr.bf16.gmra.mxu0 %v938
      %v1073 = vpop.f32.mrf.mxu0
      %v1074 = vadd.f32 0.0, %v1073
      %v1075 = vpop.f32.mrf.mxu0
      %v1076 = vpop.f32.mrf.mxu0
      %v1077 = vadd.f32 0.0, %v1076
      %v1078 = vpop.f32.mrf.mxu0
      %1079 = vmatprep.mubr.bf16.mxu0 0
      %1080 = vmatmul.mubr.bf16.gmra.mxu0 %v941
      %v1081 = vpop.f32.mrf.mxu0
      %v1082 = vadd.f32 0.0, %v1081
      %v1083 = vpop.f32.mrf.mxu0
      %v1084 = vpop.f32.mrf.mxu0
      %v1085 = vadd.f32 0.0, %v1084
      %v1086 = vpop.f32.mrf.mxu0
      %1087 = vmatprep.mubr.bf16.mxu0 0
      %1088 = vmatmul.mubr.bf16.gmra.mxu0 %v944
      %v1089 = vpop.f32.mrf.mxu0
      %v1090 = vadd.f32 0.0, %v1089
      %v1091 = vpop.f32.mrf.mxu0
      %v1092 = vpop.f32.mrf.mxu0
      %v1093 = vadd.f32 0.0, %v1092
      %v1094 = vpop.f32.mrf.mxu0
      %1095 = vmatprep.mubr.bf16.mxu0 0
      %1096 = vmatmul.mubr.bf16.gmra.mxu0 %v947
      %v1097 = vpop.f32.mrf.mxu0
      %v1098 = vadd.f32 0.0, %v1097
      %v1099 = vpop.f32.mrf.mxu0
      %v1100 = vpop.f32.mrf.mxu0
      %v1101 = vadd.f32 0.0, %v1100
      %v1102 = vpop.f32.mrf.mxu0
      %1103 = vmatprep.mubr.bf16.mxu0 0
      %1104 = vmatmul.mubr.bf16.gmra.mxu0 %v950
      %v1105 = vpop.f32.mrf.mxu0
      %v1106 = vadd.f32 0.0, %v1105
      %v1107 = vpop.f32.mrf.mxu0
      %v1108 = vpop.f32.mrf.mxu0
      %v1109 = vadd.f32 0.0, %v1108
      %v1110 = vpop.f32.mrf.mxu0
      %1111 = vmatprep.mubr.bf16.mxu0 0
      %1112 = vmatmul.mubr.bf16.gmra.mxu0 %v953
      %v1113 = vpop.f32.mrf.mxu0
      %v1114 = vadd.f32 0.0, %v1113
      %v1115 = vpop.f32.mrf.mxu0
      %v1116 = vpop.f32.mrf.mxu0
      %v1117 = vadd.f32 0.0, %v1116
      %v1118 = vpop.f32.mrf.mxu0
      %1119 = vmatprep.mubr.bf16.mxu0 0
      %1120 = vmatmul.mubr.bf16.gmra.mxu0 %v956
      %v1121 = vpop.f32.mrf.mxu0
      %v1122 = vadd.f32 0.0, %v1121
      %v1123 = vpop.f32.mrf.mxu0
      %v1124 = vpop.f32.mrf.mxu0
      %v1125 = vadd.f32 0.0, %v1124
      %v1126 = vpop.f32.mrf.mxu0
      %1127 = vmatprep.mubr.bf16.mxu0 0
      %1128 = vmatmul.mubr.bf16.gmra.mxu0 %v959
      %v1129 = vpop.f32.mrf.mxu0
      %v1130 = vadd.f32 0.0, %v1129
      %v1131 = vpop.f32.mrf.mxu0
      %v1132 = vpop.f32.mrf.mxu0
      %v1133 = vadd.f32 0.0, %v1132
      %v1134 = vpop.f32.mrf.mxu0
      %1135 = vmatprep.mubr.bf16.mxu0 0
      %1136 = vmatmul.mubr.bf16.gmra.mxu0 %v962
      %v1137 = vpop.f32.mrf.mxu0
      %v1138 = vadd.f32 0.0, %v1137
      %v1139 = vpop.f32.mrf.mxu0
      %v1140 = vpop.f32.mrf.mxu0
      %v1141 = vadd.f32 0.0, %v1140
      %v1142 = vpop.f32.mrf.mxu0
      %1143 = vdwg.mxu0
      %v1144 = vadd.f32 %v872, %v1002
      %v1145 = vadd.f32 %v873, %v1005
      %v1146 = vadd.f32 %v874, %v1010
      %v1147 = vadd.f32 %v875, %v1013
      %v1148 = vadd.f32 %v876, %v1018
      %v1149 = vadd.f32 %v877, %v1021
      %v1150 = vadd.f32 %v878, %v1026
      %v1151 = vadd.f32 %v879, %v1029
      %v1152 = vadd.f32 %v880, %v1034
      %v1153 = vadd.f32 %v881, %v1037
      %v1154 = vadd.f32 %v882, %v1042
      %v1155 = vadd.f32 %v883, %v1045
      %v1156 = vadd.f32 %v884, %v1050
      %v1157 = vadd.f32 %v885, %v1053
      %v1158 = vadd.f32 %v886, %v1058
      %v1159 = vadd.f32 %v887, %v1061
      %v1160 = vadd.f32 %v888, %v1066
      %v1161 = vadd.f32 %v889, %v1069
      %v1162 = vadd.f32 %v890, %v1074
      %v1163 = vadd.f32 %v891, %v1077
      %v1164 = vadd.f32 %v892, %v1082
      %v1165 = vadd.f32 %v893, %v1085
      %v1166 = vadd.f32 %v894, %v1090
      %v1167 = vadd.f32 %v895, %v1093
      %v1168 = vadd.f32 %v896, %v1098
      %v1169 = vadd.f32 %v897, %v1101
      %v1170 = vadd.f32 %v898, %v1106
      %v1171 = vadd.f32 %v899, %v1109
      %v1172 = vadd.f32 %v900, %v1114
      %v1173 = vadd.f32 %v901, %v1117
      %v1174 = vadd.f32 %v902, %v1122
      %v1175 = vadd.f32 %v903, %v1125
      %v1176 = vadd.f32 %v904, %v1130
      %v1177 = vadd.f32 %v905, %v1133
      %v1178 = vadd.f32 %v906, %v1138
      %v1179 = vadd.f32 %v907, %v1141
      %1180 = vst.msk [vmem:[#allocation2] sm:$0xff] %vm339, %v1144
      %1181 = vst.msk [vmem:[#allocation2 + $0x8] sm:$0xff] %vm339, %v1145
      %1182 = vst.msk [vmem:[#allocation2 + $0x10] sm:$0xff] %vm339, %v1146
      %1183 = vst.msk [vmem:[#allocation2 + $0x18] sm:$0xff] %vm339, %v1147
      %1184 = vst.msk [vmem:[#allocation2 + $0x20] sm:$0xff] %vm339, %v1148
      %1185 = vst.msk [vmem:[#allocation2 + $0x28] sm:$0xff] %vm339, %v1149
      %1186 = vst.msk [vmem:[#allocation2 + $0x30] sm:$0xff] %vm339, %v1150
      %1187 = vst.msk [vmem:[#allocation2 + $0x38] sm:$0xff] %vm339, %v1151
      %1188 = vst.msk [vmem:[#allocation2 + $0x40] sm:$0xff] %vm339, %v1152
      %1189 = vst.msk [vmem:[#allocation2 + $0x48] sm:$0xff] %vm339, %v1153
      %1190 = vst.msk [vmem:[#allocation2 + $0x50] sm:$0xff] %vm339, %v1154
      %1191 = vst.msk [vmem:[#allocation2 + $0x58] sm:$0xff] %vm339, %v1155
      %1192 = vst.msk [vmem:[#allocation2 + $0x60] sm:$0xff] %vm339, %v1156
      %1193 = vst.msk [vmem:[#allocation2 + $0x68] sm:$0xff] %vm339, %v1157
      %1194 = vst.msk [vmem:[#allocation2 + $0x70] sm:$0xff] %vm339, %v1158
      %1195 = vst.msk [vmem:[#allocation2 + $0x78] sm:$0xff] %vm339, %v1159
      %1196 = vst.msk [vmem:[#allocation2 + $0x80] sm:$0xff] %vm339, %v1160
      %1197 = vst.msk [vmem:[#allocation2 + $0x88] sm:$0xff] %vm339, %v1161
      %1198 = vst.msk [vmem:[#allocation2 + $0x90] sm:$0xff] %vm339, %v1162
      %1199 = vst.msk [vmem:[#allocation2 + $0x98] sm:$0xff] %vm339, %v1163
      %1200 = vst.msk [vmem:[#allocation2 + $0xa0] sm:$0xff] %vm339, %v1164
      %1201 = vst.msk [vmem:[#allocation2 + $0xa8] sm:$0xff] %vm339, %v1165
      %1202 = vst.msk [vmem:[#allocation2 + $0xb0] sm:$0xff] %vm339, %v1166
      %1203 = vst.msk [vmem:[#allocation2 + $0xb8] sm:$0xff] %vm339, %v1167
      %1204 = vst.msk [vmem:[#allocation2 + $0xc0] sm:$0xff] %vm339, %v1168
      %1205 = vst.msk [vmem:[#allocation2 + $0xc8] sm:$0xff] %vm339, %v1169
      %1206 = vst.msk [vmem:[#allocation2 + $0xd0] sm:$0xff] %vm339, %v1170
      %1207 = vst.msk [vmem:[#allocation2 + $0xd8] sm:$0xff] %vm339, %v1171
      %1208 = vst.msk [vmem:[#allocation2 + $0xe0] sm:$0xff] %vm339, %v1172
      %1209 = vst.msk [vmem:[#allocation2 + $0xe8] sm:$0xff] %vm339, %v1173
      %1210 = vst.msk [vmem:[#allocation2 + $0xf0] sm:$0xff] %vm339, %v1174
      %1211 = vst.msk [vmem:[#allocation2 + $0xf8] sm:$0xff] %vm339, %v1175
      %1212 = vst.msk [vmem:[#allocation2 + $0x100] sm:$0xff] %vm339, %v1176
      %1213 = vst.msk [vmem:[#allocation2 + $0x108] sm:$0xff] %vm339, %v1177
      %1214 = vst.msk [vmem:[#allocation2 + $0x110] sm:$0xff] %vm339, %v1178
      %1215 = vst.msk [vmem:[#allocation2 + $0x118] sm:$0xff] %vm339, %v1179
      %v1216 = vld [vmem:[#allocation4 + $0x2] sm:$0xff]
      %v1217 = vld [vmem:[#allocation4 + $0xa] sm:$0xff]
      %v1218 = vld [vmem:[#allocation4 + $0x12] sm:$0xff]
      %v1219 = vld [vmem:[#allocation4 + $0x1a] sm:$0xff]
      %v1220 = vld [vmem:[#allocation4 + $0x22] sm:$0xff]
      %v1221 = vld [vmem:[#allocation4 + $0x2a] sm:$0xff]
      %v1222 = vld [vmem:[#allocation4 + $0x32] sm:$0xff]
      %v1223 = vld [vmem:[#allocation4 + $0x3a] sm:$0xff]
      %v1224 = vld [vmem:[#allocation4 + $0x42] sm:$0xff]
      %v1225 = vld [vmem:[#allocation4 + $0x4a] sm:$0xff]
      %v1226 = vld [vmem:[#allocation4 + $0x52] sm:$0xff]
      %v1227 = vld [vmem:[#allocation4 + $0x5a] sm:$0xff]
      %v1228 = vld [vmem:[#allocation4 + $0x62] sm:$0xff]
      %v1229 = vld [vmem:[#allocation4 + $0x6a] sm:$0xff]
      %v1230 = vld [vmem:[#allocation4 + $0x72] sm:$0xff]
      %v1231 = vld [vmem:[#allocation4 + $0x7a] sm:$0xff]
      %v1232 = vld [vmem:[#allocation4 + $0x82] sm:$0xff]
      %v1233 = vld [vmem:[#allocation4 + $0x8a] sm:$0xff]
      %v1234 = vld [vmem:[#allocation4 + $0x92] sm:$0xff]
      %v1235 = vld [vmem:[#allocation4 + $0x9a] sm:$0xff]
      %v1236 = vld [vmem:[#allocation4 + $0xa2] sm:$0xff]
      %v1237 = vld [vmem:[#allocation4 + $0xaa] sm:$0xff]
      %v1238 = vld [vmem:[#allocation4 + $0xb2] sm:$0xff]
      %v1239 = vld [vmem:[#allocation4 + $0xba] sm:$0xff]
      %v1240 = vld [vmem:[#allocation4 + $0xc2] sm:$0xff]
      %v1241 = vld [vmem:[#allocation4 + $0xca] sm:$0xff]
      %v1242 = vld [vmem:[#allocation4 + $0xd2] sm:$0xff]
      %v1243 = vld [vmem:[#allocation4 + $0xda] sm:$0xff]
      %v1244 = vld [vmem:[#allocation4 + $0xe2] sm:$0xff]
      %v1245 = vld [vmem:[#allocation4 + $0xea] sm:$0xff]
      %v1246 = vld [vmem:[#allocation4 + $0xf2] sm:$0xff]
      %v1247 = vld [vmem:[#allocation4 + $0xfa] sm:$0xff]
      %v1248 = vld [vmem:[#allocation4 + $0x102] sm:$0xff]
      %v1249 = vld [vmem:[#allocation4 + $0x10a] sm:$0xff]
      %v1250 = vld [vmem:[#allocation4 + $0x112] sm:$0xff]
      %v1251 = vld [vmem:[#allocation4 + $0x11a] sm:$0xff]
      %v1252 = vpack.c.bf16 %v1217, %v1216
      %v1253 = vpack.c.bf16 %v1219, %v1218
      %v1254 = vpack.c.bf16 %v1221, %v1220
      %v1255 = vpack.c.bf16 %v1223, %v1222
      %v1256 = vpack.c.bf16 %v1225, %v1224
      %v1257 = vpack.c.bf16 %v1227, %v1226
      %v1258 = vpack.c.bf16 %v1229, %v1228
      %v1259 = vpack.c.bf16 %v1231, %v1230
      %v1260 = vpack.c.bf16 %v1233, %v1232
      %v1261 = vpack.c.bf16 %v1235, %v1234
      %v1262 = vpack.c.bf16 %v1237, %v1236
      %v1263 = vpack.c.bf16 %v1239, %v1238
      %v1264 = vpack.c.bf16 %v1241, %v1240
      %v1265 = vpack.c.bf16 %v1243, %v1242
      %v1266 = vpack.c.bf16 %v1245, %v1244
      %v1267 = vpack.c.bf16 %v1247, %v1246
      %v1268 = vpack.c.bf16 %v1249, %v1248
      %v1269 = vpack.c.bf16 %v1251, %v1250
      %v1270 = vld [vmem:[#allocation2] sm:$0xff]
      %v1271 = vld [vmem:[#allocation2 + $0x8] sm:$0xff]
      %v1272 = vld [vmem:[#allocation2 + $0x10] sm:$0xff]
      %v1273 = vld [vmem:[#allocation2 + $0x18] sm:$0xff]
      %v1274 = vld [vmem:[#allocation2 + $0x20] sm:$0xff]
      %v1275 = vld [vmem:[#allocation2 + $0x28] sm:$0xff]
      %v1276 = vld [vmem:[#allocation2 + $0x30] sm:$0xff]
      %v1277 = vld [vmem:[#allocation2 + $0x38] sm:$0xff]
      %v1278 = vld [vmem:[#allocation2 + $0x40] sm:$0xff]
      %v1279 = vld [vmem:[#allocation2 + $0x48] sm:$0xff]
      %v1280 = vld [vmem:[#allocation2 + $0x50] sm:$0xff]
      %v1281 = vld [vmem:[#allocation2 + $0x58] sm:$0xff]
      %v1282 = vld [vmem:[#allocation2 + $0x60] sm:$0xff]
      %v1283 = vld [vmem:[#allocation2 + $0x68] sm:$0xff]
      %v1284 = vld [vmem:[#allocation2 + $0x70] sm:$0xff]
      %v1285 = vld [vmem:[#allocation2 + $0x78] sm:$0xff]
      %v1286 = vld [vmem:[#allocation2 + $0x80] sm:$0xff]
      %v1287 = vld [vmem:[#allocation2 + $0x88] sm:$0xff]
      %v1288 = vld [vmem:[#allocation2 + $0x90] sm:$0xff]
      %v1289 = vld [vmem:[#allocation2 + $0x98] sm:$0xff]
      %v1290 = vld [vmem:[#allocation2 + $0xa0] sm:$0xff]
      %v1291 = vld [vmem:[#allocation2 + $0xa8] sm:$0xff]
      %v1292 = vld [vmem:[#allocation2 + $0xb0] sm:$0xff]
      %v1293 = vld [vmem:[#allocation2 + $0xb8] sm:$0xff]
      %v1294 = vld [vmem:[#allocation2 + $0xc0] sm:$0xff]
      %v1295 = vld [vmem:[#allocation2 + $0xc8] sm:$0xff]
      %v1296 = vld [vmem:[#allocation2 + $0xd0] sm:$0xff]
      %v1297 = vld [vmem:[#allocation2 + $0xd8] sm:$0xff]
      %v1298 = vld [vmem:[#allocation2 + $0xe0] sm:$0xff]
      %v1299 = vld [vmem:[#allocation2 + $0xe8] sm:$0xff]
      %v1300 = vld [vmem:[#allocation2 + $0xf0] sm:$0xff]
      %v1301 = vld [vmem:[#allocation2 + $0xf8] sm:$0xff]
      %v1302 = vld [vmem:[#allocation2 + $0x100] sm:$0xff]
      %v1303 = vld [vmem:[#allocation2 + $0x108] sm:$0xff]
      %v1304 = vld [vmem:[#allocation2 + $0x110] sm:$0xff]
      %v1305 = vld [vmem:[#allocation2 + $0x118] sm:$0xff]
      %s1306 = scalar_lea.vmem %s1, 4
      %v1307 = vld [vmem:[%s1306] sm:$0x3]
      %v1309 = vsel %vm339, %v1252, 0
      %v1312 = vsel %vm339, %v1253, 0
      %v1315 = vsel %vm339, %v1254, 0
      %v1318 = vsel %vm339, %v1255, 0
      %v1321 = vsel %vm339, %v1256, 0
      %v1324 = vsel %vm339, %v1257, 0
      %v1327 = vsel %vm339, %v1258, 0
      %v1330 = vsel %vm339, %v1259, 0
      %v1333 = vsel %vm339, %v1260, 0
      %v1336 = vsel %vm339, %v1261, 0
      %v1339 = vsel %vm339, %v1262, 0
      %v1342 = vsel %vm339, %v1263, 0
      %v1345 = vsel %vm339, %v1264, 0
      %v1348 = vsel %vm339, %v1265, 0
      %v1351 = vsel %vm339, %v1266, 0
      %v1354 = vsel %vm339, %v1267, 0
      %v1357 = vsel %vm339, %v1268, 0
      %v1360 = vsel %vm339, %v1269, 0
      %v1363 = vsel %vm565, %v1307, 0
      %1365 = vmatprep.subr.bf16.mxu0 0
      %1366 = vmatpush1.bf16.msra.mxu0 0
      %1367 = vmatprep.subr.bf16.mxu0 0
      %1368 = vmatpush1.bf16.msra.mxu0 0
      %1369 = vmatprep.subr.bf16.mxu0 0
      %1370 = vmatpush1.bf16.msra.mxu0 0
      %1371 = vmatprep.subr.bf16.mxu0 0
      %1372 = vmatpush1.bf16.msra.mxu0 0
      %1373 = vmatprep.subr.bf16.mxu0 0
      %1374 = vmatpush1.bf16.msra.mxu0 0
      %1375 = vmatprep.subr.bf16.mxu0 0
      %1376 = vmatpush1.bf16.msra.mxu0 0
      %1377 = vmatprep.subr.bf16.mxu0 0
      %1378 = vmatpush1.bf16.msra.mxu0 0
      %1379 = vmatprep.subr.bf16.mxu0 0
      %1380 = vmatpush1.bf16.msra.mxu0 %v1363
      %1381 = vmatprep.subr.bf16.mxu0 0
      %1382 = vmatpush2.bf16.msra.mxu0 0
      %1383 = vmatprep.subr.bf16.mxu0 0
      %1384 = vmatpush2.bf16.msra.mxu0 0
      %1385 = vmatprep.subr.bf16.mxu0 0
      %1386 = vmatpush2.bf16.msra.mxu0 0
      %1387 = vmatprep.subr.bf16.mxu0 0
      %1388 = vmatpush2.bf16.msra.mxu0 0
      %1389 = vmatprep.subr.bf16.mxu0 0
      %1390 = vmatpush2.bf16.msra.mxu0 0
      %1391 = vmatprep.subr.bf16.mxu0 0
      %1392 = vmatpush2.bf16.msra.mxu0 0
      %1393 = vmatprep.subr.bf16.mxu0 0
      %1394 = vmatpush2.bf16.msra.mxu0 0
      %1395 = vmatprep.subr.bf16.mxu0 0
      %1396 = vmatpush2.bf16.msra.mxu0 0
      %1397 = vmatprep.mubr.bf16.mxu0 0
      %1398 = vmatmul.mubr.bf16.gmra.mxu0 %v1309
      %v1399 = vpop.f32.mrf.mxu0
      %v1400 = vadd.f32 0.0, %v1399
      %v1401 = vpop.f32.mrf.mxu0
      %v1402 = vpop.f32.mrf.mxu0
      %v1403 = vadd.f32 0.0, %v1402
      %v1404 = vpop.f32.mrf.mxu0
      %1405 = vmatprep.mubr.bf16.mxu0 0
      %1406 = vmatmul.mubr.bf16.gmra.mxu0 %v1312
      %v1407 = vpop.f32.mrf.mxu0
      %v1408 = vadd.f32 0.0, %v1407
      %v1409 = vpop.f32.mrf.mxu0
      %v1410 = vpop.f32.mrf.mxu0
      %v1411 = vadd.f32 0.0, %v1410
      %v1412 = vpop.f32.mrf.mxu0
      %1413 = vmatprep.mubr.bf16.mxu0 0
      %1414 = vmatmul.mubr.bf16.gmra.mxu0 %v1315
      %v1415 = vpop.f32.mrf.mxu0
      %v1416 = vadd.f32 0.0, %v1415
      %v1417 = vpop.f32.mrf.mxu0
      %v1418 = vpop.f32.mrf.mxu0
      %v1419 = vadd.f32 0.0, %v1418
      %v1420 = vpop.f32.mrf.mxu0
      %1421 = vmatprep.mubr.bf16.mxu0 0
      %1422 = vmatmul.mubr.bf16.gmra.mxu0 %v1318
      %v1423 = vpop.f32.mrf.mxu0
      %v1424 = vadd.f32 0.0, %v1423
      %v1425 = vpop.f32.mrf.mxu0
      %v1426 = vpop.f32.mrf.mxu0
      %v1427 = vadd.f32 0.0, %v1426
      %v1428 = vpop.f32.mrf.mxu0
      %1429 = vmatprep.mubr.bf16.mxu0 0
      %1430 = vmatmul.mubr.bf16.gmra.mxu0 %v1321
      %v1431 = vpop.f32.mrf.mxu0
      %v1432 = vadd.f32 0.0, %v1431
      %v1433 = vpop.f32.mrf.mxu0
      %v1434 = vpop.f32.mrf.mxu0
      %v1435 = vadd.f32 0.0, %v1434
      %v1436 = vpop.f32.mrf.mxu0
      %1437 = vmatprep.mubr.bf16.mxu0 0
      %1438 = vmatmul.mubr.bf16.gmra.mxu0 %v1324
      %v1439 = vpop.f32.mrf.mxu0
      %v1440 = vadd.f32 0.0, %v1439
      %v1441 = vpop.f32.mrf.mxu0
      %v1442 = vpop.f32.mrf.mxu0
      %v1443 = vadd.f32 0.0, %v1442
      %v1444 = vpop.f32.mrf.mxu0
      %1445 = vmatprep.mubr.bf16.mxu0 0
      %1446 = vmatmul.mubr.bf16.gmra.mxu0 %v1327
      %v1447 = vpop.f32.mrf.mxu0
      %v1448 = vadd.f32 0.0, %v1447
      %v1449 = vpop.f32.mrf.mxu0
      %v1450 = vpop.f32.mrf.mxu0
      %v1451 = vadd.f32 0.0, %v1450
      %v1452 = vpop.f32.mrf.mxu0
      %1453 = vmatprep.mubr.bf16.mxu0 0
      %1454 = vmatmul.mubr.bf16.gmra.mxu0 %v1330
      %v1455 = vpop.f32.mrf.mxu0
      %v1456 = vadd.f32 0.0, %v1455
      %v1457 = vpop.f32.mrf.mxu0
      %v1458 = vpop.f32.mrf.mxu0
      %v1459 = vadd.f32 0.0, %v1458
      %v1460 = vpop.f32.mrf.mxu0
      %1461 = vmatprep.mubr.bf16.mxu0 0
      %1462 = vmatmul.mubr.bf16.gmra.mxu0 %v1333
      %v1463 = vpop.f32.mrf.mxu0
      %v1464 = vadd.f32 0.0, %v1463
      %v1465 = vpop.f32.mrf.mxu0
      %v1466 = vpop.f32.mrf.mxu0
      %v1467 = vadd.f32 0.0, %v1466
      %v1468 = vpop.f32.mrf.mxu0
      %1469 = vmatprep.mubr.bf16.mxu0 0
      %1470 = vmatmul.mubr.bf16.gmra.mxu0 %v1336
      %v1471 = vpop.f32.mrf.mxu0
      %v1472 = vadd.f32 0.0, %v1471
      %v1473 = vpop.f32.mrf.mxu0
      %v1474 = vpop.f32.mrf.mxu0
      %v1475 = vadd.f32 0.0, %v1474
      %v1476 = vpop.f32.mrf.mxu0
      %1477 = vmatprep.mubr.bf16.mxu0 0
      %1478 = vmatmul.mubr.bf16.gmra.mxu0 %v1339
      %v1479 = vpop.f32.mrf.mxu0
      %v1480 = vadd.f32 0.0, %v1479
      %v1481 = vpop.f32.mrf.mxu0
      %v1482 = vpop.f32.mrf.mxu0
      %v1483 = vadd.f32 0.0, %v1482
      %v1484 = vpop.f32.mrf.mxu0
      %1485 = vmatprep.mubr.bf16.mxu0 0
      %1486 = vmatmul.mubr.bf16.gmra.mxu0 %v1342
      %v1487 = vpop.f32.mrf.mxu0
      %v1488 = vadd.f32 0.0, %v1487
      %v1489 = vpop.f32.mrf.mxu0
      %v1490 = vpop.f32.mrf.mxu0
      %v1491 = vadd.f32 0.0, %v1490
      %v1492 = vpop.f32.mrf.mxu0
      %1493 = vmatprep.mubr.bf16.mxu0 0
      %1494 = vmatmul.mubr.bf16.gmra.mxu0 %v1345
      %v1495 = vpop.f32.mrf.mxu0
      %v1496 = vadd.f32 0.0, %v1495
      %v1497 = vpop.f32.mrf.mxu0
      %v1498 = vpop.f32.mrf.mxu0
      %v1499 = vadd.f32 0.0, %v1498
      %v1500 = vpop.f32.mrf.mxu0
      %1501 = vmatprep.mubr.bf16.mxu0 0
      %1502 = vmatmul.mubr.bf16.gmra.mxu0 %v1348
      %v1503 = vpop.f32.mrf.mxu0
      %v1504 = vadd.f32 0.0, %v1503
      %v1505 = vpop.f32.mrf.mxu0
      %v1506 = vpop.f32.mrf.mxu0
      %v1507 = vadd.f32 0.0, %v1506
      %v1508 = vpop.f32.mrf.mxu0
      %1509 = vmatprep.mubr.bf16.mxu0 0
      %1510 = vmatmul.mubr.bf16.gmra.mxu0 %v1351
      %v1511 = vpop.f32.mrf.mxu0
      %v1512 = vadd.f32 0.0, %v1511
      %v1513 = vpop.f32.mrf.mxu0
      %v1514 = vpop.f32.mrf.mxu0
      %v1515 = vadd.f32 0.0, %v1514
      %v1516 = vpop.f32.mrf.mxu0
      %1517 = vmatprep.mubr.bf16.mxu0 0
      %1518 = vmatmul.mubr.bf16.gmra.mxu0 %v1354
      %v1519 = vpop.f32.mrf.mxu0
      %v1520 = vadd.f32 0.0, %v1519
      %v1521 = vpop.f32.mrf.mxu0
      %v1522 = vpop.f32.mrf.mxu0
      %v1523 = vadd.f32 0.0, %v1522
      %v1524 = vpop.f32.mrf.mxu0
      %1525 = vmatprep.mubr.bf16.mxu0 0
      %1526 = vmatmul.mubr.bf16.gmra.mxu0 %v1357
      %v1527 = vpop.f32.mrf.mxu0
      %v1528 = vadd.f32 0.0, %v1527
      %v1529 = vpop.f32.mrf.mxu0
      %v1530 = vpop.f32.mrf.mxu0
      %v1531 = vadd.f32 0.0, %v1530
      %v1532 = vpop.f32.mrf.mxu0
      %1533 = vmatprep.mubr.bf16.mxu0 0
      %1534 = vmatmul.mubr.bf16.gmra.mxu0 %v1360
      %v1535 = vpop.f32.mrf.mxu0
      %v1536 = vadd.f32 0.0, %v1535
      %v1537 = vpop.f32.mrf.mxu0
      %v1538 = vpop.f32.mrf.mxu0
      %v1539 = vadd.f32 0.0, %v1538
      %v1540 = vpop.f32.mrf.mxu0
      %1541 = vdwg.mxu0
      %v1542 = vadd.f32 %v1270, %v1400
      %v1543 = vadd.f32 %v1271, %v1403
      %v1544 = vadd.f32 %v1272, %v1408
      %v1545 = vadd.f32 %v1273, %v1411
      %v1546 = vadd.f32 %v1274, %v1416
      %v1547 = vadd.f32 %v1275, %v1419
      %v1548 = vadd.f32 %v1276, %v1424
      %v1549 = vadd.f32 %v1277, %v1427
      %v1550 = vadd.f32 %v1278, %v1432
      %v1551 = vadd.f32 %v1279, %v1435
      %v1552 = vadd.f32 %v1280, %v1440
      %v1553 = vadd.f32 %v1281, %v1443
      %v1554 = vadd.f32 %v1282, %v1448
      %v1555 = vadd.f32 %v1283, %v1451
      %v1556 = vadd.f32 %v1284, %v1456
      %v1557 = vadd.f32 %v1285, %v1459
      %v1558 = vadd.f32 %v1286, %v1464
      %v1559 = vadd.f32 %v1287, %v1467
      %v1560 = vadd.f32 %v1288, %v1472
      %v1561 = vadd.f32 %v1289, %v1475
      %v1562 = vadd.f32 %v1290, %v1480
      %v1563 = vadd.f32 %v1291, %v1483
      %v1564 = vadd.f32 %v1292, %v1488
      %v1565 = vadd.f32 %v1293, %v1491
      %v1566 = vadd.f32 %v1294, %v1496
      %v1567 = vadd.f32 %v1295, %v1499
      %v1568 = vadd.f32 %v1296, %v1504
      %v1569 = vadd.f32 %v1297, %v1507
      %v1570 = vadd.f32 %v1298, %v1512
      %v1571 = vadd.f32 %v1299, %v1515
      %v1572 = vadd.f32 %v1300, %v1520
      %v1573 = vadd.f32 %v1301, %v1523
      %v1574 = vadd.f32 %v1302, %v1528
      %v1575 = vadd.f32 %v1303, %v1531
      %v1576 = vadd.f32 %v1304, %v1536
      %v1577 = vadd.f32 %v1305, %v1539
      %1578 = vst.msk [vmem:[#allocation2] sm:$0xff] %vm339, %v1542
      %1579 = vst.msk [vmem:[#allocation2 + $0x8] sm:$0xff] %vm339, %v1543
      %1580 = vst.msk [vmem:[#allocation2 + $0x10] sm:$0xff] %vm339, %v1544
      %1581 = vst.msk [vmem:[#allocation2 + $0x18] sm:$0xff] %vm339, %v1545
      %1582 = vst.msk [vmem:[#allocation2 + $0x20] sm:$0xff] %vm339, %v1546
      %1583 = vst.msk [vmem:[#allocation2 + $0x28] sm:$0xff] %vm339, %v1547
      %1584 = vst.msk [vmem:[#allocation2 + $0x30] sm:$0xff] %vm339, %v1548
      %1585 = vst.msk [vmem:[#allocation2 + $0x38] sm:$0xff] %vm339, %v1549
      %1586 = vst.msk [vmem:[#allocation2 + $0x40] sm:$0xff] %vm339, %v1550
      %1587 = vst.msk [vmem:[#allocation2 + $0x48] sm:$0xff] %vm339, %v1551
      %1588 = vst.msk [vmem:[#allocation2 + $0x50] sm:$0xff] %vm339, %v1552
      %1589 = vst.msk [vmem:[#allocation2 + $0x58] sm:$0xff] %vm339, %v1553
      %1590 = vst.msk [vmem:[#allocation2 + $0x60] sm:$0xff] %vm339, %v1554
      %1591 = vst.msk [vmem:[#allocation2 + $0x68] sm:$0xff] %vm339, %v1555
      %1592 = vst.msk [vmem:[#allocation2 + $0x70] sm:$0xff] %vm339, %v1556
      %1593 = vst.msk [vmem:[#allocation2 + $0x78] sm:$0xff] %vm339, %v1557
      %1594 = vst.msk [vmem:[#allocation2 + $0x80] sm:$0xff] %vm339, %v1558
      %1595 = vst.msk [vmem:[#allocation2 + $0x88] sm:$0xff] %vm339, %v1559
      %1596 = vst.msk [vmem:[#allocation2 + $0x90] sm:$0xff] %vm339, %v1560
      %1597 = vst.msk [vmem:[#allocation2 + $0x98] sm:$0xff] %vm339, %v1561
      %1598 = vst.msk [vmem:[#allocation2 + $0xa0] sm:$0xff] %vm339, %v1562
      %1599 = vst.msk [vmem:[#allocation2 + $0xa8] sm:$0xff] %vm339, %v1563
      %1600 = vst.msk [vmem:[#allocation2 + $0xb0] sm:$0xff] %vm339, %v1564
      %1601 = vst.msk [vmem:[#allocation2 + $0xb8] sm:$0xff] %vm339, %v1565
      %1602 = vst.msk [vmem:[#allocation2 + $0xc0] sm:$0xff] %vm339, %v1566
      %1603 = vst.msk [vmem:[#allocation2 + $0xc8] sm:$0xff] %vm339, %v1567
      %1604 = vst.msk [vmem:[#allocation2 + $0xd0] sm:$0xff] %vm339, %v1568
      %1605 = vst.msk [vmem:[#allocation2 + $0xd8] sm:$0xff] %vm339, %v1569
      %1606 = vst.msk [vmem:[#allocation2 + $0xe0] sm:$0xff] %vm339, %v1570
      %1607 = vst.msk [vmem:[#allocation2 + $0xe8] sm:$0xff] %vm339, %v1571
      %1608 = vst.msk [vmem:[#allocation2 + $0xf0] sm:$0xff] %vm339, %v1572
      %1609 = vst.msk [vmem:[#allocation2 + $0xf8] sm:$0xff] %vm339, %v1573
      %1610 = vst.msk [vmem:[#allocation2 + $0x100] sm:$0xff] %vm339, %v1574
      %1611 = vst.msk [vmem:[#allocation2 + $0x108] sm:$0xff] %vm339, %v1575
      %1612 = vst.msk [vmem:[#allocation2 + $0x110] sm:$0xff] %vm339, %v1576
      %1613 = vst.msk [vmem:[#allocation2 + $0x118] sm:$0xff] %vm339, %v1577
      %v1614 = vld [vmem:[#allocation4 + $0x12] sm:$0xff]
      %v1615 = vld [vmem:[#allocation4 + $0x1a] sm:$0xff]
      %v1616 = vld [vmem:[#allocation4 + $0x22] sm:$0xff]
      %v1617 = vld [vmem:[#allocation4 + $0x2a] sm:$0xff]
      %v1618 = vld [vmem:[#allocation4 + $0x32] sm:$0xff]
      %v1619 = vld [vmem:[#allocation4 + $0x3a] sm:$0xff]
      %v1620 = vld [vmem:[#allocation4 + $0x42] sm:$0xff]
      %v1621 = vld [vmem:[#allocation4 + $0x4a] sm:$0xff]
      %v1622 = vld [vmem:[#allocation4 + $0x52] sm:$0xff]
      %v1623 = vld [vmem:[#allocation4 + $0x5a] sm:$0xff]
      %v1624 = vld [vmem:[#allocation4 + $0x62] sm:$0xff]
      %v1625 = vld [vmem:[#allocation4 + $0x6a] sm:$0xff]
      %v1626 = vld [vmem:[#allocation4 + $0x72] sm:$0xff]
      %v1627 = vld [vmem:[#allocation4 + $0x7a] sm:$0xff]
      %v1628 = vld [vmem:[#allocation4 + $0x82] sm:$0xff]
      %v1629 = vld [vmem:[#allocation4 + $0x8a] sm:$0xff]
      %v1630 = vld [vmem:[#allocation4 + $0x92] sm:$0xff]
      %v1631 = vld [vmem:[#allocation4 + $0x9a] sm:$0xff]
      %v1632 = vld [vmem:[#allocation4 + $0xa2] sm:$0xff]
      %v1633 = vld [vmem:[#allocation4 + $0xaa] sm:$0xff]
      %v1634 = vld [vmem:[#allocation4 + $0xb2] sm:$0xff]
      %v1635 = vld [vmem:[#allocation4 + $0xba] sm:$0xff]
      %v1636 = vld [vmem:[#allocation4 + $0xc2] sm:$0xff]
      %v1637 = vld [vmem:[#allocation4 + $0xca] sm:$0xff]
      %v1638 = vld [vmem:[#allocation4 + $0xd2] sm:$0xff]
      %v1639 = vld [vmem:[#allocation4 + $0xda] sm:$0xff]
      %v1640 = vld [vmem:[#allocation4 + $0xe2] sm:$0xff]
      %v1641 = vld [vmem:[#allocation4 + $0xea] sm:$0xff]
      %v1642 = vld [vmem:[#allocation4 + $0xf2] sm:$0xff]
      %v1643 = vld [vmem:[#allocation4 + $0xfa] sm:$0xff]
      %v1644 = vld [vmem:[#allocation4 + $0x102] sm:$0xff]
      %v1645 = vld [vmem:[#allocation4 + $0x10a] sm:$0xff]
      %v1646 = vld [vmem:[#allocation4 + $0x112] sm:$0xff]
      %v1647 = vld [vmem:[#allocation4 + $0x11a] sm:$0xff]
      %v1648 = vld [vmem:[#allocation4 + $0x122] sm:$0xff]
      %v1649 = vld [vmem:[#allocation4 + $0x12a] sm:$0xff]
      %v1650 = vpack.c.bf16 %v1615, %v1614
      %v1651 = vpack.c.bf16 %v1617, %v1616
      %v1652 = vpack.c.bf16 %v1619, %v1618
      %v1653 = vpack.c.bf16 %v1621, %v1620
      %v1654 = vpack.c.bf16 %v1623, %v1622
      %v1655 = vpack.c.bf16 %v1625, %v1624
      %v1656 = vpack.c.bf16 %v1627, %v1626
      %v1657 = vpack.c.bf16 %v1629, %v1628
      %v1658 = vpack.c.bf16 %v1631, %v1630
      %v1659 = vpack.c.bf16 %v1633, %v1632
      %v1660 = vpack.c.bf16 %v1635, %v1634
      %v1661 = vpack.c.bf16 %v1637, %v1636
      %v1662 = vpack.c.bf16 %v1639, %v1638
      %v1663 = vpack.c.bf16 %v1641, %v1640
      %v1664 = vpack.c.bf16 %v1643, %v1642
      %v1665 = vpack.c.bf16 %v1645, %v1644
      %v1666 = vpack.c.bf16 %v1647, %v1646
      %v1667 = vpack.c.bf16 %v1649, %v1648
      %v1668 = vld [vmem:[#allocation2] sm:$0xff]
      %v1669 = vld [vmem:[#allocation2 + $0x8] sm:$0xff]
      %v1670 = vld [vmem:[#allocation2 + $0x10] sm:$0xff]
      %v1671 = vld [vmem:[#allocation2 + $0x18] sm:$0xff]
      %v1672 = vld [vmem:[#allocation2 + $0x20] sm:$0xff]
      %v1673 = vld [vmem:[#allocation2 + $0x28] sm:$0xff]
      %v1674 = vld [vmem:[#allocation2 + $0x30] sm:$0xff]
      %v1675 = vld [vmem:[#allocation2 + $0x38] sm:$0xff]
      %v1676 = vld [vmem:[#allocation2 + $0x40] sm:$0xff]
      %v1677 = vld [vmem:[#allocation2 + $0x48] sm:$0xff]
      %v1678 = vld [vmem:[#allocation2 + $0x50] sm:$0xff]
      %v1679 = vld [vmem:[#allocation2 + $0x58] sm:$0xff]
      %v1680 = vld [vmem:[#allocation2 + $0x60] sm:$0xff]
      %v1681 = vld [vmem:[#allocation2 + $0x68] sm:$0xff]
      %v1682 = vld [vmem:[#allocation2 + $0x70] sm:$0xff]
      %v1683 = vld [vmem:[#allocation2 + $0x78] sm:$0xff]
      %v1684 = vld [vmem:[#allocation2 + $0x80] sm:$0xff]
      %v1685 = vld [vmem:[#allocation2 + $0x88] sm:$0xff]
      %v1686 = vld [vmem:[#allocation2 + $0x90] sm:$0xff]
      %v1687 = vld [vmem:[#allocation2 + $0x98] sm:$0xff]
      %v1688 = vld [vmem:[#allocation2 + $0xa0] sm:$0xff]
      %v1689 = vld [vmem:[#allocation2 + $0xa8] sm:$0xff]
      %v1690 = vld [vmem:[#allocation2 + $0xb0] sm:$0xff]
      %v1691 = vld [vmem:[#allocation2 + $0xb8] sm:$0xff]
      %v1692 = vld [vmem:[#allocation2 + $0xc0] sm:$0xff]
      %v1693 = vld [vmem:[#allocation2 + $0xc8] sm:$0xff]
      %v1694 = vld [vmem:[#allocation2 + $0xd0] sm:$0xff]
      %v1695 = vld [vmem:[#allocation2 + $0xd8] sm:$0xff]
      %v1696 = vld [vmem:[#allocation2 + $0xe0] sm:$0xff]
      %v1697 = vld [vmem:[#allocation2 + $0xe8] sm:$0xff]
      %v1698 = vld [vmem:[#allocation2 + $0xf0] sm:$0xff]
      %v1699 = vld [vmem:[#allocation2 + $0xf8] sm:$0xff]
      %v1700 = vld [vmem:[#allocation2 + $0x100] sm:$0xff]
      %v1701 = vld [vmem:[#allocation2 + $0x108] sm:$0xff]
      %v1702 = vld [vmem:[#allocation2 + $0x110] sm:$0xff]
      %v1703 = vld [vmem:[#allocation2 + $0x118] sm:$0xff]
      %s1704 = scalar_lea.vmem %s1, 6
      %v1705 = vld [vmem:[%s1704] sm:$0x3]
      %v1707 = vsel %vm339, %v1650, 0
      %v1710 = vsel %vm339, %v1651, 0
      %v1713 = vsel %vm339, %v1652, 0
      %v1716 = vsel %vm339, %v1653, 0
      %v1719 = vsel %vm339, %v1654, 0
      %v1722 = vsel %vm339, %v1655, 0
      %v1725 = vsel %vm339, %v1656, 0
      %v1728 = vsel %vm339, %v1657, 0
      %v1731 = vsel %vm339, %v1658, 0
      %v1734 = vsel %vm339, %v1659, 0
      %v1737 = vsel %vm339, %v1660, 0
      %v1740 = vsel %vm339, %v1661, 0
      %v1743 = vsel %vm339, %v1662, 0
      %v1746 = vsel %vm339, %v1663, 0
      %v1749 = vsel %vm339, %v1664, 0
      %v1752 = vsel %vm339, %v1665, 0
      %v1755 = vsel %vm339, %v1666, 0
      %v1758 = vsel %vm339, %v1667, 0
      %v1761 = vsel %vm565, %v1705, 0
      %1763 = vmatprep.subr.bf16.mxu0 0
      %1764 = vmatpush1.bf16.msra.mxu0 0
      %1765 = vmatprep.subr.bf16.mxu0 0
      %1766 = vmatpush1.bf16.msra.mxu0 0
      %1767 = vmatprep.subr.bf16.mxu0 0
      %1768 = vmatpush1.bf16.msra.mxu0 0
      %1769 = vmatprep.subr.bf16.mxu0 0
      %1770 = vmatpush1.bf16.msra.mxu0 0
      %1771 = vmatprep.subr.bf16.mxu0 0
      %1772 = vmatpush1.bf16.msra.mxu0 0
      %1773 = vmatprep.subr.bf16.mxu0 0
      %1774 = vmatpush1.bf16.msra.mxu0 0
      %1775 = vmatprep.subr.bf16.mxu0 0
      %1776 = vmatpush1.bf16.msra.mxu0 0
      %1777 = vmatprep.subr.bf16.mxu0 0
      %1778 = vmatpush1.bf16.msra.mxu0 %v1761
      %1779 = vmatprep.subr.bf16.mxu0 0
      %1780 = vmatpush2.bf16.msra.mxu0 0
      %1781 = vmatprep.subr.bf16.mxu0 0
      %1782 = vmatpush2.bf16.msra.mxu0 0
      %1783 = vmatprep.subr.bf16.mxu0 0
      %1784 = vmatpush2.bf16.msra.mxu0 0
      %1785 = vmatprep.subr.bf16.mxu0 0
      %1786 = vmatpush2.bf16.msra.mxu0 0
      %1787 = vmatprep.subr.bf16.mxu0 0
      %1788 = vmatpush2.bf16.msra.mxu0 0
      %1789 = vmatprep.subr.bf16.mxu0 0
      %1790 = vmatpush2.bf16.msra.mxu0 0
      %1791 = vmatprep.subr.bf16.mxu0 0
      %1792 = vmatpush2.bf16.msra.mxu0 0
      %1793 = vmatprep.subr.bf16.mxu0 0
      %1794 = vmatpush2.bf16.msra.mxu0 0
      %1795 = vmatprep.mubr.bf16.mxu0 0
      %1796 = vmatmul.mubr.bf16.gmra.mxu0 %v1707
      %v1797 = vpop.f32.mrf.mxu0
      %v1798 = vadd.f32 0.0, %v1797
      %v1799 = vpop.f32.mrf.mxu0
      %v1800 = vpop.f32.mrf.mxu0
      %v1801 = vadd.f32 0.0, %v1800
      %v1802 = vpop.f32.mrf.mxu0
      %1803 = vmatprep.mubr.bf16.mxu0 0
      %1804 = vmatmul.mubr.bf16.gmra.mxu0 %v1710
      %v1805 = vpop.f32.mrf.mxu0
      %v1806 = vadd.f32 0.0, %v1805
      %v1807 = vpop.f32.mrf.mxu0
      %v1808 = vpop.f32.mrf.mxu0
      %v1809 = vadd.f32 0.0, %v1808
      %v1810 = vpop.f32.mrf.mxu0
      %1811 = vmatprep.mubr.bf16.mxu0 0
      %1812 = vmatmul.mubr.bf16.gmra.mxu0 %v1713
      %v1813 = vpop.f32.mrf.mxu0
      %v1814 = vadd.f32 0.0, %v1813
      %v1815 = vpop.f32.mrf.mxu0
      %v1816 = vpop.f32.mrf.mxu0
      %v1817 = vadd.f32 0.0, %v1816
      %v1818 = vpop.f32.mrf.mxu0
      %1819 = vmatprep.mubr.bf16.mxu0 0
      %1820 = vmatmul.mubr.bf16.gmra.mxu0 %v1716
      %v1821 = vpop.f32.mrf.mxu0
      %v1822 = vadd.f32 0.0, %v1821
      %v1823 = vpop.f32.mrf.mxu0
      %v1824 = vpop.f32.mrf.mxu0
      %v1825 = vadd.f32 0.0, %v1824
      %v1826 = vpop.f32.mrf.mxu0
      %1827 = vmatprep.mubr.bf16.mxu0 0
      %1828 = vmatmul.mubr.bf16.gmra.mxu0 %v1719
      %v1829 = vpop.f32.mrf.mxu0
      %v1830 = vadd.f32 0.0, %v1829
      %v1831 = vpop.f32.mrf.mxu0
      %v1832 = vpop.f32.mrf.mxu0
      %v1833 = vadd.f32 0.0, %v1832
      %v1834 = vpop.f32.mrf.mxu0
      %1835 = vmatprep.mubr.bf16.mxu0 0
      %1836 = vmatmul.mubr.bf16.gmra.mxu0 %v1722
      %v1837 = vpop.f32.mrf.mxu0
      %v1838 = vadd.f32 0.0, %v1837
      %v1839 = vpop.f32.mrf.mxu0
      %v1840 = vpop.f32.mrf.mxu0
      %v1841 = vadd.f32 0.0, %v1840
      %v1842 = vpop.f32.mrf.mxu0
      %1843 = vmatprep.mubr.bf16.mxu0 0
      %1844 = vmatmul.mubr.bf16.gmra.mxu0 %v1725
      %v1845 = vpop.f32.mrf.mxu0
      %v1846 = vadd.f32 0.0, %v1845
      %v1847 = vpop.f32.mrf.mxu0
      %v1848 = vpop.f32.mrf.mxu0
      %v1849 = vadd.f32 0.0, %v1848
      %v1850 = vpop.f32.mrf.mxu0
      %1851 = vmatprep.mubr.bf16.mxu0 0
      %1852 = vmatmul.mubr.bf16.gmra.mxu0 %v1728
      %v1853 = vpop.f32.mrf.mxu0
      %v1854 = vadd.f32 0.0, %v1853
      %v1855 = vpop.f32.mrf.mxu0
      %v1856 = vpop.f32.mrf.mxu0
      %v1857 = vadd.f32 0.0, %v1856
      %v1858 = vpop.f32.mrf.mxu0
      %1859 = vmatprep.mubr.bf16.mxu0 0
      %1860 = vmatmul.mubr.bf16.gmra.mxu0 %v1731
      %v1861 = vpop.f32.mrf.mxu0
      %v1862 = vadd.f32 0.0, %v1861
      %v1863 = vpop.f32.mrf.mxu0
      %v1864 = vpop.f32.mrf.mxu0
      %v1865 = vadd.f32 0.0, %v1864
      %v1866 = vpop.f32.mrf.mxu0
      %1867 = vmatprep.mubr.bf16.mxu0 0
      %1868 = vmatmul.mubr.bf16.gmra.mxu0 %v1734
      %v1869 = vpop.f32.mrf.mxu0
      %v1870 = vadd.f32 0.0, %v1869
      %v1871 = vpop.f32.mrf.mxu0
      %v1872 = vpop.f32.mrf.mxu0
      %v1873 = vadd.f32 0.0, %v1872
      %v1874 = vpop.f32.mrf.mxu0
      %1875 = vmatprep.mubr.bf16.mxu0 0
      %1876 = vmatmul.mubr.bf16.gmra.mxu0 %v1737
      %v1877 = vpop.f32.mrf.mxu0
      %v1878 = vadd.f32 0.0, %v1877
      %v1879 = vpop.f32.mrf.mxu0
      %v1880 = vpop.f32.mrf.mxu0
      %v1881 = vadd.f32 0.0, %v1880
      %v1882 = vpop.f32.mrf.mxu0
      %1883 = vmatprep.mubr.bf16.mxu0 0
      %1884 = vmatmul.mubr.bf16.gmra.mxu0 %v1740
      %v1885 = vpop.f32.mrf.mxu0
      %v1886 = vadd.f32 0.0, %v1885
      %v1887 = vpop.f32.mrf.mxu0
      %v1888 = vpop.f32.mrf.mxu0
      %v1889 = vadd.f32 0.0, %v1888
      %v1890 = vpop.f32.mrf.mxu0
      %1891 = vmatprep.mubr.bf16.mxu0 0
      %1892 = vmatmul.mubr.bf16.gmra.mxu0 %v1743
      %v1893 = vpop.f32.mrf.mxu0
      %v1894 = vadd.f32 0.0, %v1893
      %v1895 = vpop.f32.mrf.mxu0
      %v1896 = vpop.f32.mrf.mxu0
      %v1897 = vadd.f32 0.0, %v1896
      %v1898 = vpop.f32.mrf.mxu0
      %1899 = vmatprep.mubr.bf16.mxu0 0
      %1900 = vmatmul.mubr.bf16.gmra.mxu0 %v1746
      %v1901 = vpop.f32.mrf.mxu0
      %v1902 = vadd.f32 0.0, %v1901
      %v1903 = vpop.f32.mrf.mxu0
      %v1904 = vpop.f32.mrf.mxu0
      %v1905 = vadd.f32 0.0, %v1904
      %v1906 = vpop.f32.mrf.mxu0
      %1907 = vmatprep.mubr.bf16.mxu0 0
      %1908 = vmatmul.mubr.bf16.gmra.mxu0 %v1749
      %v1909 = vpop.f32.mrf.mxu0
      %v1910 = vadd.f32 0.0, %v1909
      %v1911 = vpop.f32.mrf.mxu0
      %v1912 = vpop.f32.mrf.mxu0
      %v1913 = vadd.f32 0.0, %v1912
      %v1914 = vpop.f32.mrf.mxu0
      %1915 = vmatprep.mubr.bf16.mxu0 0
      %1916 = vmatmul.mubr.bf16.gmra.mxu0 %v1752
      %v1917 = vpop.f32.mrf.mxu0
      %v1918 = vadd.f32 0.0, %v1917
      %v1919 = vpop.f32.mrf.mxu0
      %v1920 = vpop.f32.mrf.mxu0
      %v1921 = vadd.f32 0.0, %v1920
      %v1922 = vpop.f32.mrf.mxu0
      %1923 = vmatprep.mubr.bf16.mxu0 0
      %1924 = vmatmul.mubr.bf16.gmra.mxu0 %v1755
      %v1925 = vpop.f32.mrf.mxu0
      %v1926 = vadd.f32 0.0, %v1925
      %v1927 = vpop.f32.mrf.mxu0
      %v1928 = vpop.f32.mrf.mxu0
      %v1929 = vadd.f32 0.0, %v1928
      %v1930 = vpop.f32.mrf.mxu0
      %1931 = vmatprep.mubr.bf16.mxu0 0
      %1932 = vmatmul.mubr.bf16.gmra.mxu0 %v1758
      %v1933 = vpop.f32.mrf.mxu0
      %v1934 = vadd.f32 0.0, %v1933
      %v1935 = vpop.f32.mrf.mxu0
      %v1936 = vpop.f32.mrf.mxu0
      %v1937 = vadd.f32 0.0, %v1936
      %v1938 = vpop.f32.mrf.mxu0
      %1939 = vdwg.mxu0
      %v1940 = vadd.f32 %v1668, %v1798
      %v1941 = vadd.f32 %v1669, %v1801
      %v1942 = vadd.f32 %v1670, %v1806
      %v1943 = vadd.f32 %v1671, %v1809
      %v1944 = vadd.f32 %v1672, %v1814
      %v1945 = vadd.f32 %v1673, %v1817
      %v1946 = vadd.f32 %v1674, %v1822
      %v1947 = vadd.f32 %v1675, %v1825
      %v1948 = vadd.f32 %v1676, %v1830
      %v1949 = vadd.f32 %v1677, %v1833
      %v1950 = vadd.f32 %v1678, %v1838
      %v1951 = vadd.f32 %v1679, %v1841
      %v1952 = vadd.f32 %v1680, %v1846
      %v1953 = vadd.f32 %v1681, %v1849
      %v1954 = vadd.f32 %v1682, %v1854
      %v1955 = vadd.f32 %v1683, %v1857
      %v1956 = vadd.f32 %v1684, %v1862
      %v1957 = vadd.f32 %v1685, %v1865
      %v1958 = vadd.f32 %v1686, %v1870
      %v1959 = vadd.f32 %v1687, %v1873
      %v1960 = vadd.f32 %v1688, %v1878
      %v1961 = vadd.f32 %v1689, %v1881
      %v1962 = vadd.f32 %v1690, %v1886
      %v1963 = vadd.f32 %v1691, %v1889
      %v1964 = vadd.f32 %v1692, %v1894
      %v1965 = vadd.f32 %v1693, %v1897
      %v1966 = vadd.f32 %v1694, %v1902
      %v1967 = vadd.f32 %v1695, %v1905
      %v1968 = vadd.f32 %v1696, %v1910
      %v1969 = vadd.f32 %v1697, %v1913
      %v1970 = vadd.f32 %v1698, %v1918
      %v1971 = vadd.f32 %v1699, %v1921
      %v1972 = vadd.f32 %v1700, %v1926
      %v1973 = vadd.f32 %v1701, %v1929
      %v1974 = vadd.f32 %v1702, %v1934
      %v1975 = vadd.f32 %v1703, %v1937
      %1976 = vst.msk [vmem:[#allocation2] sm:$0xff] %vm339, %v1940
      %1977 = vst.msk [vmem:[#allocation2 + $0x8] sm:$0xff] %vm339, %v1941
      %1978 = vst.msk [vmem:[#allocation2 + $0x10] sm:$0xff] %vm339, %v1942
      %1979 = vst.msk [vmem:[#allocation2 + $0x18] sm:$0xff] %vm339, %v1943
      %1980 = vst.msk [vmem:[#allocation2 + $0x20] sm:$0xff] %vm339, %v1944
      %1981 = vst.msk [vmem:[#allocation2 + $0x28] sm:$0xff] %vm339, %v1945
      %1982 = vst.msk [vmem:[#allocation2 + $0x30] sm:$0xff] %vm339, %v1946
      %1983 = vst.msk [vmem:[#allocation2 + $0x38] sm:$0xff] %vm339, %v1947
      %1984 = vst.msk [vmem:[#allocation2 + $0x40] sm:$0xff] %vm339, %v1948
      %1985 = vst.msk [vmem:[#allocation2 + $0x48] sm:$0xff] %vm339, %v1949
      %1986 = vst.msk [vmem:[#allocation2 + $0x50] sm:$0xff] %vm339, %v1950
      %1987 = vst.msk [vmem:[#allocation2 + $0x58] sm:$0xff] %vm339, %v1951
      %1988 = vst.msk [vmem:[#allocation2 + $0x60] sm:$0xff] %vm339, %v1952
      %1989 = vst.msk [vmem:[#allocation2 + $0x68] sm:$0xff] %vm339, %v1953
      %1990 = vst.msk [vmem:[#allocation2 + $0x70] sm:$0xff] %vm339, %v1954
      %1991 = vst.msk [vmem:[#allocation2 + $0x78] sm:$0xff] %vm339, %v1955
      %1992 = vst.msk [vmem:[#allocation2 + $0x80] sm:$0xff] %vm339, %v1956
      %1993 = vst.msk [vmem:[#allocation2 + $0x88] sm:$0xff] %vm339, %v1957
      %1994 = vst.msk [vmem:[#allocation2 + $0x90] sm:$0xff] %vm339, %v1958
      %1995 = vst.msk [vmem:[#allocation2 + $0x98] sm:$0xff] %vm339, %v1959
      %1996 = vst.msk [vmem:[#allocation2 + $0xa0] sm:$0xff] %vm339, %v1960
      %1997 = vst.msk [vmem:[#allocation2 + $0xa8] sm:$0xff] %vm339, %v1961
      %1998 = vst.msk [vmem:[#allocation2 + $0xb0] sm:$0xff] %vm339, %v1962
      %1999 = vst.msk [vmem:[#allocation2 + $0xb8] sm:$0xff] %vm339, %v1963
      %2000 = vst.msk [vmem:[#allocation2 + $0xc0] sm:$0xff] %vm339, %v1964
      %2001 = vst.msk [vmem:[#allocation2 + $0xc8] sm:$0xff] %vm339, %v1965
      %2002 = vst.msk [vmem:[#allocation2 + $0xd0] sm:$0xff] %vm339, %v1966
      %2003 = vst.msk [vmem:[#allocation2 + $0xd8] sm:$0xff] %vm339, %v1967
      %2004 = vst.msk [vmem:[#allocation2 + $0xe0] sm:$0xff] %vm339, %v1968
      %2005 = vst.msk [vmem:[#allocation2 + $0xe8] sm:$0xff] %vm339, %v1969
      %2006 = vst.msk [vmem:[#allocation2 + $0xf0] sm:$0xff] %vm339, %v1970
      %2007 = vst.msk [vmem:[#allocation2 + $0xf8] sm:$0xff] %vm339, %v1971
      %2008 = vst.msk [vmem:[#allocation2 + $0x100] sm:$0xff] %vm339, %v1972
      %2009 = vst.msk [vmem:[#allocation2 + $0x108] sm:$0xff] %vm339, %v1973
      %2010 = vst.msk [vmem:[#allocation2 + $0x110] sm:$0xff] %vm339, %v1974
      %2011 = vst.msk [vmem:[#allocation2 + $0x118] sm:$0xff] %vm339, %v1975
      %v2012 = vld [vmem:[#allocation4 + $0x13] sm:$0xff]
      %v2013 = vld [vmem:[#allocation4 + $0x1b] sm:$0xff]
      %v2014 = vld [vmem:[#allocation4 + $0x23] sm:$0xff]
      %v2015 = vld [vmem:[#allocation4 + $0x2b] sm:$0xff]
      %v2016 = vld [vmem:[#allocation4 + $0x33] sm:$0xff]
      %v2017 = vld [vmem:[#allocation4 + $0x3b] sm:$0xff]
      %v2018 = vld [vmem:[#allocation4 + $0x43] sm:$0xff]
      %v2019 = vld [vmem:[#allocation4 + $0x4b] sm:$0xff]
      %v2020 = vld [vmem:[#allocation4 + $0x53] sm:$0xff]
      %v2021 = vld [vmem:[#allocation4 + $0x5b] sm:$0xff]
      %v2022 = vld [vmem:[#allocation4 + $0x63] sm:$0xff]
      %v2023 = vld [vmem:[#allocation4 + $0x6b] sm:$0xff]
      %v2024 = vld [vmem:[#allocation4 + $0x73] sm:$0xff]
      %v2025 = vld [vmem:[#allocation4 + $0x7b] sm:$0xff]
      %v2026 = vld [vmem:[#allocation4 + $0x83] sm:$0xff]
      %v2027 = vld [vmem:[#allocation4 + $0x8b] sm:$0xff]
      %v2028 = vld [vmem:[#allocation4 + $0x93] sm:$0xff]
      %v2029 = vld [vmem:[#allocation4 + $0x9b] sm:$0xff]
      %v2030 = vld [vmem:[#allocation4 + $0xa3] sm:$0xff]
      %v2031 = vld [vmem:[#allocation4 + $0xab] sm:$0xff]
      %v2032 = vld [vmem:[#allocation4 + $0xb3] sm:$0xff]
      %v2033 = vld [vmem:[#allocation4 + $0xbb] sm:$0xff]
      %v2034 = vld [vmem:[#allocation4 + $0xc3] sm:$0xff]
      %v2035 = vld [vmem:[#allocation4 + $0xcb] sm:$0xff]
      %v2036 = vld [vmem:[#allocation4 + $0xd3] sm:$0xff]
      %v2037 = vld [vmem:[#allocation4 + $0xdb] sm:$0xff]
      %v2038 = vld [vmem:[#allocation4 + $0xe3] sm:$0xff]
      %v2039 = vld [vmem:[#allocation4 + $0xeb] sm:$0xff]
      %v2040 = vld [vmem:[#allocation4 + $0xf3] sm:$0xff]
      %v2041 = vld [vmem:[#allocation4 + $0xfb] sm:$0xff]
      %v2042 = vld [vmem:[#allocation4 + $0x103] sm:$0xff]
      %v2043 = vld [vmem:[#allocation4 + $0x10b] sm:$0xff]
      %v2044 = vld [vmem:[#allocation4 + $0x113] sm:$0xff]
      %v2045 = vld [vmem:[#allocation4 + $0x11b] sm:$0xff]
      %v2046 = vld [vmem:[#allocation4 + $0x123] sm:$0xff]
      %v2047 = vld [vmem:[#allocation4 + $0x12b] sm:$0xff]
      %v2048 = vpack.c.bf16 %v2013, %v2012
      %v2049 = vpack.c.bf16 %v2015, %v2014
      %v2050 = vpack.c.bf16 %v2017, %v2016
      %v2051 = vpack.c.bf16 %v2019, %v2018
      %v2052 = vpack.c.bf16 %v2021, %v2020
      %v2053 = vpack.c.bf16 %v2023, %v2022
      %v2054 = vpack.c.bf16 %v2025, %v2024
      %v2055 = vpack.c.bf16 %v2027, %v2026
      %v2056 = vpack.c.bf16 %v2029, %v2028
      %v2057 = vpack.c.bf16 %v2031, %v2030
      %v2058 = vpack.c.bf16 %v2033, %v2032
      %v2059 = vpack.c.bf16 %v2035, %v2034
      %v2060 = vpack.c.bf16 %v2037, %v2036
      %v2061 = vpack.c.bf16 %v2039, %v2038
      %v2062 = vpack.c.bf16 %v2041, %v2040
      %v2063 = vpack.c.bf16 %v2043, %v2042
      %v2064 = vpack.c.bf16 %v2045, %v2044
      %v2065 = vpack.c.bf16 %v2047, %v2046
      %v2066 = vld [vmem:[#allocation2] sm:$0xff]
      %v2067 = vld [vmem:[#allocation2 + $0x8] sm:$0xff]
      %v2068 = vld [vmem:[#allocation2 + $0x10] sm:$0xff]
      %v2069 = vld [vmem:[#allocation2 + $0x18] sm:$0xff]
      %v2070 = vld [vmem:[#allocation2 + $0x20] sm:$0xff]
      %v2071 = vld [vmem:[#allocation2 + $0x28] sm:$0xff]
      %v2072 = vld [vmem:[#allocation2 + $0x30] sm:$0xff]
      %v2073 = vld [vmem:[#allocation2 + $0x38] sm:$0xff]
      %v2074 = vld [vmem:[#allocation2 + $0x40] sm:$0xff]
      %v2075 = vld [vmem:[#allocation2 + $0x48] sm:$0xff]
      %v2076 = vld [vmem:[#allocation2 + $0x50] sm:$0xff]
      %v2077 = vld [vmem:[#allocation2 + $0x58] sm:$0xff]
      %v2078 = vld [vmem:[#allocation2 + $0x60] sm:$0xff]
      %v2079 = vld [vmem:[#allocation2 + $0x68] sm:$0xff]
      %v2080 = vld [vmem:[#allocation2 + $0x70] sm:$0xff]
      %v2081 = vld [vmem:[#allocation2 + $0x78] sm:$0xff]
      %v2082 = vld [vmem:[#allocation2 + $0x80] sm:$0xff]
      %v2083 = vld [vmem:[#allocation2 + $0x88] sm:$0xff]
      %v2084 = vld [vmem:[#allocation2 + $0x90] sm:$0xff]
      %v2085 = vld [vmem:[#allocation2 + $0x98] sm:$0xff]
      %v2086 = vld [vmem:[#allocation2 + $0xa0] sm:$0xff]
      %v2087 = vld [vmem:[#allocation2 + $0xa8] sm:$0xff]
      %v2088 = vld [vmem:[#allocation2 + $0xb0] sm:$0xff]
      %v2089 = vld [vmem:[#allocation2 + $0xb8] sm:$0xff]
      %v2090 = vld [vmem:[#allocation2 + $0xc0] sm:$0xff]
      %v2091 = vld [vmem:[#allocation2 + $0xc8] sm:$0xff]
      %v2092 = vld [vmem:[#allocation2 + $0xd0] sm:$0xff]
      %v2093 = vld [vmem:[#allocation2 + $0xd8] sm:$0xff]
      %v2094 = vld [vmem:[#allocation2 + $0xe0] sm:$0xff]
      %v2095 = vld [vmem:[#allocation2 + $0xe8] sm:$0xff]
      %v2096 = vld [vmem:[#allocation2 + $0xf0] sm:$0xff]
      %v2097 = vld [vmem:[#allocation2 + $0xf8] sm:$0xff]
      %v2098 = vld [vmem:[#allocation2 + $0x100] sm:$0xff]
      %v2099 = vld [vmem:[#allocation2 + $0x108] sm:$0xff]
      %v2100 = vld [vmem:[#allocation2 + $0x110] sm:$0xff]
      %v2101 = vld [vmem:[#allocation2 + $0x118] sm:$0xff]
      %s2102 = scalar_lea.vmem %s1, 8
      %v2103 = vld [vmem:[%s2102] sm:$0x3]
      %v2105 = vsel %vm339, %v2048, 0
      %v2108 = vsel %vm339, %v2049, 0
      %v2111 = vsel %vm339, %v2050, 0
      %v2114 = vsel %vm339, %v2051, 0
      %v2117 = vsel %vm339, %v2052, 0
      %v2120 = vsel %vm339, %v2053, 0
      %v2123 = vsel %vm339, %v2054, 0
      %v2126 = vsel %vm339, %v2055, 0
      %v2129 = vsel %vm339, %v2056, 0
      %v2132 = vsel %vm339, %v2057, 0
      %v2135 = vsel %vm339, %v2058, 0
      %v2138 = vsel %vm339, %v2059, 0
      %v2141 = vsel %vm339, %v2060, 0
      %v2144 = vsel %vm339, %v2061, 0
      %v2147 = vsel %vm339, %v2062, 0
      %v2150 = vsel %vm339, %v2063, 0
      %v2153 = vsel %vm339, %v2064, 0
      %v2156 = vsel %vm339, %v2065, 0
      %v2159 = vsel %vm565, %v2103, 0
      %2161 = vmatprep.subr.bf16.mxu0 0
      %2162 = vmatpush1.bf16.msra.mxu0 0
      %2163 = vmatprep.subr.bf16.mxu0 0
      %2164 = vmatpush1.bf16.msra.mxu0 0
      %2165 = vmatprep.subr.bf16.mxu0 0
      %2166 = vmatpush1.bf16.msra.mxu0 0
      %2167 = vmatprep.subr.bf16.mxu0 0
      %2168 = vmatpush1.bf16.msra.mxu0 0
      %2169 = vmatprep.subr.bf16.mxu0 0
      %2170 = vmatpush1.bf16.msra.mxu0 0
      %2171 = vmatprep.subr.bf16.mxu0 0
      %2172 = vmatpush1.bf16.msra.mxu0 0
      %2173 = vmatprep.subr.bf16.mxu0 0
      %2174 = vmatpush1.bf16.msra.mxu0 0
      %2175 = vmatprep.subr.bf16.mxu0 0
      %2176 = vmatpush1.bf16.msra.mxu0 %v2159
      %2177 = vmatprep.subr.bf16.mxu0 0
      %2178 = vmatpush2.bf16.msra.mxu0 0
      %2179 = vmatprep.subr.bf16.mxu0 0
      %2180 = vmatpush2.bf16.msra.mxu0 0
      %2181 = vmatprep.subr.bf16.mxu0 0
      %2182 = vmatpush2.bf16.msra.mxu0 0
      %2183 = vmatprep.subr.bf16.mxu0 0
      %2184 = vmatpush2.bf16.msra.mxu0 0
      %2185 = vmatprep.subr.bf16.mxu0 0
      %2186 = vmatpush2.bf16.msra.mxu0 0
      %2187 = vmatprep.subr.bf16.mxu0 0
      %2188 = vmatpush2.bf16.msra.mxu0 0
      %2189 = vmatprep.subr.bf16.mxu0 0
      %2190 = vmatpush2.bf16.msra.mxu0 0
      %2191 = vmatprep.subr.bf16.mxu0 0
      %2192 = vmatpush2.bf16.msra.mxu0 0
      %2193 = vmatprep.mubr.bf16.mxu0 0
      %2194 = vmatmul.mubr.bf16.gmra.mxu0 %v2105
      %v2195 = vpop.f32.mrf.mxu0
      %v2196 = vadd.f32 0.0, %v2195
      %v2197 = vpop.f32.mrf.mxu0
      %v2198 = vpop.f32.mrf.mxu0
      %v2199 = vadd.f32 0.0, %v2198
      %v2200 = vpop.f32.mrf.mxu0
      %2201 = vmatprep.mubr.bf16.mxu0 0
      %2202 = vmatmul.mubr.bf16.gmra.mxu0 %v2108
      %v2203 = vpop.f32.mrf.mxu0
      %v2204 = vadd.f32 0.0, %v2203
      %v2205 = vpop.f32.mrf.mxu0
      %v2206 = vpop.f32.mrf.mxu0
      %v2207 = vadd.f32 0.0, %v2206
      %v2208 = vpop.f32.mrf.mxu0
      %2209 = vmatprep.mubr.bf16.mxu0 0
      %2210 = vmatmul.mubr.bf16.gmra.mxu0 %v2111
      %v2211 = vpop.f32.mrf.mxu0
      %v2212 = vadd.f32 0.0, %v2211
      %v2213 = vpop.f32.mrf.mxu0
      %v2214 = vpop.f32.mrf.mxu0
      %v2215 = vadd.f32 0.0, %v2214
      %v2216 = vpop.f32.mrf.mxu0
      %2217 = vmatprep.mubr.bf16.mxu0 0
      %2218 = vmatmul.mubr.bf16.gmra.mxu0 %v2114
      %v2219 = vpop.f32.mrf.mxu0
      %v2220 = vadd.f32 0.0, %v2219
      %v2221 = vpop.f32.mrf.mxu0
      %v2222 = vpop.f32.mrf.mxu0
      %v2223 = vadd.f32 0.0, %v2222
      %v2224 = vpop.f32.mrf.mxu0
      %2225 = vmatprep.mubr.bf16.mxu0 0
      %2226 = vmatmul.mubr.bf16.gmra.mxu0 %v2117
      %v2227 = vpop.f32.mrf.mxu0
      %v2228 = vadd.f32 0.0, %v2227
      %v2229 = vpop.f32.mrf.mxu0
      %v2230 = vpop.f32.mrf.mxu0
      %v2231 = vadd.f32 0.0, %v2230
      %v2232 = vpop.f32.mrf.mxu0
      %2233 = vmatprep.mubr.bf16.mxu0 0
      %2234 = vmatmul.mubr.bf16.gmra.mxu0 %v2120
      %v2235 = vpop.f32.mrf.mxu0
      %v2236 = vadd.f32 0.0, %v2235
      %v2237 = vpop.f32.mrf.mxu0
      %v2238 = vpop.f32.mrf.mxu0
      %v2239 = vadd.f32 0.0, %v2238
      %v2240 = vpop.f32.mrf.mxu0
      %2241 = vmatprep.mubr.bf16.mxu0 0
      %2242 = vmatmul.mubr.bf16.gmra.mxu0 %v2123
      %v2243 = vpop.f32.mrf.mxu0
      %v2244 = vadd.f32 0.0, %v2243
      %v2245 = vpop.f32.mrf.mxu0
      %v2246 = vpop.f32.mrf.mxu0
      %v2247 = vadd.f32 0.0, %v2246
      %v2248 = vpop.f32.mrf.mxu0
      %2249 = vmatprep.mubr.bf16.mxu0 0
      %2250 = vmatmul.mubr.bf16.gmra.mxu0 %v2126
      %v2251 = vpop.f32.mrf.mxu0
      %v2252 = vadd.f32 0.0, %v2251
      %v2253 = vpop.f32.mrf.mxu0
      %v2254 = vpop.f32.mrf.mxu0
      %v2255 = vadd.f32 0.0, %v2254
      %v2256 = vpop.f32.mrf.mxu0
      %2257 = vmatprep.mubr.bf16.mxu0 0
      %2258 = vmatmul.mubr.bf16.gmra.mxu0 %v2129
      %v2259 = vpop.f32.mrf.mxu0
      %v2260 = vadd.f32 0.0, %v2259
      %v2261 = vpop.f32.mrf.mxu0
      %v2262 = vpop.f32.mrf.mxu0
      %v2263 = vadd.f32 0.0, %v2262
      %v2264 = vpop.f32.mrf.mxu0
      %2265 = vmatprep.mubr.bf16.mxu0 0
      %2266 = vmatmul.mubr.bf16.gmra.mxu0 %v2132
      %v2267 = vpop.f32.mrf.mxu0
      %v2268 = vadd.f32 0.0, %v2267
      %v2269 = vpop.f32.mrf.mxu0
      %v2270 = vpop.f32.mrf.mxu0
      %v2271 = vadd.f32 0.0, %v2270
      %v2272 = vpop.f32.mrf.mxu0
      %2273 = vmatprep.mubr.bf16.mxu0 0
      %2274 = vmatmul.mubr.bf16.gmra.mxu0 %v2135
      %v2275 = vpop.f32.mrf.mxu0
      %v2276 = vadd.f32 0.0, %v2275
      %v2277 = vpop.f32.mrf.mxu0
      %v2278 = vpop.f32.mrf.mxu0
      %v2279 = vadd.f32 0.0, %v2278
      %v2280 = vpop.f32.mrf.mxu0
      %2281 = vmatprep.mubr.bf16.mxu0 0
      %2282 = vmatmul.mubr.bf16.gmra.mxu0 %v2138
      %v2283 = vpop.f32.mrf.mxu0
      %v2284 = vadd.f32 0.0, %v2283
      %v2285 = vpop.f32.mrf.mxu0
      %v2286 = vpop.f32.mrf.mxu0
      %v2287 = vadd.f32 0.0, %v2286
      %v2288 = vpop.f32.mrf.mxu0
      %2289 = vmatprep.mubr.bf16.mxu0 0
      %2290 = vmatmul.mubr.bf16.gmra.mxu0 %v2141
      %v2291 = vpop.f32.mrf.mxu0
      %v2292 = vadd.f32 0.0, %v2291
      %v2293 = vpop.f32.mrf.mxu0
      %v2294 = vpop.f32.mrf.mxu0
      %v2295 = vadd.f32 0.0, %v2294
      %v2296 = vpop.f32.mrf.mxu0
      %2297 = vmatprep.mubr.bf16.mxu0 0
      %2298 = vmatmul.mubr.bf16.gmra.mxu0 %v2144
      %v2299 = vpop.f32.mrf.mxu0
      %v2300 = vadd.f32 0.0, %v2299
      %v2301 = vpop.f32.mrf.mxu0
      %v2302 = vpop.f32.mrf.mxu0
      %v2303 = vadd.f32 0.0, %v2302
      %v2304 = vpop.f32.mrf.mxu0
      %2305 = vmatprep.mubr.bf16.mxu0 0
      %2306 = vmatmul.mubr.bf16.gmra.mxu0 %v2147
      %v2307 = vpop.f32.mrf.mxu0
      %v2308 = vadd.f32 0.0, %v2307
      %v2309 = vpop.f32.mrf.mxu0
      %v2310 = vpop.f32.mrf.mxu0
      %v2311 = vadd.f32 0.0, %v2310
      %v2312 = vpop.f32.mrf.mxu0
      %2313 = vmatprep.mubr.bf16.mxu0 0
      %2314 = vmatmul.mubr.bf16.gmra.mxu0 %v2150
      %v2315 = vpop.f32.mrf.mxu0
      %v2316 = vadd.f32 0.0, %v2315
      %v2317 = vpop.f32.mrf.mxu0
      %v2318 = vpop.f32.mrf.mxu0
      %v2319 = vadd.f32 0.0, %v2318
      %v2320 = vpop.f32.mrf.mxu0
      %2321 = vmatprep.mubr.bf16.mxu0 0
      %2322 = vmatmul.mubr.bf16.gmra.mxu0 %v2153
      %v2323 = vpop.f32.mrf.mxu0
      %v2324 = vadd.f32 0.0, %v2323
      %v2325 = vpop.f32.mrf.mxu0
      %v2326 = vpop.f32.mrf.mxu0
      %v2327 = vadd.f32 0.0, %v2326
      %v2328 = vpop.f32.mrf.mxu0
      %2329 = vmatprep.mubr.bf16.mxu0 0
      %2330 = vmatmul.mubr.bf16.gmra.mxu0 %v2156
      %v2331 = vpop.f32.mrf.mxu0
      %v2332 = vadd.f32 0.0, %v2331
      %v2333 = vpop.f32.mrf.mxu0
      %v2334 = vpop.f32.mrf.mxu0
      %v2335 = vadd.f32 0.0, %v2334
      %v2336 = vpop.f32.mrf.mxu0
      %2337 = vdwg.mxu0
      %v2338 = vadd.f32 %v2066, %v2196
      %v2339 = vadd.f32 %v2067, %v2199
      %v2340 = vadd.f32 %v2068, %v2204
      %v2341 = vadd.f32 %v2069, %v2207
      %v2342 = vadd.f32 %v2070, %v2212
      %v2343 = vadd.f32 %v2071, %v2215
      %v2344 = vadd.f32 %v2072, %v2220
      %v2345 = vadd.f32 %v2073, %v2223
      %v2346 = vadd.f32 %v2074, %v2228
      %v2347 = vadd.f32 %v2075, %v2231
      %v2348 = vadd.f32 %v2076, %v2236
      %v2349 = vadd.f32 %v2077, %v2239
      %v2350 = vadd.f32 %v2078, %v2244
      %v2351 = vadd.f32 %v2079, %v2247
      %v2352 = vadd.f32 %v2080, %v2252
      %v2353 = vadd.f32 %v2081, %v2255
      %v2354 = vadd.f32 %v2082, %v2260
      %v2355 = vadd.f32 %v2083, %v2263
      %v2356 = vadd.f32 %v2084, %v2268
      %v2357 = vadd.f32 %v2085, %v2271
      %v2358 = vadd.f32 %v2086, %v2276
      %v2359 = vadd.f32 %v2087, %v2279
      %v2360 = vadd.f32 %v2088, %v2284
      %v2361 = vadd.f32 %v2089, %v2287
      %v2362 = vadd.f32 %v2090, %v2292
      %v2363 = vadd.f32 %v2091, %v2295
      %v2364 = vadd.f32 %v2092, %v2300
      %v2365 = vadd.f32 %v2093, %v2303
      %v2366 = vadd.f32 %v2094, %v2308
      %v2367 = vadd.f32 %v2095, %v2311
      %v2368 = vadd.f32 %v2096, %v2316
      %v2369 = vadd.f32 %v2097, %v2319
      %v2370 = vadd.f32 %v2098, %v2324
      %v2371 = vadd.f32 %v2099, %v2327
      %v2372 = vadd.f32 %v2100, %v2332
      %v2373 = vadd.f32 %v2101, %v2335
      %2374 = vst.msk [vmem:[#allocation2] sm:$0xff] %vm339, %v2338
      %2375 = vst.msk [vmem:[#allocation2 + $0x8] sm:$0xff] %vm339, %v2339
      %2376 = vst.msk [vmem:[#allocation2 + $0x10] sm:$0xff] %vm339, %v2340
      %2377 = vst.msk [vmem:[#allocation2 + $0x18] sm:$0xff] %vm339, %v2341
      %2378 = vst.msk [vmem:[#allocation2 + $0x20] sm:$0xff] %vm339, %v2342
      %2379 = vst.msk [vmem:[#allocation2 + $0x28] sm:$0xff] %vm339, %v2343
      %2380 = vst.msk [vmem:[#allocation2 + $0x30] sm:$0xff] %vm339, %v2344
      %2381 = vst.msk [vmem:[#allocation2 + $0x38] sm:$0xff] %vm339, %v2345
      %2382 = vst.msk [vmem:[#allocation2 + $0x40] sm:$0xff] %vm339, %v2346
      %2383 = vst.msk [vmem:[#allocation2 + $0x48] sm:$0xff] %vm339, %v2347
      %2384 = vst.msk [vmem:[#allocation2 + $0x50] sm:$0xff] %vm339, %v2348
      %2385 = vst.msk [vmem:[#allocation2 + $0x58] sm:$0xff] %vm339, %v2349
      %2386 = vst.msk [vmem:[#allocation2 + $0x60] sm:$0xff] %vm339, %v2350
      %2387 = vst.msk [vmem:[#allocation2 + $0x68] sm:$0xff] %vm339, %v2351
      %2388 = vst.msk [vmem:[#allocation2 + $0x70] sm:$0xff] %vm339, %v2352
      %2389 = vst.msk [vmem:[#allocation2 + $0x78] sm:$0xff] %vm339, %v2353
      %2390 = vst.msk [vmem:[#allocation2 + $0x80] sm:$0xff] %vm339, %v2354
      %2391 = vst.msk [vmem:[#allocation2 + $0x88] sm:$0xff] %vm339, %v2355
      %2392 = vst.msk [vmem:[#allocation2 + $0x90] sm:$0xff] %vm339, %v2356
      %2393 = vst.msk [vmem:[#allocation2 + $0x98] sm:$0xff] %vm339, %v2357
      %2394 = vst.msk [vmem:[#allocation2 + $0xa0] sm:$0xff] %vm339, %v2358
      %2395 = vst.msk [vmem:[#allocation2 + $0xa8] sm:$0xff] %vm339, %v2359
      %2396 = vst.msk [vmem:[#allocation2 + $0xb0] sm:$0xff] %vm339, %v2360
      %2397 = vst.msk [vmem:[#allocation2 + $0xb8] sm:$0xff] %vm339, %v2361
      %2398 = vst.msk [vmem:[#allocation2 + $0xc0] sm:$0xff] %vm339, %v2362
      %2399 = vst.msk [vmem:[#allocation2 + $0xc8] sm:$0xff] %vm339, %v2363
      %2400 = vst.msk [vmem:[#allocation2 + $0xd0] sm:$0xff] %vm339, %v2364
      %2401 = vst.msk [vmem:[#allocation2 + $0xd8] sm:$0xff] %vm339, %v2365
      %2402 = vst.msk [vmem:[#allocation2 + $0xe0] sm:$0xff] %vm339, %v2366
      %2403 = vst.msk [vmem:[#allocation2 + $0xe8] sm:$0xff] %vm339, %v2367
      %2404 = vst.msk [vmem:[#allocation2 + $0xf0] sm:$0xff] %vm339, %v2368
      %2405 = vst.msk [vmem:[#allocation2 + $0xf8] sm:$0xff] %vm339, %v2369
      %2406 = vst.msk [vmem:[#allocation2 + $0x100] sm:$0xff] %vm339, %v2370
      %2407 = vst.msk [vmem:[#allocation2 + $0x108] sm:$0xff] %vm339, %v2371
      %2408 = vst.msk [vmem:[#allocation2 + $0x110] sm:$0xff] %vm339, %v2372
      %2409 = vst.msk [vmem:[#allocation2 + $0x118] sm:$0xff] %vm339, %v2373
      %v2410 = vld [vmem:[#allocation4 + $0x14] sm:$0xff]
      %v2411 = vld [vmem:[#allocation4 + $0x1c] sm:$0xff]
      %v2412 = vld [vmem:[#allocation4 + $0x24] sm:$0xff]
      %v2413 = vld [vmem:[#allocation4 + $0x2c] sm:$0xff]
      %v2414 = vld [vmem:[#allocation4 + $0x34] sm:$0xff]
      %v2415 = vld [vmem:[#allocation4 + $0x3c] sm:$0xff]
      %v2416 = vld [vmem:[#allocation4 + $0x44] sm:$0xff]
      %v2417 = vld [vmem:[#allocation4 + $0x4c] sm:$0xff]
      %v2418 = vld [vmem:[#allocation4 + $0x54] sm:$0xff]
      %v2419 = vld [vmem:[#allocation4 + $0x5c] sm:$0xff]
      %v2420 = vld [vmem:[#allocation4 + $0x64] sm:$0xff]
      %v2421 = vld [vmem:[#allocation4 + $0x6c] sm:$0xff]
      %v2422 = vld [vmem:[#allocation4 + $0x74] sm:$0xff]
      %v2423 = vld [vmem:[#allocation4 + $0x7c] sm:$0xff]
      %v2424 = vld [vmem:[#allocation4 + $0x84] sm:$0xff]
      %v2425 = vld [vmem:[#allocation4 + $0x8c] sm:$0xff]
      %v2426 = vld [vmem:[#allocation4 + $0x94] sm:$0xff]
      %v2427 = vld [vmem:[#allocation4 + $0x9c] sm:$0xff]
      %v2428 = vld [vmem:[#allocation4 + $0xa4] sm:$0xff]
      %v2429 = vld [vmem:[#allocation4 + $0xac] sm:$0xff]
      %v2430 = vld [vmem:[#allocation4 + $0xb4] sm:$0xff]
      %v2431 = vld [vmem:[#allocation4 + $0xbc] sm:$0xff]
      %v2432 = vld [vmem:[#allocation4 + $0xc4] sm:$0xff]
      %v2433 = vld [vmem:[#allocation4 + $0xcc] sm:$0xff]
      %v2434 = vld [vmem:[#allocation4 + $0xd4] sm:$0xff]
      %v2435 = vld [vmem:[#allocation4 + $0xdc] sm:$0xff]
      %v2436 = vld [vmem:[#allocation4 + $0xe4] sm:$0xff]
      %v2437 = vld [vmem:[#allocation4 + $0xec] sm:$0xff]
      %v2438 = vld [vmem:[#allocation4 + $0xf4] sm:$0xff]
      %v2439 = vld [vmem:[#allocation4 + $0xfc] sm:$0xff]
      %v2440 = vld [vmem:[#allocation4 + $0x104] sm:$0xff]
      %v2441 = vld [vmem:[#allocation4 + $0x10c] sm:$0xff]
      %v2442 = vld [vmem:[#allocation4 + $0x114] sm:$0xff]
      %v2443 = vld [vmem:[#allocation4 + $0x11c] sm:$0xff]
      %v2444 = vld [vmem:[#allocation4 + $0x124] sm:$0xff]
      %v2445 = vld [vmem:[#allocation4 + $0x12c] sm:$0xff]
      %v2446 = vpack.c.bf16 %v2411, %v2410
      %v2447 = vpack.c.bf16 %v2413, %v2412
      %v2448 = vpack.c.bf16 %v2415, %v2414
      %v2449 = vpack.c.bf16 %v2417, %v2416
      %v2450 = vpack.c.bf16 %v2419, %v2418
      %v2451 = vpack.c.bf16 %v2421, %v2420
      %v2452 = vpack.c.bf16 %v2423, %v2422
      %v2453 = vpack.c.bf16 %v2425, %v2424
      %v2454 = vpack.c.bf16 %v2427, %v2426
      %v2455 = vpack.c.bf16 %v2429, %v2428
      %v2456 = vpack.c.bf16 %v2431, %v2430
      %v2457 = vpack.c.bf16 %v2433, %v2432
      %v2458 = vpack.c.bf16 %v2435, %v2434
      %v2459 = vpack.c.bf16 %v2437, %v2436
      %v2460 = vpack.c.bf16 %v2439, %v2438
      %v2461 = vpack.c.bf16 %v2441, %v2440
      %v2462 = vpack.c.bf16 %v2443, %v2442
      %v2463 = vpack.c.bf16 %v2445, %v2444
      %v2464 = vld [vmem:[#allocation2] sm:$0xff]
      %v2465 = vld [vmem:[#allocation2 + $0x8] sm:$0xff]
      %v2466 = vld [vmem:[#allocation2 + $0x10] sm:$0xff]
      %v2467 = vld [vmem:[#allocation2 + $0x18] sm:$0xff]
      %v2468 = vld [vmem:[#allocation2 + $0x20] sm:$0xff]
      %v2469 = vld [vmem:[#allocation2 + $0x28] sm:$0xff]
      %v2470 = vld [vmem:[#allocation2 + $0x30] sm:$0xff]
      %v2471 = vld [vmem:[#allocation2 + $0x38] sm:$0xff]
      %v2472 = vld [vmem:[#allocation2 + $0x40] sm:$0xff]
      %v2473 = vld [vmem:[#allocation2 + $0x48] sm:$0xff]
      %v2474 = vld [vmem:[#allocation2 + $0x50] sm:$0xff]
      %v2475 = vld [vmem:[#allocation2 + $0x58] sm:$0xff]
      %v2476 = vld [vmem:[#allocation2 + $0x60] sm:$0xff]
      %v2477 = vld [vmem:[#allocation2 + $0x68] sm:$0xff]
      %v2478 = vld [vmem:[#allocation2 + $0x70] sm:$0xff]
      %v2479 = vld [vmem:[#allocation2 + $0x78] sm:$0xff]
      %v2480 = vld [vmem:[#allocation2 + $0x80] sm:$0xff]
      %v2481 = vld [vmem:[#allocation2 + $0x88] sm:$0xff]
      %v2482 = vld [vmem:[#allocation2 + $0x90] sm:$0xff]
      %v2483 = vld [vmem:[#allocation2 + $0x98] sm:$0xff]
      %v2484 = vld [vmem:[#allocation2 + $0xa0] sm:$0xff]
      %v2485 = vld [vmem:[#allocation2 + $0xa8] sm:$0xff]
      %v2486 = vld [vmem:[#allocation2 + $0xb0] sm:$0xff]
      %v2487 = vld [vmem:[#allocation2 + $0xb8] sm:$0xff]
      %v2488 = vld [vmem:[#allocation2 + $0xc0] sm:$0xff]
      %v2489 = vld [vmem:[#allocation2 + $0xc8] sm:$0xff]
      %v2490 = vld [vmem:[#allocation2 + $0xd0] sm:$0xff]
      %v2491 = vld [vmem:[#allocation2 + $0xd8] sm:$0xff]
      %v2492 = vld [vmem:[#allocation2 + $0xe0] sm:$0xff]
      %v2493 = vld [vmem:[#allocation2 + $0xe8] sm:$0xff]
      %v2494 = vld [vmem:[#allocation2 + $0xf0] sm:$0xff]
      %v2495 = vld [vmem:[#allocation2 + $0xf8] sm:$0xff]
      %v2496 = vld [vmem:[#allocation2 + $0x100] sm:$0xff]
      %v2497 = vld [vmem:[#allocation2 + $0x108] sm:$0xff]
      %v2498 = vld [vmem:[#allocation2 + $0x110] sm:$0xff]
      %v2499 = vld [vmem:[#allocation2 + $0x118] sm:$0xff]
      %s2500 = scalar_lea.vmem %s1, 10
      %v2501 = vld [vmem:[%s2500] sm:$0x3]
      %v2503 = vsel %vm339, %v2446, 0
      %v2506 = vsel %vm339, %v2447, 0
      %v2509 = vsel %vm339, %v2448, 0
      %v2512 = vsel %vm339, %v2449, 0
      %v2515 = vsel %vm339, %v2450, 0
      %v2518 = vsel %vm339, %v2451, 0
      %v2521 = vsel %vm339, %v2452, 0
      %v2524 = vsel %vm339, %v2453, 0
      %v2527 = vsel %vm339, %v2454, 0
      %v2530 = vsel %vm339, %v2455, 0
      %v2533 = vsel %vm339, %v2456, 0
      %v2536 = vsel %vm339, %v2457, 0
      %v2539 = vsel %vm339, %v2458, 0
      %v2542 = vsel %vm339, %v2459, 0
      %v2545 = vsel %vm339, %v2460, 0
      %v2548 = vsel %vm339, %v2461, 0
      %v2551 = vsel %vm339, %v2462, 0
      %v2554 = vsel %vm339, %v2463, 0
      %v2557 = vsel %vm565, %v2501, 0
      %2559 = vmatprep.subr.bf16.mxu0 0
      %2560 = vmatpush1.bf16.msra.mxu0 0
      %2561 = vmatprep.subr.bf16.mxu0 0
      %2562 = vmatpush1.bf16.msra.mxu0 0
      %2563 = vmatprep.subr.bf16.mxu0 0
      %2564 = vmatpush1.bf16.msra.mxu0 0
      %2565 = vmatprep.subr.bf16.mxu0 0
      %2566 = vmatpush1.bf16.msra.mxu0 0
      %2567 = vmatprep.subr.bf16.mxu0 0
      %2568 = vmatpush1.bf16.msra.mxu0 0
      %2569 = vmatprep.subr.bf16.mxu0 0
      %2570 = vmatpush1.bf16.msra.mxu0 0
      %2571 = vmatprep.subr.bf16.mxu0 0
      %2572 = vmatpush1.bf16.msra.mxu0 0
      %2573 = vmatprep.subr.bf16.mxu0 0
      %2574 = vmatpush1.bf16.msra.mxu0 %v2557
      %2575 = vmatprep.subr.bf16.mxu0 0
      %2576 = vmatpush2.bf16.msra.mxu0 0
      %2577 = vmatprep.subr.bf16.mxu0 0
      %2578 = vmatpush2.bf16.msra.mxu0 0
      %2579 = vmatprep.subr.bf16.mxu0 0
      %2580 = vmatpush2.bf16.msra.mxu0 0
      %2581 = vmatprep.subr.bf16.mxu0 0
      %2582 = vmatpush2.bf16.msra.mxu0 0
      %2583 = vmatprep.subr.bf16.mxu0 0
      %2584 = vmatpush2.bf16.msra.mxu0 0
      %2585 = vmatprep.subr.bf16.mxu0 0
      %2586 = vmatpush2.bf16.msra.mxu0 0
      %2587 = vmatprep.subr.bf16.mxu0 0
      %2588 = vmatpush2.bf16.msra.mxu0 0
      %2589 = vmatprep.subr.bf16.mxu0 0
      %2590 = vmatpush2.bf16.msra.mxu0 0
      %2591 = vmatprep.mubr.bf16.mxu0 0
      %2592 = vmatmul.mubr.bf16.gmra.mxu0 %v2503
      %v2593 = vpop.f32.mrf.mxu0
      %v2594 = vadd.f32 0.0, %v2593
      %v2595 = vpop.f32.mrf.mxu0
      %v2596 = vpop.f32.mrf.mxu0
      %v2597 = vadd.f32 0.0, %v2596
      %v2598 = vpop.f32.mrf.mxu0
      %2599 = vmatprep.mubr.bf16.mxu0 0
      %2600 = vmatmul.mubr.bf16.gmra.mxu0 %v2506
      %v2601 = vpop.f32.mrf.mxu0
      %v2602 = vadd.f32 0.0, %v2601
      %v2603 = vpop.f32.mrf.mxu0
      %v2604 = vpop.f32.mrf.mxu0
      %v2605 = vadd.f32 0.0, %v2604
      %v2606 = vpop.f32.mrf.mxu0
      %2607 = vmatprep.mubr.bf16.mxu0 0
      %2608 = vmatmul.mubr.bf16.gmra.mxu0 %v2509
      %v2609 = vpop.f32.mrf.mxu0
      %v2610 = vadd.f32 0.0, %v2609
      %v2611 = vpop.f32.mrf.mxu0
      %v2612 = vpop.f32.mrf.mxu0
      %v2613 = vadd.f32 0.0, %v2612
      %v2614 = vpop.f32.mrf.mxu0
      %2615 = vmatprep.mubr.bf16.mxu0 0
      %2616 = vmatmul.mubr.bf16.gmra.mxu0 %v2512
      %v2617 = vpop.f32.mrf.mxu0
      %v2618 = vadd.f32 0.0, %v2617
      %v2619 = vpop.f32.mrf.mxu0
      %v2620 = vpop.f32.mrf.mxu0
      %v2621 = vadd.f32 0.0, %v2620
      %v2622 = vpop.f32.mrf.mxu0
      %2623 = vmatprep.mubr.bf16.mxu0 0
      %2624 = vmatmul.mubr.bf16.gmra.mxu0 %v2515
      %v2625 = vpop.f32.mrf.mxu0
      %v2626 = vadd.f32 0.0, %v2625
      %v2627 = vpop.f32.mrf.mxu0
      %v2628 = vpop.f32.mrf.mxu0
      %v2629 = vadd.f32 0.0, %v2628
      %v2630 = vpop.f32.mrf.mxu0
      %2631 = vmatprep.mubr.bf16.mxu0 0
      %2632 = vmatmul.mubr.bf16.gmra.mxu0 %v2518
      %v2633 = vpop.f32.mrf.mxu0
      %v2634 = vadd.f32 0.0, %v2633
      %v2635 = vpop.f32.mrf.mxu0
      %v2636 = vpop.f32.mrf.mxu0
      %v2637 = vadd.f32 0.0, %v2636
      %v2638 = vpop.f32.mrf.mxu0
      %2639 = vmatprep.mubr.bf16.mxu0 0
      %2640 = vmatmul.mubr.bf16.gmra.mxu0 %v2521
      %v2641 = vpop.f32.mrf.mxu0
      %v2642 = vadd.f32 0.0, %v2641
      %v2643 = vpop.f32.mrf.mxu0
      %v2644 = vpop.f32.mrf.mxu0
      %v2645 = vadd.f32 0.0, %v2644
      %v2646 = vpop.f32.mrf.mxu0
      %2647 = vmatprep.mubr.bf16.mxu0 0
      %2648 = vmatmul.mubr.bf16.gmra.mxu0 %v2524
      %v2649 = vpop.f32.mrf.mxu0
      %v2650 = vadd.f32 0.0, %v2649
      %v2651 = vpop.f32.mrf.mxu0
      %v2652 = vpop.f32.mrf.mxu0
      %v2653 = vadd.f32 0.0, %v2652
      %v2654 = vpop.f32.mrf.mxu0
      %2655 = vmatprep.mubr.bf16.mxu0 0
      %2656 = vmatmul.mubr.bf16.gmra.mxu0 %v2527
      %v2657 = vpop.f32.mrf.mxu0
      %v2658 = vadd.f32 0.0, %v2657
      %v2659 = vpop.f32.mrf.mxu0
      %v2660 = vpop.f32.mrf.mxu0
      %v2661 = vadd.f32 0.0, %v2660
      %v2662 = vpop.f32.mrf.mxu0
      %2663 = vmatprep.mubr.bf16.mxu0 0
      %2664 = vmatmul.mubr.bf16.gmra.mxu0 %v2530
      %v2665 = vpop.f32.mrf.mxu0
      %v2666 = vadd.f32 0.0, %v2665
      %v2667 = vpop.f32.mrf.mxu0
      %v2668 = vpop.f32.mrf.mxu0
      %v2669 = vadd.f32 0.0, %v2668
      %v2670 = vpop.f32.mrf.mxu0
      %2671 = vmatprep.mubr.bf16.mxu0 0
      %2672 = vmatmul.mubr.bf16.gmra.mxu0 %v2533
      %v2673 = vpop.f32.mrf.mxu0
      %v2674 = vadd.f32 0.0, %v2673
      %v2675 = vpop.f32.mrf.mxu0
      %v2676 = vpop.f32.mrf.mxu0
      %v2677 = vadd.f32 0.0, %v2676
      %v2678 = vpop.f32.mrf.mxu0
      %2679 = vmatprep.mubr.bf16.mxu0 0
      %2680 = vmatmul.mubr.bf16.gmra.mxu0 %v2536
      %v2681 = vpop.f32.mrf.mxu0
      %v2682 = vadd.f32 0.0, %v2681
      %v2683 = vpop.f32.mrf.mxu0
      %v2684 = vpop.f32.mrf.mxu0
      %v2685 = vadd.f32 0.0, %v2684
      %v2686 = vpop.f32.mrf.mxu0
      %2687 = vmatprep.mubr.bf16.mxu0 0
      %2688 = vmatmul.mubr.bf16.gmra.mxu0 %v2539
      %v2689 = vpop.f32.mrf.mxu0
      %v2690 = vadd.f32 0.0, %v2689
      %v2691 = vpop.f32.mrf.mxu0
      %v2692 = vpop.f32.mrf.mxu0
      %v2693 = vadd.f32 0.0, %v2692
      %v2694 = vpop.f32.mrf.mxu0
      %2695 = vmatprep.mubr.bf16.mxu0 0
      %2696 = vmatmul.mubr.bf16.gmra.mxu0 %v2542
      %v2697 = vpop.f32.mrf.mxu0
      %v2698 = vadd.f32 0.0, %v2697
      %v2699 = vpop.f32.mrf.mxu0
      %v2700 = vpop.f32.mrf.mxu0
      %v2701 = vadd.f32 0.0, %v2700
      %v2702 = vpop.f32.mrf.mxu0
      %2703 = vmatprep.mubr.bf16.mxu0 0
      %2704 = vmatmul.mubr.bf16.gmra.mxu0 %v2545
      %v2705 = vpop.f32.mrf.mxu0
      %v2706 = vadd.f32 0.0, %v2705
      %v2707 = vpop.f32.mrf.mxu0
      %v2708 = vpop.f32.mrf.mxu0
      %v2709 = vadd.f32 0.0, %v2708
      %v2710 = vpop.f32.mrf.mxu0
      %2711 = vmatprep.mubr.bf16.mxu0 0
      %2712 = vmatmul.mubr.bf16.gmra.mxu0 %v2548
      %v2713 = vpop.f32.mrf.mxu0
      %v2714 = vadd.f32 0.0, %v2713
      %v2715 = vpop.f32.mrf.mxu0
      %v2716 = vpop.f32.mrf.mxu0
      %v2717 = vadd.f32 0.0, %v2716
      %v2718 = vpop.f32.mrf.mxu0
      %2719 = vmatprep.mubr.bf16.mxu0 0
      %2720 = vmatmul.mubr.bf16.gmra.mxu0 %v2551
      %v2721 = vpop.f32.mrf.mxu0
      %v2722 = vadd.f32 0.0, %v2721
      %v2723 = vpop.f32.mrf.mxu0
      %v2724 = vpop.f32.mrf.mxu0
      %v2725 = vadd.f32 0.0, %v2724
      %v2726 = vpop.f32.mrf.mxu0
      %2727 = vmatprep.mubr.bf16.mxu0 0
      %2728 = vmatmul.mubr.bf16.gmra.mxu0 %v2554
      %v2729 = vpop.f32.mrf.mxu0
      %v2730 = vadd.f32 0.0, %v2729
      %v2731 = vpop.f32.mrf.mxu0
      %v2732 = vpop.f32.mrf.mxu0
      %v2733 = vadd.f32 0.0, %v2732
      %v2734 = vpop.f32.mrf.mxu0
      %2735 = vdwg.mxu0
      %v2736 = vadd.f32 %v2464, %v2594
      %v2737 = vadd.f32 %v2465, %v2597
      %v2738 = vadd.f32 %v2466, %v2602
      %v2739 = vadd.f32 %v2467, %v2605
      %v2740 = vadd.f32 %v2468, %v2610
      %v2741 = vadd.f32 %v2469, %v2613
      %v2742 = vadd.f32 %v2470, %v2618
      %v2743 = vadd.f32 %v2471, %v2621
      %v2744 = vadd.f32 %v2472, %v2626
      %v2745 = vadd.f32 %v2473, %v2629
      %v2746 = vadd.f32 %v2474, %v2634
      %v2747 = vadd.f32 %v2475, %v2637
      %v2748 = vadd.f32 %v2476, %v2642
      %v2749 = vadd.f32 %v2477, %v2645
      %v2750 = vadd.f32 %v2478, %v2650
      %v2751 = vadd.f32 %v2479, %v2653
      %v2752 = vadd.f32 %v2480, %v2658
      %v2753 = vadd.f32 %v2481, %v2661
      %v2754 = vadd.f32 %v2482, %v2666
      %v2755 = vadd.f32 %v2483, %v2669
      %v2756 = vadd.f32 %v2484, %v2674
      %v2757 = vadd.f32 %v2485, %v2677
      %v2758 = vadd.f32 %v2486, %v2682
      %v2759 = vadd.f32 %v2487, %v2685
      %v2760 = vadd.f32 %v2488, %v2690
      %v2761 = vadd.f32 %v2489, %v2693
      %v2762 = vadd.f32 %v2490, %v2698
      %v2763 = vadd.f32 %v2491, %v2701
      %v2764 = vadd.f32 %v2492, %v2706
      %v2765 = vadd.f32 %v2493, %v2709
      %v2766 = vadd.f32 %v2494, %v2714
      %v2767 = vadd.f32 %v2495, %v2717
      %v2768 = vadd.f32 %v2496, %v2722
      %v2769 = vadd.f32 %v2497, %v2725
      %v2770 = vadd.f32 %v2498, %v2730
      %v2771 = vadd.f32 %v2499, %v2733
      %2772 = vst.msk [vmem:[#allocation2] sm:$0xff] %vm339, %v2736
      %2773 = vst.msk [vmem:[#allocation2 + $0x8] sm:$0xff] %vm339, %v2737
      %2774 = vst.msk [vmem:[#allocation2 + $0x10] sm:$0xff] %vm339, %v2738
      %2775 = vst.msk [vmem:[#allocation2 + $0x18] sm:$0xff] %vm339, %v2739
      %2776 = vst.msk [vmem:[#allocation2 + $0x20] sm:$0xff] %vm339, %v2740
      %2777 = vst.msk [vmem:[#allocation2 + $0x28] sm:$0xff] %vm339, %v2741
      %2778 = vst.msk [vmem:[#allocation2 + $0x30] sm:$0xff] %vm339, %v2742
      %2779 = vst.msk [vmem:[#allocation2 + $0x38] sm:$0xff] %vm339, %v2743
      %2780 = vst.msk [vmem:[#allocation2 + $0x40] sm:$0xff] %vm339, %v2744
      %2781 = vst.msk [vmem:[#allocation2 + $0x48] sm:$0xff] %vm339, %v2745
      %2782 = vst.msk [vmem:[#allocation2 + $0x50] sm:$0xff] %vm339, %v2746
      %2783 = vst.msk [vmem:[#allocation2 + $0x58] sm:$0xff] %vm339, %v2747
      %2784 = vst.msk [vmem:[#allocation2 + $0x60] sm:$0xff] %vm339, %v2748
      %2785 = vst.msk [vmem:[#allocation2 + $0x68] sm:$0xff] %vm339, %v2749
      %2786 = vst.msk [vmem:[#allocation2 + $0x70] sm:$0xff] %vm339, %v2750
      %2787 = vst.msk [vmem:[#allocation2 + $0x78] sm:$0xff] %vm339, %v2751
      %2788 = vst.msk [vmem:[#allocation2 + $0x80] sm:$0xff] %vm339, %v2752
      %2789 = vst.msk [vmem:[#allocation2 + $0x88] sm:$0xff] %vm339, %v2753
      %2790 = vst.msk [vmem:[#allocation2 + $0x90] sm:$0xff] %vm339, %v2754
      %2791 = vst.msk [vmem:[#allocation2 + $0x98] sm:$0xff] %vm339, %v2755
      %2792 = vst.msk [vmem:[#allocation2 + $0xa0] sm:$0xff] %vm339, %v2756
      %2793 = vst.msk [vmem:[#allocation2 + $0xa8] sm:$0xff] %vm339, %v2757
      %2794 = vst.msk [vmem:[#allocation2 + $0xb0] sm:$0xff] %vm339, %v2758
      %2795 = vst.msk [vmem:[#allocation2 + $0xb8] sm:$0xff] %vm339, %v2759
      %2796 = vst.msk [vmem:[#allocation2 + $0xc0] sm:$0xff] %vm339, %v2760
      %2797 = vst.msk [vmem:[#allocation2 + $0xc8] sm:$0xff] %vm339, %v2761
      %2798 = vst.msk [vmem:[#allocation2 + $0xd0] sm:$0xff] %vm339, %v2762
      %2799 = vst.msk [vmem:[#allocation2 + $0xd8] sm:$0xff] %vm339, %v2763
      %2800 = vst.msk [vmem:[#allocation2 + $0xe0] sm:$0xff] %vm339, %v2764
      %2801 = vst.msk [vmem:[#allocation2 + $0xe8] sm:$0xff] %vm339, %v2765
      %2802 = vst.msk [vmem:[#allocation2 + $0xf0] sm:$0xff] %vm339, %v2766
      %2803 = vst.msk [vmem:[#allocation2 + $0xf8] sm:$0xff] %vm339, %v2767
      %2804 = vst.msk [vmem:[#allocation2 + $0x100] sm:$0xff] %vm339, %v2768
      %2805 = vst.msk [vmem:[#allocation2 + $0x108] sm:$0xff] %vm339, %v2769
      %2806 = vst.msk [vmem:[#allocation2 + $0x110] sm:$0xff] %vm339, %v2770
      %2807 = vst.msk [vmem:[#allocation2 + $0x118] sm:$0xff] %vm339, %v2771
      %v2808 = vld [vmem:[#allocation4 + $0x24] sm:$0xff]
      %v2809 = vld [vmem:[#allocation4 + $0x2c] sm:$0xff]
      %v2810 = vld [vmem:[#allocation4 + $0x34] sm:$0xff]
      %v2811 = vld [vmem:[#allocation4 + $0x3c] sm:$0xff]
      %v2812 = vld [vmem:[#allocation4 + $0x44] sm:$0xff]
      %v2813 = vld [vmem:[#allocation4 + $0x4c] sm:$0xff]
      %v2814 = vld [vmem:[#allocation4 + $0x54] sm:$0xff]
      %v2815 = vld [vmem:[#allocation4 + $0x5c] sm:$0xff]
      %v2816 = vld [vmem:[#allocation4 + $0x64] sm:$0xff]
      %v2817 = vld [vmem:[#allocation4 + $0x6c] sm:$0xff]
      %v2818 = vld [vmem:[#allocation4 + $0x74] sm:$0xff]
      %v2819 = vld [vmem:[#allocation4 + $0x7c] sm:$0xff]
      %v2820 = vld [vmem:[#allocation4 + $0x84] sm:$0xff]
      %v2821 = vld [vmem:[#allocation4 + $0x8c] sm:$0xff]
      %v2822 = vld [vmem:[#allocation4 + $0x94] sm:$0xff]
      %v2823 = vld [vmem:[#allocation4 + $0x9c] sm:$0xff]
      %v2824 = vld [vmem:[#allocation4 + $0xa4] sm:$0xff]
      %v2825 = vld [vmem:[#allocation4 + $0xac] sm:$0xff]
      %v2826 = vld [vmem:[#allocation4 + $0xb4] sm:$0xff]
      %v2827 = vld [vmem:[#allocation4 + $0xbc] sm:$0xff]
      %v2828 = vld [vmem:[#allocation4 + $0xc4] sm:$0xff]
      %v2829 = vld [vmem:[#allocation4 + $0xcc] sm:$0xff]
      %v2830 = vld [vmem:[#allocation4 + $0xd4] sm:$0xff]
      %v2831 = vld [vmem:[#allocation4 + $0xdc] sm:$0xff]
      %v2832 = vld [vmem:[#allocation4 + $0xe4] sm:$0xff]
      %v2833 = vld [vmem:[#allocation4 + $0xec] sm:$0xff]
      %v2834 = vld [vmem:[#allocation4 + $0xf4] sm:$0xff]
      %v2835 = vld [vmem:[#allocation4 + $0xfc] sm:$0xff]
      %v2836 = vld [vmem:[#allocation4 + $0x104] sm:$0xff]
      %v2837 = vld [vmem:[#allocation4 + $0x10c] sm:$0xff]
      %v2838 = vld [vmem:[#allocation4 + $0x114] sm:$0xff]
      %v2839 = vld [vmem:[#allocation4 + $0x11c] sm:$0xff]
      %v2840 = vld [vmem:[#allocation4 + $0x124] sm:$0xff]
      %v2841 = vld [vmem:[#allocation4 + $0x12c] sm:$0xff]
      %v2842 = vld [vmem:[#allocation4 + $0x134] sm:$0xff]
      %v2843 = vld [vmem:[#allocation4 + $0x13c] sm:$0xff]
      %v2844 = vpack.c.bf16 %v2809, %v2808
      %v2845 = vpack.c.bf16 %v2811, %v2810
      %v2846 = vpack.c.bf16 %v2813, %v2812
      %v2847 = vpack.c.bf16 %v2815, %v2814
      %v2848 = vpack.c.bf16 %v2817, %v2816
      %v2849 = vpack.c.bf16 %v2819, %v2818
      %v2850 = vpack.c.bf16 %v2821, %v2820
      %v2851 = vpack.c.bf16 %v2823, %v2822
      %v2852 = vpack.c.bf16 %v2825, %v2824
      %v2853 = vpack.c.bf16 %v2827, %v2826
      %v2854 = vpack.c.bf16 %v2829, %v2828
      %v2855 = vpack.c.bf16 %v2831, %v2830
      %v2856 = vpack.c.bf16 %v2833, %v2832
      %v2857 = vpack.c.bf16 %v2835, %v2834
      %v2858 = vpack.c.bf16 %v2837, %v2836
      %v2859 = vpack.c.bf16 %v2839, %v2838
      %v2860 = vpack.c.bf16 %v2841, %v2840
      %v2861 = vpack.c.bf16 %v2843, %v2842
      %v2862 = vld [vmem:[#allocation2] sm:$0xff]
      %v2863 = vld [vmem:[#allocation2 + $0x8] sm:$0xff]
      %v2864 = vld [vmem:[#allocation2 + $0x10] sm:$0xff]
      %v2865 = vld [vmem:[#allocation2 + $0x18] sm:$0xff]
      %v2866 = vld [vmem:[#allocation2 + $0x20] sm:$0xff]
      %v2867 = vld [vmem:[#allocation2 + $0x28] sm:$0xff]
      %v2868 = vld [vmem:[#allocation2 + $0x30] sm:$0xff]
      %v2869 = vld [vmem:[#allocation2 + $0x38] sm:$0xff]
      %v2870 = vld [vmem:[#allocation2 + $0x40] sm:$0xff]
      %v2871 = vld [vmem:[#allocation2 + $0x48] sm:$0xff]
      %v2872 = vld [vmem:[#allocation2 + $0x50] sm:$0xff]
      %v2873 = vld [vmem:[#allocation2 + $0x58] sm:$0xff]
      %v2874 = vld [vmem:[#allocation2 + $0x60] sm:$0xff]
      %v2875 = vld [vmem:[#allocation2 + $0x68] sm:$0xff]
      %v2876 = vld [vmem:[#allocation2 + $0x70] sm:$0xff]
      %v2877 = vld [vmem:[#allocation2 + $0x78] sm:$0xff]
      %v2878 = vld [vmem:[#allocation2 + $0x80] sm:$0xff]
      %v2879 = vld [vmem:[#allocation2 + $0x88] sm:$0xff]
      %v2880 = vld [vmem:[#allocation2 + $0x90] sm:$0xff]
      %v2881 = vld [vmem:[#allocation2 + $0x98] sm:$0xff]
      %v2882 = vld [vmem:[#allocation2 + $0xa0] sm:$0xff]
      %v2883 = vld [vmem:[#allocation2 + $0xa8] sm:$0xff]
      %v2884 = vld [vmem:[#allocation2 + $0xb0] sm:$0xff]
      %v2885 = vld [vmem:[#allocation2 + $0xb8] sm:$0xff]
      %v2886 = vld [vmem:[#allocation2 + $0xc0] sm:$0xff]
      %v2887 = vld [vmem:[#allocation2 + $0xc8] sm:$0xff]
      %v2888 = vld [vmem:[#allocation2 + $0xd0] sm:$0xff]
      %v2889 = vld [vmem:[#allocation2 + $0xd8] sm:$0xff]
      %v2890 = vld [vmem:[#allocation2 + $0xe0] sm:$0xff]
      %v2891 = vld [vmem:[#allocation2 + $0xe8] sm:$0xff]
      %v2892 = vld [vmem:[#allocation2 + $0xf0] sm:$0xff]
      %v2893 = vld [vmem:[#allocation2 + $0xf8] sm:$0xff]
      %v2894 = vld [vmem:[#allocation2 + $0x100] sm:$0xff]
      %v2895 = vld [vmem:[#allocation2 + $0x108] sm:$0xff]
      %v2896 = vld [vmem:[#allocation2 + $0x110] sm:$0xff]
      %v2897 = vld [vmem:[#allocation2 + $0x118] sm:$0xff]
      %s2898 = scalar_lea.vmem %s1, 12
      %v2899 = vld [vmem:[%s2898] sm:$0x3]
      %v2901 = vsel %vm339, %v2844, 0
      %v2904 = vsel %vm339, %v2845, 0
      %v2907 = vsel %vm339, %v2846, 0
      %v2910 = vsel %vm339, %v2847, 0
      %v2913 = vsel %vm339, %v2848, 0
      %v2916 = vsel %vm339, %v2849, 0
      %v2919 = vsel %vm339, %v2850, 0
      %v2922 = vsel %vm339, %v2851, 0
      %v2925 = vsel %vm339, %v2852, 0
      %v2928 = vsel %vm339, %v2853, 0
      %v2931 = vsel %vm339, %v2854, 0
      %v2934 = vsel %vm339, %v2855, 0
      %v2937 = vsel %vm339, %v2856, 0
      %v2940 = vsel %vm339, %v2857, 0
      %v2943 = vsel %vm339, %v2858, 0
      %v2946 = vsel %vm339, %v2859, 0
      %v2949 = vsel %vm339, %v2860, 0
      %v2952 = vsel %vm339, %v2861, 0
      %v2955 = vsel %vm565, %v2899, 0
      %2957 = vmatprep.subr.bf16.mxu0 0
      %2958 = vmatpush1.bf16.msra.mxu0 0
      %2959 = vmatprep.subr.bf16.mxu0 0
      %2960 = vmatpush1.bf16.msra.mxu0 0
      %2961 = vmatprep.subr.bf16.mxu0 0
      %2962 = vmatpush1.bf16.msra.mxu0 0
      %2963 = vmatprep.subr.bf16.mxu0 0
      %2964 = vmatpush1.bf16.msra.mxu0 0
      %2965 = vmatprep.subr.bf16.mxu0 0
      %2966 = vmatpush1.bf16.msra.mxu0 0
      %2967 = vmatprep.subr.bf16.mxu0 0
      %2968 = vmatpush1.bf16.msra.mxu0 0
      %2969 = vmatprep.subr.bf16.mxu0 0
      %2970 = vmatpush1.bf16.msra.mxu0 0
      %2971 = vmatprep.subr.bf16.mxu0 0
      %2972 = vmatpush1.bf16.msra.mxu0 %v2955
      %2973 = vmatprep.subr.bf16.mxu0 0
      %2974 = vmatpush2.bf16.msra.mxu0 0
      %2975 = vmatprep.subr.bf16.mxu0 0
      %2976 = vmatpush2.bf16.msra.mxu0 0
      %2977 = vmatprep.subr.bf16.mxu0 0
      %2978 = vmatpush2.bf16.msra.mxu0 0
      %2979 = vmatprep.subr.bf16.mxu0 0
      %2980 = vmatpush2.bf16.msra.mxu0 0
      %2981 = vmatprep.subr.bf16.mxu0 0
      %2982 = vmatpush2.bf16.msra.mxu0 0
      %2983 = vmatprep.subr.bf16.mxu0 0
      %2984 = vmatpush2.bf16.msra.mxu0 0
      %2985 = vmatprep.subr.bf16.mxu0 0
      %2986 = vmatpush2.bf16.msra.mxu0 0
      %2987 = vmatprep.subr.bf16.mxu0 0
      %2988 = vmatpush2.bf16.msra.mxu0 0
      %2989 = vmatprep.mubr.bf16.mxu0 0
      %2990 = vmatmul.mubr.bf16.gmra.mxu0 %v2901
      %v2991 = vpop.f32.mrf.mxu0
      %v2992 = vadd.f32 0.0, %v2991
      %v2993 = vpop.f32.mrf.mxu0
      %v2994 = vpop.f32.mrf.mxu0
      %v2995 = vadd.f32 0.0, %v2994
      %v2996 = vpop.f32.mrf.mxu0
      %2997 = vmatprep.mubr.bf16.mxu0 0
      %2998 = vmatmul.mubr.bf16.gmra.mxu0 %v2904
      %v2999 = vpop.f32.mrf.mxu0
      %v3000 = vadd.f32 0.0, %v2999
      %v3001 = vpop.f32.mrf.mxu0
      %v3002 = vpop.f32.mrf.mxu0
      %v3003 = vadd.f32 0.0, %v3002
      %v3004 = vpop.f32.mrf.mxu0
      %3005 = vmatprep.mubr.bf16.mxu0 0
      %3006 = vmatmul.mubr.bf16.gmra.mxu0 %v2907
      %v3007 = vpop.f32.mrf.mxu0
      %v3008 = vadd.f32 0.0, %v3007
      %v3009 = vpop.f32.mrf.mxu0
      %v3010 = vpop.f32.mrf.mxu0
      %v3011 = vadd.f32 0.0, %v3010
      %v3012 = vpop.f32.mrf.mxu0
      %3013 = vmatprep.mubr.bf16.mxu0 0
      %3014 = vmatmul.mubr.bf16.gmra.mxu0 %v2910
      %v3015 = vpop.f32.mrf.mxu0
      %v3016 = vadd.f32 0.0, %v3015
      %v3017 = vpop.f32.mrf.mxu0
      %v3018 = vpop.f32.mrf.mxu0
      %v3019 = vadd.f32 0.0, %v3018
      %v3020 = vpop.f32.mrf.mxu0
      %3021 = vmatprep.mubr.bf16.mxu0 0
      %3022 = vmatmul.mubr.bf16.gmra.mxu0 %v2913
      %v3023 = vpop.f32.mrf.mxu0
      %v3024 = vadd.f32 0.0, %v3023
      %v3025 = vpop.f32.mrf.mxu0
      %v3026 = vpop.f32.mrf.mxu0
      %v3027 = vadd.f32 0.0, %v3026
      %v3028 = vpop.f32.mrf.mxu0
      %3029 = vmatprep.mubr.bf16.mxu0 0
      %3030 = vmatmul.mubr.bf16.gmra.mxu0 %v2916
      %v3031 = vpop.f32.mrf.mxu0
      %v3032 = vadd.f32 0.0, %v3031
      %v3033 = vpop.f32.mrf.mxu0
      %v3034 = vpop.f32.mrf.mxu0
      %v3035 = vadd.f32 0.0, %v3034
      %v3036 = vpop.f32.mrf.mxu0
      %3037 = vmatprep.mubr.bf16.mxu0 0
      %3038 = vmatmul.mubr.bf16.gmra.mxu0 %v2919
      %v3039 = vpop.f32.mrf.mxu0
      %v3040 = vadd.f32 0.0, %v3039
      %v3041 = vpop.f32.mrf.mxu0
      %v3042 = vpop.f32.mrf.mxu0
      %v3043 = vadd.f32 0.0, %v3042
      %v3044 = vpop.f32.mrf.mxu0
      %3045 = vmatprep.mubr.bf16.mxu0 0
      %3046 = vmatmul.mubr.bf16.gmra.mxu0 %v2922
      %v3047 = vpop.f32.mrf.mxu0
      %v3048 = vadd.f32 0.0, %v3047
      %v3049 = vpop.f32.mrf.mxu0
      %v3050 = vpop.f32.mrf.mxu0
      %v3051 = vadd.f32 0.0, %v3050
      %v3052 = vpop.f32.mrf.mxu0
      %3053 = vmatprep.mubr.bf16.mxu0 0
      %3054 = vmatmul.mubr.bf16.gmra.mxu0 %v2925
      %v3055 = vpop.f32.mrf.mxu0
      %v3056 = vadd.f32 0.0, %v3055
      %v3057 = vpop.f32.mrf.mxu0
      %v3058 = vpop.f32.mrf.mxu0
      %v3059 = vadd.f32 0.0, %v3058
      %v3060 = vpop.f32.mrf.mxu0
      %3061 = vmatprep.mubr.bf16.mxu0 0
      %3062 = vmatmul.mubr.bf16.gmra.mxu0 %v2928
      %v3063 = vpop.f32.mrf.mxu0
      %v3064 = vadd.f32 0.0, %v3063
      %v3065 = vpop.f32.mrf.mxu0
      %v3066 = vpop.f32.mrf.mxu0
      %v3067 = vadd.f32 0.0, %v3066
      %v3068 = vpop.f32.mrf.mxu0
      %3069 = vmatprep.mubr.bf16.mxu0 0
      %3070 = vmatmul.mubr.bf16.gmra.mxu0 %v2931
      %v3071 = vpop.f32.mrf.mxu0
      %v3072 = vadd.f32 0.0, %v3071
      %v3073 = vpop.f32.mrf.mxu0
      %v3074 = vpop.f32.mrf.mxu0
      %v3075 = vadd.f32 0.0, %v3074
      %v3076 = vpop.f32.mrf.mxu0
      %3077 = vmatprep.mubr.bf16.mxu0 0
      %3078 = vmatmul.mubr.bf16.gmra.mxu0 %v2934
      %v3079 = vpop.f32.mrf.mxu0
      %v3080 = vadd.f32 0.0, %v3079
      %v3081 = vpop.f32.mrf.mxu0
      %v3082 = vpop.f32.mrf.mxu0
      %v3083 = vadd.f32 0.0, %v3082
      %v3084 = vpop.f32.mrf.mxu0
      %3085 = vmatprep.mubr.bf16.mxu0 0
      %3086 = vmatmul.mubr.bf16.gmra.mxu0 %v2937
      %v3087 = vpop.f32.mrf.mxu0
      %v3088 = vadd.f32 0.0, %v3087
      %v3089 = vpop.f32.mrf.mxu0
      %v3090 = vpop.f32.mrf.mxu0
      %v3091 = vadd.f32 0.0, %v3090
      %v3092 = vpop.f32.mrf.mxu0
      %3093 = vmatprep.mubr.bf16.mxu0 0
      %3094 = vmatmul.mubr.bf16.gmra.mxu0 %v2940
      %v3095 = vpop.f32.mrf.mxu0
      %v3096 = vadd.f32 0.0, %v3095
      %v3097 = vpop.f32.mrf.mxu0
      %v3098 = vpop.f32.mrf.mxu0
      %v3099 = vadd.f32 0.0, %v3098
      %v3100 = vpop.f32.mrf.mxu0
      %3101 = vmatprep.mubr.bf16.mxu0 0
      %3102 = vmatmul.mubr.bf16.gmra.mxu0 %v2943
      %v3103 = vpop.f32.mrf.mxu0
      %v3104 = vadd.f32 0.0, %v3103
      %v3105 = vpop.f32.mrf.mxu0
      %v3106 = vpop.f32.mrf.mxu0
      %v3107 = vadd.f32 0.0, %v3106
      %v3108 = vpop.f32.mrf.mxu0
      %3109 = vmatprep.mubr.bf16.mxu0 0
      %3110 = vmatmul.mubr.bf16.gmra.mxu0 %v2946
      %v3111 = vpop.f32.mrf.mxu0
      %v3112 = vadd.f32 0.0, %v3111
      %v3113 = vpop.f32.mrf.mxu0
      %v3114 = vpop.f32.mrf.mxu0
      %v3115 = vadd.f32 0.0, %v3114
      %v3116 = vpop.f32.mrf.mxu0
      %3117 = vmatprep.mubr.bf16.mxu0 0
      %3118 = vmatmul.mubr.bf16.gmra.mxu0 %v2949
      %v3119 = vpop.f32.mrf.mxu0
      %v3120 = vadd.f32 0.0, %v3119
      %v3121 = vpop.f32.mrf.mxu0
      %v3122 = vpop.f32.mrf.mxu0
      %v3123 = vadd.f32 0.0, %v3122
      %v3124 = vpop.f32.mrf.mxu0
      %3125 = vmatprep.mubr.bf16.mxu0 0
      %3126 = vmatmul.mubr.bf16.gmra.mxu0 %v2952
      %v3127 = vpop.f32.mrf.mxu0
      %v3128 = vadd.f32 0.0, %v3127
      %v3129 = vpop.f32.mrf.mxu0
      %v3130 = vpop.f32.mrf.mxu0
      %v3131 = vadd.f32 0.0, %v3130
      %v3132 = vpop.f32.mrf.mxu0
      %3133 = vdwg.mxu0
      %v3134 = vadd.f32 %v2862, %v2992
      %v3135 = vadd.f32 %v2863, %v2995
      %v3136 = vadd.f32 %v2864, %v3000
      %v3137 = vadd.f32 %v2865, %v3003
      %v3138 = vadd.f32 %v2866, %v3008
      %v3139 = vadd.f32 %v2867, %v3011
      %v3140 = vadd.f32 %v2868, %v3016
      %v3141 = vadd.f32 %v2869, %v3019
      %v3142 = vadd.f32 %v2870, %v3024
      %v3143 = vadd.f32 %v2871, %v3027
      %v3144 = vadd.f32 %v2872, %v3032
      %v3145 = vadd.f32 %v2873, %v3035
      %v3146 = vadd.f32 %v2874, %v3040
      %v3147 = vadd.f32 %v2875, %v3043
      %v3148 = vadd.f32 %v2876, %v3048
      %v3149 = vadd.f32 %v2877, %v3051
      %v3150 = vadd.f32 %v2878, %v3056
      %v3151 = vadd.f32 %v2879, %v3059
      %v3152 = vadd.f32 %v2880, %v3064
      %v3153 = vadd.f32 %v2881, %v3067
      %v3154 = vadd.f32 %v2882, %v3072
      %v3155 = vadd.f32 %v2883, %v3075
      %v3156 = vadd.f32 %v2884, %v3080
      %v3157 = vadd.f32 %v2885, %v3083
      %v3158 = vadd.f32 %v2886, %v3088
      %v3159 = vadd.f32 %v2887, %v3091
      %v3160 = vadd.f32 %v2888, %v3096
      %v3161 = vadd.f32 %v2889, %v3099
      %v3162 = vadd.f32 %v2890, %v3104
      %v3163 = vadd.f32 %v2891, %v3107
      %v3164 = vadd.f32 %v2892, %v3112
      %v3165 = vadd.f32 %v2893, %v3115
      %v3166 = vadd.f32 %v2894, %v3120
      %v3167 = vadd.f32 %v2895, %v3123
      %v3168 = vadd.f32 %v2896, %v3128
      %v3169 = vadd.f32 %v2897, %v3131
      %3170 = vst.msk [vmem:[#allocation2] sm:$0xff] %vm339, %v3134
      %3171 = vst.msk [vmem:[#allocation2 + $0x8] sm:$0xff] %vm339, %v3135
      %3172 = vst.msk [vmem:[#allocation2 + $0x10] sm:$0xff] %vm339, %v3136
      %3173 = vst.msk [vmem:[#allocation2 + $0x18] sm:$0xff] %vm339, %v3137
      %3174 = vst.msk [vmem:[#allocation2 + $0x20] sm:$0xff] %vm339, %v3138
      %3175 = vst.msk [vmem:[#allocation2 + $0x28] sm:$0xff] %vm339, %v3139
      %3176 = vst.msk [vmem:[#allocation2 + $0x30] sm:$0xff] %vm339, %v3140
      %3177 = vst.msk [vmem:[#allocation2 + $0x38] sm:$0xff] %vm339, %v3141
      %3178 = vst.msk [vmem:[#allocation2 + $0x40] sm:$0xff] %vm339, %v3142
      %3179 = vst.msk [vmem:[#allocation2 + $0x48] sm:$0xff] %vm339, %v3143
      %3180 = vst.msk [vmem:[#allocation2 + $0x50] sm:$0xff] %vm339, %v3144
      %3181 = vst.msk [vmem:[#allocation2 + $0x58] sm:$0xff] %vm339, %v3145
      %3182 = vst.msk [vmem:[#allocation2 + $0x60] sm:$0xff] %vm339, %v3146
      %3183 = vst.msk [vmem:[#allocation2 + $0x68] sm:$0xff] %vm339, %v3147
      %3184 = vst.msk [vmem:[#allocation2 + $0x70] sm:$0xff] %vm339, %v3148
      %3185 = vst.msk [vmem:[#allocation2 + $0x78] sm:$0xff] %vm339, %v3149
      %3186 = vst.msk [vmem:[#allocation2 + $0x80] sm:$0xff] %vm339, %v3150
      %3187 = vst.msk [vmem:[#allocation2 + $0x88] sm:$0xff] %vm339, %v3151
      %3188 = vst.msk [vmem:[#allocation2 + $0x90] sm:$0xff] %vm339, %v3152
      %3189 = vst.msk [vmem:[#allocation2 + $0x98] sm:$0xff] %vm339, %v3153
      %3190 = vst.msk [vmem:[#allocation2 + $0xa0] sm:$0xff] %vm339, %v3154
      %3191 = vst.msk [vmem:[#allocation2 + $0xa8] sm:$0xff] %vm339, %v3155
      %3192 = vst.msk [vmem:[#allocation2 + $0xb0] sm:$0xff] %vm339, %v3156
      %3193 = vst.msk [vmem:[#allocation2 + $0xb8] sm:$0xff] %vm339, %v3157
      %3194 = vst.msk [vmem:[#allocation2 + $0xc0] sm:$0xff] %vm339, %v3158
      %3195 = vst.msk [vmem:[#allocation2 + $0xc8] sm:$0xff] %vm339, %v3159
      %3196 = vst.msk [vmem:[#allocation2 + $0xd0] sm:$0xff] %vm339, %v3160
      %3197 = vst.msk [vmem:[#allocation2 + $0xd8] sm:$0xff] %vm339, %v3161
      %3198 = vst.msk [vmem:[#allocation2 + $0xe0] sm:$0xff] %vm339, %v3162
      %3199 = vst.msk [vmem:[#allocation2 + $0xe8] sm:$0xff] %vm339, %v3163
      %3200 = vst.msk [vmem:[#allocation2 + $0xf0] sm:$0xff] %vm339, %v3164
      %3201 = vst.msk [vmem:[#allocation2 + $0xf8] sm:$0xff] %vm339, %v3165
      %3202 = vst.msk [vmem:[#allocation2 + $0x100] sm:$0xff] %vm339, %v3166
      %3203 = vst.msk [vmem:[#allocation2 + $0x108] sm:$0xff] %vm339, %v3167
      %3204 = vst.msk [vmem:[#allocation2 + $0x110] sm:$0xff] %vm339, %v3168
      %3205 = vst.msk [vmem:[#allocation2 + $0x118] sm:$0xff] %vm339, %v3169
      %v3206 = vld [vmem:[#allocation4 + $0x25] sm:$0xff]
      %v3207 = vld [vmem:[#allocation4 + $0x2d] sm:$0xff]
      %v3208 = vld [vmem:[#allocation4 + $0x35] sm:$0xff]
      %v3209 = vld [vmem:[#allocation4 + $0x3d] sm:$0xff]
      %v3210 = vld [vmem:[#allocation4 + $0x45] sm:$0xff]
      %v3211 = vld [vmem:[#allocation4 + $0x4d] sm:$0xff]
      %v3212 = vld [vmem:[#allocation4 + $0x55] sm:$0xff]
      %v3213 = vld [vmem:[#allocation4 + $0x5d] sm:$0xff]
      %v3214 = vld [vmem:[#allocation4 + $0x65] sm:$0xff]
      %v3215 = vld [vmem:[#allocation4 + $0x6d] sm:$0xff]
      %v3216 = vld [vmem:[#allocation4 + $0x75] sm:$0xff]
      %v3217 = vld [vmem:[#allocation4 + $0x7d] sm:$0xff]
      %v3218 = vld [vmem:[#allocation4 + $0x85] sm:$0xff]
      %v3219 = vld [vmem:[#allocation4 + $0x8d] sm:$0xff]
      %v3220 = vld [vmem:[#allocation4 + $0x95] sm:$0xff]
      %v3221 = vld [vmem:[#allocation4 + $0x9d] sm:$0xff]
      %v3222 = vld [vmem:[#allocation4 + $0xa5] sm:$0xff]
      %v3223 = vld [vmem:[#allocation4 + $0xad] sm:$0xff]
      %v3224 = vld [vmem:[#allocation4 + $0xb5] sm:$0xff]
      %v3225 = vld [vmem:[#allocation4 + $0xbd] sm:$0xff]
      %v3226 = vld [vmem:[#allocation4 + $0xc5] sm:$0xff]
      %v3227 = vld [vmem:[#allocation4 + $0xcd] sm:$0xff]
      %v3228 = vld [vmem:[#allocation4 + $0xd5] sm:$0xff]
      %v3229 = vld [vmem:[#allocation4 + $0xdd] sm:$0xff]
      %v3230 = vld [vmem:[#allocation4 + $0xe5] sm:$0xff]
      %v3231 = vld [vmem:[#allocation4 + $0xed] sm:$0xff]
      %v3232 = vld [vmem:[#allocation4 + $0xf5] sm:$0xff]
      %v3233 = vld [vmem:[#allocation4 + $0xfd] sm:$0xff]
      %v3234 = vld [vmem:[#allocation4 + $0x105] sm:$0xff]
      %v3235 = vld [vmem:[#allocation4 + $0x10d] sm:$0xff]
      %v3236 = vld [vmem:[#allocation4 + $0x115] sm:$0xff]
      %v3237 = vld [vmem:[#allocation4 + $0x11d] sm:$0xff]
      %v3238 = vld [vmem:[#allocation4 + $0x125] sm:$0xff]
      %v3239 = vld [vmem:[#allocation4 + $0x12d] sm:$0xff]
      %v3240 = vld [vmem:[#allocation4 + $0x135] sm:$0xff]
      %v3241 = vld [vmem:[#allocation4 + $0x13d] sm:$0xff]
      %v3242 = vpack.c.bf16 %v3207, %v3206
      %v3243 = vpack.c.bf16 %v3209, %v3208
      %v3244 = vpack.c.bf16 %v3211, %v3210
      %v3245 = vpack.c.bf16 %v3213, %v3212
      %v3246 = vpack.c.bf16 %v3215, %v3214
      %v3247 = vpack.c.bf16 %v3217, %v3216
      %v3248 = vpack.c.bf16 %v3219, %v3218
      %v3249 = vpack.c.bf16 %v3221, %v3220
      %v3250 = vpack.c.bf16 %v3223, %v3222
      %v3251 = vpack.c.bf16 %v3225, %v3224
      %v3252 = vpack.c.bf16 %v3227, %v3226
      %v3253 = vpack.c.bf16 %v3229, %v3228
      %v3254 = vpack.c.bf16 %v3231, %v3230
      %v3255 = vpack.c.bf16 %v3233, %v3232
      %v3256 = vpack.c.bf16 %v3235, %v3234
      %v3257 = vpack.c.bf16 %v3237, %v3236
      %v3258 = vpack.c.bf16 %v3239, %v3238
      %v3259 = vpack.c.bf16 %v3241, %v3240
      %v3260 = vld [vmem:[#allocation2] sm:$0xff]
      %v3261 = vld [vmem:[#allocation2 + $0x8] sm:$0xff]
      %v3262 = vld [vmem:[#allocation2 + $0x10] sm:$0xff]
      %v3263 = vld [vmem:[#allocation2 + $0x18] sm:$0xff]
      %v3264 = vld [vmem:[#allocation2 + $0x20] sm:$0xff]
      %v3265 = vld [vmem:[#allocation2 + $0x28] sm:$0xff]
      %v3266 = vld [vmem:[#allocation2 + $0x30] sm:$0xff]
      %v3267 = vld [vmem:[#allocation2 + $0x38] sm:$0xff]
      %v3268 = vld [vmem:[#allocation2 + $0x40] sm:$0xff]
      %v3269 = vld [vmem:[#allocation2 + $0x48] sm:$0xff]
      %v3270 = vld [vmem:[#allocation2 + $0x50] sm:$0xff]
      %v3271 = vld [vmem:[#allocation2 + $0x58] sm:$0xff]
      %v3272 = vld [vmem:[#allocation2 + $0x60] sm:$0xff]
      %v3273 = vld [vmem:[#allocation2 + $0x68] sm:$0xff]
      %v3274 = vld [vmem:[#allocation2 + $0x70] sm:$0xff]
      %v3275 = vld [vmem:[#allocation2 + $0x78] sm:$0xff]
      %v3276 = vld [vmem:[#allocation2 + $0x80] sm:$0xff]
      %v3277 = vld [vmem:[#allocation2 + $0x88] sm:$0xff]
      %v3278 = vld [vmem:[#allocation2 + $0x90] sm:$0xff]
      %v3279 = vld [vmem:[#allocation2 + $0x98] sm:$0xff]
      %v3280 = vld [vmem:[#allocation2 + $0xa0] sm:$0xff]
      %v3281 = vld [vmem:[#allocation2 + $0xa8] sm:$0xff]
      %v3282 = vld [vmem:[#allocation2 + $0xb0] sm:$0xff]
      %v3283 = vld [vmem:[#allocation2 + $0xb8] sm:$0xff]
      %v3284 = vld [vmem:[#allocation2 + $0xc0] sm:$0xff]
      %v3285 = vld [vmem:[#allocation2 + $0xc8] sm:$0xff]
      %v3286 = vld [vmem:[#allocation2 + $0xd0] sm:$0xff]
      %v3287 = vld [vmem:[#allocation2 + $0xd8] sm:$0xff]
      %v3288 = vld [vmem:[#allocation2 + $0xe0] sm:$0xff]
      %v3289 = vld [vmem:[#allocation2 + $0xe8] sm:$0xff]
      %v3290 = vld [vmem:[#allocation2 + $0xf0] sm:$0xff]
      %v3291 = vld [vmem:[#allocation2 + $0xf8] sm:$0xff]
      %v3292 = vld [vmem:[#allocation2 + $0x100] sm:$0xff]
      %v3293 = vld [vmem:[#allocation2 + $0x108] sm:$0xff]
      %v3294 = vld [vmem:[#allocation2 + $0x110] sm:$0xff]
      %v3295 = vld [vmem:[#allocation2 + $0x118] sm:$0xff]
      %s3296 = scalar_lea.vmem %s1, 14
      %v3297 = vld [vmem:[%s3296] sm:$0x3]
      %v3299 = vsel %vm339, %v3242, 0
      %v3302 = vsel %vm339, %v3243, 0
      %v3305 = vsel %vm339, %v3244, 0
      %v3308 = vsel %vm339, %v3245, 0
      %v3311 = vsel %vm339, %v3246, 0
      %v3314 = vsel %vm339, %v3247, 0
      %v3317 = vsel %vm339, %v3248, 0
      %v3320 = vsel %vm339, %v3249, 0
      %v3323 = vsel %vm339, %v3250, 0
      %v3326 = vsel %vm339, %v3251, 0
      %v3329 = vsel %vm339, %v3252, 0
      %v3332 = vsel %vm339, %v3253, 0
      %v3335 = vsel %vm339, %v3254, 0
      %v3338 = vsel %vm339, %v3255, 0
      %v3341 = vsel %vm339, %v3256, 0
      %v3344 = vsel %vm339, %v3257, 0
      %v3347 = vsel %vm339, %v3258, 0
      %v3350 = vsel %vm339, %v3259, 0
      %v3353 = vsel %vm565, %v3297, 0
      %3355 = vmatprep.subr.bf16.mxu0 0
      %3356 = vmatpush1.bf16.msra.mxu0 0
      %3357 = vmatprep.subr.bf16.mxu0 0
      %3358 = vmatpush1.bf16.msra.mxu0 0
      %3359 = vmatprep.subr.bf16.mxu0 0
      %3360 = vmatpush1.bf16.msra.mxu0 0
      %3361 = vmatprep.subr.bf16.mxu0 0
      %3362 = vmatpush1.bf16.msra.mxu0 0
      %3363 = vmatprep.subr.bf16.mxu0 0
      %3364 = vmatpush1.bf16.msra.mxu0 0
      %3365 = vmatprep.subr.bf16.mxu0 0
      %3366 = vmatpush1.bf16.msra.mxu0 0
      %3367 = vmatprep.subr.bf16.mxu0 0
      %3368 = vmatpush1.bf16.msra.mxu0 0
      %3369 = vmatprep.subr.bf16.mxu0 0
      %3370 = vmatpush1.bf16.msra.mxu0 %v3353
      %3371 = vmatprep.subr.bf16.mxu0 0
      %3372 = vmatpush2.bf16.msra.mxu0 0
      %3373 = vmatprep.subr.bf16.mxu0 0
      %3374 = vmatpush2.bf16.msra.mxu0 0
      %3375 = vmatprep.subr.bf16.mxu0 0
      %3376 = vmatpush2.bf16.msra.mxu0 0
      %3377 = vmatprep.subr.bf16.mxu0 0
      %3378 = vmatpush2.bf16.msra.mxu0 0
      %3379 = vmatprep.subr.bf16.mxu0 0
      %3380 = vmatpush2.bf16.msra.mxu0 0
      %3381 = vmatprep.subr.bf16.mxu0 0
      %3382 = vmatpush2.bf16.msra.mxu0 0
      %3383 = vmatprep.subr.bf16.mxu0 0
      %3384 = vmatpush2.bf16.msra.mxu0 0
      %3385 = vmatprep.subr.bf16.mxu0 0
      %3386 = vmatpush2.bf16.msra.mxu0 0
      %3387 = vmatprep.mubr.bf16.mxu0 0
      %3388 = vmatmul.mubr.bf16.gmra.mxu0 %v3299
      %v3389 = vpop.f32.mrf.mxu0
      %v3390 = vadd.f32 0.0, %v3389
      %v3391 = vpop.f32.mrf.mxu0
      %v3392 = vpop.f32.mrf.mxu0
      %v3393 = vadd.f32 0.0, %v3392
      %v3394 = vpop.f32.mrf.mxu0
      %3395 = vmatprep.mubr.bf16.mxu0 0
      %3396 = vmatmul.mubr.bf16.gmra.mxu0 %v3302
      %v3397 = vpop.f32.mrf.mxu0
      %v3398 = vadd.f32 0.0, %v3397
      %v3399 = vpop.f32.mrf.mxu0
      %v3400 = vpop.f32.mrf.mxu0
      %v3401 = vadd.f32 0.0, %v3400
      %v3402 = vpop.f32.mrf.mxu0
      %3403 = vmatprep.mubr.bf16.mxu0 0
      %3404 = vmatmul.mubr.bf16.gmra.mxu0 %v3305
      %v3405 = vpop.f32.mrf.mxu0
      %v3406 = vadd.f32 0.0, %v3405
      %v3407 = vpop.f32.mrf.mxu0
      %v3408 = vpop.f32.mrf.mxu0
      %v3409 = vadd.f32 0.0, %v3408
      %v3410 = vpop.f32.mrf.mxu0
      %3411 = vmatprep.mubr.bf16.mxu0 0
      %3412 = vmatmul.mubr.bf16.gmra.mxu0 %v3308
      %v3413 = vpop.f32.mrf.mxu0
      %v3414 = vadd.f32 0.0, %v3413
      %v3415 = vpop.f32.mrf.mxu0
      %v3416 = vpop.f32.mrf.mxu0
      %v3417 = vadd.f32 0.0, %v3416
      %v3418 = vpop.f32.mrf.mxu0
      %3419 = vmatprep.mubr.bf16.mxu0 0
      %3420 = vmatmul.mubr.bf16.gmra.mxu0 %v3311
      %v3421 = vpop.f32.mrf.mxu0
      %v3422 = vadd.f32 0.0, %v3421
      %v3423 = vpop.f32.mrf.mxu0
      %v3424 = vpop.f32.mrf.mxu0
      %v3425 = vadd.f32 0.0, %v3424
      %v3426 = vpop.f32.mrf.mxu0
      %3427 = vmatprep.mubr.bf16.mxu0 0
      %3428 = vmatmul.mubr.bf16.gmra.mxu0 %v3314
      %v3429 = vpop.f32.mrf.mxu0
      %v3430 = vadd.f32 0.0, %v3429
      %v3431 = vpop.f32.mrf.mxu0
      %v3432 = vpop.f32.mrf.mxu0
      %v3433 = vadd.f32 0.0, %v3432
      %v3434 = vpop.f32.mrf.mxu0
      %3435 = vmatprep.mubr.bf16.mxu0 0
      %3436 = vmatmul.mubr.bf16.gmra.mxu0 %v3317
      %v3437 = vpop.f32.mrf.mxu0
      %v3438 = vadd.f32 0.0, %v3437
      %v3439 = vpop.f32.mrf.mxu0
      %v3440 = vpop.f32.mrf.mxu0
      %v3441 = vadd.f32 0.0, %v3440
      %v3442 = vpop.f32.mrf.mxu0
      %3443 = vmatprep.mubr.bf16.mxu0 0
      %3444 = vmatmul.mubr.bf16.gmra.mxu0 %v3320
      %v3445 = vpop.f32.mrf.mxu0
      %v3446 = vadd.f32 0.0, %v3445
      %v3447 = vpop.f32.mrf.mxu0
      %v3448 = vpop.f32.mrf.mxu0
      %v3449 = vadd.f32 0.0, %v3448
      %v3450 = vpop.f32.mrf.mxu0
      %3451 = vmatprep.mubr.bf16.mxu0 0
      %3452 = vmatmul.mubr.bf16.gmra.mxu0 %v3323
      %v3453 = vpop.f32.mrf.mxu0
      %v3454 = vadd.f32 0.0, %v3453
      %v3455 = vpop.f32.mrf.mxu0
      %v3456 = vpop.f32.mrf.mxu0
      %v3457 = vadd.f32 0.0, %v3456
      %v3458 = vpop.f32.mrf.mxu0
      %3459 = vmatprep.mubr.bf16.mxu0 0
      %3460 = vmatmul.mubr.bf16.gmra.mxu0 %v3326
      %v3461 = vpop.f32.mrf.mxu0
      %v3462 = vadd.f32 0.0, %v3461
      %v3463 = vpop.f32.mrf.mxu0
      %v3464 = vpop.f32.mrf.mxu0
      %v3465 = vadd.f32 0.0, %v3464
      %v3466 = vpop.f32.mrf.mxu0
      %3467 = vmatprep.mubr.bf16.mxu0 0
      %3468 = vmatmul.mubr.bf16.gmra.mxu0 %v3329
      %v3469 = vpop.f32.mrf.mxu0
      %v3470 = vadd.f32 0.0, %v3469
      %v3471 = vpop.f32.mrf.mxu0
      %v3472 = vpop.f32.mrf.mxu0
      %v3473 = vadd.f32 0.0, %v3472
      %v3474 = vpop.f32.mrf.mxu0
      %3475 = vmatprep.mubr.bf16.mxu0 0
      %3476 = vmatmul.mubr.bf16.gmra.mxu0 %v3332
      %v3477 = vpop.f32.mrf.mxu0
      %v3478 = vadd.f32 0.0, %v3477
      %v3479 = vpop.f32.mrf.mxu0
      %v3480 = vpop.f32.mrf.mxu0
      %v3481 = vadd.f32 0.0, %v3480
      %v3482 = vpop.f32.mrf.mxu0
      %3483 = vmatprep.mubr.bf16.mxu0 0
      %3484 = vmatmul.mubr.bf16.gmra.mxu0 %v3335
      %v3485 = vpop.f32.mrf.mxu0
      %v3486 = vadd.f32 0.0, %v3485
      %v3487 = vpop.f32.mrf.mxu0
      %v3488 = vpop.f32.mrf.mxu0
      %v3489 = vadd.f32 0.0, %v3488
      %v3490 = vpop.f32.mrf.mxu0
      %3491 = vmatprep.mubr.bf16.mxu0 0
      %3492 = vmatmul.mubr.bf16.gmra.mxu0 %v3338
      %v3493 = vpop.f32.mrf.mxu0
      %v3494 = vadd.f32 0.0, %v3493
      %v3495 = vpop.f32.mrf.mxu0
      %v3496 = vpop.f32.mrf.mxu0
      %v3497 = vadd.f32 0.0, %v3496
      %v3498 = vpop.f32.mrf.mxu0
      %3499 = vmatprep.mubr.bf16.mxu0 0
      %3500 = vmatmul.mubr.bf16.gmra.mxu0 %v3341
      %v3501 = vpop.f32.mrf.mxu0
      %v3502 = vadd.f32 0.0, %v3501
      %v3503 = vpop.f32.mrf.mxu0
      %v3504 = vpop.f32.mrf.mxu0
      %v3505 = vadd.f32 0.0, %v3504
      %v3506 = vpop.f32.mrf.mxu0
      %3507 = vmatprep.mubr.bf16.mxu0 0
      %3508 = vmatmul.mubr.bf16.gmra.mxu0 %v3344
      %v3509 = vpop.f32.mrf.mxu0
      %v3510 = vadd.f32 0.0, %v3509
      %v3511 = vpop.f32.mrf.mxu0
      %v3512 = vpop.f32.mrf.mxu0
      %v3513 = vadd.f32 0.0, %v3512
      %v3514 = vpop.f32.mrf.mxu0
      %3515 = vmatprep.mubr.bf16.mxu0 0
      %3516 = vmatmul.mubr.bf16.gmra.mxu0 %v3347
      %v3517 = vpop.f32.mrf.mxu0
      %v3518 = vadd.f32 0.0, %v3517
      %v3519 = vpop.f32.mrf.mxu0
      %v3520 = vpop.f32.mrf.mxu0
      %v3521 = vadd.f32 0.0, %v3520
      %v3522 = vpop.f32.mrf.mxu0
      %3523 = vmatprep.mubr.bf16.mxu0 0
      %3524 = vmatmul.mubr.bf16.gmra.mxu0 %v3350
      %v3525 = vpop.f32.mrf.mxu0
      %v3526 = vadd.f32 0.0, %v3525
      %v3527 = vpop.f32.mrf.mxu0
      %v3528 = vpop.f32.mrf.mxu0
      %v3529 = vadd.f32 0.0, %v3528
      %v3530 = vpop.f32.mrf.mxu0
      %3531 = vdwg.mxu0
      %v3532 = vadd.f32 %v3260, %v3390
      %v3533 = vadd.f32 %v3261, %v3393
      %v3534 = vadd.f32 %v3262, %v3398
      %v3535 = vadd.f32 %v3263, %v3401
      %v3536 = vadd.f32 %v3264, %v3406
      %v3537 = vadd.f32 %v3265, %v3409
      %v3538 = vadd.f32 %v3266, %v3414
      %v3539 = vadd.f32 %v3267, %v3417
      %v3540 = vadd.f32 %v3268, %v3422
      %v3541 = vadd.f32 %v3269, %v3425
      %v3542 = vadd.f32 %v3270, %v3430
      %v3543 = vadd.f32 %v3271, %v3433
      %v3544 = vadd.f32 %v3272, %v3438
      %v3545 = vadd.f32 %v3273, %v3441
      %v3546 = vadd.f32 %v3274, %v3446
      %v3547 = vadd.f32 %v3275, %v3449
      %v3548 = vadd.f32 %v3276, %v3454
      %v3549 = vadd.f32 %v3277, %v3457
      %v3550 = vadd.f32 %v3278, %v3462
      %v3551 = vadd.f32 %v3279, %v3465
      %v3552 = vadd.f32 %v3280, %v3470
      %v3553 = vadd.f32 %v3281, %v3473
      %v3554 = vadd.f32 %v3282, %v3478
      %v3555 = vadd.f32 %v3283, %v3481
      %v3556 = vadd.f32 %v3284, %v3486
      %v3557 = vadd.f32 %v3285, %v3489
      %v3558 = vadd.f32 %v3286, %v3494
      %v3559 = vadd.f32 %v3287, %v3497
      %v3560 = vadd.f32 %v3288, %v3502
      %v3561 = vadd.f32 %v3289, %v3505
      %v3562 = vadd.f32 %v3290, %v3510
      %v3563 = vadd.f32 %v3291, %v3513
      %v3564 = vadd.f32 %v3292, %v3518
      %v3565 = vadd.f32 %v3293, %v3521
      %v3566 = vadd.f32 %v3294, %v3526
      %v3567 = vadd.f32 %v3295, %v3529
      %3568 = vst.msk [vmem:[#allocation2] sm:$0xff] %vm339, %v3532
      %3569 = vst.msk [vmem:[#allocation2 + $0x8] sm:$0xff] %vm339, %v3533
      %3570 = vst.msk [vmem:[#allocation2 + $0x10] sm:$0xff] %vm339, %v3534
      %3571 = vst.msk [vmem:[#allocation2 + $0x18] sm:$0xff] %vm339, %v3535
      %3572 = vst.msk [vmem:[#allocation2 + $0x20] sm:$0xff] %vm339, %v3536
      %3573 = vst.msk [vmem:[#allocation2 + $0x28] sm:$0xff] %vm339, %v3537
      %3574 = vst.msk [vmem:[#allocation2 + $0x30] sm:$0xff] %vm339, %v3538
      %3575 = vst.msk [vmem:[#allocation2 + $0x38] sm:$0xff] %vm339, %v3539
      %3576 = vst.msk [vmem:[#allocation2 + $0x40] sm:$0xff] %vm339, %v3540
      %3577 = vst.msk [vmem:[#allocation2 + $0x48] sm:$0xff] %vm339, %v3541
      %3578 = vst.msk [vmem:[#allocation2 + $0x50] sm:$0xff] %vm339, %v3542
      %3579 = vst.msk [vmem:[#allocation2 + $0x58] sm:$0xff] %vm339, %v3543
      %3580 = vst.msk [vmem:[#allocation2 + $0x60] sm:$0xff] %vm339, %v3544
      %3581 = vst.msk [vmem:[#allocation2 + $0x68] sm:$0xff] %vm339, %v3545
      %3582 = vst.msk [vmem:[#allocation2 + $0x70] sm:$0xff] %vm339, %v3546
      %3583 = vst.msk [vmem:[#allocation2 + $0x78] sm:$0xff] %vm339, %v3547
      %3584 = vst.msk [vmem:[#allocation2 + $0x80] sm:$0xff] %vm339, %v3548
      %3585 = vst.msk [vmem:[#allocation2 + $0x88] sm:$0xff] %vm339, %v3549
      %3586 = vst.msk [vmem:[#allocation2 + $0x90] sm:$0xff] %vm339, %v3550
      %3587 = vst.msk [vmem:[#allocation2 + $0x98] sm:$0xff] %vm339, %v3551
      %3588 = vst.msk [vmem:[#allocation2 + $0xa0] sm:$0xff] %vm339, %v3552
      %3589 = vst.msk [vmem:[#allocation2 + $0xa8] sm:$0xff] %vm339, %v3553
      %3590 = vst.msk [vmem:[#allocation2 + $0xb0] sm:$0xff] %vm339, %v3554
      %3591 = vst.msk [vmem:[#allocation2 + $0xb8] sm:$0xff] %vm339, %v3555
      %3592 = vst.msk [vmem:[#allocation2 + $0xc0] sm:$0xff] %vm339, %v3556
      %3593 = vst.msk [vmem:[#allocation2 + $0xc8] sm:$0xff] %vm339, %v3557
      %3594 = vst.msk [vmem:[#allocation2 + $0xd0] sm:$0xff] %vm339, %v3558
      %3595 = vst.msk [vmem:[#allocation2 + $0xd8] sm:$0xff] %vm339, %v3559
      %3596 = vst.msk [vmem:[#allocation2 + $0xe0] sm:$0xff] %vm339, %v3560
      %3597 = vst.msk [vmem:[#allocation2 + $0xe8] sm:$0xff] %vm339, %v3561
      %3598 = vst.msk [vmem:[#allocation2 + $0xf0] sm:$0xff] %vm339, %v3562
      %3599 = vst.msk [vmem:[#allocation2 + $0xf8] sm:$0xff] %vm339, %v3563
      %3600 = vst.msk [vmem:[#allocation2 + $0x100] sm:$0xff] %vm339, %v3564
      %3601 = vst.msk [vmem:[#allocation2 + $0x108] sm:$0xff] %vm339, %v3565
      %3602 = vst.msk [vmem:[#allocation2 + $0x110] sm:$0xff] %vm339, %v3566
      %3603 = vst.msk [vmem:[#allocation2 + $0x118] sm:$0xff] %vm339, %v3567
      %v3604 = vld [vmem:[#allocation4 + $0x26] sm:$0xff]
      %v3605 = vld [vmem:[#allocation4 + $0x2e] sm:$0xff]
      %v3606 = vld [vmem:[#allocation4 + $0x36] sm:$0xff]
      %v3607 = vld [vmem:[#allocation4 + $0x3e] sm:$0xff]
      %v3608 = vld [vmem:[#allocation4 + $0x46] sm:$0xff]
      %v3609 = vld [vmem:[#allocation4 + $0x4e] sm:$0xff]
      %v3610 = vld [vmem:[#allocation4 + $0x56] sm:$0xff]
      %v3611 = vld [vmem:[#allocation4 + $0x5e] sm:$0xff]
      %v3612 = vld [vmem:[#allocation4 + $0x66] sm:$0xff]
      %v3613 = vld [vmem:[#allocation4 + $0x6e] sm:$0xff]
      %v3614 = vld [vmem:[#allocation4 + $0x76] sm:$0xff]
      %v3615 = vld [vmem:[#allocation4 + $0x7e] sm:$0xff]
      %v3616 = vld [vmem:[#allocation4 + $0x86] sm:$0xff]
      %v3617 = vld [vmem:[#allocation4 + $0x8e] sm:$0xff]
      %v3618 = vld [vmem:[#allocation4 + $0x96] sm:$0xff]
      %v3619 = vld [vmem:[#allocation4 + $0x9e] sm:$0xff]
      %v3620 = vld [vmem:[#allocation4 + $0xa6] sm:$0xff]
      %v3621 = vld [vmem:[#allocation4 + $0xae] sm:$0xff]
      %v3622 = vld [vmem:[#allocation4 + $0xb6] sm:$0xff]
      %v3623 = vld [vmem:[#allocation4 + $0xbe] sm:$0xff]
      %v3624 = vld [vmem:[#allocation4 + $0xc6] sm:$0xff]
      %v3625 = vld [vmem:[#allocation4 + $0xce] sm:$0xff]
      %v3626 = vld [vmem:[#allocation4 + $0xd6] sm:$0xff]
      %v3627 = vld [vmem:[#allocation4 + $0xde] sm:$0xff]
      %v3628 = vld [vmem:[#allocation4 + $0xe6] sm:$0xff]
      %v3629 = vld [vmem:[#allocation4 + $0xee] sm:$0xff]
      %v3630 = vld [vmem:[#allocation4 + $0xf6] sm:$0xff]
      %v3631 = vld [vmem:[#allocation4 + $0xfe] sm:$0xff]
      %v3632 = vld [vmem:[#allocation4 + $0x106] sm:$0xff]
      %v3633 = vld [vmem:[#allocation4 + $0x10e] sm:$0xff]
      %v3634 = vld [vmem:[#allocation4 + $0x116] sm:$0xff]
      %v3635 = vld [vmem:[#allocation4 + $0x11e] sm:$0xff]
      %v3636 = vld [vmem:[#allocation4 + $0x126] sm:$0xff]
      %v3637 = vld [vmem:[#allocation4 + $0x12e] sm:$0xff]
      %v3638 = vld [vmem:[#allocation4 + $0x136] sm:$0xff]
      %v3639 = vld [vmem:[#allocation4 + $0x13e] sm:$0xff]
      %v3640 = vpack.c.bf16 %v3605, %v3604
      %v3641 = vpack.c.bf16 %v3607, %v3606
      %v3642 = vpack.c.bf16 %v3609, %v3608
      %v3643 = vpack.c.bf16 %v3611, %v3610
      %v3644 = vpack.c.bf16 %v3613, %v3612
      %v3645 = vpack.c.bf16 %v3615, %v3614
      %v3646 = vpack.c.bf16 %v3617, %v3616
      %v3647 = vpack.c.bf16 %v3619, %v3618
      %v3648 = vpack.c.bf16 %v3621, %v3620
      %v3649 = vpack.c.bf16 %v3623, %v3622
      %v3650 = vpack.c.bf16 %v3625, %v3624
      %v3651 = vpack.c.bf16 %v3627, %v3626
      %v3652 = vpack.c.bf16 %v3629, %v3628
      %v3653 = vpack.c.bf16 %v3631, %v3630
      %v3654 = vpack.c.bf16 %v3633, %v3632
      %v3655 = vpack.c.bf16 %v3635, %v3634
      %v3656 = vpack.c.bf16 %v3637, %v3636
      %v3657 = vpack.c.bf16 %v3639, %v3638
      %v3658 = vld [vmem:[#allocation2] sm:$0xff]
      %v3659 = vld [vmem:[#allocation2 + $0x8] sm:$0xff]
      %v3660 = vld [vmem:[#allocation2 + $0x10] sm:$0xff]
      %v3661 = vld [vmem:[#allocation2 + $0x18] sm:$0xff]
      %v3662 = vld [vmem:[#allocation2 + $0x20] sm:$0xff]
      %v3663 = vld [vmem:[#allocation2 + $0x28] sm:$0xff]
      %v3664 = vld [vmem:[#allocation2 + $0x30] sm:$0xff]
      %v3665 = vld [vmem:[#allocation2 + $0x38] sm:$0xff]
      %v3666 = vld [vmem:[#allocation2 + $0x40] sm:$0xff]
      %v3667 = vld [vmem:[#allocation2 + $0x48] sm:$0xff]
      %v3668 = vld [vmem:[#allocation2 + $0x50] sm:$0xff]
      %v3669 = vld [vmem:[#allocation2 + $0x58] sm:$0xff]
      %v3670 = vld [vmem:[#allocation2 + $0x60] sm:$0xff]
      %v3671 = vld [vmem:[#allocation2 + $0x68] sm:$0xff]
      %v3672 = vld [vmem:[#allocation2 + $0x70] sm:$0xff]
      %v3673 = vld [vmem:[#allocation2 + $0x78] sm:$0xff]
      %v3674 = vld [vmem:[#allocation2 + $0x80] sm:$0xff]
      %v3675 = vld [vmem:[#allocation2 + $0x88] sm:$0xff]
      %v3676 = vld [vmem:[#allocation2 + $0x90] sm:$0xff]
      %v3677 = vld [vmem:[#allocation2 + $0x98] sm:$0xff]
      %v3678 = vld [vmem:[#allocation2 + $0xa0] sm:$0xff]
      %v3679 = vld [vmem:[#allocation2 + $0xa8] sm:$0xff]
      %v3680 = vld [vmem:[#allocation2 + $0xb0] sm:$0xff]
      %v3681 = vld [vmem:[#allocation2 + $0xb8] sm:$0xff]
      %v3682 = vld [vmem:[#allocation2 + $0xc0] sm:$0xff]
      %v3683 = vld [vmem:[#allocation2 + $0xc8] sm:$0xff]
      %v3684 = vld [vmem:[#allocation2 + $0xd0] sm:$0xff]
      %v3685 = vld [vmem:[#allocation2 + $0xd8] sm:$0xff]
      %v3686 = vld [vmem:[#allocation2 + $0xe0] sm:$0xff]
      %v3687 = vld [vmem:[#allocation2 + $0xe8] sm:$0xff]
      %v3688 = vld [vmem:[#allocation2 + $0xf0] sm:$0xff]
      %v3689 = vld [vmem:[#allocation2 + $0xf8] sm:$0xff]
      %v3690 = vld [vmem:[#allocation2 + $0x100] sm:$0xff]
      %v3691 = vld [vmem:[#allocation2 + $0x108] sm:$0xff]
      %v3692 = vld [vmem:[#allocation2 + $0x110] sm:$0xff]
      %v3693 = vld [vmem:[#allocation2 + $0x118] sm:$0xff]
      %s3694 = scalar_lea.vmem %s1, 16
      %v3695 = vld [vmem:[%s3694] sm:$0x3]
      %v3697 = vsel %vm339, %v3640, 0
      %v3700 = vsel %vm339, %v3641, 0
      %v3703 = vsel %vm339, %v3642, 0
      %v3706 = vsel %vm339, %v3643, 0
      %v3709 = vsel %vm339, %v3644, 0
      %v3712 = vsel %vm339, %v3645, 0
      %v3715 = vsel %vm339, %v3646, 0
      %v3718 = vsel %vm339, %v3647, 0
      %v3721 = vsel %vm339, %v3648, 0
      %v3724 = vsel %vm339, %v3649, 0
      %v3727 = vsel %vm339, %v3650, 0
      %v3730 = vsel %vm339, %v3651, 0
      %v3733 = vsel %vm339, %v3652, 0
      %v3736 = vsel %vm339, %v3653, 0
      %v3739 = vsel %vm339, %v3654, 0
      %v3742 = vsel %vm339, %v3655, 0
      %v3745 = vsel %vm339, %v3656, 0
      %v3748 = vsel %vm339, %v3657, 0
      %v3751 = vsel %vm565, %v3695, 0
      %3753 = vmatprep.subr.bf16.mxu0 0
      %3754 = vmatpush1.bf16.msra.mxu0 0
      %3755 = vmatprep.subr.bf16.mxu0 0
      %3756 = vmatpush1.bf16.msra.mxu0 0
      %3757 = vmatprep.subr.bf16.mxu0 0
      %3758 = vmatpush1.bf16.msra.mxu0 0
      %3759 = vmatprep.subr.bf16.mxu0 0
      %3760 = vmatpush1.bf16.msra.mxu0 0
      %3761 = vmatprep.subr.bf16.mxu0 0
      %3762 = vmatpush1.bf16.msra.mxu0 0
      %3763 = vmatprep.subr.bf16.mxu0 0
      %3764 = vmatpush1.bf16.msra.mxu0 0
      %3765 = vmatprep.subr.bf16.mxu0 0
      %3766 = vmatpush1.bf16.msra.mxu0 0
      %3767 = vmatprep.subr.bf16.mxu0 0
      %3768 = vmatpush1.bf16.msra.mxu0 %v3751
      %3769 = vmatprep.subr.bf16.mxu0 0
      %3770 = vmatpush2.bf16.msra.mxu0 0
      %3771 = vmatprep.subr.bf16.mxu0 0
      %3772 = vmatpush2.bf16.msra.mxu0 0
      %3773 = vmatprep.subr.bf16.mxu0 0
      %3774 = vmatpush2.bf16.msra.mxu0 0
      %3775 = vmatprep.subr.bf16.mxu0 0
      %3776 = vmatpush2.bf16.msra.mxu0 0
      %3777 = vmatprep.subr.bf16.mxu0 0
      %3778 = vmatpush2.bf16.msra.mxu0 0
      %3779 = vmatprep.subr.bf16.mxu0 0
      %3780 = vmatpush2.bf16.msra.mxu0 0
      %3781 = vmatprep.subr.bf16.mxu0 0
      %3782 = vmatpush2.bf16.msra.mxu0 0
      %3783 = vmatprep.subr.bf16.mxu0 0
      %3784 = vmatpush2.bf16.msra.mxu0 0
      %3785 = vmatprep.mubr.bf16.mxu0 0
      %3786 = vmatmul.mubr.bf16.gmra.mxu0 %v3697
      %v3787 = vpop.f32.mrf.mxu0
      %v3788 = vadd.f32 0.0, %v3787
      %v3789 = vpop.f32.mrf.mxu0
      %v3790 = vpop.f32.mrf.mxu0
      %v3791 = vadd.f32 0.0, %v3790
      %v3792 = vpop.f32.mrf.mxu0
      %3793 = vmatprep.mubr.bf16.mxu0 0
      %3794 = vmatmul.mubr.bf16.gmra.mxu0 %v3700
      %v3795 = vpop.f32.mrf.mxu0
      %v3796 = vadd.f32 0.0, %v3795
      %v3797 = vpop.f32.mrf.mxu0
      %v3798 = vpop.f32.mrf.mxu0
      %v3799 = vadd.f32 0.0, %v3798
      %v3800 = vpop.f32.mrf.mxu0
      %3801 = vmatprep.mubr.bf16.mxu0 0
      %3802 = vmatmul.mubr.bf16.gmra.mxu0 %v3703
      %v3803 = vpop.f32.mrf.mxu0
      %v3804 = vadd.f32 0.0, %v3803
      %v3805 = vpop.f32.mrf.mxu0
      %v3806 = vpop.f32.mrf.mxu0
      %v3807 = vadd.f32 0.0, %v3806
      %v3808 = vpop.f32.mrf.mxu0
      %3809 = vmatprep.mubr.bf16.mxu0 0
      %3810 = vmatmul.mubr.bf16.gmra.mxu0 %v3706
      %v3811 = vpop.f32.mrf.mxu0
      %v3812 = vadd.f32 0.0, %v3811
      %v3813 = vpop.f32.mrf.mxu0
      %v3814 = vpop.f32.mrf.mxu0
      %v3815 = vadd.f32 0.0, %v3814
      %v3816 = vpop.f32.mrf.mxu0
      %3817 = vmatprep.mubr.bf16.mxu0 0
      %3818 = vmatmul.mubr.bf16.gmra.mxu0 %v3709
      %v3819 = vpop.f32.mrf.mxu0
      %v3820 = vadd.f32 0.0, %v3819
      %v3821 = vpop.f32.mrf.mxu0
      %v3822 = vpop.f32.mrf.mxu0
      %v3823 = vadd.f32 0.0, %v3822
      %v3824 = vpop.f32.mrf.mxu0
      %3825 = vmatprep.mubr.bf16.mxu0 0
      %3826 = vmatmul.mubr.bf16.gmra.mxu0 %v3712
      %v3827 = vpop.f32.mrf.mxu0
      %v3828 = vadd.f32 0.0, %v3827
      %v3829 = vpop.f32.mrf.mxu0
      %v3830 = vpop.f32.mrf.mxu0
      %v3831 = vadd.f32 0.0, %v3830
      %v3832 = vpop.f32.mrf.mxu0
      %3833 = vmatprep.mubr.bf16.mxu0 0
      %3834 = vmatmul.mubr.bf16.gmra.mxu0 %v3715
      %v3835 = vpop.f32.mrf.mxu0
      %v3836 = vadd.f32 0.0, %v3835
      %v3837 = vpop.f32.mrf.mxu0
      %v3838 = vpop.f32.mrf.mxu0
      %v3839 = vadd.f32 0.0, %v3838
      %v3840 = vpop.f32.mrf.mxu0
      %3841 = vmatprep.mubr.bf16.mxu0 0
      %3842 = vmatmul.mubr.bf16.gmra.mxu0 %v3718
      %v3843 = vpop.f32.mrf.mxu0
      %v3844 = vadd.f32 0.0, %v3843
      %v3845 = vpop.f32.mrf.mxu0
      %v3846 = vpop.f32.mrf.mxu0
      %v3847 = vadd.f32 0.0, %v3846
      %v3848 = vpop.f32.mrf.mxu0
      %3849 = vmatprep.mubr.bf16.mxu0 0
      %3850 = vmatmul.mubr.bf16.gmra.mxu0 %v3721
      %v3851 = vpop.f32.mrf.mxu0
      %v3852 = vadd.f32 0.0, %v3851
      %v3853 = vpop.f32.mrf.mxu0
      %v3854 = vpop.f32.mrf.mxu0
      %v3855 = vadd.f32 0.0, %v3854
      %v3856 = vpop.f32.mrf.mxu0
      %3857 = vmatprep.mubr.bf16.mxu0 0
      %3858 = vmatmul.mubr.bf16.gmra.mxu0 %v3724
      %v3859 = vpop.f32.mrf.mxu0
      %v3860 = vadd.f32 0.0, %v3859
      %v3861 = vpop.f32.mrf.mxu0
      %v3862 = vpop.f32.mrf.mxu0
      %v3863 = vadd.f32 0.0, %v3862
      %v3864 = vpop.f32.mrf.mxu0
      %3865 = vmatprep.mubr.bf16.mxu0 0
      %3866 = vmatmul.mubr.bf16.gmra.mxu0 %v3727
      %v3867 = vpop.f32.mrf.mxu0
      %v3868 = vadd.f32 0.0, %v3867
      %v3869 = vpop.f32.mrf.mxu0
      %v3870 = vpop.f32.mrf.mxu0
      %v3871 = vadd.f32 0.0, %v3870
      %v3872 = vpop.f32.mrf.mxu0
      %3873 = vmatprep.mubr.bf16.mxu0 0
      %3874 = vmatmul.mubr.bf16.gmra.mxu0 %v3730
      %v3875 = vpop.f32.mrf.mxu0
      %v3876 = vadd.f32 0.0, %v3875
      %v3877 = vpop.f32.mrf.mxu0
      %v3878 = vpop.f32.mrf.mxu0
      %v3879 = vadd.f32 0.0, %v3878
      %v3880 = vpop.f32.mrf.mxu0
      %3881 = vmatprep.mubr.bf16.mxu0 0
      %3882 = vmatmul.mubr.bf16.gmra.mxu0 %v3733
      %v3883 = vpop.f32.mrf.mxu0
      %v3884 = vadd.f32 0.0, %v3883
      %v3885 = vpop.f32.mrf.mxu0
      %v3886 = vpop.f32.mrf.mxu0
      %v3887 = vadd.f32 0.0, %v3886
      %v3888 = vpop.f32.mrf.mxu0
      %3889 = vmatprep.mubr.bf16.mxu0 0
      %3890 = vmatmul.mubr.bf16.gmra.mxu0 %v3736
      %v3891 = vpop.f32.mrf.mxu0
      %v3892 = vadd.f32 0.0, %v3891
      %v3893 = vpop.f32.mrf.mxu0
      %v3894 = vpop.f32.mrf.mxu0
      %v3895 = vadd.f32 0.0, %v3894
      %v3896 = vpop.f32.mrf.mxu0
      %3897 = vmatprep.mubr.bf16.mxu0 0
      %3898 = vmatmul.mubr.bf16.gmra.mxu0 %v3739
      %v3899 = vpop.f32.mrf.mxu0
      %v3900 = vadd.f32 0.0, %v3899
      %v3901 = vpop.f32.mrf.mxu0
      %v3902 = vpop.f32.mrf.mxu0
      %v3903 = vadd.f32 0.0, %v3902
      %v3904 = vpop.f32.mrf.mxu0
      %3905 = vmatprep.mubr.bf16.mxu0 0
      %3906 = vmatmul.mubr.bf16.gmra.mxu0 %v3742
      %v3907 = vpop.f32.mrf.mxu0
      %v3908 = vadd.f32 0.0, %v3907
      %v3909 = vpop.f32.mrf.mxu0
      %v3910 = vpop.f32.mrf.mxu0
      %v3911 = vadd.f32 0.0, %v3910
      %v3912 = vpop.f32.mrf.mxu0
      %3913 = vmatprep.mubr.bf16.mxu0 0
      %3914 = vmatmul.mubr.bf16.gmra.mxu0 %v3745
      %v3915 = vpop.f32.mrf.mxu0
      %v3916 = vadd.f32 0.0, %v3915
      %v3917 = vpop.f32.mrf.mxu0
      %v3918 = vpop.f32.mrf.mxu0
      %v3919 = vadd.f32 0.0, %v3918
      %v3920 = vpop.f32.mrf.mxu0
      %3921 = vmatprep.mubr.bf16.mxu0 0
      %3922 = vmatmul.mubr.bf16.gmra.mxu0 %v3748
      %v3923 = vpop.f32.mrf.mxu0
      %v3924 = vadd.f32 0.0, %v3923
      %v3925 = vpop.f32.mrf.mxu0
      %v3926 = vpop.f32.mrf.mxu0
      %v3927 = vadd.f32 0.0, %v3926
      %v3928 = vpop.f32.mrf.mxu0
      %3929 = vdwg.mxu0
      %v3930 = vadd.f32 %v3658, %v3788
      %v3931 = vadd.f32 %v3659, %v3791
      %v3932 = vadd.f32 %v3660, %v3796
      %v3933 = vadd.f32 %v3661, %v3799
      %v3934 = vadd.f32 %v3662, %v3804
      %v3935 = vadd.f32 %v3663, %v3807
      %v3936 = vadd.f32 %v3664, %v3812
      %v3937 = vadd.f32 %v3665, %v3815
      %v3938 = vadd.f32 %v3666, %v3820
      %v3939 = vadd.f32 %v3667, %v3823
      %v3940 = vadd.f32 %v3668, %v3828
      %v3941 = vadd.f32 %v3669, %v3831
      %v3942 = vadd.f32 %v3670, %v3836
      %v3943 = vadd.f32 %v3671, %v3839
      %v3944 = vadd.f32 %v3672, %v3844
      %v3945 = vadd.f32 %v3673, %v3847
      %v3946 = vadd.f32 %v3674, %v3852
      %v3947 = vadd.f32 %v3675, %v3855
      %v3948 = vadd.f32 %v3676, %v3860
      %v3949 = vadd.f32 %v3677, %v3863
      %v3950 = vadd.f32 %v3678, %v3868
      %v3951 = vadd.f32 %v3679, %v3871
      %v3952 = vadd.f32 %v3680, %v3876
      %v3953 = vadd.f32 %v3681, %v3879
      %v3954 = vadd.f32 %v3682, %v3884
      %v3955 = vadd.f32 %v3683, %v3887
      %v3956 = vadd.f32 %v3684, %v3892
      %v3957 = vadd.f32 %v3685, %v3895
      %v3958 = vadd.f32 %v3686, %v3900
      %v3959 = vadd.f32 %v3687, %v3903
      %v3960 = vadd.f32 %v3688, %v3908
      %v3961 = vadd.f32 %v3689, %v3911
      %v3962 = vadd.f32 %v3690, %v3916
      %v3963 = vadd.f32 %v3691, %v3919
      %v3964 = vadd.f32 %v3692, %v3924
      %v3965 = vadd.f32 %v3693, %v3927
      %3966 = vst.msk [vmem:[#allocation2] sm:$0xff] %vm339, %v3930
      %3967 = vst.msk [vmem:[#allocation2 + $0x8] sm:$0xff] %vm339, %v3931
      %3968 = vst.msk [vmem:[#allocation2 + $0x10] sm:$0xff] %vm339, %v3932
      %3969 = vst.msk [vmem:[#allocation2 + $0x18] sm:$0xff] %vm339, %v3933
      %3970 = vst.msk [vmem:[#allocation2 + $0x20] sm:$0xff] %vm339, %v3934
      %3971 = vst.msk [vmem:[#allocation2 + $0x28] sm:$0xff] %vm339, %v3935
      %3972 = vst.msk [vmem:[#allocation2 + $0x30] sm:$0xff] %vm339, %v3936
      %3973 = vst.msk [vmem:[#allocation2 + $0x38] sm:$0xff] %vm339, %v3937
      %3974 = vst.msk [vmem:[#allocation2 + $0x40] sm:$0xff] %vm339, %v3938
      %3975 = vst.msk [vmem:[#allocation2 + $0x48] sm:$0xff] %vm339, %v3939
      %3976 = vst.msk [vmem:[#allocation2 + $0x50] sm:$0xff] %vm339, %v3940
      %3977 = vst.msk [vmem:[#allocation2 + $0x58] sm:$0xff] %vm339, %v3941
      %3978 = vst.msk [vmem:[#allocation2 + $0x60] sm:$0xff] %vm339, %v3942
      %3979 = vst.msk [vmem:[#allocation2 + $0x68] sm:$0xff] %vm339, %v3943
      %3980 = vst.msk [vmem:[#allocation2 + $0x70] sm:$0xff] %vm339, %v3944
      %3981 = vst.msk [vmem:[#allocation2 + $0x78] sm:$0xff] %vm339, %v3945
      %3982 = vst.msk [vmem:[#allocation2 + $0x80] sm:$0xff] %vm339, %v3946
      %3983 = vst.msk [vmem:[#allocation2 + $0x88] sm:$0xff] %vm339, %v3947
      %3984 = vst.msk [vmem:[#allocation2 + $0x90] sm:$0xff] %vm339, %v3948
      %3985 = vst.msk [vmem:[#allocation2 + $0x98] sm:$0xff] %vm339, %v3949
      %3986 = vst.msk [vmem:[#allocation2 + $0xa0] sm:$0xff] %vm339, %v3950
      %3987 = vst.msk [vmem:[#allocation2 + $0xa8] sm:$0xff] %vm339, %v3951
      %3988 = vst.msk [vmem:[#allocation2 + $0xb0] sm:$0xff] %vm339, %v3952
      %3989 = vst.msk [vmem:[#allocation2 + $0xb8] sm:$0xff] %vm339, %v3953
      %3990 = vst.msk [vmem:[#allocation2 + $0xc0] sm:$0xff] %vm339, %v3954
      %3991 = vst.msk [vmem:[#allocation2 + $0xc8] sm:$0xff] %vm339, %v3955
      %3992 = vst.msk [vmem:[#allocation2 + $0xd0] sm:$0xff] %vm339, %v3956
      %3993 = vst.msk [vmem:[#allocation2 + $0xd8] sm:$0xff] %vm339, %v3957
      %3994 = vst.msk [vmem:[#allocation2 + $0xe0] sm:$0xff] %vm339, %v3958
      %3995 = vst.msk [vmem:[#allocation2 + $0xe8] sm:$0xff] %vm339, %v3959
      %3996 = vst.msk [vmem:[#allocation2 + $0xf0] sm:$0xff] %vm339, %v3960
      %3997 = vst.msk [vmem:[#allocation2 + $0xf8] sm:$0xff] %vm339, %v3961
      %3998 = vst.msk [vmem:[#allocation2 + $0x100] sm:$0xff] %vm339, %v3962
      %3999 = vst.msk [vmem:[#allocation2 + $0x108] sm:$0xff] %vm339, %v3963
      %4000 = vst.msk [vmem:[#allocation2 + $0x110] sm:$0xff] %vm339, %v3964
      %4001 = vst.msk [vmem:[#allocation2 + $0x118] sm:$0xff] %vm339, %v3965
      %v4002 = vld [vmem:[#allocation2] sm:$0xff]
      %v4003 = vld [vmem:[#allocation2 + $0x8] sm:$0xff]
      %v4004 = vld [vmem:[#allocation2 + $0x10] sm:$0xff]
      %v4005 = vld [vmem:[#allocation2 + $0x18] sm:$0xff]
      %v4006 = vld [vmem:[#allocation2 + $0x20] sm:$0xff]
      %v4007 = vld [vmem:[#allocation2 + $0x28] sm:$0xff]
      %v4008 = vld [vmem:[#allocation2 + $0x30] sm:$0xff]
      %v4009 = vld [vmem:[#allocation2 + $0x38] sm:$0xff]
      %v4010 = vld [vmem:[#allocation2 + $0x40] sm:$0xff]
      %v4011 = vld [vmem:[#allocation2 + $0x48] sm:$0xff]
      %v4012 = vld [vmem:[#allocation2 + $0x50] sm:$0xff]
      %v4013 = vld [vmem:[#allocation2 + $0x58] sm:$0xff]
      %v4014 = vld [vmem:[#allocation2 + $0x60] sm:$0xff]
      %v4015 = vld [vmem:[#allocation2 + $0x68] sm:$0xff]
      %v4016 = vld [vmem:[#allocation2 + $0x70] sm:$0xff]
      %v4017 = vld [vmem:[#allocation2 + $0x78] sm:$0xff]
      %v4018 = vld [vmem:[#allocation2 + $0x80] sm:$0xff]
      %v4019 = vld [vmem:[#allocation2 + $0x88] sm:$0xff]
      %v4020 = vld [vmem:[#allocation2 + $0x90] sm:$0xff]
      %v4021 = vld [vmem:[#allocation2 + $0x98] sm:$0xff]
      %v4022 = vld [vmem:[#allocation2 + $0xa0] sm:$0xff]
      %v4023 = vld [vmem:[#allocation2 + $0xa8] sm:$0xff]
      %v4024 = vld [vmem:[#allocation2 + $0xb0] sm:$0xff]
      %v4025 = vld [vmem:[#allocation2 + $0xb8] sm:$0xff]
      %v4026 = vld [vmem:[#allocation2 + $0xc0] sm:$0xff]
      %v4027 = vld [vmem:[#allocation2 + $0xc8] sm:$0xff]
      %v4028 = vld [vmem:[#allocation2 + $0xd0] sm:$0xff]
      %v4029 = vld [vmem:[#allocation2 + $0xd8] sm:$0xff]
      %v4030 = vld [vmem:[#allocation2 + $0xe0] sm:$0xff]
      %v4031 = vld [vmem:[#allocation2 + $0xe8] sm:$0xff]
      %v4032 = vld [vmem:[#allocation2 + $0xf0] sm:$0xff]
      %v4033 = vld [vmem:[#allocation2 + $0xf8] sm:$0xff]
      %v4034 = vld [vmem:[#allocation2 + $0x100] sm:$0xff]
      %v4035 = vld [vmem:[#allocation2 + $0x108] sm:$0xff]
      %v4036 = vld [vmem:[#allocation2 + $0x110] sm:$0xff]
      %v4037 = vld [vmem:[#allocation2 + $0x118] sm:$0xff]
      %v4038 = vld [vmem:[%s2] sm:$0x1]
      %v4040 = vlaneseq
      %v4041 = vshrl.u32 %v4040, 7
      %v4042 = vsub.s32 0, %v4041
      %v4043 = vrot.slane %v4038, %v4042
      %v4045 = vadd.f32 %v4002, %v4043
      %v4046 = vadd.f32 %v4003, %v4043
      %v4047 = vadd.f32 %v4004, %v4043
      %v4048 = vadd.f32 %v4005, %v4043
      %v4049 = vadd.f32 %v4006, %v4043
      %v4050 = vadd.f32 %v4007, %v4043
      %v4051 = vadd.f32 %v4008, %v4043
      %v4052 = vadd.f32 %v4009, %v4043
      %v4053 = vadd.f32 %v4010, %v4043
      %v4054 = vadd.f32 %v4011, %v4043
      %v4055 = vadd.f32 %v4012, %v4043
      %v4056 = vadd.f32 %v4013, %v4043
      %v4057 = vadd.f32 %v4014, %v4043
      %v4058 = vadd.f32 %v4015, %v4043
      %v4059 = vadd.f32 %v4016, %v4043
      %v4060 = vadd.f32 %v4017, %v4043
      %v4061 = vadd.f32 %v4018, %v4043
      %v4062 = vadd.f32 %v4019, %v4043
      %v4063 = vadd.f32 %v4020, %v4043
      %v4064 = vadd.f32 %v4021, %v4043
      %v4065 = vadd.f32 %v4022, %v4043
      %v4066 = vadd.f32 %v4023, %v4043
      %v4067 = vadd.f32 %v4024, %v4043
      %v4068 = vadd.f32 %v4025, %v4043
      %v4069 = vadd.f32 %v4026, %v4043
      %v4070 = vadd.f32 %v4027, %v4043
      %v4071 = vadd.f32 %v4028, %v4043
      %v4072 = vadd.f32 %v4029, %v4043
      %v4073 = vadd.f32 %v4030, %v4043
      %v4074 = vadd.f32 %v4031, %v4043
      %v4075 = vadd.f32 %v4032, %v4043
      %v4076 = vadd.f32 %v4033, %v4043
      %v4077 = vadd.f32 %v4034, %v4043
      %v4078 = vadd.f32 %v4035, %v4043
      %v4079 = vadd.f32 %v4036, %v4043
      %v4080 = vadd.f32 %v4037, %v4043
      %v4081 = vmax.f32 %v4045, 0.0
      %v4082 = vmax.f32 %v4046, 0.0
      %v4083 = vmax.f32 %v4047, 0.0
      %v4084 = vmax.f32 %v4048, 0.0
      %v4085 = vmax.f32 %v4049, 0.0
      %v4086 = vmax.f32 %v4050, 0.0
      %v4087 = vmax.f32 %v4051, 0.0
      %v4088 = vmax.f32 %v4052, 0.0
      %v4089 = vmax.f32 %v4053, 0.0
      %v4090 = vmax.f32 %v4054, 0.0
      %v4091 = vmax.f32 %v4055, 0.0
      %v4092 = vmax.f32 %v4056, 0.0
      %v4093 = vmax.f32 %v4057, 0.0
      %v4094 = vmax.f32 %v4058, 0.0
      %v4095 = vmax.f32 %v4059, 0.0
      %v4096 = vmax.f32 %v4060, 0.0
      %v4097 = vmax.f32 %v4061, 0.0
      %v4098 = vmax.f32 %v4062, 0.0
      %v4099 = vmax.f32 %v4063, 0.0
      %v4100 = vmax.f32 %v4064, 0.0
      %v4101 = vmax.f32 %v4065, 0.0
      %v4102 = vmax.f32 %v4066, 0.0
      %v4103 = vmax.f32 %v4067, 0.0
      %v4104 = vmax.f32 %v4068, 0.0
      %v4105 = vmax.f32 %v4069, 0.0
      %v4106 = vmax.f32 %v4070, 0.0
      %v4107 = vmax.f32 %v4071, 0.0
      %v4108 = vmax.f32 %v4072, 0.0
      %v4109 = vmax.f32 %v4073, 0.0
      %v4110 = vmax.f32 %v4074, 0.0
      %v4111 = vmax.f32 %v4075, 0.0
      %v4112 = vmax.f32 %v4076, 0.0
      %v4113 = vmax.f32 %v4077, 0.0
      %v4114 = vmax.f32 %v4078, 0.0
      %v4115 = vmax.f32 %v4079, 0.0
      %v4116 = vmax.f32 %v4080, 0.0
      %v4117 = vld [vmem:[%s5] sm:$0xff]
      %v4118 = vld [vmem:[%s5 + $0x8] sm:$0xff]
      %v4119 = vld [vmem:[%s5 + $0x10] sm:$0xff]
      %v4120 = vld [vmem:[%s5 + $0x18] sm:$0xff]
      %v4121 = vld [vmem:[%s5 + $0x20] sm:$0xff]
      %v4122 = vld [vmem:[%s5 + $0x28] sm:$0xff]
      %v4123 = vld [vmem:[%s5 + $0x30] sm:$0xff]
      %v4124 = vld [vmem:[%s5 + $0x38] sm:$0xff]
      %v4125 = vld [vmem:[%s5 + $0x40] sm:$0xff]
      %v4126 = vld [vmem:[%s5 + $0x48] sm:$0xff]
      %v4127 = vld [vmem:[%s5 + $0x50] sm:$0xff]
      %v4128 = vld [vmem:[%s5 + $0x58] sm:$0xff]
      %v4129 = vld [vmem:[%s5 + $0x60] sm:$0xff]
      %v4130 = vld [vmem:[%s5 + $0x68] sm:$0xff]
      %v4131 = vld [vmem:[%s5 + $0x70] sm:$0xff]
      %v4132 = vld [vmem:[%s5 + $0x78] sm:$0xff]
      %v4133 = vld [vmem:[%s5 + $0x80] sm:$0xff]
      %v4134 = vld [vmem:[%s5 + $0x88] sm:$0xff]
      %v4135 = vld [vmem:[%s5 + $0x90] sm:$0xff]
      %v4136 = vld [vmem:[%s5 + $0x98] sm:$0xff]
      %v4137 = vld [vmem:[%s5 + $0xa0] sm:$0xff]
      %v4138 = vld [vmem:[%s5 + $0xa8] sm:$0xff]
      %v4139 = vld [vmem:[%s5 + $0xb0] sm:$0xff]
      %v4140 = vld [vmem:[%s5 + $0xb8] sm:$0xff]
      %v4141 = vld [vmem:[%s5 + $0xc0] sm:$0xff]
      %v4142 = vld [vmem:[%s5 + $0xc8] sm:$0xff]
      %v4143 = vld [vmem:[%s5 + $0xd0] sm:$0xff]
      %v4144 = vld [vmem:[%s5 + $0xd8] sm:$0xff]
      %v4145 = vld [vmem:[%s5 + $0xe0] sm:$0xff]
      %v4146 = vld [vmem:[%s5 + $0xe8] sm:$0xff]
      %v4147 = vld [vmem:[%s5 + $0xf0] sm:$0xff]
      %v4148 = vld [vmem:[%s5 + $0xf8] sm:$0xff]
      %v4149 = vld [vmem:[%s5 + $0x100] sm:$0xff]
      %v4150 = vld [vmem:[%s5 + $0x108] sm:$0xff]
      %v4151 = vld [vmem:[%s5 + $0x110] sm:$0xff]
      %v4152 = vld [vmem:[%s5 + $0x118] sm:$0xff]
      %4154 = vset.pattern.permute.xlu0 0
      %4155 = vperm.xlu0 %4154, %v4117
      %v4156 = vpop.permute.xlu0 %4155
      %4159 = vset.pattern.permute.xlu0 0
      %4160 = vperm.xlu0 %4159, %v4118
      %v4161 = vpop.permute.xlu0 %4160
      %4164 = vset.pattern.permute.xlu0 0
      %4165 = vperm.xlu0 %4164, %v4119
      %v4166 = vpop.permute.xlu0 %4165
      %4169 = vset.pattern.permute.xlu0 0
      %4170 = vperm.xlu0 %4169, %v4120
      %v4171 = vpop.permute.xlu0 %4170
      %4174 = vset.pattern.permute.xlu0 0
      %4175 = vperm.xlu0 %4174, %v4121
      %v4176 = vpop.permute.xlu0 %4175
      %4179 = vset.pattern.permute.xlu0 0
      %4180 = vperm.xlu0 %4179, %v4122
      %v4181 = vpop.permute.xlu0 %4180
      %4184 = vset.pattern.permute.xlu0 0
      %4185 = vperm.xlu0 %4184, %v4123
      %v4186 = vpop.permute.xlu0 %4185
      %4189 = vset.pattern.permute.xlu0 0
      %4190 = vperm.xlu0 %4189, %v4124
      %v4191 = vpop.permute.xlu0 %4190
      %4194 = vset.pattern.permute.xlu0 0
      %4195 = vperm.xlu0 %4194, %v4125
      %v4196 = vpop.permute.xlu0 %4195
      %4199 = vset.pattern.permute.xlu0 0
      %4200 = vperm.xlu0 %4199, %v4126
      %v4201 = vpop.permute.xlu0 %4200
      %4204 = vset.pattern.permute.xlu0 0
      %4205 = vperm.xlu0 %4204, %v4127
      %v4206 = vpop.permute.xlu0 %4205
      %4209 = vset.pattern.permute.xlu0 0
      %4210 = vperm.xlu0 %4209, %v4128
      %v4211 = vpop.permute.xlu0 %4210
      %4214 = vset.pattern.permute.xlu0 0
      %4215 = vperm.xlu0 %4214, %v4129
      %v4216 = vpop.permute.xlu0 %4215
      %4219 = vset.pattern.permute.xlu0 0
      %4220 = vperm.xlu0 %4219, %v4130
      %v4221 = vpop.permute.xlu0 %4220
      %4224 = vset.pattern.permute.xlu0 0
      %4225 = vperm.xlu0 %4224, %v4131
      %v4226 = vpop.permute.xlu0 %4225
      %4229 = vset.pattern.permute.xlu0 0
      %4230 = vperm.xlu0 %4229, %v4132
      %v4231 = vpop.permute.xlu0 %4230
      %4234 = vset.pattern.permute.xlu0 0
      %4235 = vperm.xlu0 %4234, %v4133
      %v4236 = vpop.permute.xlu0 %4235
      %4239 = vset.pattern.permute.xlu0 0
      %4240 = vperm.xlu0 %4239, %v4134
      %v4241 = vpop.permute.xlu0 %4240
      %4244 = vset.pattern.permute.xlu0 0
      %4245 = vperm.xlu0 %4244, %v4135
      %v4246 = vpop.permute.xlu0 %4245
      %4249 = vset.pattern.permute.xlu0 0
      %4250 = vperm.xlu0 %4249, %v4136
      %v4251 = vpop.permute.xlu0 %4250
      %4254 = vset.pattern.permute.xlu0 0
      %4255 = vperm.xlu0 %4254, %v4137
      %v4256 = vpop.permute.xlu0 %4255
      %4259 = vset.pattern.permute.xlu0 0
      %4260 = vperm.xlu0 %4259, %v4138
      %v4261 = vpop.permute.xlu0 %4260
      %4264 = vset.pattern.permute.xlu0 0
      %4265 = vperm.xlu0 %4264, %v4139
      %v4266 = vpop.permute.xlu0 %4265
      %4269 = vset.pattern.permute.xlu0 0
      %4270 = vperm.xlu0 %4269, %v4140
      %v4271 = vpop.permute.xlu0 %4270
      %4274 = vset.pattern.permute.xlu0 0
      %4275 = vperm.xlu0 %4274, %v4141
      %v4276 = vpop.permute.xlu0 %4275
      %4279 = vset.pattern.permute.xlu0 0
      %4280 = vperm.xlu0 %4279, %v4142
      %v4281 = vpop.permute.xlu0 %4280
      %4284 = vset.pattern.permute.xlu0 0
      %4285 = vperm.xlu0 %4284, %v4143
      %v4286 = vpop.permute.xlu0 %4285
      %4289 = vset.pattern.permute.xlu0 0
      %4290 = vperm.xlu0 %4289, %v4144
      %v4291 = vpop.permute.xlu0 %4290
      %4294 = vset.pattern.permute.xlu0 0
      %4295 = vperm.xlu0 %4294, %v4145
      %v4296 = vpop.permute.xlu0 %4295
      %4299 = vset.pattern.permute.xlu0 0
      %4300 = vperm.xlu0 %4299, %v4146
      %v4301 = vpop.permute.xlu0 %4300
      %4304 = vset.pattern.permute.xlu0 0
      %4305 = vperm.xlu0 %4304, %v4147
      %v4306 = vpop.permute.xlu0 %4305
      %4309 = vset.pattern.permute.xlu0 0
      %4310 = vperm.xlu0 %4309, %v4148
      %v4311 = vpop.permute.xlu0 %4310
      %4314 = vset.pattern.permute.xlu0 0
      %4315 = vperm.xlu0 %4314, %v4149
      %v4316 = vpop.permute.xlu0 %4315
      %4319 = vset.pattern.permute.xlu0 0
      %4320 = vperm.xlu0 %4319, %v4150
      %v4321 = vpop.permute.xlu0 %4320
      %4324 = vset.pattern.permute.xlu0 0
      %4325 = vperm.xlu0 %4324, %v4151
      %v4326 = vpop.permute.xlu0 %4325
      %4329 = vset.pattern.permute.xlu0 0
      %4330 = vperm.xlu0 %4329, %v4152
      %v4331 = vpop.permute.xlu0 %4330
      %v4333 = vmul.f32 %v4081, %v4156
      %v4334 = vmul.f32 %v4082, %v4161
      %v4335 = vmul.f32 %v4083, %v4166
      %v4336 = vmul.f32 %v4084, %v4171
      %v4337 = vmul.f32 %v4085, %v4176
      %v4338 = vmul.f32 %v4086, %v4181
      %v4339 = vmul.f32 %v4087, %v4186
      %v4340 = vmul.f32 %v4088, %v4191
      %v4341 = vmul.f32 %v4089, %v4196
      %v4342 = vmul.f32 %v4090, %v4201
      %v4343 = vmul.f32 %v4091, %v4206
      %v4344 = vmul.f32 %v4092, %v4211
      %v4345 = vmul.f32 %v4093, %v4216
      %v4346 = vmul.f32 %v4094, %v4221
      %v4347 = vmul.f32 %v4095, %v4226
      %v4348 = vmul.f32 %v4096, %v4231
      %v4349 = vmul.f32 %v4097, %v4236
      %v4350 = vmul.f32 %v4098, %v4241
      %v4351 = vmul.f32 %v4099, %v4246
      %v4352 = vmul.f32 %v4100, %v4251
      %v4353 = vmul.f32 %v4101, %v4256
      %v4354 = vmul.f32 %v4102, %v4261
      %v4355 = vmul.f32 %v4103, %v4266
      %v4356 = vmul.f32 %v4104, %v4271
      %v4357 = vmul.f32 %v4105, %v4276
      %v4358 = vmul.f32 %v4106, %v4281
      %v4359 = vmul.f32 %v4107, %v4286
      %v4360 = vmul.f32 %v4108, %v4291
      %v4361 = vmul.f32 %v4109, %v4296
      %v4362 = vmul.f32 %v4110, %v4301
      %v4363 = vmul.f32 %v4111, %v4306
      %v4364 = vmul.f32 %v4112, %v4311
      %v4365 = vmul.f32 %v4113, %v4316
      %v4366 = vmul.f32 %v4114, %v4321
      %v4367 = vmul.f32 %v4115, %v4326
      %v4368 = vmul.f32 %v4116, %v4331
      %4369 = vst.msk [vmem:[#allocation3] sm:$0xff] %vm339, 0.0
      %4370 = vst.msk [vmem:[#allocation3 + $0x8] sm:$0xff] %vm339, 0.0
      %4371 = vst.msk [vmem:[#allocation3 + $0x10] sm:$0xff] %vm339, 0.0
      %4372 = vst.msk [vmem:[#allocation3 + $0x18] sm:$0xff] %vm339, 0.0
      %4373 = vst.msk [vmem:[#allocation3 + $0x20] sm:$0xff] %vm339, 0.0
      %4374 = vst.msk [vmem:[#allocation3 + $0x28] sm:$0xff] %vm339, 0.0
      %4375 = vst.msk [vmem:[#allocation3 + $0x30] sm:$0xff] %vm339, 0.0
      %4376 = vst.msk [vmem:[#allocation3 + $0x38] sm:$0xff] %vm339, 0.0
      %4377 = vst.msk [vmem:[#allocation3 + $0x40] sm:$0xff] %vm339, 0.0
      %4378 = vst.msk [vmem:[#allocation3 + $0x48] sm:$0xff] %vm339, 0.0
      %4379 = vst.msk [vmem:[#allocation3 + $0x50] sm:$0xff] %vm339, 0.0
      %4380 = vst.msk [vmem:[#allocation3 + $0x58] sm:$0xff] %vm339, 0.0
      %4381 = vst.msk [vmem:[#allocation3 + $0x60] sm:$0xff] %vm339, 0.0
      %4382 = vst.msk [vmem:[#allocation3 + $0x68] sm:$0xff] %vm339, 0.0
      %4383 = vst.msk [vmem:[#allocation3 + $0x70] sm:$0xff] %vm339, 0.0
      %4384 = vst.msk [vmem:[#allocation3 + $0x78] sm:$0xff] %vm339, 0.0
      %4385 = vst.msk [vmem:[#allocation3 + $0x80] sm:$0xff] %vm339, 0.0
      %4386 = vst.msk [vmem:[#allocation3 + $0x88] sm:$0xff] %vm339, 0.0
      %4387 = vst.msk [vmem:[#allocation3 + $0x90] sm:$0xff] %vm339, 0.0
      %4388 = vst.msk [vmem:[#allocation3 + $0x98] sm:$0xff] %vm339, 0.0
      %4389 = vst.msk [vmem:[#allocation3 + $0xa0] sm:$0xff] %vm339, 0.0
      %4390 = vst.msk [vmem:[#allocation3 + $0xa8] sm:$0xff] %vm339, 0.0
      %4391 = vst.msk [vmem:[#allocation3 + $0xb0] sm:$0xff] %vm339, 0.0
      %4392 = vst.msk [vmem:[#allocation3 + $0xb8] sm:$0xff] %vm339, 0.0
      %4393 = vst.msk [vmem:[#allocation3 + $0xc0] sm:$0xff] %vm339, 0.0
      %4394 = vst.msk [vmem:[#allocation3 + $0xc8] sm:$0xff] %vm339, 0.0
      %4395 = vst.msk [vmem:[#allocation3 + $0xd0] sm:$0xff] %vm339, 0.0
      %4396 = vst.msk [vmem:[#allocation3 + $0xd8] sm:$0xff] %vm339, 0.0
      %4397 = vst.msk [vmem:[#allocation3 + $0xe0] sm:$0xff] %vm339, 0.0
      %4398 = vst.msk [vmem:[#allocation3 + $0xe8] sm:$0xff] %vm339, 0.0
      %4399 = vst.msk [vmem:[#allocation3 + $0xf0] sm:$0xff] %vm339, 0.0
      %4400 = vst.msk [vmem:[#allocation3 + $0xf8] sm:$0xff] %vm339, 0.0
      %4401 = vst.msk [vmem:[#allocation3 + $0x100] sm:$0xff] %vm339, 0.0
      %4402 = vst.msk [vmem:[#allocation3 + $0x108] sm:$0xff] %vm339, 0.0
      %4403 = vst.msk [vmem:[#allocation3 + $0x110] sm:$0xff] %vm339, 0.0
      %4404 = vst.msk [vmem:[#allocation3 + $0x118] sm:$0xff] %vm339, 0.0
      %4405 = vst.msk [vmem:[#allocation3 + $0x120] sm:$0xff] %vm339, 0.0
      %4406 = vst.msk [vmem:[#allocation3 + $0x128] sm:$0xff] %vm339, 0.0
      %4407 = vst.msk [vmem:[#allocation3 + $0x130] sm:$0xff] %vm339, 0.0
      %4408 = vst.msk [vmem:[#allocation3 + $0x138] sm:$0xff] %vm339, 0.0
      %4409 = vst.msk [vmem:[#allocation3 + $0x140] sm:$0xff] %vm339, 0.0
      %4410 = vst.msk [vmem:[#allocation3 + $0x148] sm:$0xff] %vm339, 0.0
      %4411 = vst.msk [vmem:[#allocation3 + $0x150] sm:$0x3f] %vm382, 0.0
      %4412 = vst.msk [vmem:[#allocation3 + $0x13] sm:$0xff] %vm339, %v4333
      %4413 = vst.msk [vmem:[#allocation3 + $0x1b] sm:$0xff] %vm339, %v4334
      %4414 = vst.msk [vmem:[#allocation3 + $0x23] sm:$0xff] %vm339, %v4335
      %4415 = vst.msk [vmem:[#allocation3 + $0x2b] sm:$0xff] %vm339, %v4336
      %4416 = vst.msk [vmem:[#allocation3 + $0x33] sm:$0xff] %vm339, %v4337
      %4417 = vst.msk [vmem:[#allocation3 + $0x3b] sm:$0xff] %vm339, %v4338
      %4418 = vst.msk [vmem:[#allocation3 + $0x43] sm:$0xff] %vm339, %v4339
      %4419 = vst.msk [vmem:[#allocation3 + $0x4b] sm:$0xff] %vm339, %v4340
      %4420 = vst.msk [vmem:[#allocation3 + $0x53] sm:$0xff] %vm339, %v4341
      %4421 = vst.msk [vmem:[#allocation3 + $0x5b] sm:$0xff] %vm339, %v4342
      %4422 = vst.msk [vmem:[#allocation3 + $0x63] sm:$0xff] %vm339, %v4343
      %4423 = vst.msk [vmem:[#allocation3 + $0x6b] sm:$0xff] %vm339, %v4344
      %4424 = vst.msk [vmem:[#allocation3 + $0x73] sm:$0xff] %vm339, %v4345
      %4425 = vst.msk [vmem:[#allocation3 + $0x7b] sm:$0xff] %vm339, %v4346
      %4426 = vst.msk [vmem:[#allocation3 + $0x83] sm:$0xff] %vm339, %v4347
      %4427 = vst.msk [vmem:[#allocation3 + $0x8b] sm:$0xff] %vm339, %v4348
      %4428 = vst.msk [vmem:[#allocation3 + $0x93] sm:$0xff] %vm339, %v4349
      %4429 = vst.msk [vmem:[#allocation3 + $0x9b] sm:$0xff] %vm339, %v4350
      %4430 = vst.msk [vmem:[#allocation3 + $0xa3] sm:$0xff] %vm339, %v4351
      %4431 = vst.msk [vmem:[#allocation3 + $0xab] sm:$0xff] %vm339, %v4352
      %4432 = vst.msk [vmem:[#allocation3 + $0xb3] sm:$0xff] %vm339, %v4353
      %4433 = vst.msk [vmem:[#allocation3 + $0xbb] sm:$0xff] %vm339, %v4354
      %4434 = vst.msk [vmem:[#allocation3 + $0xc3] sm:$0xff] %vm339, %v4355
      %4435 = vst.msk [vmem:[#allocation3 + $0xcb] sm:$0xff] %vm339, %v4356
      %4436 = vst.msk [vmem:[#allocation3 + $0xd3] sm:$0xff] %vm339, %v4357
      %4437 = vst.msk [vmem:[#allocation3 + $0xdb] sm:$0xff] %vm339, %v4358
      %4438 = vst.msk [vmem:[#allocation3 + $0xe3] sm:$0xff] %vm339, %v4359
      %4439 = vst.msk [vmem:[#allocation3 + $0xeb] sm:$0xff] %vm339, %v4360
      %4440 = vst.msk [vmem:[#allocation3 + $0xf3] sm:$0xff] %vm339, %v4361
      %4441 = vst.msk [vmem:[#allocation3 + $0xfb] sm:$0xff] %vm339, %v4362
      %4442 = vst.msk [vmem:[#allocation3 + $0x103] sm:$0xff] %vm339, %v4363
      %4443 = vst.msk [vmem:[#allocation3 + $0x10b] sm:$0xff] %vm339, %v4364
      %4444 = vst.msk [vmem:[#allocation3 + $0x113] sm:$0xff] %vm339, %v4365
      %4445 = vst.msk [vmem:[#allocation3 + $0x11b] sm:$0xff] %vm339, %v4366
      %4446 = vst.msk [vmem:[#allocation3 + $0x123] sm:$0xff] %vm339, %v4367
      %4447 = vst.msk [vmem:[#allocation3 + $0x12b] sm:$0xff] %vm339, %v4368
      %4448 = vst.msk [vmem:[#allocation2] sm:$0xff] %vm339, 0.0
      %4449 = vst.msk [vmem:[#allocation2 + $0x8] sm:$0xff] %vm339, 0.0
      %4450 = vst.msk [vmem:[#allocation2 + $0x10] sm:$0xff] %vm339, 0.0
      %4451 = vst.msk [vmem:[#allocation2 + $0x18] sm:$0xff] %vm339, 0.0
      %4452 = vst.msk [vmem:[#allocation2 + $0x20] sm:$0xff] %vm339, 0.0
      %4453 = vst.msk [vmem:[#allocation2 + $0x28] sm:$0xff] %vm339, 0.0
      %4454 = vst.msk [vmem:[#allocation2 + $0x30] sm:$0xff] %vm339, 0.0
      %4455 = vst.msk [vmem:[#allocation2 + $0x38] sm:$0xff] %vm339, 0.0
      %4456 = vst.msk [vmem:[#allocation2 + $0x40] sm:$0xff] %vm339, 0.0
      %4457 = vst.msk [vmem:[#allocation2 + $0x48] sm:$0xff] %vm339, 0.0
      %4458 = vst.msk [vmem:[#allocation2 + $0x50] sm:$0xff] %vm339, 0.0
      %4459 = vst.msk [vmem:[#allocation2 + $0x58] sm:$0xff] %vm339, 0.0
      %4460 = vst.msk [vmem:[#allocation2 + $0x60] sm:$0xff] %vm339, 0.0
      %4461 = vst.msk [vmem:[#allocation2 + $0x68] sm:$0xff] %vm339, 0.0
      %4462 = vst.msk [vmem:[#allocation2 + $0x70] sm:$0xff] %vm339, 0.0
      %4463 = vst.msk [vmem:[#allocation2 + $0x78] sm:$0xff] %vm339, 0.0
      %4464 = vst.msk [vmem:[#allocation2 + $0x80] sm:$0xff] %vm339, 0.0
      %4465 = vst.msk [vmem:[#allocation2 + $0x88] sm:$0xff] %vm339, 0.0
      %4466 = vst.msk [vmem:[#allocation2 + $0x90] sm:$0xff] %vm339, 0.0
      %4467 = vst.msk [vmem:[#allocation2 + $0x98] sm:$0xff] %vm339, 0.0
      %4468 = vst.msk [vmem:[#allocation2 + $0xa0] sm:$0xff] %vm339, 0.0
      %4469 = vst.msk [vmem:[#allocation2 + $0xa8] sm:$0xff] %vm339, 0.0
      %4470 = vst.msk [vmem:[#allocation2 + $0xb0] sm:$0xff] %vm339, 0.0
      %4471 = vst.msk [vmem:[#allocation2 + $0xb8] sm:$0xff] %vm339, 0.0
      %4472 = vst.msk [vmem:[#allocation2 + $0xc0] sm:$0xff] %vm339, 0.0
      %4473 = vst.msk [vmem:[#allocation2 + $0xc8] sm:$0xff] %vm339, 0.0
      %4474 = vst.msk [vmem:[#allocation2 + $0xd0] sm:$0xff] %vm339, 0.0
      %4475 = vst.msk [vmem:[#allocation2 + $0xd8] sm:$0xff] %vm339, 0.0
      %4476 = vst.msk [vmem:[#allocation2 + $0xe0] sm:$0xff] %vm339, 0.0
      %4477 = vst.msk [vmem:[#allocation2 + $0xe8] sm:$0xff] %vm339, 0.0
      %4478 = vst.msk [vmem:[#allocation2 + $0xf0] sm:$0xff] %vm339, 0.0
      %4479 = vst.msk [vmem:[#allocation2 + $0xf8] sm:$0xff] %vm339, 0.0
      %4480 = vst.msk [vmem:[#allocation2 + $0x100] sm:$0xff] %vm339, 0.0
      %4481 = vst.msk [vmem:[#allocation2 + $0x108] sm:$0xff] %vm339, 0.0
      %4482 = vst.msk [vmem:[#allocation2 + $0x110] sm:$0xff] %vm339, 0.0
      %4483 = vst.msk [vmem:[#allocation2 + $0x118] sm:$0xff] %vm339, 0.0
      %v4484 = vld [vmem:[#allocation3] sm:$0xff]
      %v4485 = vld [vmem:[#allocation3 + $0x8] sm:$0xff]
      %v4486 = vld [vmem:[#allocation3 + $0x10] sm:$0xff]
      %v4487 = vld [vmem:[#allocation3 + $0x18] sm:$0xff]
      %v4488 = vld [vmem:[#allocation3 + $0x20] sm:$0xff]
      %v4489 = vld [vmem:[#allocation3 + $0x28] sm:$0xff]
      %v4490 = vld [vmem:[#allocation3 + $0x30] sm:$0xff]
      %v4491 = vld [vmem:[#allocation3 + $0x38] sm:$0xff]
      %v4492 = vld [vmem:[#allocation3 + $0x40] sm:$0xff]
      %v4493 = vld [vmem:[#allocation3 + $0x48] sm:$0xff]
      %v4494 = vld [vmem:[#allocation3 + $0x50] sm:$0xff]
      %v4495 = vld [vmem:[#allocation3 + $0x58] sm:$0xff]
      %v4496 = vld [vmem:[#allocation3 + $0x60] sm:$0xff]
      %v4497 = vld [vmem:[#allocation3 + $0x68] sm:$0xff]
      %v4498 = vld [vmem:[#allocation3 + $0x70] sm:$0xff]
      %v4499 = vld [vmem:[#allocation3 + $0x78] sm:$0xff]
      %v4500 = vld [vmem:[#allocation3 + $0x80] sm:$0xff]
      %v4501 = vld [vmem:[#allocation3 + $0x88] sm:$0xff]
      %v4502 = vld [vmem:[#allocation3 + $0x90] sm:$0xff]
      %v4503 = vld [vmem:[#allocation3 + $0x98] sm:$0xff]
      %v4504 = vld [vmem:[#allocation3 + $0xa0] sm:$0xff]
      %v4505 = vld [vmem:[#allocation3 + $0xa8] sm:$0xff]
      %v4506 = vld [vmem:[#allocation3 + $0xb0] sm:$0xff]
      %v4507 = vld [vmem:[#allocation3 + $0xb8] sm:$0xff]
      %v4508 = vld [vmem:[#allocation3 + $0xc0] sm:$0xff]
      %v4509 = vld [vmem:[#allocation3 + $0xc8] sm:$0xff]
      %v4510 = vld [vmem:[#allocation3 + $0xd0] sm:$0xff]
      %v4511 = vld [vmem:[#allocation3 + $0xd8] sm:$0xff]
      %v4512 = vld [vmem:[#allocation3 + $0xe0] sm:$0xff]
      %v4513 = vld [vmem:[#allocation3 + $0xe8] sm:$0xff]
      %v4514 = vld [vmem:[#allocation3 + $0xf0] sm:$0xff]
      %v4515 = vld [vmem:[#allocation3 + $0xf8] sm:$0xff]
      %v4516 = vld [vmem:[#allocation3 + $0x100] sm:$0xff]
      %v4517 = vld [vmem:[#allocation3 + $0x108] sm:$0xff]
      %v4518 = vld [vmem:[#allocation3 + $0x110] sm:$0xff]
      %v4519 = vld [vmem:[#allocation3 + $0x118] sm:$0xff]
      %v4520 = vpack.c.bf16 %v4485, %v4484
      %v4521 = vpack.c.bf16 %v4487, %v4486
      %v4522 = vpack.c.bf16 %v4489, %v4488
      %v4523 = vpack.c.bf16 %v4491, %v4490
      %v4524 = vpack.c.bf16 %v4493, %v4492
      %v4525 = vpack.c.bf16 %v4495, %v4494
      %v4526 = vpack.c.bf16 %v4497, %v4496
      %v4527 = vpack.c.bf16 %v4499, %v4498
      %v4528 = vpack.c.bf16 %v4501, %v4500
      %v4529 = vpack.c.bf16 %v4503, %v4502
      %v4530 = vpack.c.bf16 %v4505, %v4504
      %v4531 = vpack.c.bf16 %v4507, %v4506
      %v4532 = vpack.c.bf16 %v4509, %v4508
      %v4533 = vpack.c.bf16 %v4511, %v4510
      %v4534 = vpack.c.bf16 %v4513, %v4512
      %v4535 = vpack.c.bf16 %v4515, %v4514
      %v4536 = vpack.c.bf16 %v4517, %v4516
      %v4537 = vpack.c.bf16 %v4519, %v4518
      %v4538 = vld [vmem:[#allocation2] sm:$0xff]
      %v4539 = vld [vmem:[#allocation2 + $0x8] sm:$0xff]
      %v4540 = vld [vmem:[#allocation2 + $0x10] sm:$0xff]
      %v4541 = vld [vmem:[#allocation2 + $0x18] sm:$0xff]
      %v4542 = vld [vmem:[#allocation2 + $0x20] sm:$0xff]
      %v4543 = vld [vmem:[#allocation2 + $0x28] sm:$0xff]
      %v4544 = vld [vmem:[#allocation2 + $0x30] sm:$0xff]
      %v4545 = vld [vmem:[#allocation2 + $0x38] sm:$0xff]
      %v4546 = vld [vmem:[#allocation2 + $0x40] sm:$0xff]
      %v4547 = vld [vmem:[#allocation2 + $0x48] sm:$0xff]
      %v4548 = vld [vmem:[#allocation2 + $0x50] sm:$0xff]
      %v4549 = vld [vmem:[#allocation2 + $0x58] sm:$0xff]
      %v4550 = vld [vmem:[#allocation2 + $0x60] sm:$0xff]
      %v4551 = vld [vmem:[#allocation2 + $0x68] sm:$0xff]
      %v4552 = vld [vmem:[#allocation2 + $0x70] sm:$0xff]
      %v4553 = vld [vmem:[#allocation2 + $0x78] sm:$0xff]
      %v4554 = vld [vmem:[#allocation2 + $0x80] sm:$0xff]
      %v4555 = vld [vmem:[#allocation2 + $0x88] sm:$0xff]
      %v4556 = vld [vmem:[#allocation2 + $0x90] sm:$0xff]
      %v4557 = vld [vmem:[#allocation2 + $0x98] sm:$0xff]
      %v4558 = vld [vmem:[#allocation2 + $0xa0] sm:$0xff]
      %v4559 = vld [vmem:[#allocation2 + $0xa8] sm:$0xff]
      %v4560 = vld [vmem:[#allocation2 + $0xb0] sm:$0xff]
      %v4561 = vld [vmem:[#allocation2 + $0xb8] sm:$0xff]
      %v4562 = vld [vmem:[#allocation2 + $0xc0] sm:$0xff]
      %v4563 = vld [vmem:[#allocation2 + $0xc8] sm:$0xff]
      %v4564 = vld [vmem:[#allocation2 + $0xd0] sm:$0xff]
      %v4565 = vld [vmem:[#allocation2 + $0xd8] sm:$0xff]
      %v4566 = vld [vmem:[#allocation2 + $0xe0] sm:$0xff]
      %v4567 = vld [vmem:[#allocation2 + $0xe8] sm:$0xff]
      %v4568 = vld [vmem:[#allocation2 + $0xf0] sm:$0xff]
      %v4569 = vld [vmem:[#allocation2 + $0xf8] sm:$0xff]
      %v4570 = vld [vmem:[#allocation2 + $0x100] sm:$0xff]
      %v4571 = vld [vmem:[#allocation2 + $0x108] sm:$0xff]
      %v4572 = vld [vmem:[#allocation2 + $0x110] sm:$0xff]
      %v4573 = vld [vmem:[#allocation2 + $0x118] sm:$0xff]
      %v4574 = vld [vmem:[%s3] sm:$0x3]
      %v4576 = vsel %vm339, %v4520, 0
      %v4579 = vsel %vm339, %v4521, 0
      %v4582 = vsel %vm339, %v4522, 0
      %v4585 = vsel %vm339, %v4523, 0
      %v4588 = vsel %vm339, %v4524, 0
      %v4591 = vsel %vm339, %v4525, 0
      %v4594 = vsel %vm339, %v4526, 0
      %v4597 = vsel %vm339, %v4527, 0
      %v4600 = vsel %vm339, %v4528, 0
      %v4603 = vsel %vm339, %v4529, 0
      %v4606 = vsel %vm339, %v4530, 0
      %v4609 = vsel %vm339, %v4531, 0
      %v4612 = vsel %vm339, %v4532, 0
      %v4615 = vsel %vm339, %v4533, 0
      %v4618 = vsel %vm339, %v4534, 0
      %v4621 = vsel %vm339, %v4535, 0
      %v4624 = vsel %vm339, %v4536, 0
      %v4627 = vsel %vm339, %v4537, 0
      %v4630 = vsel %vm565, %v4574, 0
      %4632 = vmatprep.subr.bf16.mxu0 0
      %4633 = vmatpush1.bf16.msra.mxu0 0
      %4634 = vmatprep.subr.bf16.mxu0 0
      %4635 = vmatpush1.bf16.msra.mxu0 0
      %4636 = vmatprep.subr.bf16.mxu0 0
      %4637 = vmatpush1.bf16.msra.mxu0 0
      %4638 = vmatprep.subr.bf16.mxu0 0
      %4639 = vmatpush1.bf16.msra.mxu0 0
      %4640 = vmatprep.subr.bf16.mxu0 0
      %4641 = vmatpush1.bf16.msra.mxu0 0
      %4642 = vmatprep.subr.bf16.mxu0 0
      %4643 = vmatpush1.bf16.msra.mxu0 0
      %4644 = vmatprep.subr.bf16.mxu0 0
      %4645 = vmatpush1.bf16.msra.mxu0 0
      %4646 = vmatprep.subr.bf16.mxu0 0
      %4647 = vmatpush1.bf16.msra.mxu0 %v4630
      %4648 = vmatprep.subr.bf16.mxu0 0
      %4649 = vmatpush2.bf16.msra.mxu0 0
      %4650 = vmatprep.subr.bf16.mxu0 0
      %4651 = vmatpush2.bf16.msra.mxu0 0
      %4652 = vmatprep.subr.bf16.mxu0 0
      %4653 = vmatpush2.bf16.msra.mxu0 0
      %4654 = vmatprep.subr.bf16.mxu0 0
      %4655 = vmatpush2.bf16.msra.mxu0 0
      %4656 = vmatprep.subr.bf16.mxu0 0
      %4657 = vmatpush2.bf16.msra.mxu0 0
      %4658 = vmatprep.subr.bf16.mxu0 0
      %4659 = vmatpush2.bf16.msra.mxu0 0
      %4660 = vmatprep.subr.bf16.mxu0 0
      %4661 = vmatpush2.bf16.msra.mxu0 0
      %4662 = vmatprep.subr.bf16.mxu0 0
      %4663 = vmatpush2.bf16.msra.mxu0 0
      %4664 = vmatprep.mubr.bf16.mxu0 0
      %4665 = vmatmul.mubr.bf16.gmra.mxu0 %v4576
      %v4666 = vpop.f32.mrf.mxu0
      %v4667 = vadd.f32 0.0, %v4666
      %v4668 = vpop.f32.mrf.mxu0
      %v4669 = vpop.f32.mrf.mxu0
      %v4670 = vadd.f32 0.0, %v4669
      %v4671 = vpop.f32.mrf.mxu0
      %4672 = vmatprep.mubr.bf16.mxu0 0
      %4673 = vmatmul.mubr.bf16.gmra.mxu0 %v4579
      %v4674 = vpop.f32.mrf.mxu0
      %v4675 = vadd.f32 0.0, %v4674
      %v4676 = vpop.f32.mrf.mxu0
      %v4677 = vpop.f32.mrf.mxu0
      %v4678 = vadd.f32 0.0, %v4677
      %v4679 = vpop.f32.mrf.mxu0
      %4680 = vmatprep.mubr.bf16.mxu0 0
      %4681 = vmatmul.mubr.bf16.gmra.mxu0 %v4582
      %v4682 = vpop.f32.mrf.mxu0
      %v4683 = vadd.f32 0.0, %v4682
      %v4684 = vpop.f32.mrf.mxu0
      %v4685 = vpop.f32.mrf.mxu0
      %v4686 = vadd.f32 0.0, %v4685
      %v4687 = vpop.f32.mrf.mxu0
      %4688 = vmatprep.mubr.bf16.mxu0 0
      %4689 = vmatmul.mubr.bf16.gmra.mxu0 %v4585
      %v4690 = vpop.f32.mrf.mxu0
      %v4691 = vadd.f32 0.0, %v4690
      %v4692 = vpop.f32.mrf.mxu0
      %v4693 = vpop.f32.mrf.mxu0
      %v4694 = vadd.f32 0.0, %v4693
      %v4695 = vpop.f32.mrf.mxu0
      %4696 = vmatprep.mubr.bf16.mxu0 0
      %4697 = vmatmul.mubr.bf16.gmra.mxu0 %v4588
      %v4698 = vpop.f32.mrf.mxu0
      %v4699 = vadd.f32 0.0, %v4698
      %v4700 = vpop.f32.mrf.mxu0
      %v4701 = vpop.f32.mrf.mxu0
      %v4702 = vadd.f32 0.0, %v4701
      %v4703 = vpop.f32.mrf.mxu0
      %4704 = vmatprep.mubr.bf16.mxu0 0
      %4705 = vmatmul.mubr.bf16.gmra.mxu0 %v4591
      %v4706 = vpop.f32.mrf.mxu0
      %v4707 = vadd.f32 0.0, %v4706
      %v4708 = vpop.f32.mrf.mxu0
      %v4709 = vpop.f32.mrf.mxu0
      %v4710 = vadd.f32 0.0, %v4709
      %v4711 = vpop.f32.mrf.mxu0
      %4712 = vmatprep.mubr.bf16.mxu0 0
      %4713 = vmatmul.mubr.bf16.gmra.mxu0 %v4594
      %v4714 = vpop.f32.mrf.mxu0
      %v4715 = vadd.f32 0.0, %v4714
      %v4716 = vpop.f32.mrf.mxu0
      %v4717 = vpop.f32.mrf.mxu0
      %v4718 = vadd.f32 0.0, %v4717
      %v4719 = vpop.f32.mrf.mxu0
      %4720 = vmatprep.mubr.bf16.mxu0 0
      %4721 = vmatmul.mubr.bf16.gmra.mxu0 %v4597
      %v4722 = vpop.f32.mrf.mxu0
      %v4723 = vadd.f32 0.0, %v4722
      %v4724 = vpop.f32.mrf.mxu0
      %v4725 = vpop.f32.mrf.mxu0
      %v4726 = vadd.f32 0.0, %v4725
      %v4727 = vpop.f32.mrf.mxu0
      %4728 = vmatprep.mubr.bf16.mxu0 0
      %4729 = vmatmul.mubr.bf16.gmra.mxu0 %v4600
      %v4730 = vpop.f32.mrf.mxu0
      %v4731 = vadd.f32 0.0, %v4730
      %v4732 = vpop.f32.mrf.mxu0
      %v4733 = vpop.f32.mrf.mxu0
      %v4734 = vadd.f32 0.0, %v4733
      %v4735 = vpop.f32.mrf.mxu0
      %4736 = vmatprep.mubr.bf16.mxu0 0
      %4737 = vmatmul.mubr.bf16.gmra.mxu0 %v4603
      %v4738 = vpop.f32.mrf.mxu0
      %v4739 = vadd.f32 0.0, %v4738
      %v4740 = vpop.f32.mrf.mxu0
      %v4741 = vpop.f32.mrf.mxu0
      %v4742 = vadd.f32 0.0, %v4741
      %v4743 = vpop.f32.mrf.mxu0
      %4744 = vmatprep.mubr.bf16.mxu0 0
      %4745 = vmatmul.mubr.bf16.gmra.mxu0 %v4606
      %v4746 = vpop.f32.mrf.mxu0
      %v4747 = vadd.f32 0.0, %v4746
      %v4748 = vpop.f32.mrf.mxu0
      %v4749 = vpop.f32.mrf.mxu0
      %v4750 = vadd.f32 0.0, %v4749
      %v4751 = vpop.f32.mrf.mxu0
      %4752 = vmatprep.mubr.bf16.mxu0 0
      %4753 = vmatmul.mubr.bf16.gmra.mxu0 %v4609
      %v4754 = vpop.f32.mrf.mxu0
      %v4755 = vadd.f32 0.0, %v4754
      %v4756 = vpop.f32.mrf.mxu0
      %v4757 = vpop.f32.mrf.mxu0
      %v4758 = vadd.f32 0.0, %v4757
      %v4759 = vpop.f32.mrf.mxu0
      %4760 = vmatprep.mubr.bf16.mxu0 0
      %4761 = vmatmul.mubr.bf16.gmra.mxu0 %v4612
      %v4762 = vpop.f32.mrf.mxu0
      %v4763 = vadd.f32 0.0, %v4762
      %v4764 = vpop.f32.mrf.mxu0
      %v4765 = vpop.f32.mrf.mxu0
      %v4766 = vadd.f32 0.0, %v4765
      %v4767 = vpop.f32.mrf.mxu0
      %4768 = vmatprep.mubr.bf16.mxu0 0
      %4769 = vmatmul.mubr.bf16.gmra.mxu0 %v4615
      %v4770 = vpop.f32.mrf.mxu0
      %v4771 = vadd.f32 0.0, %v4770
      %v4772 = vpop.f32.mrf.mxu0
      %v4773 = vpop.f32.mrf.mxu0
      %v4774 = vadd.f32 0.0, %v4773
      %v4775 = vpop.f32.mrf.mxu0
      %4776 = vmatprep.mubr.bf16.mxu0 0
      %4777 = vmatmul.mubr.bf16.gmra.mxu0 %v4618
      %v4778 = vpop.f32.mrf.mxu0
      %v4779 = vadd.f32 0.0, %v4778
      %v4780 = vpop.f32.mrf.mxu0
      %v4781 = vpop.f32.mrf.mxu0
      %v4782 = vadd.f32 0.0, %v4781
      %v4783 = vpop.f32.mrf.mxu0
      %4784 = vmatprep.mubr.bf16.mxu0 0
      %4785 = vmatmul.mubr.bf16.gmra.mxu0 %v4621
      %v4786 = vpop.f32.mrf.mxu0
      %v4787 = vadd.f32 0.0, %v4786
      %v4788 = vpop.f32.mrf.mxu0
      %v4789 = vpop.f32.mrf.mxu0
      %v4790 = vadd.f32 0.0, %v4789
      %v4791 = vpop.f32.mrf.mxu0
      %4792 = vmatprep.mubr.bf16.mxu0 0
      %4793 = vmatmul.mubr.bf16.gmra.mxu0 %v4624
      %v4794 = vpop.f32.mrf.mxu0
      %v4795 = vadd.f32 0.0, %v4794
      %v4796 = vpop.f32.mrf.mxu0
      %v4797 = vpop.f32.mrf.mxu0
      %v4798 = vadd.f32 0.0, %v4797
      %v4799 = vpop.f32.mrf.mxu0
      %4800 = vmatprep.mubr.bf16.mxu0 0
      %4801 = vmatmul.mubr.bf16.gmra.mxu0 %v4627
      %v4802 = vpop.f32.mrf.mxu0
      %v4803 = vadd.f32 0.0, %v4802
      %v4804 = vpop.f32.mrf.mxu0
      %v4805 = vpop.f32.mrf.mxu0
      %v4806 = vadd.f32 0.0, %v4805
      %v4807 = vpop.f32.mrf.mxu0
      %4808 = vdwg.mxu0
      %v4809 = vadd.f32 %v4538, %v4667
      %v4810 = vadd.f32 %v4539, %v4670
      %v4811 = vadd.f32 %v4540, %v4675
      %v4812 = vadd.f32 %v4541, %v4678
      %v4813 = vadd.f32 %v4542, %v4683
      %v4814 = vadd.f32 %v4543, %v4686
      %v4815 = vadd.f32 %v4544, %v4691
      %v4816 = vadd.f32 %v4545, %v4694
      %v4817 = vadd.f32 %v4546, %v4699
      %v4818 = vadd.f32 %v4547, %v4702
      %v4819 = vadd.f32 %v4548, %v4707
      %v4820 = vadd.f32 %v4549, %v4710
      %v4821 = vadd.f32 %v4550, %v4715
      %v4822 = vadd.f32 %v4551, %v4718
      %v4823 = vadd.f32 %v4552, %v4723
      %v4824 = vadd.f32 %v4553, %v4726
      %v4825 = vadd.f32 %v4554, %v4731
      %v4826 = vadd.f32 %v4555, %v4734
      %v4827 = vadd.f32 %v4556, %v4739
      %v4828 = vadd.f32 %v4557, %v4742
      %v4829 = vadd.f32 %v4558, %v4747
      %v4830 = vadd.f32 %v4559, %v4750
      %v4831 = vadd.f32 %v4560, %v4755
      %v4832 = vadd.f32 %v4561, %v4758
      %v4833 = vadd.f32 %v4562, %v4763
      %v4834 = vadd.f32 %v4563, %v4766
      %v4835 = vadd.f32 %v4564, %v4771
      %v4836 = vadd.f32 %v4565, %v4774
      %v4837 = vadd.f32 %v4566, %v4779
      %v4838 = vadd.f32 %v4567, %v4782
      %v4839 = vadd.f32 %v4568, %v4787
      %v4840 = vadd.f32 %v4569, %v4790
      %v4841 = vadd.f32 %v4570, %v4795
      %v4842 = vadd.f32 %v4571, %v4798
      %v4843 = vadd.f32 %v4572, %v4803
      %v4844 = vadd.f32 %v4573, %v4806
      %4845 = vst.msk [vmem:[#allocation2] sm:$0xff] %vm339, %v4809
      %4846 = vst.msk [vmem:[#allocation2 + $0x8] sm:$0xff] %vm339, %v4810
      %4847 = vst.msk [vmem:[#allocation2 + $0x10] sm:$0xff] %vm339, %v4811
      %4848 = vst.msk [vmem:[#allocation2 + $0x18] sm:$0xff] %vm339, %v4812
      %4849 = vst.msk [vmem:[#allocation2 + $0x20] sm:$0xff] %vm339, %v4813
      %4850 = vst.msk [vmem:[#allocation2 + $0x28] sm:$0xff] %vm339, %v4814
      %4851 = vst.msk [vmem:[#allocation2 + $0x30] sm:$0xff] %vm339, %v4815
      %4852 = vst.msk [vmem:[#allocation2 + $0x38] sm:$0xff] %vm339, %v4816
      %4853 = vst.msk [vmem:[#allocation2 + $0x40] sm:$0xff] %vm339, %v4817
      %4854 = vst.msk [vmem:[#allocation2 + $0x48] sm:$0xff] %vm339, %v4818
      %4855 = vst.msk [vmem:[#allocation2 + $0x50] sm:$0xff] %vm339, %v4819
      %4856 = vst.msk [vmem:[#allocation2 + $0x58] sm:$0xff] %vm339, %v4820
      %4857 = vst.msk [vmem:[#allocation2 + $0x60] sm:$0xff] %vm339, %v4821
      %4858 = vst.msk [vmem:[#allocation2 + $0x68] sm:$0xff] %vm339, %v4822
      %4859 = vst.msk [vmem:[#allocation2 + $0x70] sm:$0xff] %vm339, %v4823
      %4860 = vst.msk [vmem:[#allocation2 + $0x78] sm:$0xff] %vm339, %v4824
      %4861 = vst.msk [vmem:[#allocation2 + $0x80] sm:$0xff] %vm339, %v4825
      %4862 = vst.msk [vmem:[#allocation2 + $0x88] sm:$0xff] %vm339, %v4826
      %4863 = vst.msk [vmem:[#allocation2 + $0x90] sm:$0xff] %vm339, %v4827
      %4864 = vst.msk [vmem:[#allocation2 + $0x98] sm:$0xff] %vm339, %v4828
      %4865 = vst.msk [vmem:[#allocation2 + $0xa0] sm:$0xff] %vm339, %v4829
      %4866 = vst.msk [vmem:[#allocation2 + $0xa8] sm:$0xff] %vm339, %v4830
      %4867 = vst.msk [vmem:[#allocation2 + $0xb0] sm:$0xff] %vm339, %v4831
      %4868 = vst.msk [vmem:[#allocation2 + $0xb8] sm:$0xff] %vm339, %v4832
      %4869 = vst.msk [vmem:[#allocation2 + $0xc0] sm:$0xff] %vm339, %v4833
      %4870 = vst.msk [vmem:[#allocation2 + $0xc8] sm:$0xff] %vm339, %v4834
      %4871 = vst.msk [vmem:[#allocation2 + $0xd0] sm:$0xff] %vm339, %v4835
      %4872 = vst.msk [vmem:[#allocation2 + $0xd8] sm:$0xff] %vm339, %v4836
      %4873 = vst.msk [vmem:[#allocation2 + $0xe0] sm:$0xff] %vm339, %v4837
      %4874 = vst.msk [vmem:[#allocation2 + $0xe8] sm:$0xff] %vm339, %v4838
      %4875 = vst.msk [vmem:[#allocation2 + $0xf0] sm:$0xff] %vm339, %v4839
      %4876 = vst.msk [vmem:[#allocation2 + $0xf8] sm:$0xff] %vm339, %v4840
      %4877 = vst.msk [vmem:[#allocation2 + $0x100] sm:$0xff] %vm339, %v4841
      %4878 = vst.msk [vmem:[#allocation2 + $0x108] sm:$0xff] %vm339, %v4842
      %4879 = vst.msk [vmem:[#allocation2 + $0x110] sm:$0xff] %vm339, %v4843
      %4880 = vst.msk [vmem:[#allocation2 + $0x118] sm:$0xff] %vm339, %v4844
      %v4881 = vld [vmem:[#allocation3 + $0x1] sm:$0xff]
      %v4882 = vld [vmem:[#allocation3 + $0x9] sm:$0xff]
      %v4883 = vld [vmem:[#allocation3 + $0x11] sm:$0xff]
      %v4884 = vld [vmem:[#allocation3 + $0x19] sm:$0xff]
      %v4885 = vld [vmem:[#allocation3 + $0x21] sm:$0xff]
      %v4886 = vld [vmem:[#allocation3 + $0x29] sm:$0xff]
      %v4887 = vld [vmem:[#allocation3 + $0x31] sm:$0xff]
      %v4888 = vld [vmem:[#allocation3 + $0x39] sm:$0xff]
      %v4889 = vld [vmem:[#allocation3 + $0x41] sm:$0xff]
      %v4890 = vld [vmem:[#allocation3 + $0x49] sm:$0xff]
      %v4891 = vld [vmem:[#allocation3 + $0x51] sm:$0xff]
      %v4892 = vld [vmem:[#allocation3 + $0x59] sm:$0xff]
      %v4893 = vld [vmem:[#allocation3 + $0x61] sm:$0xff]
      %v4894 = vld [vmem:[#allocation3 + $0x69] sm:$0xff]
      %v4895 = vld [vmem:[#allocation3 + $0x71] sm:$0xff]
      %v4896 = vld [vmem:[#allocation3 + $0x79] sm:$0xff]
      %v4897 = vld [vmem:[#allocation3 + $0x81] sm:$0xff]
      %v4898 = vld [vmem:[#allocation3 + $0x89] sm:$0xff]
      %v4899 = vld [vmem:[#allocation3 + $0x91] sm:$0xff]
      %v4900 = vld [vmem:[#allocation3 + $0x99] sm:$0xff]
      %v4901 = vld [vmem:[#allocation3 + $0xa1] sm:$0xff]
      %v4902 = vld [vmem:[#allocation3 + $0xa9] sm:$0xff]
      %v4903 = vld [vmem:[#allocation3 + $0xb1] sm:$0xff]
      %v4904 = vld [vmem:[#allocation3 + $0xb9] sm:$0xff]
      %v4905 = vld [vmem:[#allocation3 + $0xc1] sm:$0xff]
      %v4906 = vld [vmem:[#allocation3 + $0xc9] sm:$0xff]
      %v4907 = vld [vmem:[#allocation3 + $0xd1] sm:$0xff]
      %v4908 = vld [vmem:[#allocation3 + $0xd9] sm:$0xff]
      %v4909 = vld [vmem:[#allocation3 + $0xe1] sm:$0xff]
      %v4910 = vld [vmem:[#allocation3 + $0xe9] sm:$0xff]
      %v4911 = vld [vmem:[#allocation3 + $0xf1] sm:$0xff]
      %v4912 = vld [vmem:[#allocation3 + $0xf9] sm:$0xff]
      %v4913 = vld [vmem:[#allocation3 + $0x101] sm:$0xff]
      %v4914 = vld [vmem:[#allocation3 + $0x109] sm:$0xff]
      %v4915 = vld [vmem:[#allocation3 + $0x111] sm:$0xff]
      %v4916 = vld [vmem:[#allocation3 + $0x119] sm:$0xff]
      %v4917 = vpack.c.bf16 %v4882, %v4881
      %v4918 = vpack.c.bf16 %v4884, %v4883
      %v4919 = vpack.c.bf16 %v4886, %v4885
      %v4920 = vpack.c.bf16 %v4888, %v4887
      %v4921 = vpack.c.bf16 %v4890, %v4889
      %v4922 = vpack.c.bf16 %v4892, %v4891
      %v4923 = vpack.c.bf16 %v4894, %v4893
      %v4924 = vpack.c.bf16 %v4896, %v4895
      %v4925 = vpack.c.bf16 %v4898, %v4897
      %v4926 = vpack.c.bf16 %v4900, %v4899
      %v4927 = vpack.c.bf16 %v4902, %v4901
      %v4928 = vpack.c.bf16 %v4904, %v4903
      %v4929 = vpack.c.bf16 %v4906, %v4905
      %v4930 = vpack.c.bf16 %v4908, %v4907
      %v4931 = vpack.c.bf16 %v4910, %v4909
      %v4932 = vpack.c.bf16 %v4912, %v4911
      %v4933 = vpack.c.bf16 %v4914, %v4913
      %v4934 = vpack.c.bf16 %v4916, %v4915
      %v4935 = vld [vmem:[#allocation2] sm:$0xff]
      %v4936 = vld [vmem:[#allocation2 + $0x8] sm:$0xff]
      %v4937 = vld [vmem:[#allocation2 + $0x10] sm:$0xff]
      %v4938 = vld [vmem:[#allocation2 + $0x18] sm:$0xff]
      %v4939 = vld [vmem:[#allocation2 + $0x20] sm:$0xff]
      %v4940 = vld [vmem:[#allocation2 + $0x28] sm:$0xff]
      %v4941 = vld [vmem:[#allocation2 + $0x30] sm:$0xff]
      %v4942 = vld [vmem:[#allocation2 + $0x38] sm:$0xff]
      %v4943 = vld [vmem:[#allocation2 + $0x40] sm:$0xff]
      %v4944 = vld [vmem:[#allocation2 + $0x48] sm:$0xff]
      %v4945 = vld [vmem:[#allocation2 + $0x50] sm:$0xff]
      %v4946 = vld [vmem:[#allocation2 + $0x58] sm:$0xff]
      %v4947 = vld [vmem:[#allocation2 + $0x60] sm:$0xff]
      %v4948 = vld [vmem:[#allocation2 + $0x68] sm:$0xff]
      %v4949 = vld [vmem:[#allocation2 + $0x70] sm:$0xff]
      %v4950 = vld [vmem:[#allocation2 + $0x78] sm:$0xff]
      %v4951 = vld [vmem:[#allocation2 + $0x80] sm:$0xff]
      %v4952 = vld [vmem:[#allocation2 + $0x88] sm:$0xff]
      %v4953 = vld [vmem:[#allocation2 + $0x90] sm:$0xff]
      %v4954 = vld [vmem:[#allocation2 + $0x98] sm:$0xff]
      %v4955 = vld [vmem:[#allocation2 + $0xa0] sm:$0xff]
      %v4956 = vld [vmem:[#allocation2 + $0xa8] sm:$0xff]
      %v4957 = vld [vmem:[#allocation2 + $0xb0] sm:$0xff]
      %v4958 = vld [vmem:[#allocation2 + $0xb8] sm:$0xff]
      %v4959 = vld [vmem:[#allocation2 + $0xc0] sm:$0xff]
      %v4960 = vld [vmem:[#allocation2 + $0xc8] sm:$0xff]
      %v4961 = vld [vmem:[#allocation2 + $0xd0] sm:$0xff]
      %v4962 = vld [vmem:[#allocation2 + $0xd8] sm:$0xff]
      %v4963 = vld [vmem:[#allocation2 + $0xe0] sm:$0xff]
      %v4964 = vld [vmem:[#allocation2 + $0xe8] sm:$0xff]
      %v4965 = vld [vmem:[#allocation2 + $0xf0] sm:$0xff]
      %v4966 = vld [vmem:[#allocation2 + $0xf8] sm:$0xff]
      %v4967 = vld [vmem:[#allocation2 + $0x100] sm:$0xff]
      %v4968 = vld [vmem:[#allocation2 + $0x108] sm:$0xff]
      %v4969 = vld [vmem:[#allocation2 + $0x110] sm:$0xff]
      %v4970 = vld [vmem:[#allocation2 + $0x118] sm:$0xff]
      %s4971 = scalar_lea.vmem %s3, 2
      %v4972 = vld [vmem:[%s4971] sm:$0x3]
      %v4974 = vsel %vm339, %v4917, 0
      %v4977 = vsel %vm339, %v4918, 0
      %v4980 = vsel %vm339, %v4919, 0
      %v4983 = vsel %vm339, %v4920, 0
      %v4986 = vsel %vm339, %v4921, 0
      %v4989 = vsel %vm339, %v4922, 0
      %v4992 = vsel %vm339, %v4923, 0
      %v4995 = vsel %vm339, %v4924, 0
      %v4998 = vsel %vm339, %v4925, 0
      %v5001 = vsel %vm339, %v4926, 0
      %v5004 = vsel %vm339, %v4927, 0
      %v5007 = vsel %vm339, %v4928, 0
      %v5010 = vsel %vm339, %v4929, 0
      %v5013 = vsel %vm339, %v4930, 0
      %v5016 = vsel %vm339, %v4931, 0
      %v5019 = vsel %vm339, %v4932, 0
      %v5022 = vsel %vm339, %v4933, 0
      %v5025 = vsel %vm339, %v4934, 0
      %v5028 = vsel %vm565, %v4972, 0
      %5030 = vmatprep.subr.bf16.mxu0 0
      %5031 = vmatpush1.bf16.msra.mxu0 0
      %5032 = vmatprep.subr.bf16.mxu0 0
      %5033 = vmatpush1.bf16.msra.mxu0 0
      %5034 = vmatprep.subr.bf16.mxu0 0
      %5035 = vmatpush1.bf16.msra.mxu0 0
      %5036 = vmatprep.subr.bf16.mxu0 0
      %5037 = vmatpush1.bf16.msra.mxu0 0
      %5038 = vmatprep.subr.bf16.mxu0 0
      %5039 = vmatpush1.bf16.msra.mxu0 0
      %5040 = vmatprep.subr.bf16.mxu0 0
      %5041 = vmatpush1.bf16.msra.mxu0 0
      %5042 = vmatprep.subr.bf16.mxu0 0
      %5043 = vmatpush1.bf16.msra.mxu0 0
      %5044 = vmatprep.subr.bf16.mxu0 0
      %5045 = vmatpush1.bf16.msra.mxu0 %v5028
      %5046 = vmatprep.subr.bf16.mxu0 0
      %5047 = vmatpush2.bf16.msra.mxu0 0
      %5048 = vmatprep.subr.bf16.mxu0 0
      %5049 = vmatpush2.bf16.msra.mxu0 0
      %5050 = vmatprep.subr.bf16.mxu0 0
      %5051 = vmatpush2.bf16.msra.mxu0 0
      %5052 = vmatprep.subr.bf16.mxu0 0
      %5053 = vmatpush2.bf16.msra.mxu0 0
      %5054 = vmatprep.subr.bf16.mxu0 0
      %5055 = vmatpush2.bf16.msra.mxu0 0
      %5056 = vmatprep.subr.bf16.mxu0 0
      %5057 = vmatpush2.bf16.msra.mxu0 0
      %5058 = vmatprep.subr.bf16.mxu0 0
      %5059 = vmatpush2.bf16.msra.mxu0 0
      %5060 = vmatprep.subr.bf16.mxu0 0
      %5061 = vmatpush2.bf16.msra.mxu0 0
      %5062 = vmatprep.mubr.bf16.mxu0 0
      %5063 = vmatmul.mubr.bf16.gmra.mxu0 %v4974
      %v5064 = vpop.f32.mrf.mxu0
      %v5065 = vadd.f32 0.0, %v5064
      %v5066 = vpop.f32.mrf.mxu0
      %v5067 = vpop.f32.mrf.mxu0
      %v5068 = vadd.f32 0.0, %v5067
      %v5069 = vpop.f32.mrf.mxu0
      %5070 = vmatprep.mubr.bf16.mxu0 0
      %5071 = vmatmul.mubr.bf16.gmra.mxu0 %v4977
      %v5072 = vpop.f32.mrf.mxu0
      %v5073 = vadd.f32 0.0, %v5072
      %v5074 = vpop.f32.mrf.mxu0
      %v5075 = vpop.f32.mrf.mxu0
      %v5076 = vadd.f32 0.0, %v5075
      %v5077 = vpop.f32.mrf.mxu0
      %5078 = vmatprep.mubr.bf16.mxu0 0
      %5079 = vmatmul.mubr.bf16.gmra.mxu0 %v4980
      %v5080 = vpop.f32.mrf.mxu0
      %v5081 = vadd.f32 0.0, %v5080
      %v5082 = vpop.f32.mrf.mxu0
      %v5083 = vpop.f32.mrf.mxu0
      %v5084 = vadd.f32 0.0, %v5083
      %v5085 = vpop.f32.mrf.mxu0
      %5086 = vmatprep.mubr.bf16.mxu0 0
      %5087 = vmatmul.mubr.bf16.gmra.mxu0 %v4983
      %v5088 = vpop.f32.mrf.mxu0
      %v5089 = vadd.f32 0.0, %v5088
      %v5090 = vpop.f32.mrf.mxu0
      %v5091 = vpop.f32.mrf.mxu0
      %v5092 = vadd.f32 0.0, %v5091
      %v5093 = vpop.f32.mrf.mxu0
      %5094 = vmatprep.mubr.bf16.mxu0 0
      %5095 = vmatmul.mubr.bf16.gmra.mxu0 %v4986
      %v5096 = vpop.f32.mrf.mxu0
      %v5097 = vadd.f32 0.0, %v5096
      %v5098 = vpop.f32.mrf.mxu0
      %v5099 = vpop.f32.mrf.mxu0
      %v5100 = vadd.f32 0.0, %v5099
      %v5101 = vpop.f32.mrf.mxu0
      %5102 = vmatprep.mubr.bf16.mxu0 0
      %5103 = vmatmul.mubr.bf16.gmra.mxu0 %v4989
      %v5104 = vpop.f32.mrf.mxu0
      %v5105 = vadd.f32 0.0, %v5104
      %v5106 = vpop.f32.mrf.mxu0
      %v5107 = vpop.f32.mrf.mxu0
      %v5108 = vadd.f32 0.0, %v5107
      %v5109 = vpop.f32.mrf.mxu0
      %5110 = vmatprep.mubr.bf16.mxu0 0
      %5111 = vmatmul.mubr.bf16.gmra.mxu0 %v4992
      %v5112 = vpop.f32.mrf.mxu0
      %v5113 = vadd.f32 0.0, %v5112
      %v5114 = vpop.f32.mrf.mxu0
      %v5115 = vpop.f32.mrf.mxu0
      %v5116 = vadd.f32 0.0, %v5115
      %v5117 = vpop.f32.mrf.mxu0
      %5118 = vmatprep.mubr.bf16.mxu0 0
      %5119 = vmatmul.mubr.bf16.gmra.mxu0 %v4995
      %v5120 = vpop.f32.mrf.mxu0
      %v5121 = vadd.f32 0.0, %v5120
      %v5122 = vpop.f32.mrf.mxu0
      %v5123 = vpop.f32.mrf.mxu0
      %v5124 = vadd.f32 0.0, %v5123
      %v5125 = vpop.f32.mrf.mxu0
      %5126 = vmatprep.mubr.bf16.mxu0 0
      %5127 = vmatmul.mubr.bf16.gmra.mxu0 %v4998
      %v5128 = vpop.f32.mrf.mxu0
      %v5129 = vadd.f32 0.0, %v5128
      %v5130 = vpop.f32.mrf.mxu0
      %v5131 = vpop.f32.mrf.mxu0
      %v5132 = vadd.f32 0.0, %v5131
      %v5133 = vpop.f32.mrf.mxu0
      %5134 = vmatprep.mubr.bf16.mxu0 0
      %5135 = vmatmul.mubr.bf16.gmra.mxu0 %v5001
      %v5136 = vpop.f32.mrf.mxu0
      %v5137 = vadd.f32 0.0, %v5136
      %v5138 = vpop.f32.mrf.mxu0
      %v5139 = vpop.f32.mrf.mxu0
      %v5140 = vadd.f32 0.0, %v5139
      %v5141 = vpop.f32.mrf.mxu0
      %5142 = vmatprep.mubr.bf16.mxu0 0
      %5143 = vmatmul.mubr.bf16.gmra.mxu0 %v5004
      %v5144 = vpop.f32.mrf.mxu0
      %v5145 = vadd.f32 0.0, %v5144
      %v5146 = vpop.f32.mrf.mxu0
      %v5147 = vpop.f32.mrf.mxu0
      %v5148 = vadd.f32 0.0, %v5147
      %v5149 = vpop.f32.mrf.mxu0
      %5150 = vmatprep.mubr.bf16.mxu0 0
      %5151 = vmatmul.mubr.bf16.gmra.mxu0 %v5007
      %v5152 = vpop.f32.mrf.mxu0
      %v5153 = vadd.f32 0.0, %v5152
      %v5154 = vpop.f32.mrf.mxu0
      %v5155 = vpop.f32.mrf.mxu0
      %v5156 = vadd.f32 0.0, %v5155
      %v5157 = vpop.f32.mrf.mxu0
      %5158 = vmatprep.mubr.bf16.mxu0 0
      %5159 = vmatmul.mubr.bf16.gmra.mxu0 %v5010
      %v5160 = vpop.f32.mrf.mxu0
      %v5161 = vadd.f32 0.0, %v5160
      %v5162 = vpop.f32.mrf.mxu0
      %v5163 = vpop.f32.mrf.mxu0
      %v5164 = vadd.f32 0.0, %v5163
      %v5165 = vpop.f32.mrf.mxu0
      %5166 = vmatprep.mubr.bf16.mxu0 0
      %5167 = vmatmul.mubr.bf16.gmra.mxu0 %v5013
      %v5168 = vpop.f32.mrf.mxu0
      %v5169 = vadd.f32 0.0, %v5168
      %v5170 = vpop.f32.mrf.mxu0
      %v5171 = vpop.f32.mrf.mxu0
      %v5172 = vadd.f32 0.0, %v5171
      %v5173 = vpop.f32.mrf.mxu0
      %5174 = vmatprep.mubr.bf16.mxu0 0
      %5175 = vmatmul.mubr.bf16.gmra.mxu0 %v5016
      %v5176 = vpop.f32.mrf.mxu0
      %v5177 = vadd.f32 0.0, %v5176
      %v5178 = vpop.f32.mrf.mxu0
      %v5179 = vpop.f32.mrf.mxu0
      %v5180 = vadd.f32 0.0, %v5179
      %v5181 = vpop.f32.mrf.mxu0
      %5182 = vmatprep.mubr.bf16.mxu0 0
      %5183 = vmatmul.mubr.bf16.gmra.mxu0 %v5019
      %v5184 = vpop.f32.mrf.mxu0
      %v5185 = vadd.f32 0.0, %v5184
      %v5186 = vpop.f32.mrf.mxu0
      %v5187 = vpop.f32.mrf.mxu0
      %v5188 = vadd.f32 0.0, %v5187
      %v5189 = vpop.f32.mrf.mxu0
      %5190 = vmatprep.mubr.bf16.mxu0 0
      %5191 = vmatmul.mubr.bf16.gmra.mxu0 %v5022
      %v5192 = vpop.f32.mrf.mxu0
      %v5193 = vadd.f32 0.0, %v5192
      %v5194 = vpop.f32.mrf.mxu0
      %v5195 = vpop.f32.mrf.mxu0
      %v5196 = vadd.f32 0.0, %v5195
      %v5197 = vpop.f32.mrf.mxu0
      %5198 = vmatprep.mubr.bf16.mxu0 0
      %5199 = vmatmul.mubr.bf16.gmra.mxu0 %v5025
      %v5200 = vpop.f32.mrf.mxu0
      %v5201 = vadd.f32 0.0, %v5200
      %v5202 = vpop.f32.mrf.mxu0
      %v5203 = vpop.f32.mrf.mxu0
      %v5204 = vadd.f32 0.0, %v5203
      %v5205 = vpop.f32.mrf.mxu0
      %5206 = vdwg.mxu0
      %v5207 = vadd.f32 %v4935, %v5065
      %v5208 = vadd.f32 %v4936, %v5068
      %v5209 = vadd.f32 %v4937, %v5073
      %v5210 = vadd.f32 %v4938, %v5076
      %v5211 = vadd.f32 %v4939, %v5081
      %v5212 = vadd.f32 %v4940, %v5084
      %v5213 = vadd.f32 %v4941, %v5089
      %v5214 = vadd.f32 %v4942, %v5092
      %v5215 = vadd.f32 %v4943, %v5097
      %v5216 = vadd.f32 %v4944, %v5100
      %v5217 = vadd.f32 %v4945, %v5105
      %v5218 = vadd.f32 %v4946, %v5108
      %v5219 = vadd.f32 %v4947, %v5113
      %v5220 = vadd.f32 %v4948, %v5116
      %v5221 = vadd.f32 %v4949, %v5121
      %v5222 = vadd.f32 %v4950, %v5124
      %v5223 = vadd.f32 %v4951, %v5129
      %v5224 = vadd.f32 %v4952, %v5132
      %v5225 = vadd.f32 %v4953, %v5137
      %v5226 = vadd.f32 %v4954, %v5140
      %v5227 = vadd.f32 %v4955, %v5145
      %v5228 = vadd.f32 %v4956, %v5148
      %v5229 = vadd.f32 %v4957, %v5153
      %v5230 = vadd.f32 %v4958, %v5156
      %v5231 = vadd.f32 %v4959, %v5161
      %v5232 = vadd.f32 %v4960, %v5164
      %v5233 = vadd.f32 %v4961, %v5169
      %v5234 = vadd.f32 %v4962, %v5172
      %v5235 = vadd.f32 %v4963, %v5177
      %v5236 = vadd.f32 %v4964, %v5180
      %v5237 = vadd.f32 %v4965, %v5185
      %v5238 = vadd.f32 %v4966, %v5188
      %v5239 = vadd.f32 %v4967, %v5193
      %v5240 = vadd.f32 %v4968, %v5196
      %v5241 = vadd.f32 %v4969, %v5201
      %v5242 = vadd.f32 %v4970, %v5204
      %5243 = vst.msk [vmem:[#allocation2] sm:$0xff] %vm339, %v5207
      %5244 = vst.msk [vmem:[#allocation2 + $0x8] sm:$0xff] %vm339, %v5208
      %5245 = vst.msk [vmem:[#allocation2 + $0x10] sm:$0xff] %vm339, %v5209
      %5246 = vst.msk [vmem:[#allocation2 + $0x18] sm:$0xff] %vm339, %v5210
      %5247 = vst.msk [vmem:[#allocation2 + $0x20] sm:$0xff] %vm339, %v5211
      %5248 = vst.msk [vmem:[#allocation2 + $0x28] sm:$0xff] %vm339, %v5212
      %5249 = vst.msk [vmem:[#allocation2 + $0x30] sm:$0xff] %vm339, %v5213
      %5250 = vst.msk [vmem:[#allocation2 + $0x38] sm:$0xff] %vm339, %v5214
      %5251 = vst.msk [vmem:[#allocation2 + $0x40] sm:$0xff] %vm339, %v5215
      %5252 = vst.msk [vmem:[#allocation2 + $0x48] sm:$0xff] %vm339, %v5216
      %5253 = vst.msk [vmem:[#allocation2 + $0x50] sm:$0xff] %vm339, %v5217
      %5254 = vst.msk [vmem:[#allocation2 + $0x58] sm:$0xff] %vm339, %v5218
      %5255 = vst.msk [vmem:[#allocation2 + $0x60] sm:$0xff] %vm339, %v5219
      %5256 = vst.msk [vmem:[#allocation2 + $0x68] sm:$0xff] %vm339, %v5220
      %5257 = vst.msk [vmem:[#allocation2 + $0x70] sm:$0xff] %vm339, %v5221
      %5258 = vst.msk [vmem:[#allocation2 + $0x78] sm:$0xff] %vm339, %v5222
      %5259 = vst.msk [vmem:[#allocation2 + $0x80] sm:$0xff] %vm339, %v5223
      %5260 = vst.msk [vmem:[#allocation2 + $0x88] sm:$0xff] %vm339, %v5224
      %5261 = vst.msk [vmem:[#allocation2 + $0x90] sm:$0xff] %vm339, %v5225
      %5262 = vst.msk [vmem:[#allocation2 + $0x98] sm:$0xff] %vm339, %v5226
      %5263 = vst.msk [vmem:[#allocation2 + $0xa0] sm:$0xff] %vm339, %v5227
      %5264 = vst.msk [vmem:[#allocation2 + $0xa8] sm:$0xff] %vm339, %v5228
      %5265 = vst.msk [vmem:[#allocation2 + $0xb0] sm:$0xff] %vm339, %v5229
      %5266 = vst.msk [vmem:[#allocation2 + $0xb8] sm:$0xff] %vm339, %v5230
      %5267 = vst.msk [vmem:[#allocation2 + $0xc0] sm:$0xff] %vm339, %v5231
      %5268 = vst.msk [vmem:[#allocation2 + $0xc8] sm:$0xff] %vm339, %v5232
      %5269 = vst.msk [vmem:[#allocation2 + $0xd0] sm:$0xff] %vm339, %v5233
      %5270 = vst.msk [vmem:[#allocation2 + $0xd8] sm:$0xff] %vm339, %v5234
      %5271 = vst.msk [vmem:[#allocation2 + $0xe0] sm:$0xff] %vm339, %v5235
      %5272 = vst.msk [vmem:[#allocation2 + $0xe8] sm:$0xff] %vm339, %v5236
      %5273 = vst.msk [vmem:[#allocation2 + $0xf0] sm:$0xff] %vm339, %v5237
      %5274 = vst.msk [vmem:[#allocation2 + $0xf8] sm:$0xff] %vm339, %v5238
      %5275 = vst.msk [vmem:[#allocation2 + $0x100] sm:$0xff] %vm339, %v5239
      %5276 = vst.msk [vmem:[#allocation2 + $0x108] sm:$0xff] %vm339, %v5240
      %5277 = vst.msk [vmem:[#allocation2 + $0x110] sm:$0xff] %vm339, %v5241
      %5278 = vst.msk [vmem:[#allocation2 + $0x118] sm:$0xff] %vm339, %v5242
      %v5279 = vld [vmem:[#allocation3 + $0x2] sm:$0xff]
      %v5280 = vld [vmem:[#allocation3 + $0xa] sm:$0xff]
      %v5281 = vld [vmem:[#allocation3 + $0x12] sm:$0xff]
      %v5282 = vld [vmem:[#allocation3 + $0x1a] sm:$0xff]
      %v5283 = vld [vmem:[#allocation3 + $0x22] sm:$0xff]
      %v5284 = vld [vmem:[#allocation3 + $0x2a] sm:$0xff]
      %v5285 = vld [vmem:[#allocation3 + $0x32] sm:$0xff]
      %v5286 = vld [vmem:[#allocation3 + $0x3a] sm:$0xff]
      %v5287 = vld [vmem:[#allocation3 + $0x42] sm:$0xff]
      %v5288 = vld [vmem:[#allocation3 + $0x4a] sm:$0xff]
      %v5289 = vld [vmem:[#allocation3 + $0x52] sm:$0xff]
      %v5290 = vld [vmem:[#allocation3 + $0x5a] sm:$0xff]
      %v5291 = vld [vmem:[#allocation3 + $0x62] sm:$0xff]
      %v5292 = vld [vmem:[#allocation3 + $0x6a] sm:$0xff]
      %v5293 = vld [vmem:[#allocation3 + $0x72] sm:$0xff]
      %v5294 = vld [vmem:[#allocation3 + $0x7a] sm:$0xff]
      %v5295 = vld [vmem:[#allocation3 + $0x82] sm:$0xff]
      %v5296 = vld [vmem:[#allocation3 + $0x8a] sm:$0xff]
      %v5297 = vld [vmem:[#allocation3 + $0x92] sm:$0xff]
      %v5298 = vld [vmem:[#allocation3 + $0x9a] sm:$0xff]
      %v5299 = vld [vmem:[#allocation3 + $0xa2] sm:$0xff]
      %v5300 = vld [vmem:[#allocation3 + $0xaa] sm:$0xff]
      %v5301 = vld [vmem:[#allocation3 + $0xb2] sm:$0xff]
      %v5302 = vld [vmem:[#allocation3 + $0xba] sm:$0xff]
      %v5303 = vld [vmem:[#allocation3 + $0xc2] sm:$0xff]
      %v5304 = vld [vmem:[#allocation3 + $0xca] sm:$0xff]
      %v5305 = vld [vmem:[#allocation3 + $0xd2] sm:$0xff]
      %v5306 = vld [vmem:[#allocation3 + $0xda] sm:$0xff]
      %v5307 = vld [vmem:[#allocation3 + $0xe2] sm:$0xff]
      %v5308 = vld [vmem:[#allocation3 + $0xea] sm:$0xff]
      %v5309 = vld [vmem:[#allocation3 + $0xf2] sm:$0xff]
      %v5310 = vld [vmem:[#allocation3 + $0xfa] sm:$0xff]
      %v5311 = vld [vmem:[#allocation3 + $0x102] sm:$0xff]
      %v5312 = vld [vmem:[#allocation3 + $0x10a] sm:$0xff]
      %v5313 = vld [vmem:[#allocation3 + $0x112] sm:$0xff]
      %v5314 = vld [vmem:[#allocation3 + $0x11a] sm:$0xff]
      %v5315 = vpack.c.bf16 %v5280, %v5279
      %v5316 = vpack.c.bf16 %v5282, %v5281
      %v5317 = vpack.c.bf16 %v5284, %v5283
      %v5318 = vpack.c.bf16 %v5286, %v5285
      %v5319 = vpack.c.bf16 %v5288, %v5287
      %v5320 = vpack.c.bf16 %v5290, %v5289
      %v5321 = vpack.c.bf16 %v5292, %v5291
      %v5322 = vpack.c.bf16 %v5294, %v5293
      %v5323 = vpack.c.bf16 %v5296, %v5295
      %v5324 = vpack.c.bf16 %v5298, %v5297
      %v5325 = vpack.c.bf16 %v5300, %v5299
      %v5326 = vpack.c.bf16 %v5302, %v5301
      %v5327 = vpack.c.bf16 %v5304, %v5303
      %v5328 = vpack.c.bf16 %v5306, %v5305
      %v5329 = vpack.c.bf16 %v5308, %v5307
      %v5330 = vpack.c.bf16 %v5310, %v5309
      %v5331 = vpack.c.bf16 %v5312, %v5311
      %v5332 = vpack.c.bf16 %v5314, %v5313
      %v5333 = vld [vmem:[#allocation2] sm:$0xff]
      %v5334 = vld [vmem:[#allocation2 + $0x8] sm:$0xff]
      %v5335 = vld [vmem:[#allocation2 + $0x10] sm:$0xff]
      %v5336 = vld [vmem:[#allocation2 + $0x18] sm:$0xff]
      %v5337 = vld [vmem:[#allocation2 + $0x20] sm:$0xff]
      %v5338 = vld [vmem:[#allocation2 + $0x28] sm:$0xff]
      %v5339 = vld [vmem:[#allocation2 + $0x30] sm:$0xff]
      %v5340 = vld [vmem:[#allocation2 + $0x38] sm:$0xff]
      %v5341 = vld [vmem:[#allocation2 + $0x40] sm:$0xff]
      %v5342 = vld [vmem:[#allocation2 + $0x48] sm:$0xff]
      %v5343 = vld [vmem:[#allocation2 + $0x50] sm:$0xff]
      %v5344 = vld [vmem:[#allocation2 + $0x58] sm:$0xff]
      %v5345 = vld [vmem:[#allocation2 + $0x60] sm:$0xff]
      %v5346 = vld [vmem:[#allocation2 + $0x68] sm:$0xff]
      %v5347 = vld [vmem:[#allocation2 + $0x70] sm:$0xff]
      %v5348 = vld [vmem:[#allocation2 + $0x78] sm:$0xff]
      %v5349 = vld [vmem:[#allocation2 + $0x80] sm:$0xff]
      %v5350 = vld [vmem:[#allocation2 + $0x88] sm:$0xff]
      %v5351 = vld [vmem:[#allocation2 + $0x90] sm:$0xff]
      %v5352 = vld [vmem:[#allocation2 + $0x98] sm:$0xff]
      %v5353 = vld [vmem:[#allocation2 + $0xa0] sm:$0xff]
      %v5354 = vld [vmem:[#allocation2 + $0xa8] sm:$0xff]
      %v5355 = vld [vmem:[#allocation2 + $0xb0] sm:$0xff]
      %v5356 = vld [vmem:[#allocation2 + $0xb8] sm:$0xff]
      %v5357 = vld [vmem:[#allocation2 + $0xc0] sm:$0xff]
      %v5358 = vld [vmem:[#allocation2 + $0xc8] sm:$0xff]
      %v5359 = vld [vmem:[#allocation2 + $0xd0] sm:$0xff]
      %v5360 = vld [vmem:[#allocation2 + $0xd8] sm:$0xff]
      %v5361 = vld [vmem:[#allocation2 + $0xe0] sm:$0xff]
      %v5362 = vld [vmem:[#allocation2 + $0xe8] sm:$0xff]
      %v5363 = vld [vmem:[#allocation2 + $0xf0] sm:$0xff]
      %v5364 = vld [vmem:[#allocation2 + $0xf8] sm:$0xff]
      %v5365 = vld [vmem:[#allocation2 + $0x100] sm:$0xff]
      %v5366 = vld [vmem:[#allocation2 + $0x108] sm:$0xff]
      %v5367 = vld [vmem:[#allocation2 + $0x110] sm:$0xff]
      %v5368 = vld [vmem:[#allocation2 + $0x118] sm:$0xff]
      %s5369 = scalar_lea.vmem %s3, 4
      %v5370 = vld [vmem:[%s5369] sm:$0x3]
      %v5372 = vsel %vm339, %v5315, 0
      %v5375 = vsel %vm339, %v5316, 0
      %v5378 = vsel %vm339, %v5317, 0
      %v5381 = vsel %vm339, %v5318, 0
      %v5384 = vsel %vm339, %v5319, 0
      %v5387 = vsel %vm339, %v5320, 0
      %v5390 = vsel %vm339, %v5321, 0
      %v5393 = vsel %vm339, %v5322, 0
      %v5396 = vsel %vm339, %v5323, 0
      %v5399 = vsel %vm339, %v5324, 0
      %v5402 = vsel %vm339, %v5325, 0
      %v5405 = vsel %vm339, %v5326, 0
      %v5408 = vsel %vm339, %v5327, 0
      %v5411 = vsel %vm339, %v5328, 0
      %v5414 = vsel %vm339, %v5329, 0
      %v5417 = vsel %vm339, %v5330, 0
      %v5420 = vsel %vm339, %v5331, 0
      %v5423 = vsel %vm339, %v5332, 0
      %v5426 = vsel %vm565, %v5370, 0
      %5428 = vmatprep.subr.bf16.mxu0 0
      %5429 = vmatpush1.bf16.msra.mxu0 0
      %5430 = vmatprep.subr.bf16.mxu0 0
      %5431 = vmatpush1.bf16.msra.mxu0 0
      %5432 = vmatprep.subr.bf16.mxu0 0
      %5433 = vmatpush1.bf16.msra.mxu0 0
      %5434 = vmatprep.subr.bf16.mxu0 0
      %5435 = vmatpush1.bf16.msra.mxu0 0
      %5436 = vmatprep.subr.bf16.mxu0 0
      %5437 = vmatpush1.bf16.msra.mxu0 0
      %5438 = vmatprep.subr.bf16.mxu0 0
      %5439 = vmatpush1.bf16.msra.mxu0 0
      %5440 = vmatprep.subr.bf16.mxu0 0
      %5441 = vmatpush1.bf16.msra.mxu0 0
      %5442 = vmatprep.subr.bf16.mxu0 0
      %5443 = vmatpush1.bf16.msra.mxu0 %v5426
      %5444 = vmatprep.subr.bf16.mxu0 0
      %5445 = vmatpush2.bf16.msra.mxu0 0
      %5446 = vmatprep.subr.bf16.mxu0 0
      %5447 = vmatpush2.bf16.msra.mxu0 0
      %5448 = vmatprep.subr.bf16.mxu0 0
      %5449 = vmatpush2.bf16.msra.mxu0 0
      %5450 = vmatprep.subr.bf16.mxu0 0
      %5451 = vmatpush2.bf16.msra.mxu0 0
      %5452 = vmatprep.subr.bf16.mxu0 0
      %5453 = vmatpush2.bf16.msra.mxu0 0
      %5454 = vmatprep.subr.bf16.mxu0 0
      %5455 = vmatpush2.bf16.msra.mxu0 0
      %5456 = vmatprep.subr.bf16.mxu0 0
      %5457 = vmatpush2.bf16.msra.mxu0 0
      %5458 = vmatprep.subr.bf16.mxu0 0
      %5459 = vmatpush2.bf16.msra.mxu0 0
      %5460 = vmatprep.mubr.bf16.mxu0 0
      %5461 = vmatmul.mubr.bf16.gmra.mxu0 %v5372
      %v5462 = vpop.f32.mrf.mxu0
      %v5463 = vadd.f32 0.0, %v5462
      %v5464 = vpop.f32.mrf.mxu0
      %v5465 = vpop.f32.mrf.mxu0
      %v5466 = vadd.f32 0.0, %v5465
      %v5467 = vpop.f32.mrf.mxu0
      %5468 = vmatprep.mubr.bf16.mxu0 0
      %5469 = vmatmul.mubr.bf16.gmra.mxu0 %v5375
      %v5470 = vpop.f32.mrf.mxu0
      %v5471 = vadd.f32 0.0, %v5470
      %v5472 = vpop.f32.mrf.mxu0
      %v5473 = vpop.f32.mrf.mxu0
      %v5474 = vadd.f32 0.0, %v5473
      %v5475 = vpop.f32.mrf.mxu0
      %5476 = vmatprep.mubr.bf16.mxu0 0
      %5477 = vmatmul.mubr.bf16.gmra.mxu0 %v5378
      %v5478 = vpop.f32.mrf.mxu0
      %v5479 = vadd.f32 0.0, %v5478
      %v5480 = vpop.f32.mrf.mxu0
      %v5481 = vpop.f32.mrf.mxu0
      %v5482 = vadd.f32 0.0, %v5481
      %v5483 = vpop.f32.mrf.mxu0
      %5484 = vmatprep.mubr.bf16.mxu0 0
      %5485 = vmatmul.mubr.bf16.gmra.mxu0 %v5381
      %v5486 = vpop.f32.mrf.mxu0
      %v5487 = vadd.f32 0.0, %v5486
      %v5488 = vpop.f32.mrf.mxu0
      %v5489 = vpop.f32.mrf.mxu0
      %v5490 = vadd.f32 0.0, %v5489
      %v5491 = vpop.f32.mrf.mxu0
      %5492 = vmatprep.mubr.bf16.mxu0 0
      %5493 = vmatmul.mubr.bf16.gmra.mxu0 %v5384
      %v5494 = vpop.f32.mrf.mxu0
      %v5495 = vadd.f32 0.0, %v5494
      %v5496 = vpop.f32.mrf.mxu0
      %v5497 = vpop.f32.mrf.mxu0
      %v5498 = vadd.f32 0.0, %v5497
      %v5499 = vpop.f32.mrf.mxu0
      %5500 = vmatprep.mubr.bf16.mxu0 0
      %5501 = vmatmul.mubr.bf16.gmra.mxu0 %v5387
      %v5502 = vpop.f32.mrf.mxu0
      %v5503 = vadd.f32 0.0, %v5502
      %v5504 = vpop.f32.mrf.mxu0
      %v5505 = vpop.f32.mrf.mxu0
      %v5506 = vadd.f32 0.0, %v5505
      %v5507 = vpop.f32.mrf.mxu0
      %5508 = vmatprep.mubr.bf16.mxu0 0
      %5509 = vmatmul.mubr.bf16.gmra.mxu0 %v5390
      %v5510 = vpop.f32.mrf.mxu0
      %v5511 = vadd.f32 0.0, %v5510
      %v5512 = vpop.f32.mrf.mxu0
      %v5513 = vpop.f32.mrf.mxu0
      %v5514 = vadd.f32 0.0, %v5513
      %v5515 = vpop.f32.mrf.mxu0
      %5516 = vmatprep.mubr.bf16.mxu0 0
      %5517 = vmatmul.mubr.bf16.gmra.mxu0 %v5393
      %v5518 = vpop.f32.mrf.mxu0
      %v5519 = vadd.f32 0.0, %v5518
      %v5520 = vpop.f32.mrf.mxu0
      %v5521 = vpop.f32.mrf.mxu0
      %v5522 = vadd.f32 0.0, %v5521
      %v5523 = vpop.f32.mrf.mxu0
      %5524 = vmatprep.mubr.bf16.mxu0 0
      %5525 = vmatmul.mubr.bf16.gmra.mxu0 %v5396
      %v5526 = vpop.f32.mrf.mxu0
      %v5527 = vadd.f32 0.0, %v5526
      %v5528 = vpop.f32.mrf.mxu0
      %v5529 = vpop.f32.mrf.mxu0
      %v5530 = vadd.f32 0.0, %v5529
      %v5531 = vpop.f32.mrf.mxu0
      %5532 = vmatprep.mubr.bf16.mxu0 0
      %5533 = vmatmul.mubr.bf16.gmra.mxu0 %v5399
      %v5534 = vpop.f32.mrf.mxu0
      %v5535 = vadd.f32 0.0, %v5534
      %v5536 = vpop.f32.mrf.mxu0
      %v5537 = vpop.f32.mrf.mxu0
      %v5538 = vadd.f32 0.0, %v5537
      %v5539 = vpop.f32.mrf.mxu0
      %5540 = vmatprep.mubr.bf16.mxu0 0
      %5541 = vmatmul.mubr.bf16.gmra.mxu0 %v5402
      %v5542 = vpop.f32.mrf.mxu0
      %v5543 = vadd.f32 0.0, %v5542
      %v5544 = vpop.f32.mrf.mxu0
      %v5545 = vpop.f32.mrf.mxu0
      %v5546 = vadd.f32 0.0, %v5545
      %v5547 = vpop.f32.mrf.mxu0
      %5548 = vmatprep.mubr.bf16.mxu0 0
      %5549 = vmatmul.mubr.bf16.gmra.mxu0 %v5405
      %v5550 = vpop.f32.mrf.mxu0
      %v5551 = vadd.f32 0.0, %v5550
      %v5552 = vpop.f32.mrf.mxu0
      %v5553 = vpop.f32.mrf.mxu0
      %v5554 = vadd.f32 0.0, %v5553
      %v5555 = vpop.f32.mrf.mxu0
      %5556 = vmatprep.mubr.bf16.mxu0 0
      %5557 = vmatmul.mubr.bf16.gmra.mxu0 %v5408
      %v5558 = vpop.f32.mrf.mxu0
      %v5559 = vadd.f32 0.0, %v5558
      %v5560 = vpop.f32.mrf.mxu0
      %v5561 = vpop.f32.mrf.mxu0
      %v5562 = vadd.f32 0.0, %v5561
      %v5563 = vpop.f32.mrf.mxu0
      %5564 = vmatprep.mubr.bf16.mxu0 0
      %5565 = vmatmul.mubr.bf16.gmra.mxu0 %v5411
      %v5566 = vpop.f32.mrf.mxu0
      %v5567 = vadd.f32 0.0, %v5566
      %v5568 = vpop.f32.mrf.mxu0
      %v5569 = vpop.f32.mrf.mxu0
      %v5570 = vadd.f32 0.0, %v5569
      %v5571 = vpop.f32.mrf.mxu0
      %5572 = vmatprep.mubr.bf16.mxu0 0
      %5573 = vmatmul.mubr.bf16.gmra.mxu0 %v5414
      %v5574 = vpop.f32.mrf.mxu0
      %v5575 = vadd.f32 0.0, %v5574
      %v5576 = vpop.f32.mrf.mxu0
      %v5577 = vpop.f32.mrf.mxu0
      %v5578 = vadd.f32 0.0, %v5577
      %v5579 = vpop.f32.mrf.mxu0
      %5580 = vmatprep.mubr.bf16.mxu0 0
      %5581 = vmatmul.mubr.bf16.gmra.mxu0 %v5417
      %v5582 = vpop.f32.mrf.mxu0
      %v5583 = vadd.f32 0.0, %v5582
      %v5584 = vpop.f32.mrf.mxu0
      %v5585 = vpop.f32.mrf.mxu0
      %v5586 = vadd.f32 0.0, %v5585
      %v5587 = vpop.f32.mrf.mxu0
      %5588 = vmatprep.mubr.bf16.mxu0 0
      %5589 = vmatmul.mubr.bf16.gmra.mxu0 %v5420
      %v5590 = vpop.f32.mrf.mxu0
      %v5591 = vadd.f32 0.0, %v5590
      %v5592 = vpop.f32.mrf.mxu0
      %v5593 = vpop.f32.mrf.mxu0
      %v5594 = vadd.f32 0.0, %v5593
      %v5595 = vpop.f32.mrf.mxu0
      %5596 = vmatprep.mubr.bf16.mxu0 0
      %5597 = vmatmul.mubr.bf16.gmra.mxu0 %v5423
      %v5598 = vpop.f32.mrf.mxu0
      %v5599 = vadd.f32 0.0, %v5598
      %v5600 = vpop.f32.mrf.mxu0
      %v5601 = vpop.f32.mrf.mxu0
      %v5602 = vadd.f32 0.0, %v5601
      %v5603 = vpop.f32.mrf.mxu0
      %5604 = vdwg.mxu0
      %v5605 = vadd.f32 %v5333, %v5463
      %v5606 = vadd.f32 %v5334, %v5466
      %v5607 = vadd.f32 %v5335, %v5471
      %v5608 = vadd.f32 %v5336, %v5474
      %v5609 = vadd.f32 %v5337, %v5479
      %v5610 = vadd.f32 %v5338, %v5482
      %v5611 = vadd.f32 %v5339, %v5487
      %v5612 = vadd.f32 %v5340, %v5490
      %v5613 = vadd.f32 %v5341, %v5495
      %v5614 = vadd.f32 %v5342, %v5498
      %v5615 = vadd.f32 %v5343, %v5503
      %v5616 = vadd.f32 %v5344, %v5506
      %v5617 = vadd.f32 %v5345, %v5511
      %v5618 = vadd.f32 %v5346, %v5514
      %v5619 = vadd.f32 %v5347, %v5519
      %v5620 = vadd.f32 %v5348, %v5522
      %v5621 = vadd.f32 %v5349, %v5527
      %v5622 = vadd.f32 %v5350, %v5530
      %v5623 = vadd.f32 %v5351, %v5535
      %v5624 = vadd.f32 %v5352, %v5538
      %v5625 = vadd.f32 %v5353, %v5543
      %v5626 = vadd.f32 %v5354, %v5546
      %v5627 = vadd.f32 %v5355, %v5551
      %v5628 = vadd.f32 %v5356, %v5554
      %v5629 = vadd.f32 %v5357, %v5559
      %v5630 = vadd.f32 %v5358, %v5562
      %v5631 = vadd.f32 %v5359, %v5567
      %v5632 = vadd.f32 %v5360, %v5570
      %v5633 = vadd.f32 %v5361, %v5575
      %v5634 = vadd.f32 %v5362, %v5578
      %v5635 = vadd.f32 %v5363, %v5583
      %v5636 = vadd.f32 %v5364, %v5586
      %v5637 = vadd.f32 %v5365, %v5591
      %v5638 = vadd.f32 %v5366, %v5594
      %v5639 = vadd.f32 %v5367, %v5599
      %v5640 = vadd.f32 %v5368, %v5602
      %5641 = vst.msk [vmem:[#allocation2] sm:$0xff] %vm339, %v5605
      %5642 = vst.msk [vmem:[#allocation2 + $0x8] sm:$0xff] %vm339, %v5606
      %5643 = vst.msk [vmem:[#allocation2 + $0x10] sm:$0xff] %vm339, %v5607
      %5644 = vst.msk [vmem:[#allocation2 + $0x18] sm:$0xff] %vm339, %v5608
      %5645 = vst.msk [vmem:[#allocation2 + $0x20] sm:$0xff] %vm339, %v5609
      %5646 = vst.msk [vmem:[#allocation2 + $0x28] sm:$0xff] %vm339, %v5610
      %5647 = vst.msk [vmem:[#allocation2 + $0x30] sm:$0xff] %vm339, %v5611
      %5648 = vst.msk [vmem:[#allocation2 + $0x38] sm:$0xff] %vm339, %v5612
      %5649 = vst.msk [vmem:[#allocation2 + $0x40] sm:$0xff] %vm339, %v5613
      %5650 = vst.msk [vmem:[#allocation2 + $0x48] sm:$0xff] %vm339, %v5614
      %5651 = vst.msk [vmem:[#allocation2 + $0x50] sm:$0xff] %vm339, %v5615
      %5652 = vst.msk [vmem:[#allocation2 + $0x58] sm:$0xff] %vm339, %v5616
      %5653 = vst.msk [vmem:[#allocation2 + $0x60] sm:$0xff] %vm339, %v5617
      %5654 = vst.msk [vmem:[#allocation2 + $0x68] sm:$0xff] %vm339, %v5618
      %5655 = vst.msk [vmem:[#allocation2 + $0x70] sm:$0xff] %vm339, %v5619
      %5656 = vst.msk [vmem:[#allocation2 + $0x78] sm:$0xff] %vm339, %v5620
      %5657 = vst.msk [vmem:[#allocation2 + $0x80] sm:$0xff] %vm339, %v5621
      %5658 = vst.msk [vmem:[#allocation2 + $0x88] sm:$0xff] %vm339, %v5622
      %5659 = vst.msk [vmem:[#allocation2 + $0x90] sm:$0xff] %vm339, %v5623
      %5660 = vst.msk [vmem:[#allocation2 + $0x98] sm:$0xff] %vm339, %v5624
      %5661 = vst.msk [vmem:[#allocation2 + $0xa0] sm:$0xff] %vm339, %v5625
      %5662 = vst.msk [vmem:[#allocation2 + $0xa8] sm:$0xff] %vm339, %v5626
      %5663 = vst.msk [vmem:[#allocation2 + $0xb0] sm:$0xff] %vm339, %v5627
      %5664 = vst.msk [vmem:[#allocation2 + $0xb8] sm:$0xff] %vm339, %v5628
      %5665 = vst.msk [vmem:[#allocation2 + $0xc0] sm:$0xff] %vm339, %v5629
      %5666 = vst.msk [vmem:[#allocation2 + $0xc8] sm:$0xff] %vm339, %v5630
      %5667 = vst.msk [vmem:[#allocation2 + $0xd0] sm:$0xff] %vm339, %v5631
      %5668 = vst.msk [vmem:[#allocation2 + $0xd8] sm:$0xff] %vm339, %v5632
      %5669 = vst.msk [vmem:[#allocation2 + $0xe0] sm:$0xff] %vm339, %v5633
      %5670 = vst.msk [vmem:[#allocation2 + $0xe8] sm:$0xff] %vm339, %v5634
      %5671 = vst.msk [vmem:[#allocation2 + $0xf0] sm:$0xff] %vm339, %v5635
      %5672 = vst.msk [vmem:[#allocation2 + $0xf8] sm:$0xff] %vm339, %v5636
      %5673 = vst.msk [vmem:[#allocation2 + $0x100] sm:$0xff] %vm339, %v5637
      %5674 = vst.msk [vmem:[#allocation2 + $0x108] sm:$0xff] %vm339, %v5638
      %5675 = vst.msk [vmem:[#allocation2 + $0x110] sm:$0xff] %vm339, %v5639
      %5676 = vst.msk [vmem:[#allocation2 + $0x118] sm:$0xff] %vm339, %v5640
      %v5677 = vld [vmem:[#allocation3 + $0x12] sm:$0xff]
      %v5678 = vld [vmem:[#allocation3 + $0x1a] sm:$0xff]
      %v5679 = vld [vmem:[#allocation3 + $0x22] sm:$0xff]
      %v5680 = vld [vmem:[#allocation3 + $0x2a] sm:$0xff]
      %v5681 = vld [vmem:[#allocation3 + $0x32] sm:$0xff]
      %v5682 = vld [vmem:[#allocation3 + $0x3a] sm:$0xff]
      %v5683 = vld [vmem:[#allocation3 + $0x42] sm:$0xff]
      %v5684 = vld [vmem:[#allocation3 + $0x4a] sm:$0xff]
      %v5685 = vld [vmem:[#allocation3 + $0x52] sm:$0xff]
      %v5686 = vld [vmem:[#allocation3 + $0x5a] sm:$0xff]
      %v5687 = vld [vmem:[#allocation3 + $0x62] sm:$0xff]
      %v5688 = vld [vmem:[#allocation3 + $0x6a] sm:$0xff]
      %v5689 = vld [vmem:[#allocation3 + $0x72] sm:$0xff]
      %v5690 = vld [vmem:[#allocation3 + $0x7a] sm:$0xff]
      %v5691 = vld [vmem:[#allocation3 + $0x82] sm:$0xff]
      %v5692 = vld [vmem:[#allocation3 + $0x8a] sm:$0xff]
      %v5693 = vld [vmem:[#allocation3 + $0x92] sm:$0xff]
      %v5694 = vld [vmem:[#allocation3 + $0x9a] sm:$0xff]
      %v5695 = vld [vmem:[#allocation3 + $0xa2] sm:$0xff]
      %v5696 = vld [vmem:[#allocation3 + $0xaa] sm:$0xff]
      %v5697 = vld [vmem:[#allocation3 + $0xb2] sm:$0xff]
      %v5698 = vld [vmem:[#allocation3 + $0xba] sm:$0xff]
      %v5699 = vld [vmem:[#allocation3 + $0xc2] sm:$0xff]
      %v5700 = vld [vmem:[#allocation3 + $0xca] sm:$0xff]
      %v5701 = vld [vmem:[#allocation3 + $0xd2] sm:$0xff]
      %v5702 = vld [vmem:[#allocation3 + $0xda] sm:$0xff]
      %v5703 = vld [vmem:[#allocation3 + $0xe2] sm:$0xff]
      %v5704 = vld [vmem:[#allocation3 + $0xea] sm:$0xff]
      %v5705 = vld [vmem:[#allocation3 + $0xf2] sm:$0xff]
      %v5706 = vld [vmem:[#allocation3 + $0xfa] sm:$0xff]
      %v5707 = vld [vmem:[#allocation3 + $0x102] sm:$0xff]
      %v5708 = vld [vmem:[#allocation3 + $0x10a] sm:$0xff]
      %v5709 = vld [vmem:[#allocation3 + $0x112] sm:$0xff]
      %v5710 = vld [vmem:[#allocation3 + $0x11a] sm:$0xff]
      %v5711 = vld [vmem:[#allocation3 + $0x122] sm:$0xff]
      %v5712 = vld [vmem:[#allocation3 + $0x12a] sm:$0xff]
      %v5713 = vpack.c.bf16 %v5678, %v5677
      %v5714 = vpack.c.bf16 %v5680, %v5679
      %v5715 = vpack.c.bf16 %v5682, %v5681
      %v5716 = vpack.c.bf16 %v5684, %v5683
      %v5717 = vpack.c.bf16 %v5686, %v5685
      %v5718 = vpack.c.bf16 %v5688, %v5687
      %v5719 = vpack.c.bf16 %v5690, %v5689
      %v5720 = vpack.c.bf16 %v5692, %v5691
      %v5721 = vpack.c.bf16 %v5694, %v5693
      %v5722 = vpack.c.bf16 %v5696, %v5695
      %v5723 = vpack.c.bf16 %v5698, %v5697
      %v5724 = vpack.c.bf16 %v5700, %v5699
      %v5725 = vpack.c.bf16 %v5702, %v5701
      %v5726 = vpack.c.bf16 %v5704, %v5703
      %v5727 = vpack.c.bf16 %v5706, %v5705
      %v5728 = vpack.c.bf16 %v5708, %v5707
      %v5729 = vpack.c.bf16 %v5710, %v5709
      %v5730 = vpack.c.bf16 %v5712, %v5711
      %v5731 = vld [vmem:[#allocation2] sm:$0xff]
      %v5732 = vld [vmem:[#allocation2 + $0x8] sm:$0xff]
      %v5733 = vld [vmem:[#allocation2 + $0x10] sm:$0xff]
      %v5734 = vld [vmem:[#allocation2 + $0x18] sm:$0xff]
      %v5735 = vld [vmem:[#allocation2 + $0x20] sm:$0xff]
      %v5736 = vld [vmem:[#allocation2 + $0x28] sm:$0xff]
      %v5737 = vld [vmem:[#allocation2 + $0x30] sm:$0xff]
      %v5738 = vld [vmem:[#allocation2 + $0x38] sm:$0xff]
      %v5739 = vld [vmem:[#allocation2 + $0x40] sm:$0xff]
      %v5740 = vld [vmem:[#allocation2 + $0x48] sm:$0xff]
      %v5741 = vld [vmem:[#allocation2 + $0x50] sm:$0xff]
      %v5742 = vld [vmem:[#allocation2 + $0x58] sm:$0xff]
      %v5743 = vld [vmem:[#allocation2 + $0x60] sm:$0xff]
      %v5744 = vld [vmem:[#allocation2 + $0x68] sm:$0xff]
      %v5745 = vld [vmem:[#allocation2 + $0x70] sm:$0xff]
      %v5746 = vld [vmem:[#allocation2 + $0x78] sm:$0xff]
      %v5747 = vld [vmem:[#allocation2 + $0x80] sm:$0xff]
      %v5748 = vld [vmem:[#allocation2 + $0x88] sm:$0xff]
      %v5749 = vld [vmem:[#allocation2 + $0x90] sm:$0xff]
      %v5750 = vld [vmem:[#allocation2 + $0x98] sm:$0xff]
      %v5751 = vld [vmem:[#allocation2 + $0xa0] sm:$0xff]
      %v5752 = vld [vmem:[#allocation2 + $0xa8] sm:$0xff]
      %v5753 = vld [vmem:[#allocation2 + $0xb0] sm:$0xff]
      %v5754 = vld [vmem:[#allocation2 + $0xb8] sm:$0xff]
      %v5755 = vld [vmem:[#allocation2 + $0xc0] sm:$0xff]
      %v5756 = vld [vmem:[#allocation2 + $0xc8] sm:$0xff]
      %v5757 = vld [vmem:[#allocation2 + $0xd0] sm:$0xff]
      %v5758 = vld [vmem:[#allocation2 + $0xd8] sm:$0xff]
      %v5759 = vld [vmem:[#allocation2 + $0xe0] sm:$0xff]
      %v5760 = vld [vmem:[#allocation2 + $0xe8] sm:$0xff]
      %v5761 = vld [vmem:[#allocation2 + $0xf0] sm:$0xff]
      %v5762 = vld [vmem:[#allocation2 + $0xf8] sm:$0xff]
      %v5763 = vld [vmem:[#allocation2 + $0x100] sm:$0xff]
      %v5764 = vld [vmem:[#allocation2 + $0x108] sm:$0xff]
      %v5765 = vld [vmem:[#allocation2 + $0x110] sm:$0xff]
      %v5766 = vld [vmem:[#allocation2 + $0x118] sm:$0xff]
      %s5767 = scalar_lea.vmem %s3, 6
      %v5768 = vld [vmem:[%s5767] sm:$0x3]
      %v5770 = vsel %vm339, %v5713, 0
      %v5773 = vsel %vm339, %v5714, 0
      %v5776 = vsel %vm339, %v5715, 0
      %v5779 = vsel %vm339, %v5716, 0
      %v5782 = vsel %vm339, %v5717, 0
      %v5785 = vsel %vm339, %v5718, 0
      %v5788 = vsel %vm339, %v5719, 0
      %v5791 = vsel %vm339, %v5720, 0
      %v5794 = vsel %vm339, %v5721, 0
      %v5797 = vsel %vm339, %v5722, 0
      %v5800 = vsel %vm339, %v5723, 0
      %v5803 = vsel %vm339, %v5724, 0
      %v5806 = vsel %vm339, %v5725, 0
      %v5809 = vsel %vm339, %v5726, 0
      %v5812 = vsel %vm339, %v5727, 0
      %v5815 = vsel %vm339, %v5728, 0
      %v5818 = vsel %vm339, %v5729, 0
      %v5821 = vsel %vm339, %v5730, 0
      %v5824 = vsel %vm565, %v5768, 0
      %5826 = vmatprep.subr.bf16.mxu0 0
      %5827 = vmatpush1.bf16.msra.mxu0 0
      %5828 = vmatprep.subr.bf16.mxu0 0
      %5829 = vmatpush1.bf16.msra.mxu0 0
      %5830 = vmatprep.subr.bf16.mxu0 0
      %5831 = vmatpush1.bf16.msra.mxu0 0
      %5832 = vmatprep.subr.bf16.mxu0 0
      %5833 = vmatpush1.bf16.msra.mxu0 0
      %5834 = vmatprep.subr.bf16.mxu0 0
      %5835 = vmatpush1.bf16.msra.mxu0 0
      %5836 = vmatprep.subr.bf16.mxu0 0
      %5837 = vmatpush1.bf16.msra.mxu0 0
      %5838 = vmatprep.subr.bf16.mxu0 0
      %5839 = vmatpush1.bf16.msra.mxu0 0
      %5840 = vmatprep.subr.bf16.mxu0 0
      %5841 = vmatpush1.bf16.msra.mxu0 %v5824
      %5842 = vmatprep.subr.bf16.mxu0 0
      %5843 = vmatpush2.bf16.msra.mxu0 0
      %5844 = vmatprep.subr.bf16.mxu0 0
      %5845 = vmatpush2.bf16.msra.mxu0 0
      %5846 = vmatprep.subr.bf16.mxu0 0
      %5847 = vmatpush2.bf16.msra.mxu0 0
      %5848 = vmatprep.subr.bf16.mxu0 0
      %5849 = vmatpush2.bf16.msra.mxu0 0
      %5850 = vmatprep.subr.bf16.mxu0 0
      %5851 = vmatpush2.bf16.msra.mxu0 0
      %5852 = vmatprep.subr.bf16.mxu0 0
      %5853 = vmatpush2.bf16.msra.mxu0 0
      %5854 = vmatprep.subr.bf16.mxu0 0
      %5855 = vmatpush2.bf16.msra.mxu0 0
      %5856 = vmatprep.subr.bf16.mxu0 0
      %5857 = vmatpush2.bf16.msra.mxu0 0
      %5858 = vmatprep.mubr.bf16.mxu0 0
      %5859 = vmatmul.mubr.bf16.gmra.mxu0 %v5770
      %v5860 = vpop.f32.mrf.mxu0
      %v5861 = vadd.f32 0.0, %v5860
      %v5862 = vpop.f32.mrf.mxu0
      %v5863 = vpop.f32.mrf.mxu0
      %v5864 = vadd.f32 0.0, %v5863
      %v5865 = vpop.f32.mrf.mxu0
      %5866 = vmatprep.mubr.bf16.mxu0 0
      %5867 = vmatmul.mubr.bf16.gmra.mxu0 %v5773
      %v5868 = vpop.f32.mrf.mxu0
      %v5869 = vadd.f32 0.0, %v5868
      %v5870 = vpop.f32.mrf.mxu0
      %v5871 = vpop.f32.mrf.mxu0
      %v5872 = vadd.f32 0.0, %v5871
      %v5873 = vpop.f32.mrf.mxu0
      %5874 = vmatprep.mubr.bf16.mxu0 0
      %5875 = vmatmul.mubr.bf16.gmra.mxu0 %v5776
      %v5876 = vpop.f32.mrf.mxu0
      %v5877 = vadd.f32 0.0, %v5876
      %v5878 = vpop.f32.mrf.mxu0
      %v5879 = vpop.f32.mrf.mxu0
      %v5880 = vadd.f32 0.0, %v5879
      %v5881 = vpop.f32.mrf.mxu0
      %5882 = vmatprep.mubr.bf16.mxu0 0
      %5883 = vmatmul.mubr.bf16.gmra.mxu0 %v5779
      %v5884 = vpop.f32.mrf.mxu0
      %v5885 = vadd.f32 0.0, %v5884
      %v5886 = vpop.f32.mrf.mxu0
      %v5887 = vpop.f32.mrf.mxu0
      %v5888 = vadd.f32 0.0, %v5887
      %v5889 = vpop.f32.mrf.mxu0
      %5890 = vmatprep.mubr.bf16.mxu0 0
      %5891 = vmatmul.mubr.bf16.gmra.mxu0 %v5782
      %v5892 = vpop.f32.mrf.mxu0
      %v5893 = vadd.f32 0.0, %v5892
      %v5894 = vpop.f32.mrf.mxu0
      %v5895 = vpop.f32.mrf.mxu0
      %v5896 = vadd.f32 0.0, %v5895
      %v5897 = vpop.f32.mrf.mxu0
      %5898 = vmatprep.mubr.bf16.mxu0 0
      %5899 = vmatmul.mubr.bf16.gmra.mxu0 %v5785
      %v5900 = vpop.f32.mrf.mxu0
      %v5901 = vadd.f32 0.0, %v5900
      %v5902 = vpop.f32.mrf.mxu0
      %v5903 = vpop.f32.mrf.mxu0
      %v5904 = vadd.f32 0.0, %v5903
      %v5905 = vpop.f32.mrf.mxu0
      %5906 = vmatprep.mubr.bf16.mxu0 0
      %5907 = vmatmul.mubr.bf16.gmra.mxu0 %v5788
      %v5908 = vpop.f32.mrf.mxu0
      %v5909 = vadd.f32 0.0, %v5908
      %v5910 = vpop.f32.mrf.mxu0
      %v5911 = vpop.f32.mrf.mxu0
      %v5912 = vadd.f32 0.0, %v5911
      %v5913 = vpop.f32.mrf.mxu0
      %5914 = vmatprep.mubr.bf16.mxu0 0
      %5915 = vmatmul.mubr.bf16.gmra.mxu0 %v5791
      %v5916 = vpop.f32.mrf.mxu0
      %v5917 = vadd.f32 0.0, %v5916
      %v5918 = vpop.f32.mrf.mxu0
      %v5919 = vpop.f32.mrf.mxu0
      %v5920 = vadd.f32 0.0, %v5919
      %v5921 = vpop.f32.mrf.mxu0
      %5922 = vmatprep.mubr.bf16.mxu0 0
      %5923 = vmatmul.mubr.bf16.gmra.mxu0 %v5794
      %v5924 = vpop.f32.mrf.mxu0
      %v5925 = vadd.f32 0.0, %v5924
      %v5926 = vpop.f32.mrf.mxu0
      %v5927 = vpop.f32.mrf.mxu0
      %v5928 = vadd.f32 0.0, %v5927
      %v5929 = vpop.f32.mrf.mxu0
      %5930 = vmatprep.mubr.bf16.mxu0 0
      %5931 = vmatmul.mubr.bf16.gmra.mxu0 %v5797
      %v5932 = vpop.f32.mrf.mxu0
      %v5933 = vadd.f32 0.0, %v5932
      %v5934 = vpop.f32.mrf.mxu0
      %v5935 = vpop.f32.mrf.mxu0
      %v5936 = vadd.f32 0.0, %v5935
      %v5937 = vpop.f32.mrf.mxu0
      %5938 = vmatprep.mubr.bf16.mxu0 0
      %5939 = vmatmul.mubr.bf16.gmra.mxu0 %v5800
      %v5940 = vpop.f32.mrf.mxu0
      %v5941 = vadd.f32 0.0, %v5940
      %v5942 = vpop.f32.mrf.mxu0
      %v5943 = vpop.f32.mrf.mxu0
      %v5944 = vadd.f32 0.0, %v5943
      %v5945 = vpop.f32.mrf.mxu0
      %5946 = vmatprep.mubr.bf16.mxu0 0
      %5947 = vmatmul.mubr.bf16.gmra.mxu0 %v5803
      %v5948 = vpop.f32.mrf.mxu0
      %v5949 = vadd.f32 0.0, %v5948
      %v5950 = vpop.f32.mrf.mxu0
      %v5951 = vpop.f32.mrf.mxu0
      %v5952 = vadd.f32 0.0, %v5951
      %v5953 = vpop.f32.mrf.mxu0
      %5954 = vmatprep.mubr.bf16.mxu0 0
      %5955 = vmatmul.mubr.bf16.gmra.mxu0 %v5806
      %v5956 = vpop.f32.mrf.mxu0
      %v5957 = vadd.f32 0.0, %v5956
      %v5958 = vpop.f32.mrf.mxu0
      %v5959 = vpop.f32.mrf.mxu0
      %v5960 = vadd.f32 0.0, %v5959
      %v5961 = vpop.f32.mrf.mxu0
      %5962 = vmatprep.mubr.bf16.mxu0 0
      %5963 = vmatmul.mubr.bf16.gmra.mxu0 %v5809
      %v5964 = vpop.f32.mrf.mxu0
      %v5965 = vadd.f32 0.0, %v5964
      %v5966 = vpop.f32.mrf.mxu0
      %v5967 = vpop.f32.mrf.mxu0
      %v5968 = vadd.f32 0.0, %v5967
      %v5969 = vpop.f32.mrf.mxu0
      %5970 = vmatprep.mubr.bf16.mxu0 0
      %5971 = vmatmul.mubr.bf16.gmra.mxu0 %v5812
      %v5972 = vpop.f32.mrf.mxu0
      %v5973 = vadd.f32 0.0, %v5972
      %v5974 = vpop.f32.mrf.mxu0
      %v5975 = vpop.f32.mrf.mxu0
      %v5976 = vadd.f32 0.0, %v5975
      %v5977 = vpop.f32.mrf.mxu0
      %5978 = vmatprep.mubr.bf16.mxu0 0
      %5979 = vmatmul.mubr.bf16.gmra.mxu0 %v5815
      %v5980 = vpop.f32.mrf.mxu0
      %v5981 = vadd.f32 0.0, %v5980
      %v5982 = vpop.f32.mrf.mxu0
      %v5983 = vpop.f32.mrf.mxu0
      %v5984 = vadd.f32 0.0, %v5983
      %v5985 = vpop.f32.mrf.mxu0
      %5986 = vmatprep.mubr.bf16.mxu0 0
      %5987 = vmatmul.mubr.bf16.gmra.mxu0 %v5818
      %v5988 = vpop.f32.mrf.mxu0
      %v5989 = vadd.f32 0.0, %v5988
      %v5990 = vpop.f32.mrf.mxu0
      %v5991 = vpop.f32.mrf.mxu0
      %v5992 = vadd.f32 0.0, %v5991
      %v5993 = vpop.f32.mrf.mxu0
      %5994 = vmatprep.mubr.bf16.mxu0 0
      %5995 = vmatmul.mubr.bf16.gmra.mxu0 %v5821
      %v5996 = vpop.f32.mrf.mxu0
      %v5997 = vadd.f32 0.0, %v5996
      %v5998 = vpop.f32.mrf.mxu0
      %v5999 = vpop.f32.mrf.mxu0
      %v6000 = vadd.f32 0.0, %v5999
      %v6001 = vpop.f32.mrf.mxu0
      %6002 = vdwg.mxu0
      %v6003 = vadd.f32 %v5731, %v5861
      %v6004 = vadd.f32 %v5732, %v5864
      %v6005 = vadd.f32 %v5733, %v5869
      %v6006 = vadd.f32 %v5734, %v5872
      %v6007 = vadd.f32 %v5735, %v5877
      %v6008 = vadd.f32 %v5736, %v5880
      %v6009 = vadd.f32 %v5737, %v5885
      %v6010 = vadd.f32 %v5738, %v5888
      %v6011 = vadd.f32 %v5739, %v5893
      %v6012 = vadd.f32 %v5740, %v5896
      %v6013 = vadd.f32 %v5741, %v5901
      %v6014 = vadd.f32 %v5742, %v5904
      %v6015 = vadd.f32 %v5743, %v5909
      %v6016 = vadd.f32 %v5744, %v5912
      %v6017 = vadd.f32 %v5745, %v5917
      %v6018 = vadd.f32 %v5746, %v5920
      %v6019 = vadd.f32 %v5747, %v5925
      %v6020 = vadd.f32 %v5748, %v5928
      %v6021 = vadd.f32 %v5749, %v5933
      %v6022 = vadd.f32 %v5750, %v5936
      %v6023 = vadd.f32 %v5751, %v5941
      %v6024 = vadd.f32 %v5752, %v5944
      %v6025 = vadd.f32 %v5753, %v5949
      %v6026 = vadd.f32 %v5754, %v5952
      %v6027 = vadd.f32 %v5755, %v5957
      %v6028 = vadd.f32 %v5756, %v5960
      %v6029 = vadd.f32 %v5757, %v5965
      %v6030 = vadd.f32 %v5758, %v5968
      %v6031 = vadd.f32 %v5759, %v5973
      %v6032 = vadd.f32 %v5760, %v5976
      %v6033 = vadd.f32 %v5761, %v5981
      %v6034 = vadd.f32 %v5762, %v5984
      %v6035 = vadd.f32 %v5763, %v5989
      %v6036 = vadd.f32 %v5764, %v5992
      %v6037 = vadd.f32 %v5765, %v5997
      %v6038 = vadd.f32 %v5766, %v6000
      %6039 = vst.msk [vmem:[#allocation2] sm:$0xff] %vm339, %v6003
      %6040 = vst.msk [vmem:[#allocation2 + $0x8] sm:$0xff] %vm339, %v6004
      %6041 = vst.msk [vmem:[#allocation2 + $0x10] sm:$0xff] %vm339, %v6005
      %6042 = vst.msk [vmem:[#allocation2 + $0x18] sm:$0xff] %vm339, %v6006
      %6043 = vst.msk [vmem:[#allocation2 + $0x20] sm:$0xff] %vm339, %v6007
      %6044 = vst.msk [vmem:[#allocation2 + $0x28] sm:$0xff] %vm339, %v6008
      %6045 = vst.msk [vmem:[#allocation2 + $0x30] sm:$0xff] %vm339, %v6009
      %6046 = vst.msk [vmem:[#allocation2 + $0x38] sm:$0xff] %vm339, %v6010
      %6047 = vst.msk [vmem:[#allocation2 + $0x40] sm:$0xff] %vm339, %v6011
      %6048 = vst.msk [vmem:[#allocation2 + $0x48] sm:$0xff] %vm339, %v6012
      %6049 = vst.msk [vmem:[#allocation2 + $0x50] sm:$0xff] %vm339, %v6013
      %6050 = vst.msk [vmem:[#allocation2 + $0x58] sm:$0xff] %vm339, %v6014
      %6051 = vst.msk [vmem:[#allocation2 + $0x60] sm:$0xff] %vm339, %v6015
      %6052 = vst.msk [vmem:[#allocation2 + $0x68] sm:$0xff] %vm339, %v6016
      %6053 = vst.msk [vmem:[#allocation2 + $0x70] sm:$0xff] %vm339, %v6017
      %6054 = vst.msk [vmem:[#allocation2 + $0x78] sm:$0xff] %vm339, %v6018
      %6055 = vst.msk [vmem:[#allocation2 + $0x80] sm:$0xff] %vm339, %v6019
      %6056 = vst.msk [vmem:[#allocation2 + $0x88] sm:$0xff] %vm339, %v6020
      %6057 = vst.msk [vmem:[#allocation2 + $0x90] sm:$0xff] %vm339, %v6021
      %6058 = vst.msk [vmem:[#allocation2 + $0x98] sm:$0xff] %vm339, %v6022
      %6059 = vst.msk [vmem:[#allocation2 + $0xa0] sm:$0xff] %vm339, %v6023
      %6060 = vst.msk [vmem:[#allocation2 + $0xa8] sm:$0xff] %vm339, %v6024
      %6061 = vst.msk [vmem:[#allocation2 + $0xb0] sm:$0xff] %vm339, %v6025
      %6062 = vst.msk [vmem:[#allocation2 + $0xb8] sm:$0xff] %vm339, %v6026
      %6063 = vst.msk [vmem:[#allocation2 + $0xc0] sm:$0xff] %vm339, %v6027
      %6064 = vst.msk [vmem:[#allocation2 + $0xc8] sm:$0xff] %vm339, %v6028
      %6065 = vst.msk [vmem:[#allocation2 + $0xd0] sm:$0xff] %vm339, %v6029
      %6066 = vst.msk [vmem:[#allocation2 + $0xd8] sm:$0xff] %vm339, %v6030
      %6067 = vst.msk [vmem:[#allocation2 + $0xe0] sm:$0xff] %vm339, %v6031
      %6068 = vst.msk [vmem:[#allocation2 + $0xe8] sm:$0xff] %vm339, %v6032
      %6069 = vst.msk [vmem:[#allocation2 + $0xf0] sm:$0xff] %vm339, %v6033
      %6070 = vst.msk [vmem:[#allocation2 + $0xf8] sm:$0xff] %vm339, %v6034
      %6071 = vst.msk [vmem:[#allocation2 + $0x100] sm:$0xff] %vm339, %v6035
      %6072 = vst.msk [vmem:[#allocation2 + $0x108] sm:$0xff] %vm339, %v6036
      %6073 = vst.msk [vmem:[#allocation2 + $0x110] sm:$0xff] %vm339, %v6037
      %6074 = vst.msk [vmem:[#allocation2 + $0x118] sm:$0xff] %vm339, %v6038
      %v6075 = vld [vmem:[#allocation3 + $0x13] sm:$0xff]
      %v6076 = vld [vmem:[#allocation3 + $0x1b] sm:$0xff]
      %v6077 = vld [vmem:[#allocation3 + $0x23] sm:$0xff]
      %v6078 = vld [vmem:[#allocation3 + $0x2b] sm:$0xff]
      %v6079 = vld [vmem:[#allocation3 + $0x33] sm:$0xff]
      %v6080 = vld [vmem:[#allocation3 + $0x3b] sm:$0xff]
      %v6081 = vld [vmem:[#allocation3 + $0x43] sm:$0xff]
      %v6082 = vld [vmem:[#allocation3 + $0x4b] sm:$0xff]
      %v6083 = vld [vmem:[#allocation3 + $0x53] sm:$0xff]
      %v6084 = vld [vmem:[#allocation3 + $0x5b] sm:$0xff]
      %v6085 = vld [vmem:[#allocation3 + $0x63] sm:$0xff]
      %v6086 = vld [vmem:[#allocation3 + $0x6b] sm:$0xff]
      %v6087 = vld [vmem:[#allocation3 + $0x73] sm:$0xff]
      %v6088 = vld [vmem:[#allocation3 + $0x7b] sm:$0xff]
      %v6089 = vld [vmem:[#allocation3 + $0x83] sm:$0xff]
      %v6090 = vld [vmem:[#allocation3 + $0x8b] sm:$0xff]
      %v6091 = vld [vmem:[#allocation3 + $0x93] sm:$0xff]
      %v6092 = vld [vmem:[#allocation3 + $0x9b] sm:$0xff]
      %v6093 = vld [vmem:[#allocation3 + $0xa3] sm:$0xff]
      %v6094 = vld [vmem:[#allocation3 + $0xab] sm:$0xff]
      %v6095 = vld [vmem:[#allocation3 + $0xb3] sm:$0xff]
      %v6096 = vld [vmem:[#allocation3 + $0xbb] sm:$0xff]
      %v6097 = vld [vmem:[#allocation3 + $0xc3] sm:$0xff]
      %v6098 = vld [vmem:[#allocation3 + $0xcb] sm:$0xff]
      %v6099 = vld [vmem:[#allocation3 + $0xd3] sm:$0xff]
      %v6100 = vld [vmem:[#allocation3 + $0xdb] sm:$0xff]
      %v6101 = vld [vmem:[#allocation3 + $0xe3] sm:$0xff]
      %v6102 = vld [vmem:[#allocation3 + $0xeb] sm:$0xff]
      %v6103 = vld [vmem:[#allocation3 + $0xf3] sm:$0xff]
      %v6104 = vld [vmem:[#allocation3 + $0xfb] sm:$0xff]
      %v6105 = vld [vmem:[#allocation3 + $0x103] sm:$0xff]
      %v6106 = vld [vmem:[#allocation3 + $0x10b] sm:$0xff]
      %v6107 = vld [vmem:[#allocation3 + $0x113] sm:$0xff]
      %v6108 = vld [vmem:[#allocation3 + $0x11b] sm:$0xff]
      %v6109 = vld [vmem:[#allocation3 + $0x123] sm:$0xff]
      %v6110 = vld [vmem:[#allocation3 + $0x12b] sm:$0xff]
      %v6111 = vpack.c.bf16 %v6076, %v6075
      %v6112 = vpack.c.bf16 %v6078, %v6077
      %v6113 = vpack.c.bf16 %v6080, %v6079
      %v6114 = vpack.c.bf16 %v6082, %v6081
      %v6115 = vpack.c.bf16 %v6084, %v6083
      %v6116 = vpack.c.bf16 %v6086, %v6085
      %v6117 = vpack.c.bf16 %v6088, %v6087
      %v6118 = vpack.c.bf16 %v6090, %v6089
      %v6119 = vpack.c.bf16 %v6092, %v6091
      %v6120 = vpack.c.bf16 %v6094, %v6093
      %v6121 = vpack.c.bf16 %v6096, %v6095
      %v6122 = vpack.c.bf16 %v6098, %v6097
      %v6123 = vpack.c.bf16 %v6100, %v6099
      %v6124 = vpack.c.bf16 %v6102, %v6101
      %v6125 = vpack.c.bf16 %v6104, %v6103
      %v6126 = vpack.c.bf16 %v6106, %v6105
      %v6127 = vpack.c.bf16 %v6108, %v6107
      %v6128 = vpack.c.bf16 %v6110, %v6109
      %v6129 = vld [vmem:[#allocation2] sm:$0xff]
      %v6130 = vld [vmem:[#allocation2 + $0x8] sm:$0xff]
      %v6131 = vld [vmem:[#allocation2 + $0x10] sm:$0xff]
      %v6132 = vld [vmem:[#allocation2 + $0x18] sm:$0xff]
      %v6133 = vld [vmem:[#allocation2 + $0x20] sm:$0xff]
      %v6134 = vld [vmem:[#allocation2 + $0x28] sm:$0xff]
      %v6135 = vld [vmem:[#allocation2 + $0x30] sm:$0xff]
      %v6136 = vld [vmem:[#allocation2 + $0x38] sm:$0xff]
      %v6137 = vld [vmem:[#allocation2 + $0x40] sm:$0xff]
      %v6138 = vld [vmem:[#allocation2 + $0x48] sm:$0xff]
      %v6139 = vld [vmem:[#allocation2 + $0x50] sm:$0xff]
      %v6140 = vld [vmem:[#allocation2 + $0x58] sm:$0xff]
      %v6141 = vld [vmem:[#allocation2 + $0x60] sm:$0xff]
      %v6142 = vld [vmem:[#allocation2 + $0x68] sm:$0xff]
      %v6143 = vld [vmem:[#allocation2 + $0x70] sm:$0xff]
      %v6144 = vld [vmem:[#allocation2 + $0x78] sm:$0xff]
      %v6145 = vld [vmem:[#allocation2 + $0x80] sm:$0xff]
      %v6146 = vld [vmem:[#allocation2 + $0x88] sm:$0xff]
      %v6147 = vld [vmem:[#allocation2 + $0x90] sm:$0xff]
      %v6148 = vld [vmem:[#allocation2 + $0x98] sm:$0xff]
      %v6149 = vld [vmem:[#allocation2 + $0xa0] sm:$0xff]
      %v6150 = vld [vmem:[#allocation2 + $0xa8] sm:$0xff]
      %v6151 = vld [vmem:[#allocation2 + $0xb0] sm:$0xff]
      %v6152 = vld [vmem:[#allocation2 + $0xb8] sm:$0xff]
      %v6153 = vld [vmem:[#allocation2 + $0xc0] sm:$0xff]
      %v6154 = vld [vmem:[#allocation2 + $0xc8] sm:$0xff]
      %v6155 = vld [vmem:[#allocation2 + $0xd0] sm:$0xff]
      %v6156 = vld [vmem:[#allocation2 + $0xd8] sm:$0xff]
      %v6157 = vld [vmem:[#allocation2 + $0xe0] sm:$0xff]
      %v6158 = vld [vmem:[#allocation2 + $0xe8] sm:$0xff]
      %v6159 = vld [vmem:[#allocation2 + $0xf0] sm:$0xff]
      %v6160 = vld [vmem:[#allocation2 + $0xf8] sm:$0xff]
      %v6161 = vld [vmem:[#allocation2 + $0x100] sm:$0xff]
      %v6162 = vld [vmem:[#allocation2 + $0x108] sm:$0xff]
      %v6163 = vld [vmem:[#allocation2 + $0x110] sm:$0xff]
      %v6164 = vld [vmem:[#allocation2 + $0x118] sm:$0xff]
      %s6165 = scalar_lea.vmem %s3, 8
      %v6166 = vld [vmem:[%s6165] sm:$0x3]
      %v6168 = vsel %vm339, %v6111, 0
      %v6171 = vsel %vm339, %v6112, 0
      %v6174 = vsel %vm339, %v6113, 0
      %v6177 = vsel %vm339, %v6114, 0
      %v6180 = vsel %vm339, %v6115, 0
      %v6183 = vsel %vm339, %v6116, 0
      %v6186 = vsel %vm339, %v6117, 0
      %v6189 = vsel %vm339, %v6118, 0
      %v6192 = vsel %vm339, %v6119, 0
      %v6195 = vsel %vm339, %v6120, 0
      %v6198 = vsel %vm339, %v6121, 0
      %v6201 = vsel %vm339, %v6122, 0
      %v6204 = vsel %vm339, %v6123, 0
      %v6207 = vsel %vm339, %v6124, 0
      %v6210 = vsel %vm339, %v6125, 0
      %v6213 = vsel %vm339, %v6126, 0
      %v6216 = vsel %vm339, %v6127, 0
      %v6219 = vsel %vm339, %v6128, 0
      %v6222 = vsel %vm565, %v6166, 0
      %6224 = vmatprep.subr.bf16.mxu0 0
      %6225 = vmatpush1.bf16.msra.mxu0 0
      %6226 = vmatprep.subr.bf16.mxu0 0
      %6227 = vmatpush1.bf16.msra.mxu0 0
      %6228 = vmatprep.subr.bf16.mxu0 0
      %6229 = vmatpush1.bf16.msra.mxu0 0
      %6230 = vmatprep.subr.bf16.mxu0 0
      %6231 = vmatpush1.bf16.msra.mxu0 0
      %6232 = vmatprep.subr.bf16.mxu0 0
      %6233 = vmatpush1.bf16.msra.mxu0 0
      %6234 = vmatprep.subr.bf16.mxu0 0
      %6235 = vmatpush1.bf16.msra.mxu0 0
      %6236 = vmatprep.subr.bf16.mxu0 0
      %6237 = vmatpush1.bf16.msra.mxu0 0
      %6238 = vmatprep.subr.bf16.mxu0 0
      %6239 = vmatpush1.bf16.msra.mxu0 %v6222
      %6240 = vmatprep.subr.bf16.mxu0 0
      %6241 = vmatpush2.bf16.msra.mxu0 0
      %6242 = vmatprep.subr.bf16.mxu0 0
      %6243 = vmatpush2.bf16.msra.mxu0 0
      %6244 = vmatprep.subr.bf16.mxu0 0
      %6245 = vmatpush2.bf16.msra.mxu0 0
      %6246 = vmatprep.subr.bf16.mxu0 0
      %6247 = vmatpush2.bf16.msra.mxu0 0
      %6248 = vmatprep.subr.bf16.mxu0 0
      %6249 = vmatpush2.bf16.msra.mxu0 0
      %6250 = vmatprep.subr.bf16.mxu0 0
      %6251 = vmatpush2.bf16.msra.mxu0 0
      %6252 = vmatprep.subr.bf16.mxu0 0
      %6253 = vmatpush2.bf16.msra.mxu0 0
      %6254 = vmatprep.subr.bf16.mxu0 0
      %6255 = vmatpush2.bf16.msra.mxu0 0
      %6256 = vmatprep.mubr.bf16.mxu0 0
      %6257 = vmatmul.mubr.bf16.gmra.mxu0 %v6168
      %v6258 = vpop.f32.mrf.mxu0
      %v6259 = vadd.f32 0.0, %v6258
      %v6260 = vpop.f32.mrf.mxu0
      %v6261 = vpop.f32.mrf.mxu0
      %v6262 = vadd.f32 0.0, %v6261
      %v6263 = vpop.f32.mrf.mxu0
      %6264 = vmatprep.mubr.bf16.mxu0 0
      %6265 = vmatmul.mubr.bf16.gmra.mxu0 %v6171
      %v6266 = vpop.f32.mrf.mxu0
      %v6267 = vadd.f32 0.0, %v6266
      %v6268 = vpop.f32.mrf.mxu0
      %v6269 = vpop.f32.mrf.mxu0
      %v6270 = vadd.f32 0.0, %v6269
      %v6271 = vpop.f32.mrf.mxu0
      %6272 = vmatprep.mubr.bf16.mxu0 0
      %6273 = vmatmul.mubr.bf16.gmra.mxu0 %v6174
      %v6274 = vpop.f32.mrf.mxu0
      %v6275 = vadd.f32 0.0, %v6274
      %v6276 = vpop.f32.mrf.mxu0
      %v6277 = vpop.f32.mrf.mxu0
      %v6278 = vadd.f32 0.0, %v6277
      %v6279 = vpop.f32.mrf.mxu0
      %6280 = vmatprep.mubr.bf16.mxu0 0
      %6281 = vmatmul.mubr.bf16.gmra.mxu0 %v6177
      %v6282 = vpop.f32.mrf.mxu0
      %v6283 = vadd.f32 0.0, %v6282
      %v6284 = vpop.f32.mrf.mxu0
      %v6285 = vpop.f32.mrf.mxu0
      %v6286 = vadd.f32 0.0, %v6285
      %v6287 = vpop.f32.mrf.mxu0
      %6288 = vmatprep.mubr.bf16.mxu0 0
      %6289 = vmatmul.mubr.bf16.gmra.mxu0 %v6180
      %v6290 = vpop.f32.mrf.mxu0
      %v6291 = vadd.f32 0.0, %v6290
      %v6292 = vpop.f32.mrf.mxu0
      %v6293 = vpop.f32.mrf.mxu0
      %v6294 = vadd.f32 0.0, %v6293
      %v6295 = vpop.f32.mrf.mxu0
      %6296 = vmatprep.mubr.bf16.mxu0 0
      %6297 = vmatmul.mubr.bf16.gmra.mxu0 %v6183
      %v6298 = vpop.f32.mrf.mxu0
      %v6299 = vadd.f32 0.0, %v6298
      %v6300 = vpop.f32.mrf.mxu0
      %v6301 = vpop.f32.mrf.mxu0
      %v6302 = vadd.f32 0.0, %v6301
      %v6303 = vpop.f32.mrf.mxu0
      %6304 = vmatprep.mubr.bf16.mxu0 0
      %6305 = vmatmul.mubr.bf16.gmra.mxu0 %v6186
      %v6306 = vpop.f32.mrf.mxu0
      %v6307 = vadd.f32 0.0, %v6306
      %v6308 = vpop.f32.mrf.mxu0
      %v6309 = vpop.f32.mrf.mxu0
      %v6310 = vadd.f32 0.0, %v6309
      %v6311 = vpop.f32.mrf.mxu0
      %6312 = vmatprep.mubr.bf16.mxu0 0
      %6313 = vmatmul.mubr.bf16.gmra.mxu0 %v6189
      %v6314 = vpop.f32.mrf.mxu0
      %v6315 = vadd.f32 0.0, %v6314
      %v6316 = vpop.f32.mrf.mxu0
      %v6317 = vpop.f32.mrf.mxu0
      %v6318 = vadd.f32 0.0, %v6317
      %v6319 = vpop.f32.mrf.mxu0
      %6320 = vmatprep.mubr.bf16.mxu0 0
      %6321 = vmatmul.mubr.bf16.gmra.mxu0 %v6192
      %v6322 = vpop.f32.mrf.mxu0
      %v6323 = vadd.f32 0.0, %v6322
      %v6324 = vpop.f32.mrf.mxu0
      %v6325 = vpop.f32.mrf.mxu0
      %v6326 = vadd.f32 0.0, %v6325
      %v6327 = vpop.f32.mrf.mxu0
      %6328 = vmatprep.mubr.bf16.mxu0 0
      %6329 = vmatmul.mubr.bf16.gmra.mxu0 %v6195
      %v6330 = vpop.f32.mrf.mxu0
      %v6331 = vadd.f32 0.0, %v6330
      %v6332 = vpop.f32.mrf.mxu0
      %v6333 = vpop.f32.mrf.mxu0
      %v6334 = vadd.f32 0.0, %v6333
      %v6335 = vpop.f32.mrf.mxu0
      %6336 = vmatprep.mubr.bf16.mxu0 0
      %6337 = vmatmul.mubr.bf16.gmra.mxu0 %v6198
      %v6338 = vpop.f32.mrf.mxu0
      %v6339 = vadd.f32 0.0, %v6338
      %v6340 = vpop.f32.mrf.mxu0
      %v6341 = vpop.f32.mrf.mxu0
      %v6342 = vadd.f32 0.0, %v6341
      %v6343 = vpop.f32.mrf.mxu0
      %6344 = vmatprep.mubr.bf16.mxu0 0
      %6345 = vmatmul.mubr.bf16.gmra.mxu0 %v6201
      %v6346 = vpop.f32.mrf.mxu0
      %v6347 = vadd.f32 0.0, %v6346
      %v6348 = vpop.f32.mrf.mxu0
      %v6349 = vpop.f32.mrf.mxu0
      %v6350 = vadd.f32 0.0, %v6349
      %v6351 = vpop.f32.mrf.mxu0
      %6352 = vmatprep.mubr.bf16.mxu0 0
      %6353 = vmatmul.mubr.bf16.gmra.mxu0 %v6204
      %v6354 = vpop.f32.mrf.mxu0
      %v6355 = vadd.f32 0.0, %v6354
      %v6356 = vpop.f32.mrf.mxu0
      %v6357 = vpop.f32.mrf.mxu0
      %v6358 = vadd.f32 0.0, %v6357
      %v6359 = vpop.f32.mrf.mxu0
      %6360 = vmatprep.mubr.bf16.mxu0 0
      %6361 = vmatmul.mubr.bf16.gmra.mxu0 %v6207
      %v6362 = vpop.f32.mrf.mxu0
      %v6363 = vadd.f32 0.0, %v6362
      %v6364 = vpop.f32.mrf.mxu0
      %v6365 = vpop.f32.mrf.mxu0
      %v6366 = vadd.f32 0.0, %v6365
      %v6367 = vpop.f32.mrf.mxu0
      %6368 = vmatprep.mubr.bf16.mxu0 0
      %6369 = vmatmul.mubr.bf16.gmra.mxu0 %v6210
      %v6370 = vpop.f32.mrf.mxu0
      %v6371 = vadd.f32 0.0, %v6370
      %v6372 = vpop.f32.mrf.mxu0
      %v6373 = vpop.f32.mrf.mxu0
      %v6374 = vadd.f32 0.0, %v6373
      %v6375 = vpop.f32.mrf.mxu0
      %6376 = vmatprep.mubr.bf16.mxu0 0
      %6377 = vmatmul.mubr.bf16.gmra.mxu0 %v6213
      %v6378 = vpop.f32.mrf.mxu0
      %v6379 = vadd.f32 0.0, %v6378
      %v6380 = vpop.f32.mrf.mxu0
      %v6381 = vpop.f32.mrf.mxu0
      %v6382 = vadd.f32 0.0, %v6381
      %v6383 = vpop.f32.mrf.mxu0
      %6384 = vmatprep.mubr.bf16.mxu0 0
      %6385 = vmatmul.mubr.bf16.gmra.mxu0 %v6216
      %v6386 = vpop.f32.mrf.mxu0
      %v6387 = vadd.f32 0.0, %v6386
      %v6388 = vpop.f32.mrf.mxu0
      %v6389 = vpop.f32.mrf.mxu0
      %v6390 = vadd.f32 0.0, %v6389
      %v6391 = vpop.f32.mrf.mxu0
      %6392 = vmatprep.mubr.bf16.mxu0 0
      %6393 = vmatmul.mubr.bf16.gmra.mxu0 %v6219
      %v6394 = vpop.f32.mrf.mxu0
      %v6395 = vadd.f32 0.0, %v6394
      %v6396 = vpop.f32.mrf.mxu0
      %v6397 = vpop.f32.mrf.mxu0
      %v6398 = vadd.f32 0.0, %v6397
      %v6399 = vpop.f32.mrf.mxu0
      %6400 = vdwg.mxu0
      %v6401 = vadd.f32 %v6129, %v6259
      %v6402 = vadd.f32 %v6130, %v6262
      %v6403 = vadd.f32 %v6131, %v6267
      %v6404 = vadd.f32 %v6132, %v6270
      %v6405 = vadd.f32 %v6133, %v6275
      %v6406 = vadd.f32 %v6134, %v6278
      %v6407 = vadd.f32 %v6135, %v6283
      %v6408 = vadd.f32 %v6136, %v6286
      %v6409 = vadd.f32 %v6137, %v6291
      %v6410 = vadd.f32 %v6138, %v6294
      %v6411 = vadd.f32 %v6139, %v6299
      %v6412 = vadd.f32 %v6140, %v6302
      %v6413 = vadd.f32 %v6141, %v6307
      %v6414 = vadd.f32 %v6142, %v6310
      %v6415 = vadd.f32 %v6143, %v6315
      %v6416 = vadd.f32 %v6144, %v6318
      %v6417 = vadd.f32 %v6145, %v6323
      %v6418 = vadd.f32 %v6146, %v6326
      %v6419 = vadd.f32 %v6147, %v6331
      %v6420 = vadd.f32 %v6148, %v6334
      %v6421 = vadd.f32 %v6149, %v6339
      %v6422 = vadd.f32 %v6150, %v6342
      %v6423 = vadd.f32 %v6151, %v6347
      %v6424 = vadd.f32 %v6152, %v6350
      %v6425 = vadd.f32 %v6153, %v6355
      %v6426 = vadd.f32 %v6154, %v6358
      %v6427 = vadd.f32 %v6155, %v6363
      %v6428 = vadd.f32 %v6156, %v6366
      %v6429 = vadd.f32 %v6157, %v6371
      %v6430 = vadd.f32 %v6158, %v6374
      %v6431 = vadd.f32 %v6159, %v6379
      %v6432 = vadd.f32 %v6160, %v6382
      %v6433 = vadd.f32 %v6161, %v6387
      %v6434 = vadd.f32 %v6162, %v6390
      %v6435 = vadd.f32 %v6163, %v6395
      %v6436 = vadd.f32 %v6164, %v6398
      %6437 = vst.msk [vmem:[#allocation2] sm:$0xff] %vm339, %v6401
      %6438 = vst.msk [vmem:[#allocation2 + $0x8] sm:$0xff] %vm339, %v6402
      %6439 = vst.msk [vmem:[#allocation2 + $0x10] sm:$0xff] %vm339, %v6403
      %6440 = vst.msk [vmem:[#allocation2 + $0x18] sm:$0xff] %vm339, %v6404
      %6441 = vst.msk [vmem:[#allocation2 + $0x20] sm:$0xff] %vm339, %v6405
      %6442 = vst.msk [vmem:[#allocation2 + $0x28] sm:$0xff] %vm339, %v6406
      %6443 = vst.msk [vmem:[#allocation2 + $0x30] sm:$0xff] %vm339, %v6407
      %6444 = vst.msk [vmem:[#allocation2 + $0x38] sm:$0xff] %vm339, %v6408
      %6445 = vst.msk [vmem:[#allocation2 + $0x40] sm:$0xff] %vm339, %v6409
      %6446 = vst.msk [vmem:[#allocation2 + $0x48] sm:$0xff] %vm339, %v6410
      %6447 = vst.msk [vmem:[#allocation2 + $0x50] sm:$0xff] %vm339, %v6411
      %6448 = vst.msk [vmem:[#allocation2 + $0x58] sm:$0xff] %vm339, %v6412
      %6449 = vst.msk [vmem:[#allocation2 + $0x60] sm:$0xff] %vm339, %v6413
      %6450 = vst.msk [vmem:[#allocation2 + $0x68] sm:$0xff] %vm339, %v6414
      %6451 = vst.msk [vmem:[#allocation2 + $0x70] sm:$0xff] %vm339, %v6415
      %6452 = vst.msk [vmem:[#allocation2 + $0x78] sm:$0xff] %vm339, %v6416
      %6453 = vst.msk [vmem:[#allocation2 + $0x80] sm:$0xff] %vm339, %v6417
      %6454 = vst.msk [vmem:[#allocation2 + $0x88] sm:$0xff] %vm339, %v6418
      %6455 = vst.msk [vmem:[#allocation2 + $0x90] sm:$0xff] %vm339, %v6419
      %6456 = vst.msk [vmem:[#allocation2 + $0x98] sm:$0xff] %vm339, %v6420
      %6457 = vst.msk [vmem:[#allocation2 + $0xa0] sm:$0xff] %vm339, %v6421
      %6458 = vst.msk [vmem:[#allocation2 + $0xa8] sm:$0xff] %vm339, %v6422
      %6459 = vst.msk [vmem:[#allocation2 + $0xb0] sm:$0xff] %vm339, %v6423
      %6460 = vst.msk [vmem:[#allocation2 + $0xb8] sm:$0xff] %vm339, %v6424
      %6461 = vst.msk [vmem:[#allocation2 + $0xc0] sm:$0xff] %vm339, %v6425
      %6462 = vst.msk [vmem:[#allocation2 + $0xc8] sm:$0xff] %vm339, %v6426
      %6463 = vst.msk [vmem:[#allocation2 + $0xd0] sm:$0xff] %vm339, %v6427
      %6464 = vst.msk [vmem:[#allocation2 + $0xd8] sm:$0xff] %vm339, %v6428
      %6465 = vst.msk [vmem:[#allocation2 + $0xe0] sm:$0xff] %vm339, %v6429
      %6466 = vst.msk [vmem:[#allocation2 + $0xe8] sm:$0xff] %vm339, %v6430
      %6467 = vst.msk [vmem:[#allocation2 + $0xf0] sm:$0xff] %vm339, %v6431
      %6468 = vst.msk [vmem:[#allocation2 + $0xf8] sm:$0xff] %vm339, %v6432
      %6469 = vst.msk [vmem:[#allocation2 + $0x100] sm:$0xff] %vm339, %v6433
      %6470 = vst.msk [vmem:[#allocation2 + $0x108] sm:$0xff] %vm339, %v6434
      %6471 = vst.msk [vmem:[#allocation2 + $0x110] sm:$0xff] %vm339, %v6435
      %6472 = vst.msk [vmem:[#allocation2 + $0x118] sm:$0xff] %vm339, %v6436
      %v6473 = vld [vmem:[#allocation3 + $0x14] sm:$0xff]
      %v6474 = vld [vmem:[#allocation3 + $0x1c] sm:$0xff]
      %v6475 = vld [vmem:[#allocation3 + $0x24] sm:$0xff]
      %v6476 = vld [vmem:[#allocation3 + $0x2c] sm:$0xff]
      %v6477 = vld [vmem:[#allocation3 + $0x34] sm:$0xff]
      %v6478 = vld [vmem:[#allocation3 + $0x3c] sm:$0xff]
      %v6479 = vld [vmem:[#allocation3 + $0x44] sm:$0xff]
      %v6480 = vld [vmem:[#allocation3 + $0x4c] sm:$0xff]
      %v6481 = vld [vmem:[#allocation3 + $0x54] sm:$0xff]
      %v6482 = vld [vmem:[#allocation3 + $0x5c] sm:$0xff]
      %v6483 = vld [vmem:[#allocation3 + $0x64] sm:$0xff]
      %v6484 = vld [vmem:[#allocation3 + $0x6c] sm:$0xff]
      %v6485 = vld [vmem:[#allocation3 + $0x74] sm:$0xff]
      %v6486 = vld [vmem:[#allocation3 + $0x7c] sm:$0xff]
      %v6487 = vld [vmem:[#allocation3 + $0x84] sm:$0xff]
      %v6488 = vld [vmem:[#allocation3 + $0x8c] sm:$0xff]
      %v6489 = vld [vmem:[#allocation3 + $0x94] sm:$0xff]
      %v6490 = vld [vmem:[#allocation3 + $0x9c] sm:$0xff]
      %v6491 = vld [vmem:[#allocation3 + $0xa4] sm:$0xff]
      %v6492 = vld [vmem:[#allocation3 + $0xac] sm:$0xff]
      %v6493 = vld [vmem:[#allocation3 + $0xb4] sm:$0xff]
      %v6494 = vld [vmem:[#allocation3 + $0xbc] sm:$0xff]
      %v6495 = vld [vmem:[#allocation3 + $0xc4] sm:$0xff]
      %v6496 = vld [vmem:[#allocation3 + $0xcc] sm:$0xff]
      %v6497 = vld [vmem:[#allocation3 + $0xd4] sm:$0xff]
      %v6498 = vld [vmem:[#allocation3 + $0xdc] sm:$0xff]
      %v6499 = vld [vmem:[#allocation3 + $0xe4] sm:$0xff]
      %v6500 = vld [vmem:[#allocation3 + $0xec] sm:$0xff]
      %v6501 = vld [vmem:[#allocation3 + $0xf4] sm:$0xff]
      %v6502 = vld [vmem:[#allocation3 + $0xfc] sm:$0xff]
      %v6503 = vld [vmem:[#allocation3 + $0x104] sm:$0xff]
      %v6504 = vld [vmem:[#allocation3 + $0x10c] sm:$0xff]
      %v6505 = vld [vmem:[#allocation3 + $0x114] sm:$0xff]
      %v6506 = vld [vmem:[#allocation3 + $0x11c] sm:$0xff]
      %v6507 = vld [vmem:[#allocation3 + $0x124] sm:$0xff]
      %v6508 = vld [vmem:[#allocation3 + $0x12c] sm:$0xff]
      %v6509 = vpack.c.bf16 %v6474, %v6473
      %v6510 = vpack.c.bf16 %v6476, %v6475
      %v6511 = vpack.c.bf16 %v6478, %v6477
      %v6512 = vpack.c.bf16 %v6480, %v6479
      %v6513 = vpack.c.bf16 %v6482, %v6481
      %v6514 = vpack.c.bf16 %v6484, %v6483
      %v6515 = vpack.c.bf16 %v6486, %v6485
      %v6516 = vpack.c.bf16 %v6488, %v6487
      %v6517 = vpack.c.bf16 %v6490, %v6489
      %v6518 = vpack.c.bf16 %v6492, %v6491
      %v6519 = vpack.c.bf16 %v6494, %v6493
      %v6520 = vpack.c.bf16 %v6496, %v6495
      %v6521 = vpack.c.bf16 %v6498, %v6497
      %v6522 = vpack.c.bf16 %v6500, %v6499
      %v6523 = vpack.c.bf16 %v6502, %v6501
      %v6524 = vpack.c.bf16 %v6504, %v6503
      %v6525 = vpack.c.bf16 %v6506, %v6505
      %v6526 = vpack.c.bf16 %v6508, %v6507
      %v6527 = vld [vmem:[#allocation2] sm:$0xff]
      %v6528 = vld [vmem:[#allocation2 + $0x8] sm:$0xff]
      %v6529 = vld [vmem:[#allocation2 + $0x10] sm:$0xff]
      %v6530 = vld [vmem:[#allocation2 + $0x18] sm:$0xff]
      %v6531 = vld [vmem:[#allocation2 + $0x20] sm:$0xff]
      %v6532 = vld [vmem:[#allocation2 + $0x28] sm:$0xff]
      %v6533 = vld [vmem:[#allocation2 + $0x30] sm:$0xff]
      %v6534 = vld [vmem:[#allocation2 + $0x38] sm:$0xff]
      %v6535 = vld [vmem:[#allocation2 + $0x40] sm:$0xff]
      %v6536 = vld [vmem:[#allocation2 + $0x48] sm:$0xff]
      %v6537 = vld [vmem:[#allocation2 + $0x50] sm:$0xff]
      %v6538 = vld [vmem:[#allocation2 + $0x58] sm:$0xff]
      %v6539 = vld [vmem:[#allocation2 + $0x60] sm:$0xff]
      %v6540 = vld [vmem:[#allocation2 + $0x68] sm:$0xff]
      %v6541 = vld [vmem:[#allocation2 + $0x70] sm:$0xff]
      %v6542 = vld [vmem:[#allocation2 + $0x78] sm:$0xff]
      %v6543 = vld [vmem:[#allocation2 + $0x80] sm:$0xff]
      %v6544 = vld [vmem:[#allocation2 + $0x88] sm:$0xff]
      %v6545 = vld [vmem:[#allocation2 + $0x90] sm:$0xff]
      %v6546 = vld [vmem:[#allocation2 + $0x98] sm:$0xff]
      %v6547 = vld [vmem:[#allocation2 + $0xa0] sm:$0xff]
      %v6548 = vld [vmem:[#allocation2 + $0xa8] sm:$0xff]
      %v6549 = vld [vmem:[#allocation2 + $0xb0] sm:$0xff]
      %v6550 = vld [vmem:[#allocation2 + $0xb8] sm:$0xff]
      %v6551 = vld [vmem:[#allocation2 + $0xc0] sm:$0xff]
      %v6552 = vld [vmem:[#allocation2 + $0xc8] sm:$0xff]
      %v6553 = vld [vmem:[#allocation2 + $0xd0] sm:$0xff]
      %v6554 = vld [vmem:[#allocation2 + $0xd8] sm:$0xff]
      %v6555 = vld [vmem:[#allocation2 + $0xe0] sm:$0xff]
      %v6556 = vld [vmem:[#allocation2 + $0xe8] sm:$0xff]
      %v6557 = vld [vmem:[#allocation2 + $0xf0] sm:$0xff]
      %v6558 = vld [vmem:[#allocation2 + $0xf8] sm:$0xff]
      %v6559 = vld [vmem:[#allocation2 + $0x100] sm:$0xff]
      %v6560 = vld [vmem:[#allocation2 + $0x108] sm:$0xff]
      %v6561 = vld [vmem:[#allocation2 + $0x110] sm:$0xff]
      %v6562 = vld [vmem:[#allocation2 + $0x118] sm:$0xff]
      %s6563 = scalar_lea.vmem %s3, 10
      %v6564 = vld [vmem:[%s6563] sm:$0x3]
      %v6566 = vsel %vm339, %v6509, 0
      %v6569 = vsel %vm339, %v6510, 0
      %v6572 = vsel %vm339, %v6511, 0
      %v6575 = vsel %vm339, %v6512, 0
      %v6578 = vsel %vm339, %v6513, 0
      %v6581 = vsel %vm339, %v6514, 0
      %v6584 = vsel %vm339, %v6515, 0
      %v6587 = vsel %vm339, %v6516, 0
      %v6590 = vsel %vm339, %v6517, 0
      %v6593 = vsel %vm339, %v6518, 0
      %v6596 = vsel %vm339, %v6519, 0
      %v6599 = vsel %vm339, %v6520, 0
      %v6602 = vsel %vm339, %v6521, 0
      %v6605 = vsel %vm339, %v6522, 0
      %v6608 = vsel %vm339, %v6523, 0
      %v6611 = vsel %vm339, %v6524, 0
      %v6614 = vsel %vm339, %v6525, 0
      %v6617 = vsel %vm339, %v6526, 0
      %v6620 = vsel %vm565, %v6564, 0
      %6622 = vmatprep.subr.bf16.mxu0 0
      %6623 = vmatpush1.bf16.msra.mxu0 0
      %6624 = vmatprep.subr.bf16.mxu0 0
      %6625 = vmatpush1.bf16.msra.mxu0 0
      %6626 = vmatprep.subr.bf16.mxu0 0
      %6627 = vmatpush1.bf16.msra.mxu0 0
      %6628 = vmatprep.subr.bf16.mxu0 0
      %6629 = vmatpush1.bf16.msra.mxu0 0
      %6630 = vmatprep.subr.bf16.mxu0 0
      %6631 = vmatpush1.bf16.msra.mxu0 0
      %6632 = vmatprep.subr.bf16.mxu0 0
      %6633 = vmatpush1.bf16.msra.mxu0 0
      %6634 = vmatprep.subr.bf16.mxu0 0
      %6635 = vmatpush1.bf16.msra.mxu0 0
      %6636 = vmatprep.subr.bf16.mxu0 0
      %6637 = vmatpush1.bf16.msra.mxu0 %v6620
      %6638 = vmatprep.subr.bf16.mxu0 0
      %6639 = vmatpush2.bf16.msra.mxu0 0
      %6640 = vmatprep.subr.bf16.mxu0 0
      %6641 = vmatpush2.bf16.msra.mxu0 0
      %6642 = vmatprep.subr.bf16.mxu0 0
      %6643 = vmatpush2.bf16.msra.mxu0 0
      %6644 = vmatprep.subr.bf16.mxu0 0
      %6645 = vmatpush2.bf16.msra.mxu0 0
      %6646 = vmatprep.subr.bf16.mxu0 0
      %6647 = vmatpush2.bf16.msra.mxu0 0
      %6648 = vmatprep.subr.bf16.mxu0 0
      %6649 = vmatpush2.bf16.msra.mxu0 0
      %6650 = vmatprep.subr.bf16.mxu0 0
      %6651 = vmatpush2.bf16.msra.mxu0 0
      %6652 = vmatprep.subr.bf16.mxu0 0
      %6653 = vmatpush2.bf16.msra.mxu0 0
      %6654 = vmatprep.mubr.bf16.mxu0 0
      %6655 = vmatmul.mubr.bf16.gmra.mxu0 %v6566
      %v6656 = vpop.f32.mrf.mxu0
      %v6657 = vadd.f32 0.0, %v6656
      %v6658 = vpop.f32.mrf.mxu0
      %v6659 = vpop.f32.mrf.mxu0
      %v6660 = vadd.f32 0.0, %v6659
      %v6661 = vpop.f32.mrf.mxu0
      %6662 = vmatprep.mubr.bf16.mxu0 0
      %6663 = vmatmul.mubr.bf16.gmra.mxu0 %v6569
      %v6664 = vpop.f32.mrf.mxu0
      %v6665 = vadd.f32 0.0, %v6664
      %v6666 = vpop.f32.mrf.mxu0
      %v6667 = vpop.f32.mrf.mxu0
      %v6668 = vadd.f32 0.0, %v6667
      %v6669 = vpop.f32.mrf.mxu0
      %6670 = vmatprep.mubr.bf16.mxu0 0
      %6671 = vmatmul.mubr.bf16.gmra.mxu0 %v6572
      %v6672 = vpop.f32.mrf.mxu0
      %v6673 = vadd.f32 0.0, %v6672
      %v6674 = vpop.f32.mrf.mxu0
      %v6675 = vpop.f32.mrf.mxu0
      %v6676 = vadd.f32 0.0, %v6675
      %v6677 = vpop.f32.mrf.mxu0
      %6678 = vmatprep.mubr.bf16.mxu0 0
      %6679 = vmatmul.mubr.bf16.gmra.mxu0 %v6575
      %v6680 = vpop.f32.mrf.mxu0
      %v6681 = vadd.f32 0.0, %v6680
      %v6682 = vpop.f32.mrf.mxu0
      %v6683 = vpop.f32.mrf.mxu0
      %v6684 = vadd.f32 0.0, %v6683
      %v6685 = vpop.f32.mrf.mxu0
      %6686 = vmatprep.mubr.bf16.mxu0 0
      %6687 = vmatmul.mubr.bf16.gmra.mxu0 %v6578
      %v6688 = vpop.f32.mrf.mxu0
      %v6689 = vadd.f32 0.0, %v6688
      %v6690 = vpop.f32.mrf.mxu0
      %v6691 = vpop.f32.mrf.mxu0
      %v6692 = vadd.f32 0.0, %v6691
      %v6693 = vpop.f32.mrf.mxu0
      %6694 = vmatprep.mubr.bf16.mxu0 0
      %6695 = vmatmul.mubr.bf16.gmra.mxu0 %v6581
      %v6696 = vpop.f32.mrf.mxu0
      %v6697 = vadd.f32 0.0, %v6696
      %v6698 = vpop.f32.mrf.mxu0
      %v6699 = vpop.f32.mrf.mxu0
      %v6700 = vadd.f32 0.0, %v6699
      %v6701 = vpop.f32.mrf.mxu0
      %6702 = vmatprep.mubr.bf16.mxu0 0
      %6703 = vmatmul.mubr.bf16.gmra.mxu0 %v6584
      %v6704 = vpop.f32.mrf.mxu0
      %v6705 = vadd.f32 0.0, %v6704
      %v6706 = vpop.f32.mrf.mxu0
      %v6707 = vpop.f32.mrf.mxu0
      %v6708 = vadd.f32 0.0, %v6707
      %v6709 = vpop.f32.mrf.mxu0
      %6710 = vmatprep.mubr.bf16.mxu0 0
      %6711 = vmatmul.mubr.bf16.gmra.mxu0 %v6587
      %v6712 = vpop.f32.mrf.mxu0
      %v6713 = vadd.f32 0.0, %v6712
      %v6714 = vpop.f32.mrf.mxu0
      %v6715 = vpop.f32.mrf.mxu0
      %v6716 = vadd.f32 0.0, %v6715
      %v6717 = vpop.f32.mrf.mxu0
      %6718 = vmatprep.mubr.bf16.mxu0 0
      %6719 = vmatmul.mubr.bf16.gmra.mxu0 %v6590
      %v6720 = vpop.f32.mrf.mxu0
      %v6721 = vadd.f32 0.0, %v6720
      %v6722 = vpop.f32.mrf.mxu0
      %v6723 = vpop.f32.mrf.mxu0
      %v6724 = vadd.f32 0.0, %v6723
      %v6725 = vpop.f32.mrf.mxu0
      %6726 = vmatprep.mubr.bf16.mxu0 0
      %6727 = vmatmul.mubr.bf16.gmra.mxu0 %v6593
      %v6728 = vpop.f32.mrf.mxu0
      %v6729 = vadd.f32 0.0, %v6728
      %v6730 = vpop.f32.mrf.mxu0
      %v6731 = vpop.f32.mrf.mxu0
      %v6732 = vadd.f32 0.0, %v6731
      %v6733 = vpop.f32.mrf.mxu0
      %6734 = vmatprep.mubr.bf16.mxu0 0
      %6735 = vmatmul.mubr.bf16.gmra.mxu0 %v6596
      %v6736 = vpop.f32.mrf.mxu0
      %v6737 = vadd.f32 0.0, %v6736
      %v6738 = vpop.f32.mrf.mxu0
      %v6739 = vpop.f32.mrf.mxu0
      %v6740 = vadd.f32 0.0, %v6739
      %v6741 = vpop.f32.mrf.mxu0
      %6742 = vmatprep.mubr.bf16.mxu0 0
      %6743 = vmatmul.mubr.bf16.gmra.mxu0 %v6599
      %v6744 = vpop.f32.mrf.mxu0
      %v6745 = vadd.f32 0.0, %v6744
      %v6746 = vpop.f32.mrf.mxu0
      %v6747 = vpop.f32.mrf.mxu0
      %v6748 = vadd.f32 0.0, %v6747
      %v6749 = vpop.f32.mrf.mxu0
      %6750 = vmatprep.mubr.bf16.mxu0 0
      %6751 = vmatmul.mubr.bf16.gmra.mxu0 %v6602
      %v6752 = vpop.f32.mrf.mxu0
      %v6753 = vadd.f32 0.0, %v6752
      %v6754 = vpop.f32.mrf.mxu0
      %v6755 = vpop.f32.mrf.mxu0
      %v6756 = vadd.f32 0.0, %v6755
      %v6757 = vpop.f32.mrf.mxu0
      %6758 = vmatprep.mubr.bf16.mxu0 0
      %6759 = vmatmul.mubr.bf16.gmra.mxu0 %v6605
      %v6760 = vpop.f32.mrf.mxu0
      %v6761 = vadd.f32 0.0, %v6760
      %v6762 = vpop.f32.mrf.mxu0
      %v6763 = vpop.f32.mrf.mxu0
      %v6764 = vadd.f32 0.0, %v6763
      %v6765 = vpop.f32.mrf.mxu0
      %6766 = vmatprep.mubr.bf16.mxu0 0
      %6767 = vmatmul.mubr.bf16.gmra.mxu0 %v6608
      %v6768 = vpop.f32.mrf.mxu0
      %v6769 = vadd.f32 0.0, %v6768
      %v6770 = vpop.f32.mrf.mxu0
      %v6771 = vpop.f32.mrf.mxu0
      %v6772 = vadd.f32 0.0, %v6771
      %v6773 = vpop.f32.mrf.mxu0
      %6774 = vmatprep.mubr.bf16.mxu0 0
      %6775 = vmatmul.mubr.bf16.gmra.mxu0 %v6611
      %v6776 = vpop.f32.mrf.mxu0
      %v6777 = vadd.f32 0.0, %v6776
      %v6778 = vpop.f32.mrf.mxu0
      %v6779 = vpop.f32.mrf.mxu0
      %v6780 = vadd.f32 0.0, %v6779
      %v6781 = vpop.f32.mrf.mxu0
      %6782 = vmatprep.mubr.bf16.mxu0 0
      %6783 = vmatmul.mubr.bf16.gmra.mxu0 %v6614
      %v6784 = vpop.f32.mrf.mxu0
      %v6785 = vadd.f32 0.0, %v6784
      %v6786 = vpop.f32.mrf.mxu0
      %v6787 = vpop.f32.mrf.mxu0
      %v6788 = vadd.f32 0.0, %v6787
      %v6789 = vpop.f32.mrf.mxu0
      %6790 = vmatprep.mubr.bf16.mxu0 0
      %6791 = vmatmul.mubr.bf16.gmra.mxu0 %v6617
      %v6792 = vpop.f32.mrf.mxu0
      %v6793 = vadd.f32 0.0, %v6792
      %v6794 = vpop.f32.mrf.mxu0
      %v6795 = vpop.f32.mrf.mxu0
      %v6796 = vadd.f32 0.0, %v6795
      %v6797 = vpop.f32.mrf.mxu0
      %6798 = vdwg.mxu0
      %v6799 = vadd.f32 %v6527, %v6657
      %v6800 = vadd.f32 %v6528, %v6660
      %v6801 = vadd.f32 %v6529, %v6665
      %v6802 = vadd.f32 %v6530, %v6668
      %v6803 = vadd.f32 %v6531, %v6673
      %v6804 = vadd.f32 %v6532, %v6676
      %v6805 = vadd.f32 %v6533, %v6681
      %v6806 = vadd.f32 %v6534, %v6684
      %v6807 = vadd.f32 %v6535, %v6689
      %v6808 = vadd.f32 %v6536, %v6692
      %v6809 = vadd.f32 %v6537, %v6697
      %v6810 = vadd.f32 %v6538, %v6700
      %v6811 = vadd.f32 %v6539, %v6705
      %v6812 = vadd.f32 %v6540, %v6708
      %v6813 = vadd.f32 %v6541, %v6713
      %v6814 = vadd.f32 %v6542, %v6716
      %v6815 = vadd.f32 %v6543, %v6721
      %v6816 = vadd.f32 %v6544, %v6724
      %v6817 = vadd.f32 %v6545, %v6729
      %v6818 = vadd.f32 %v6546, %v6732
      %v6819 = vadd.f32 %v6547, %v6737
      %v6820 = vadd.f32 %v6548, %v6740
      %v6821 = vadd.f32 %v6549, %v6745
      %v6822 = vadd.f32 %v6550, %v6748
      %v6823 = vadd.f32 %v6551, %v6753
      %v6824 = vadd.f32 %v6552, %v6756
      %v6825 = vadd.f32 %v6553, %v6761
      %v6826 = vadd.f32 %v6554, %v6764
      %v6827 = vadd.f32 %v6555, %v6769
      %v6828 = vadd.f32 %v6556, %v6772
      %v6829 = vadd.f32 %v6557, %v6777
      %v6830 = vadd.f32 %v6558, %v6780
      %v6831 = vadd.f32 %v6559, %v6785
      %v6832 = vadd.f32 %v6560, %v6788
      %v6833 = vadd.f32 %v6561, %v6793
      %v6834 = vadd.f32 %v6562, %v6796
      %6835 = vst.msk [vmem:[#allocation2] sm:$0xff] %vm339, %v6799
      %6836 = vst.msk [vmem:[#allocation2 + $0x8] sm:$0xff] %vm339, %v6800
      %6837 = vst.msk [vmem:[#allocation2 + $0x10] sm:$0xff] %vm339, %v6801
      %6838 = vst.msk [vmem:[#allocation2 + $0x18] sm:$0xff] %vm339, %v6802
      %6839 = vst.msk [vmem:[#allocation2 + $0x20] sm:$0xff] %vm339, %v6803
      %6840 = vst.msk [vmem:[#allocation2 + $0x28] sm:$0xff] %vm339, %v6804
      %6841 = vst.msk [vmem:[#allocation2 + $0x30] sm:$0xff] %vm339, %v6805
      %6842 = vst.msk [vmem:[#allocation2 + $0x38] sm:$0xff] %vm339, %v6806
      %6843 = vst.msk [vmem:[#allocation2 + $0x40] sm:$0xff] %vm339, %v6807
      %6844 = vst.msk [vmem:[#allocation2 + $0x48] sm:$0xff] %vm339, %v6808
      %6845 = vst.msk [vmem:[#allocation2 + $0x50] sm:$0xff] %vm339, %v6809
      %6846 = vst.msk [vmem:[#allocation2 + $0x58] sm:$0xff] %vm339, %v6810
      %6847 = vst.msk [vmem:[#allocation2 + $0x60] sm:$0xff] %vm339, %v6811
      %6848 = vst.msk [vmem:[#allocation2 + $0x68] sm:$0xff] %vm339, %v6812
      %6849 = vst.msk [vmem:[#allocation2 + $0x70] sm:$0xff] %vm339, %v6813
      %6850 = vst.msk [vmem:[#allocation2 + $0x78] sm:$0xff] %vm339, %v6814
      %6851 = vst.msk [vmem:[#allocation2 + $0x80] sm:$0xff] %vm339, %v6815
      %6852 = vst.msk [vmem:[#allocation2 + $0x88] sm:$0xff] %vm339, %v6816
      %6853 = vst.msk [vmem:[#allocation2 + $0x90] sm:$0xff] %vm339, %v6817
      %6854 = vst.msk [vmem:[#allocation2 + $0x98] sm:$0xff] %vm339, %v6818
      %6855 = vst.msk [vmem:[#allocation2 + $0xa0] sm:$0xff] %vm339, %v6819
      %6856 = vst.msk [vmem:[#allocation2 + $0xa8] sm:$0xff] %vm339, %v6820
      %6857 = vst.msk [vmem:[#allocation2 + $0xb0] sm:$0xff] %vm339, %v6821
      %6858 = vst.msk [vmem:[#allocation2 + $0xb8] sm:$0xff] %vm339, %v6822
      %6859 = vst.msk [vmem:[#allocation2 + $0xc0] sm:$0xff] %vm339, %v6823
      %6860 = vst.msk [vmem:[#allocation2 + $0xc8] sm:$0xff] %vm339, %v6824
      %6861 = vst.msk [vmem:[#allocation2 + $0xd0] sm:$0xff] %vm339, %v6825
      %6862 = vst.msk [vmem:[#allocation2 + $0xd8] sm:$0xff] %vm339, %v6826
      %6863 = vst.msk [vmem:[#allocation2 + $0xe0] sm:$0xff] %vm339, %v6827
      %6864 = vst.msk [vmem:[#allocation2 + $0xe8] sm:$0xff] %vm339, %v6828
      %6865 = vst.msk [vmem:[#allocation2 + $0xf0] sm:$0xff] %vm339, %v6829
      %6866 = vst.msk [vmem:[#allocation2 + $0xf8] sm:$0xff] %vm339, %v6830
      %6867 = vst.msk [vmem:[#allocation2 + $0x100] sm:$0xff] %vm339, %v6831
      %6868 = vst.msk [vmem:[#allocation2 + $0x108] sm:$0xff] %vm339, %v6832
      %6869 = vst.msk [vmem:[#allocation2 + $0x110] sm:$0xff] %vm339, %v6833
      %6870 = vst.msk [vmem:[#allocation2 + $0x118] sm:$0xff] %vm339, %v6834
      %v6871 = vld [vmem:[#allocation3 + $0x24] sm:$0xff]
      %v6872 = vld [vmem:[#allocation3 + $0x2c] sm:$0xff]
      %v6873 = vld [vmem:[#allocation3 + $0x34] sm:$0xff]
      %v6874 = vld [vmem:[#allocation3 + $0x3c] sm:$0xff]
      %v6875 = vld [vmem:[#allocation3 + $0x44] sm:$0xff]
      %v6876 = vld [vmem:[#allocation3 + $0x4c] sm:$0xff]
      %v6877 = vld [vmem:[#allocation3 + $0x54] sm:$0xff]
      %v6878 = vld [vmem:[#allocation3 + $0x5c] sm:$0xff]
      %v6879 = vld [vmem:[#allocation3 + $0x64] sm:$0xff]
      %v6880 = vld [vmem:[#allocation3 + $0x6c] sm:$0xff]
      %v6881 = vld [vmem:[#allocation3 + $0x74] sm:$0xff]
      %v6882 = vld [vmem:[#allocation3 + $0x7c] sm:$0xff]
      %v6883 = vld [vmem:[#allocation3 + $0x84] sm:$0xff]
      %v6884 = vld [vmem:[#allocation3 + $0x8c] sm:$0xff]
      %v6885 = vld [vmem:[#allocation3 + $0x94] sm:$0xff]
      %v6886 = vld [vmem:[#allocation3 + $0x9c] sm:$0xff]
      %v6887 = vld [vmem:[#allocation3 + $0xa4] sm:$0xff]
      %v6888 = vld [vmem:[#allocation3 + $0xac] sm:$0xff]
      %v6889 = vld [vmem:[#allocation3 + $0xb4] sm:$0xff]
      %v6890 = vld [vmem:[#allocation3 + $0xbc] sm:$0xff]
      %v6891 = vld [vmem:[#allocation3 + $0xc4] sm:$0xff]
      %v6892 = vld [vmem:[#allocation3 + $0xcc] sm:$0xff]
      %v6893 = vld [vmem:[#allocation3 + $0xd4] sm:$0xff]
      %v6894 = vld [vmem:[#allocation3 + $0xdc] sm:$0xff]
      %v6895 = vld [vmem:[#allocation3 + $0xe4] sm:$0xff]
      %v6896 = vld [vmem:[#allocation3 + $0xec] sm:$0xff]
      %v6897 = vld [vmem:[#allocation3 + $0xf4] sm:$0xff]
      %v6898 = vld [vmem:[#allocation3 + $0xfc] sm:$0xff]
      %v6899 = vld [vmem:[#allocation3 + $0x104] sm:$0xff]
      %v6900 = vld [vmem:[#allocation3 + $0x10c] sm:$0xff]
      %v6901 = vld [vmem:[#allocation3 + $0x114] sm:$0xff]
      %v6902 = vld [vmem:[#allocation3 + $0x11c] sm:$0xff]
      %v6903 = vld [vmem:[#allocation3 + $0x124] sm:$0xff]
      %v6904 = vld [vmem:[#allocation3 + $0x12c] sm:$0xff]
      %v6905 = vld [vmem:[#allocation3 + $0x134] sm:$0xff]
      %v6906 = vld [vmem:[#allocation3 + $0x13c] sm:$0xff]
      %v6907 = vpack.c.bf16 %v6872, %v6871
      %v6908 = vpack.c.bf16 %v6874, %v6873
      %v6909 = vpack.c.bf16 %v6876, %v6875
      %v6910 = vpack.c.bf16 %v6878, %v6877
      %v6911 = vpack.c.bf16 %v6880, %v6879
      %v6912 = vpack.c.bf16 %v6882, %v6881
      %v6913 = vpack.c.bf16 %v6884, %v6883
      %v6914 = vpack.c.bf16 %v6886, %v6885
      %v6915 = vpack.c.bf16 %v6888, %v6887
      %v6916 = vpack.c.bf16 %v6890, %v6889
      %v6917 = vpack.c.bf16 %v6892, %v6891
      %v6918 = vpack.c.bf16 %v6894, %v6893
      %v6919 = vpack.c.bf16 %v6896, %v6895
      %v6920 = vpack.c.bf16 %v6898, %v6897
      %v6921 = vpack.c.bf16 %v6900, %v6899
      %v6922 = vpack.c.bf16 %v6902, %v6901
      %v6923 = vpack.c.bf16 %v6904, %v6903
      %v6924 = vpack.c.bf16 %v6906, %v6905
      %v6925 = vld [vmem:[#allocation2] sm:$0xff]
      %v6926 = vld [vmem:[#allocation2 + $0x8] sm:$0xff]
      %v6927 = vld [vmem:[#allocation2 + $0x10] sm:$0xff]
      %v6928 = vld [vmem:[#allocation2 + $0x18] sm:$0xff]
      %v6929 = vld [vmem:[#allocation2 + $0x20] sm:$0xff]
      %v6930 = vld [vmem:[#allocation2 + $0x28] sm:$0xff]
      %v6931 = vld [vmem:[#allocation2 + $0x30] sm:$0xff]
      %v6932 = vld [vmem:[#allocation2 + $0x38] sm:$0xff]
      %v6933 = vld [vmem:[#allocation2 + $0x40] sm:$0xff]
      %v6934 = vld [vmem:[#allocation2 + $0x48] sm:$0xff]
      %v6935 = vld [vmem:[#allocation2 + $0x50] sm:$0xff]
      %v6936 = vld [vmem:[#allocation2 + $0x58] sm:$0xff]
      %v6937 = vld [vmem:[#allocation2 + $0x60] sm:$0xff]
      %v6938 = vld [vmem:[#allocation2 + $0x68] sm:$0xff]
      %v6939 = vld [vmem:[#allocation2 + $0x70] sm:$0xff]
      %v6940 = vld [vmem:[#allocation2 + $0x78] sm:$0xff]
      %v6941 = vld [vmem:[#allocation2 + $0x80] sm:$0xff]
      %v6942 = vld [vmem:[#allocation2 + $0x88] sm:$0xff]
      %v6943 = vld [vmem:[#allocation2 + $0x90] sm:$0xff]
      %v6944 = vld [vmem:[#allocation2 + $0x98] sm:$0xff]
      %v6945 = vld [vmem:[#allocation2 + $0xa0] sm:$0xff]
      %v6946 = vld [vmem:[#allocation2 + $0xa8] sm:$0xff]
      %v6947 = vld [vmem:[#allocation2 + $0xb0] sm:$0xff]
      %v6948 = vld [vmem:[#allocation2 + $0xb8] sm:$0xff]
      %v6949 = vld [vmem:[#allocation2 + $0xc0] sm:$0xff]
      %v6950 = vld [vmem:[#allocation2 + $0xc8] sm:$0xff]
      %v6951 = vld [vmem:[#allocation2 + $0xd0] sm:$0xff]
      %v6952 = vld [vmem:[#allocation2 + $0xd8] sm:$0xff]
      %v6953 = vld [vmem:[#allocation2 + $0xe0] sm:$0xff]
      %v6954 = vld [vmem:[#allocation2 + $0xe8] sm:$0xff]
      %v6955 = vld [vmem:[#allocation2 + $0xf0] sm:$0xff]
      %v6956 = vld [vmem:[#allocation2 + $0xf8] sm:$0xff]
      %v6957 = vld [vmem:[#allocation2 + $0x100] sm:$0xff]
      %v6958 = vld [vmem:[#allocation2 + $0x108] sm:$0xff]
      %v6959 = vld [vmem:[#allocation2 + $0x110] sm:$0xff]
      %v6960 = vld [vmem:[#allocation2 + $0x118] sm:$0xff]
      %s6961 = scalar_lea.vmem %s3, 12
      %v6962 = vld [vmem:[%s6961] sm:$0x3]
      %v6964 = vsel %vm339, %v6907, 0
      %v6967 = vsel %vm339, %v6908, 0
      %v6970 = vsel %vm339, %v6909, 0
      %v6973 = vsel %vm339, %v6910, 0
      %v6976 = vsel %vm339, %v6911, 0
      %v6979 = vsel %vm339, %v6912, 0
      %v6982 = vsel %vm339, %v6913, 0
      %v6985 = vsel %vm339, %v6914, 0
      %v6988 = vsel %vm339, %v6915, 0
      %v6991 = vsel %vm339, %v6916, 0
      %v6994 = vsel %vm339, %v6917, 0
      %v6997 = vsel %vm339, %v6918, 0
      %v7000 = vsel %vm339, %v6919, 0
      %v7003 = vsel %vm339, %v6920, 0
      %v7006 = vsel %vm339, %v6921, 0
      %v7009 = vsel %vm339, %v6922, 0
      %v7012 = vsel %vm339, %v6923, 0
      %v7015 = vsel %vm339, %v6924, 0
      %v7018 = vsel %vm565, %v6962, 0
      %7020 = vmatprep.subr.bf16.mxu0 0
      %7021 = vmatpush1.bf16.msra.mxu0 0
      %7022 = vmatprep.subr.bf16.mxu0 0
      %7023 = vmatpush1.bf16.msra.mxu0 0
      %7024 = vmatprep.subr.bf16.mxu0 0
      %7025 = vmatpush1.bf16.msra.mxu0 0
      %7026 = vmatprep.subr.bf16.mxu0 0
      %7027 = vmatpush1.bf16.msra.mxu0 0
      %7028 = vmatprep.subr.bf16.mxu0 0
      %7029 = vmatpush1.bf16.msra.mxu0 0
      %7030 = vmatprep.subr.bf16.mxu0 0
      %7031 = vmatpush1.bf16.msra.mxu0 0
      %7032 = vmatprep.subr.bf16.mxu0 0
      %7033 = vmatpush1.bf16.msra.mxu0 0
      %7034 = vmatprep.subr.bf16.mxu0 0
      %7035 = vmatpush1.bf16.msra.mxu0 %v7018
      %7036 = vmatprep.subr.bf16.mxu0 0
      %7037 = vmatpush2.bf16.msra.mxu0 0
      %7038 = vmatprep.subr.bf16.mxu0 0
      %7039 = vmatpush2.bf16.msra.mxu0 0
      %7040 = vmatprep.subr.bf16.mxu0 0
      %7041 = vmatpush2.bf16.msra.mxu0 0
      %7042 = vmatprep.subr.bf16.mxu0 0
      %7043 = vmatpush2.bf16.msra.mxu0 0
      %7044 = vmatprep.subr.bf16.mxu0 0
      %7045 = vmatpush2.bf16.msra.mxu0 0
      %7046 = vmatprep.subr.bf16.mxu0 0
      %7047 = vmatpush2.bf16.msra.mxu0 0
      %7048 = vmatprep.subr.bf16.mxu0 0
      %7049 = vmatpush2.bf16.msra.mxu0 0
      %7050 = vmatprep.subr.bf16.mxu0 0
      %7051 = vmatpush2.bf16.msra.mxu0 0
      %7052 = vmatprep.mubr.bf16.mxu0 0
      %7053 = vmatmul.mubr.bf16.gmra.mxu0 %v6964
      %v7054 = vpop.f32.mrf.mxu0
      %v7055 = vadd.f32 0.0, %v7054
      %v7056 = vpop.f32.mrf.mxu0
      %v7057 = vpop.f32.mrf.mxu0
      %v7058 = vadd.f32 0.0, %v7057
      %v7059 = vpop.f32.mrf.mxu0
      %7060 = vmatprep.mubr.bf16.mxu0 0
      %7061 = vmatmul.mubr.bf16.gmra.mxu0 %v6967
      %v7062 = vpop.f32.mrf.mxu0
      %v7063 = vadd.f32 0.0, %v7062
      %v7064 = vpop.f32.mrf.mxu0
      %v7065 = vpop.f32.mrf.mxu0
      %v7066 = vadd.f32 0.0, %v7065
      %v7067 = vpop.f32.mrf.mxu0
      %7068 = vmatprep.mubr.bf16.mxu0 0
      %7069 = vmatmul.mubr.bf16.gmra.mxu0 %v6970
      %v7070 = vpop.f32.mrf.mxu0
      %v7071 = vadd.f32 0.0, %v7070
      %v7072 = vpop.f32.mrf.mxu0
      %v7073 = vpop.f32.mrf.mxu0
      %v7074 = vadd.f32 0.0, %v7073
      %v7075 = vpop.f32.mrf.mxu0
      %7076 = vmatprep.mubr.bf16.mxu0 0
      %7077 = vmatmul.mubr.bf16.gmra.mxu0 %v6973
      %v7078 = vpop.f32.mrf.mxu0
      %v7079 = vadd.f32 0.0, %v7078
      %v7080 = vpop.f32.mrf.mxu0
      %v7081 = vpop.f32.mrf.mxu0
      %v7082 = vadd.f32 0.0, %v7081
      %v7083 = vpop.f32.mrf.mxu0
      %7084 = vmatprep.mubr.bf16.mxu0 0
      %7085 = vmatmul.mubr.bf16.gmra.mxu0 %v6976
      %v7086 = vpop.f32.mrf.mxu0
      %v7087 = vadd.f32 0.0, %v7086
      %v7088 = vpop.f32.mrf.mxu0
      %v7089 = vpop.f32.mrf.mxu0
      %v7090 = vadd.f32 0.0, %v7089
      %v7091 = vpop.f32.mrf.mxu0
      %7092 = vmatprep.mubr.bf16.mxu0 0
      %7093 = vmatmul.mubr.bf16.gmra.mxu0 %v6979
      %v7094 = vpop.f32.mrf.mxu0
      %v7095 = vadd.f32 0.0, %v7094
      %v7096 = vpop.f32.mrf.mxu0
      %v7097 = vpop.f32.mrf.mxu0
      %v7098 = vadd.f32 0.0, %v7097
      %v7099 = vpop.f32.mrf.mxu0
      %7100 = vmatprep.mubr.bf16.mxu0 0
      %7101 = vmatmul.mubr.bf16.gmra.mxu0 %v6982
      %v7102 = vpop.f32.mrf.mxu0
      %v7103 = vadd.f32 0.0, %v7102
      %v7104 = vpop.f32.mrf.mxu0
      %v7105 = vpop.f32.mrf.mxu0
      %v7106 = vadd.f32 0.0, %v7105
      %v7107 = vpop.f32.mrf.mxu0
      %7108 = vmatprep.mubr.bf16.mxu0 0
      %7109 = vmatmul.mubr.bf16.gmra.mxu0 %v6985
      %v7110 = vpop.f32.mrf.mxu0
      %v7111 = vadd.f32 0.0, %v7110
      %v7112 = vpop.f32.mrf.mxu0
      %v7113 = vpop.f32.mrf.mxu0
      %v7114 = vadd.f32 0.0, %v7113
      %v7115 = vpop.f32.mrf.mxu0
      %7116 = vmatprep.mubr.bf16.mxu0 0
      %7117 = vmatmul.mubr.bf16.gmra.mxu0 %v6988
      %v7118 = vpop.f32.mrf.mxu0
      %v7119 = vadd.f32 0.0, %v7118
      %v7120 = vpop.f32.mrf.mxu0
      %v7121 = vpop.f32.mrf.mxu0
      %v7122 = vadd.f32 0.0, %v7121
      %v7123 = vpop.f32.mrf.mxu0
      %7124 = vmatprep.mubr.bf16.mxu0 0
      %7125 = vmatmul.mubr.bf16.gmra.mxu0 %v6991
      %v7126 = vpop.f32.mrf.mxu0
      %v7127 = vadd.f32 0.0, %v7126
      %v7128 = vpop.f32.mrf.mxu0
      %v7129 = vpop.f32.mrf.mxu0
      %v7130 = vadd.f32 0.0, %v7129
      %v7131 = vpop.f32.mrf.mxu0
      %7132 = vmatprep.mubr.bf16.mxu0 0
      %7133 = vmatmul.mubr.bf16.gmra.mxu0 %v6994
      %v7134 = vpop.f32.mrf.mxu0
      %v7135 = vadd.f32 0.0, %v7134
      %v7136 = vpop.f32.mrf.mxu0
      %v7137 = vpop.f32.mrf.mxu0
      %v7138 = vadd.f32 0.0, %v7137
      %v7139 = vpop.f32.mrf.mxu0
      %7140 = vmatprep.mubr.bf16.mxu0 0
      %7141 = vmatmul.mubr.bf16.gmra.mxu0 %v6997
      %v7142 = vpop.f32.mrf.mxu0
      %v7143 = vadd.f32 0.0, %v7142
      %v7144 = vpop.f32.mrf.mxu0
      %v7145 = vpop.f32.mrf.mxu0
      %v7146 = vadd.f32 0.0, %v7145
      %v7147 = vpop.f32.mrf.mxu0
      %7148 = vmatprep.mubr.bf16.mxu0 0
      %7149 = vmatmul.mubr.bf16.gmra.mxu0 %v7000
      %v7150 = vpop.f32.mrf.mxu0
      %v7151 = vadd.f32 0.0, %v7150
      %v7152 = vpop.f32.mrf.mxu0
      %v7153 = vpop.f32.mrf.mxu0
      %v7154 = vadd.f32 0.0, %v7153
      %v7155 = vpop.f32.mrf.mxu0
      %7156 = vmatprep.mubr.bf16.mxu0 0
      %7157 = vmatmul.mubr.bf16.gmra.mxu0 %v7003
      %v7158 = vpop.f32.mrf.mxu0
      %v7159 = vadd.f32 0.0, %v7158
      %v7160 = vpop.f32.mrf.mxu0
      %v7161 = vpop.f32.mrf.mxu0
      %v7162 = vadd.f32 0.0, %v7161
      %v7163 = vpop.f32.mrf.mxu0
      %7164 = vmatprep.mubr.bf16.mxu0 0
      %7165 = vmatmul.mubr.bf16.gmra.mxu0 %v7006
      %v7166 = vpop.f32.mrf.mxu0
      %v7167 = vadd.f32 0.0, %v7166
      %v7168 = vpop.f32.mrf.mxu0
      %v7169 = vpop.f32.mrf.mxu0
      %v7170 = vadd.f32 0.0, %v7169
      %v7171 = vpop.f32.mrf.mxu0
      %7172 = vmatprep.mubr.bf16.mxu0 0
      %7173 = vmatmul.mubr.bf16.gmra.mxu0 %v7009
      %v7174 = vpop.f32.mrf.mxu0
      %v7175 = vadd.f32 0.0, %v7174
      %v7176 = vpop.f32.mrf.mxu0
      %v7177 = vpop.f32.mrf.mxu0
      %v7178 = vadd.f32 0.0, %v7177
      %v7179 = vpop.f32.mrf.mxu0
      %7180 = vmatprep.mubr.bf16.mxu0 0
      %7181 = vmatmul.mubr.bf16.gmra.mxu0 %v7012
      %v7182 = vpop.f32.mrf.mxu0
      %v7183 = vadd.f32 0.0, %v7182
      %v7184 = vpop.f32.mrf.mxu0
      %v7185 = vpop.f32.mrf.mxu0
      %v7186 = vadd.f32 0.0, %v7185
      %v7187 = vpop.f32.mrf.mxu0
      %7188 = vmatprep.mubr.bf16.mxu0 0
      %7189 = vmatmul.mubr.bf16.gmra.mxu0 %v7015
      %v7190 = vpop.f32.mrf.mxu0
      %v7191 = vadd.f32 0.0, %v7190
      %v7192 = vpop.f32.mrf.mxu0
      %v7193 = vpop.f32.mrf.mxu0
      %v7194 = vadd.f32 0.0, %v7193
      %v7195 = vpop.f32.mrf.mxu0
      %7196 = vdwg.mxu0
      %v7197 = vadd.f32 %v6925, %v7055
      %v7198 = vadd.f32 %v6926, %v7058
      %v7199 = vadd.f32 %v6927, %v7063
      %v7200 = vadd.f32 %v6928, %v7066
      %v7201 = vadd.f32 %v6929, %v7071
      %v7202 = vadd.f32 %v6930, %v7074
      %v7203 = vadd.f32 %v6931, %v7079
      %v7204 = vadd.f32 %v6932, %v7082
      %v7205 = vadd.f32 %v6933, %v7087
      %v7206 = vadd.f32 %v6934, %v7090
      %v7207 = vadd.f32 %v6935, %v7095
      %v7208 = vadd.f32 %v6936, %v7098
      %v7209 = vadd.f32 %v6937, %v7103
      %v7210 = vadd.f32 %v6938, %v7106
      %v7211 = vadd.f32 %v6939, %v7111
      %v7212 = vadd.f32 %v6940, %v7114
      %v7213 = vadd.f32 %v6941, %v7119
      %v7214 = vadd.f32 %v6942, %v7122
      %v7215 = vadd.f32 %v6943, %v7127
      %v7216 = vadd.f32 %v6944, %v7130
      %v7217 = vadd.f32 %v6945, %v7135
      %v7218 = vadd.f32 %v6946, %v7138
      %v7219 = vadd.f32 %v6947, %v7143
      %v7220 = vadd.f32 %v6948, %v7146
      %v7221 = vadd.f32 %v6949, %v7151
      %v7222 = vadd.f32 %v6950, %v7154
      %v7223 = vadd.f32 %v6951, %v7159
      %v7224 = vadd.f32 %v6952, %v7162
      %v7225 = vadd.f32 %v6953, %v7167
      %v7226 = vadd.f32 %v6954, %v7170
      %v7227 = vadd.f32 %v6955, %v7175
      %v7228 = vadd.f32 %v6956, %v7178
      %v7229 = vadd.f32 %v6957, %v7183
      %v7230 = vadd.f32 %v6958, %v7186
      %v7231 = vadd.f32 %v6959, %v7191
      %v7232 = vadd.f32 %v6960, %v7194
      %7233 = vst.msk [vmem:[#allocation2] sm:$0xff] %vm339, %v7197
      %7234 = vst.msk [vmem:[#allocation2 + $0x8] sm:$0xff] %vm339, %v7198
      %7235 = vst.msk [vmem:[#allocation2 + $0x10] sm:$0xff] %vm339, %v7199
      %7236 = vst.msk [vmem:[#allocation2 + $0x18] sm:$0xff] %vm339, %v7200
      %7237 = vst.msk [vmem:[#allocation2 + $0x20] sm:$0xff] %vm339, %v7201
      %7238 = vst.msk [vmem:[#allocation2 + $0x28] sm:$0xff] %vm339, %v7202
      %7239 = vst.msk [vmem:[#allocation2 + $0x30] sm:$0xff] %vm339, %v7203
      %7240 = vst.msk [vmem:[#allocation2 + $0x38] sm:$0xff] %vm339, %v7204
      %7241 = vst.msk [vmem:[#allocation2 + $0x40] sm:$0xff] %vm339, %v7205
      %7242 = vst.msk [vmem:[#allocation2 + $0x48] sm:$0xff] %vm339, %v7206
      %7243 = vst.msk [vmem:[#allocation2 + $0x50] sm:$0xff] %vm339, %v7207
      %7244 = vst.msk [vmem:[#allocation2 + $0x58] sm:$0xff] %vm339, %v7208
      %7245 = vst.msk [vmem:[#allocation2 + $0x60] sm:$0xff] %vm339, %v7209
      %7246 = vst.msk [vmem:[#allocation2 + $0x68] sm:$0xff] %vm339, %v7210
      %7247 = vst.msk [vmem:[#allocation2 + $0x70] sm:$0xff] %vm339, %v7211
      %7248 = vst.msk [vmem:[#allocation2 + $0x78] sm:$0xff] %vm339, %v7212
      %7249 = vst.msk [vmem:[#allocation2 + $0x80] sm:$0xff] %vm339, %v7213
      %7250 = vst.msk [vmem:[#allocation2 + $0x88] sm:$0xff] %vm339, %v7214
      %7251 = vst.msk [vmem:[#allocation2 + $0x90] sm:$0xff] %vm339, %v7215
      %7252 = vst.msk [vmem:[#allocation2 + $0x98] sm:$0xff] %vm339, %v7216
      %7253 = vst.msk [vmem:[#allocation2 + $0xa0] sm:$0xff] %vm339, %v7217
      %7254 = vst.msk [vmem:[#allocation2 + $0xa8] sm:$0xff] %vm339, %v7218
      %7255 = vst.msk [vmem:[#allocation2 + $0xb0] sm:$0xff] %vm339, %v7219
      %7256 = vst.msk [vmem:[#allocation2 + $0xb8] sm:$0xff] %vm339, %v7220
      %7257 = vst.msk [vmem:[#allocation2 + $0xc0] sm:$0xff] %vm339, %v7221
      %7258 = vst.msk [vmem:[#allocation2 + $0xc8] sm:$0xff] %vm339, %v7222
      %7259 = vst.msk [vmem:[#allocation2 + $0xd0] sm:$0xff] %vm339, %v7223
      %7260 = vst.msk [vmem:[#allocation2 + $0xd8] sm:$0xff] %vm339, %v7224
      %7261 = vst.msk [vmem:[#allocation2 + $0xe0] sm:$0xff] %vm339, %v7225
      %7262 = vst.msk [vmem:[#allocation2 + $0xe8] sm:$0xff] %vm339, %v7226
      %7263 = vst.msk [vmem:[#allocation2 + $0xf0] sm:$0xff] %vm339, %v7227
      %7264 = vst.msk [vmem:[#allocation2 + $0xf8] sm:$0xff] %vm339, %v7228
      %7265 = vst.msk [vmem:[#allocation2 + $0x100] sm:$0xff] %vm339, %v7229
      %7266 = vst.msk [vmem:[#allocation2 + $0x108] sm:$0xff] %vm339, %v7230
      %7267 = vst.msk [vmem:[#allocation2 + $0x110] sm:$0xff] %vm339, %v7231
      %7268 = vst.msk [vmem:[#allocation2 + $0x118] sm:$0xff] %vm339, %v7232
      %v7269 = vld [vmem:[#allocation3 + $0x25] sm:$0xff]
      %v7270 = vld [vmem:[#allocation3 + $0x2d] sm:$0xff]
      %v7271 = vld [vmem:[#allocation3 + $0x35] sm:$0xff]
      %v7272 = vld [vmem:[#allocation3 + $0x3d] sm:$0xff]
      %v7273 = vld [vmem:[#allocation3 + $0x45] sm:$0xff]
      %v7274 = vld [vmem:[#allocation3 + $0x4d] sm:$0xff]
      %v7275 = vld [vmem:[#allocation3 + $0x55] sm:$0xff]
      %v7276 = vld [vmem:[#allocation3 + $0x5d] sm:$0xff]
      %v7277 = vld [vmem:[#allocation3 + $0x65] sm:$0xff]
      %v7278 = vld [vmem:[#allocation3 + $0x6d] sm:$0xff]
      %v7279 = vld [vmem:[#allocation3 + $0x75] sm:$0xff]
      %v7280 = vld [vmem:[#allocation3 + $0x7d] sm:$0xff]
      %v7281 = vld [vmem:[#allocation3 + $0x85] sm:$0xff]
      %v7282 = vld [vmem:[#allocation3 + $0x8d] sm:$0xff]
      %v7283 = vld [vmem:[#allocation3 + $0x95] sm:$0xff]
      %v7284 = vld [vmem:[#allocation3 + $0x9d] sm:$0xff]
      %v7285 = vld [vmem:[#allocation3 + $0xa5] sm:$0xff]
      %v7286 = vld [vmem:[#allocation3 + $0xad] sm:$0xff]
      %v7287 = vld [vmem:[#allocation3 + $0xb5] sm:$0xff]
      %v7288 = vld [vmem:[#allocation3 + $0xbd] sm:$0xff]
      %v7289 = vld [vmem:[#allocation3 + $0xc5] sm:$0xff]
      %v7290 = vld [vmem:[#allocation3 + $0xcd] sm:$0xff]
      %v7291 = vld [vmem:[#allocation3 + $0xd5] sm:$0xff]
      %v7292 = vld [vmem:[#allocation3 + $0xdd] sm:$0xff]
      %v7293 = vld [vmem:[#allocation3 + $0xe5] sm:$0xff]
      %v7294 = vld [vmem:[#allocation3 + $0xed] sm:$0xff]
      %v7295 = vld [vmem:[#allocation3 + $0xf5] sm:$0xff]
      %v7296 = vld [vmem:[#allocation3 + $0xfd] sm:$0xff]
      %v7297 = vld [vmem:[#allocation3 + $0x105] sm:$0xff]
      %v7298 = vld [vmem:[#allocation3 + $0x10d] sm:$0xff]
      %v7299 = vld [vmem:[#allocation3 + $0x115] sm:$0xff]
      %v7300 = vld [vmem:[#allocation3 + $0x11d] sm:$0xff]
      %v7301 = vld [vmem:[#allocation3 + $0x125] sm:$0xff]
      %v7302 = vld [vmem:[#allocation3 + $0x12d] sm:$0xff]
      %v7303 = vld [vmem:[#allocation3 + $0x135] sm:$0xff]
      %v7304 = vld [vmem:[#allocation3 + $0x13d] sm:$0xff]
      %v7305 = vpack.c.bf16 %v7270, %v7269
      %v7306 = vpack.c.bf16 %v7272, %v7271
      %v7307 = vpack.c.bf16 %v7274, %v7273
      %v7308 = vpack.c.bf16 %v7276, %v7275
      %v7309 = vpack.c.bf16 %v7278, %v7277
      %v7310 = vpack.c.bf16 %v7280, %v7279
      %v7311 = vpack.c.bf16 %v7282, %v7281
      %v7312 = vpack.c.bf16 %v7284, %v7283
      %v7313 = vpack.c.bf16 %v7286, %v7285
      %v7314 = vpack.c.bf16 %v7288, %v7287
      %v7315 = vpack.c.bf16 %v7290, %v7289
      %v7316 = vpack.c.bf16 %v7292, %v7291
      %v7317 = vpack.c.bf16 %v7294, %v7293
      %v7318 = vpack.c.bf16 %v7296, %v7295
      %v7319 = vpack.c.bf16 %v7298, %v7297
      %v7320 = vpack.c.bf16 %v7300, %v7299
      %v7321 = vpack.c.bf16 %v7302, %v7301
      %v7322 = vpack.c.bf16 %v7304, %v7303
      %v7323 = vld [vmem:[#allocation2] sm:$0xff]
      %v7324 = vld [vmem:[#allocation2 + $0x8] sm:$0xff]
      %v7325 = vld [vmem:[#allocation2 + $0x10] sm:$0xff]
      %v7326 = vld [vmem:[#allocation2 + $0x18] sm:$0xff]
      %v7327 = vld [vmem:[#allocation2 + $0x20] sm:$0xff]
      %v7328 = vld [vmem:[#allocation2 + $0x28] sm:$0xff]
      %v7329 = vld [vmem:[#allocation2 + $0x30] sm:$0xff]
      %v7330 = vld [vmem:[#allocation2 + $0x38] sm:$0xff]
      %v7331 = vld [vmem:[#allocation2 + $0x40] sm:$0xff]
      %v7332 = vld [vmem:[#allocation2 + $0x48] sm:$0xff]
      %v7333 = vld [vmem:[#allocation2 + $0x50] sm:$0xff]
      %v7334 = vld [vmem:[#allocation2 + $0x58] sm:$0xff]
      %v7335 = vld [vmem:[#allocation2 + $0x60] sm:$0xff]
      %v7336 = vld [vmem:[#allocation2 + $0x68] sm:$0xff]
      %v7337 = vld [vmem:[#allocation2 + $0x70] sm:$0xff]
      %v7338 = vld [vmem:[#allocation2 + $0x78] sm:$0xff]
      %v7339 = vld [vmem:[#allocation2 + $0x80] sm:$0xff]
      %v7340 = vld [vmem:[#allocation2 + $0x88] sm:$0xff]
      %v7341 = vld [vmem:[#allocation2 + $0x90] sm:$0xff]
      %v7342 = vld [vmem:[#allocation2 + $0x98] sm:$0xff]
      %v7343 = vld [vmem:[#allocation2 + $0xa0] sm:$0xff]
      %v7344 = vld [vmem:[#allocation2 + $0xa8] sm:$0xff]
      %v7345 = vld [vmem:[#allocation2 + $0xb0] sm:$0xff]
      %v7346 = vld [vmem:[#allocation2 + $0xb8] sm:$0xff]
      %v7347 = vld [vmem:[#allocation2 + $0xc0] sm:$0xff]
      %v7348 = vld [vmem:[#allocation2 + $0xc8] sm:$0xff]
      %v7349 = vld [vmem:[#allocation2 + $0xd0] sm:$0xff]
      %v7350 = vld [vmem:[#allocation2 + $0xd8] sm:$0xff]
      %v7351 = vld [vmem:[#allocation2 + $0xe0] sm:$0xff]
      %v7352 = vld [vmem:[#allocation2 + $0xe8] sm:$0xff]
      %v7353 = vld [vmem:[#allocation2 + $0xf0] sm:$0xff]
      %v7354 = vld [vmem:[#allocation2 + $0xf8] sm:$0xff]
      %v7355 = vld [vmem:[#allocation2 + $0x100] sm:$0xff]
      %v7356 = vld [vmem:[#allocation2 + $0x108] sm:$0xff]
      %v7357 = vld [vmem:[#allocation2 + $0x110] sm:$0xff]
      %v7358 = vld [vmem:[#allocation2 + $0x118] sm:$0xff]
      %s7359 = scalar_lea.vmem %s3, 14
      %v7360 = vld [vmem:[%s7359] sm:$0x3]
      %v7362 = vsel %vm339, %v7305, 0
      %v7365 = vsel %vm339, %v7306, 0
      %v7368 = vsel %vm339, %v7307, 0
      %v7371 = vsel %vm339, %v7308, 0
      %v7374 = vsel %vm339, %v7309, 0
      %v7377 = vsel %vm339, %v7310, 0
      %v7380 = vsel %vm339, %v7311, 0
      %v7383 = vsel %vm339, %v7312, 0
      %v7386 = vsel %vm339, %v7313, 0
      %v7389 = vsel %vm339, %v7314, 0
      %v7392 = vsel %vm339, %v7315, 0
      %v7395 = vsel %vm339, %v7316, 0
      %v7398 = vsel %vm339, %v7317, 0
      %v7401 = vsel %vm339, %v7318, 0
      %v7404 = vsel %vm339, %v7319, 0
      %v7407 = vsel %vm339, %v7320, 0
      %v7410 = vsel %vm339, %v7321, 0
      %v7413 = vsel %vm339, %v7322, 0
      %v7416 = vsel %vm565, %v7360, 0
      %7418 = vmatprep.subr.bf16.mxu0 0
      %7419 = vmatpush1.bf16.msra.mxu0 0
      %7420 = vmatprep.subr.bf16.mxu0 0
      %7421 = vmatpush1.bf16.msra.mxu0 0
      %7422 = vmatprep.subr.bf16.mxu0 0
      %7423 = vmatpush1.bf16.msra.mxu0 0
      %7424 = vmatprep.subr.bf16.mxu0 0
      %7425 = vmatpush1.bf16.msra.mxu0 0
      %7426 = vmatprep.subr.bf16.mxu0 0
      %7427 = vmatpush1.bf16.msra.mxu0 0
      %7428 = vmatprep.subr.bf16.mxu0 0
      %7429 = vmatpush1.bf16.msra.mxu0 0
      %7430 = vmatprep.subr.bf16.mxu0 0
      %7431 = vmatpush1.bf16.msra.mxu0 0
      %7432 = vmatprep.subr.bf16.mxu0 0
      %7433 = vmatpush1.bf16.msra.mxu0 %v7416
      %7434 = vmatprep.subr.bf16.mxu0 0
      %7435 = vmatpush2.bf16.msra.mxu0 0
      %7436 = vmatprep.subr.bf16.mxu0 0
      %7437 = vmatpush2.bf16.msra.mxu0 0
      %7438 = vmatprep.subr.bf16.mxu0 0
      %7439 = vmatpush2.bf16.msra.mxu0 0
      %7440 = vmatprep.subr.bf16.mxu0 0
      %7441 = vmatpush2.bf16.msra.mxu0 0
      %7442 = vmatprep.subr.bf16.mxu0 0
      %7443 = vmatpush2.bf16.msra.mxu0 0
      %7444 = vmatprep.subr.bf16.mxu0 0
      %7445 = vmatpush2.bf16.msra.mxu0 0
      %7446 = vmatprep.subr.bf16.mxu0 0
      %7447 = vmatpush2.bf16.msra.mxu0 0
      %7448 = vmatprep.subr.bf16.mxu0 0
      %7449 = vmatpush2.bf16.msra.mxu0 0
      %7450 = vmatprep.mubr.bf16.mxu0 0
      %7451 = vmatmul.mubr.bf16.gmra.mxu0 %v7362
      %v7452 = vpop.f32.mrf.mxu0
      %v7453 = vadd.f32 0.0, %v7452
      %v7454 = vpop.f32.mrf.mxu0
      %v7455 = vpop.f32.mrf.mxu0
      %v7456 = vadd.f32 0.0, %v7455
      %v7457 = vpop.f32.mrf.mxu0
      %7458 = vmatprep.mubr.bf16.mxu0 0
      %7459 = vmatmul.mubr.bf16.gmra.mxu0 %v7365
      %v7460 = vpop.f32.mrf.mxu0
      %v7461 = vadd.f32 0.0, %v7460
      %v7462 = vpop.f32.mrf.mxu0
      %v7463 = vpop.f32.mrf.mxu0
      %v7464 = vadd.f32 0.0, %v7463
      %v7465 = vpop.f32.mrf.mxu0
      %7466 = vmatprep.mubr.bf16.mxu0 0
      %7467 = vmatmul.mubr.bf16.gmra.mxu0 %v7368
      %v7468 = vpop.f32.mrf.mxu0
      %v7469 = vadd.f32 0.0, %v7468
      %v7470 = vpop.f32.mrf.mxu0
      %v7471 = vpop.f32.mrf.mxu0
      %v7472 = vadd.f32 0.0, %v7471
      %v7473 = vpop.f32.mrf.mxu0
      %7474 = vmatprep.mubr.bf16.mxu0 0
      %7475 = vmatmul.mubr.bf16.gmra.mxu0 %v7371
      %v7476 = vpop.f32.mrf.mxu0
      %v7477 = vadd.f32 0.0, %v7476
      %v7478 = vpop.f32.mrf.mxu0
      %v7479 = vpop.f32.mrf.mxu0
      %v7480 = vadd.f32 0.0, %v7479
      %v7481 = vpop.f32.mrf.mxu0
      %7482 = vmatprep.mubr.bf16.mxu0 0
      %7483 = vmatmul.mubr.bf16.gmra.mxu0 %v7374
      %v7484 = vpop.f32.mrf.mxu0
      %v7485 = vadd.f32 0.0, %v7484
      %v7486 = vpop.f32.mrf.mxu0
      %v7487 = vpop.f32.mrf.mxu0
      %v7488 = vadd.f32 0.0, %v7487
      %v7489 = vpop.f32.mrf.mxu0
      %7490 = vmatprep.mubr.bf16.mxu0 0
      %7491 = vmatmul.mubr.bf16.gmra.mxu0 %v7377
      %v7492 = vpop.f32.mrf.mxu0
      %v7493 = vadd.f32 0.0, %v7492
      %v7494 = vpop.f32.mrf.mxu0
      %v7495 = vpop.f32.mrf.mxu0
      %v7496 = vadd.f32 0.0, %v7495
      %v7497 = vpop.f32.mrf.mxu0
      %7498 = vmatprep.mubr.bf16.mxu0 0
      %7499 = vmatmul.mubr.bf16.gmra.mxu0 %v7380
      %v7500 = vpop.f32.mrf.mxu0
      %v7501 = vadd.f32 0.0, %v7500
      %v7502 = vpop.f32.mrf.mxu0
      %v7503 = vpop.f32.mrf.mxu0
      %v7504 = vadd.f32 0.0, %v7503
      %v7505 = vpop.f32.mrf.mxu0
      %7506 = vmatprep.mubr.bf16.mxu0 0
      %7507 = vmatmul.mubr.bf16.gmra.mxu0 %v7383
      %v7508 = vpop.f32.mrf.mxu0
      %v7509 = vadd.f32 0.0, %v7508
      %v7510 = vpop.f32.mrf.mxu0
      %v7511 = vpop.f32.mrf.mxu0
      %v7512 = vadd.f32 0.0, %v7511
      %v7513 = vpop.f32.mrf.mxu0
      %7514 = vmatprep.mubr.bf16.mxu0 0
      %7515 = vmatmul.mubr.bf16.gmra.mxu0 %v7386
      %v7516 = vpop.f32.mrf.mxu0
      %v7517 = vadd.f32 0.0, %v7516
      %v7518 = vpop.f32.mrf.mxu0
      %v7519 = vpop.f32.mrf.mxu0
      %v7520 = vadd.f32 0.0, %v7519
      %v7521 = vpop.f32.mrf.mxu0
      %7522 = vmatprep.mubr.bf16.mxu0 0
      %7523 = vmatmul.mubr.bf16.gmra.mxu0 %v7389
      %v7524 = vpop.f32.mrf.mxu0
      %v7525 = vadd.f32 0.0, %v7524
      %v7526 = vpop.f32.mrf.mxu0
      %v7527 = vpop.f32.mrf.mxu0
      %v7528 = vadd.f32 0.0, %v7527
      %v7529 = vpop.f32.mrf.mxu0
      %7530 = vmatprep.mubr.bf16.mxu0 0
      %7531 = vmatmul.mubr.bf16.gmra.mxu0 %v7392
      %v7532 = vpop.f32.mrf.mxu0
      %v7533 = vadd.f32 0.0, %v7532
      %v7534 = vpop.f32.mrf.mxu0
      %v7535 = vpop.f32.mrf.mxu0
      %v7536 = vadd.f32 0.0, %v7535
      %v7537 = vpop.f32.mrf.mxu0
      %7538 = vmatprep.mubr.bf16.mxu0 0
      %7539 = vmatmul.mubr.bf16.gmra.mxu0 %v7395
      %v7540 = vpop.f32.mrf.mxu0
      %v7541 = vadd.f32 0.0, %v7540
      %v7542 = vpop.f32.mrf.mxu0
      %v7543 = vpop.f32.mrf.mxu0
      %v7544 = vadd.f32 0.0, %v7543
      %v7545 = vpop.f32.mrf.mxu0
      %7546 = vmatprep.mubr.bf16.mxu0 0
      %7547 = vmatmul.mubr.bf16.gmra.mxu0 %v7398
      %v7548 = vpop.f32.mrf.mxu0
      %v7549 = vadd.f32 0.0, %v7548
      %v7550 = vpop.f32.mrf.mxu0
      %v7551 = vpop.f32.mrf.mxu0
      %v7552 = vadd.f32 0.0, %v7551
      %v7553 = vpop.f32.mrf.mxu0
      %7554 = vmatprep.mubr.bf16.mxu0 0
      %7555 = vmatmul.mubr.bf16.gmra.mxu0 %v7401
      %v7556 = vpop.f32.mrf.mxu0
      %v7557 = vadd.f32 0.0, %v7556
      %v7558 = vpop.f32.mrf.mxu0
      %v7559 = vpop.f32.mrf.mxu0
      %v7560 = vadd.f32 0.0, %v7559
      %v7561 = vpop.f32.mrf.mxu0
      %7562 = vmatprep.mubr.bf16.mxu0 0
      %7563 = vmatmul.mubr.bf16.gmra.mxu0 %v7404
      %v7564 = vpop.f32.mrf.mxu0
      %v7565 = vadd.f32 0.0, %v7564
      %v7566 = vpop.f32.mrf.mxu0
      %v7567 = vpop.f32.mrf.mxu0
      %v7568 = vadd.f32 0.0, %v7567
      %v7569 = vpop.f32.mrf.mxu0
      %7570 = vmatprep.mubr.bf16.mxu0 0
      %7571 = vmatmul.mubr.bf16.gmra.mxu0 %v7407
      %v7572 = vpop.f32.mrf.mxu0
      %v7573 = vadd.f32 0.0, %v7572
      %v7574 = vpop.f32.mrf.mxu0
      %v7575 = vpop.f32.mrf.mxu0
      %v7576 = vadd.f32 0.0, %v7575
      %v7577 = vpop.f32.mrf.mxu0
      %7578 = vmatprep.mubr.bf16.mxu0 0
      %7579 = vmatmul.mubr.bf16.gmra.mxu0 %v7410
      %v7580 = vpop.f32.mrf.mxu0
      %v7581 = vadd.f32 0.0, %v7580
      %v7582 = vpop.f32.mrf.mxu0
      %v7583 = vpop.f32.mrf.mxu0
      %v7584 = vadd.f32 0.0, %v7583
      %v7585 = vpop.f32.mrf.mxu0
      %7586 = vmatprep.mubr.bf16.mxu0 0
      %7587 = vmatmul.mubr.bf16.gmra.mxu0 %v7413
      %v7588 = vpop.f32.mrf.mxu0
      %v7589 = vadd.f32 0.0, %v7588
      %v7590 = vpop.f32.mrf.mxu0
      %v7591 = vpop.f32.mrf.mxu0
      %v7592 = vadd.f32 0.0, %v7591
      %v7593 = vpop.f32.mrf.mxu0
      %7594 = vdwg.mxu0
      %v7595 = vadd.f32 %v7323, %v7453
      %v7596 = vadd.f32 %v7324, %v7456
      %v7597 = vadd.f32 %v7325, %v7461
      %v7598 = vadd.f32 %v7326, %v7464
      %v7599 = vadd.f32 %v7327, %v7469
      %v7600 = vadd.f32 %v7328, %v7472
      %v7601 = vadd.f32 %v7329, %v7477
      %v7602 = vadd.f32 %v7330, %v7480
      %v7603 = vadd.f32 %v7331, %v7485
      %v7604 = vadd.f32 %v7332, %v7488
      %v7605 = vadd.f32 %v7333, %v7493
      %v7606 = vadd.f32 %v7334, %v7496
      %v7607 = vadd.f32 %v7335, %v7501
      %v7608 = vadd.f32 %v7336, %v7504
      %v7609 = vadd.f32 %v7337, %v7509
      %v7610 = vadd.f32 %v7338, %v7512
      %v7611 = vadd.f32 %v7339, %v7517
      %v7612 = vadd.f32 %v7340, %v7520
      %v7613 = vadd.f32 %v7341, %v7525
      %v7614 = vadd.f32 %v7342, %v7528
      %v7615 = vadd.f32 %v7343, %v7533
      %v7616 = vadd.f32 %v7344, %v7536
      %v7617 = vadd.f32 %v7345, %v7541
      %v7618 = vadd.f32 %v7346, %v7544
      %v7619 = vadd.f32 %v7347, %v7549
      %v7620 = vadd.f32 %v7348, %v7552
      %v7621 = vadd.f32 %v7349, %v7557
      %v7622 = vadd.f32 %v7350, %v7560
      %v7623 = vadd.f32 %v7351, %v7565
      %v7624 = vadd.f32 %v7352, %v7568
      %v7625 = vadd.f32 %v7353, %v7573
      %v7626 = vadd.f32 %v7354, %v7576
      %v7627 = vadd.f32 %v7355, %v7581
      %v7628 = vadd.f32 %v7356, %v7584
      %v7629 = vadd.f32 %v7357, %v7589
      %v7630 = vadd.f32 %v7358, %v7592
      %7631 = vst.msk [vmem:[#allocation2] sm:$0xff] %vm339, %v7595
      %7632 = vst.msk [vmem:[#allocation2 + $0x8] sm:$0xff] %vm339, %v7596
      %7633 = vst.msk [vmem:[#allocation2 + $0x10] sm:$0xff] %vm339, %v7597
      %7634 = vst.msk [vmem:[#allocation2 + $0x18] sm:$0xff] %vm339, %v7598
      %7635 = vst.msk [vmem:[#allocation2 + $0x20] sm:$0xff] %vm339, %v7599
      %7636 = vst.msk [vmem:[#allocation2 + $0x28] sm:$0xff] %vm339, %v7600
      %7637 = vst.msk [vmem:[#allocation2 + $0x30] sm:$0xff] %vm339, %v7601
      %7638 = vst.msk [vmem:[#allocation2 + $0x38] sm:$0xff] %vm339, %v7602
      %7639 = vst.msk [vmem:[#allocation2 + $0x40] sm:$0xff] %vm339, %v7603
      %7640 = vst.msk [vmem:[#allocation2 + $0x48] sm:$0xff] %vm339, %v7604
      %7641 = vst.msk [vmem:[#allocation2 + $0x50] sm:$0xff] %vm339, %v7605
      %7642 = vst.msk [vmem:[#allocation2 + $0x58] sm:$0xff] %vm339, %v7606
      %7643 = vst.msk [vmem:[#allocation2 + $0x60] sm:$0xff] %vm339, %v7607
      %7644 = vst.msk [vmem:[#allocation2 + $0x68] sm:$0xff] %vm339, %v7608
      %7645 = vst.msk [vmem:[#allocation2 + $0x70] sm:$0xff] %vm339, %v7609
      %7646 = vst.msk [vmem:[#allocation2 + $0x78] sm:$0xff] %vm339, %v7610
      %7647 = vst.msk [vmem:[#allocation2 + $0x80] sm:$0xff] %vm339, %v7611
      %7648 = vst.msk [vmem:[#allocation2 + $0x88] sm:$0xff] %vm339, %v7612
      %7649 = vst.msk [vmem:[#allocation2 + $0x90] sm:$0xff] %vm339, %v7613
      %7650 = vst.msk [vmem:[#allocation2 + $0x98] sm:$0xff] %vm339, %v7614
      %7651 = vst.msk [vmem:[#allocation2 + $0xa0] sm:$0xff] %vm339, %v7615
      %7652 = vst.msk [vmem:[#allocation2 + $0xa8] sm:$0xff] %vm339, %v7616
      %7653 = vst.msk [vmem:[#allocation2 + $0xb0] sm:$0xff] %vm339, %v7617
      %7654 = vst.msk [vmem:[#allocation2 + $0xb8] sm:$0xff] %vm339, %v7618
      %7655 = vst.msk [vmem:[#allocation2 + $0xc0] sm:$0xff] %vm339, %v7619
      %7656 = vst.msk [vmem:[#allocation2 + $0xc8] sm:$0xff] %vm339, %v7620
      %7657 = vst.msk [vmem:[#allocation2 + $0xd0] sm:$0xff] %vm339, %v7621
      %7658 = vst.msk [vmem:[#allocation2 + $0xd8] sm:$0xff] %vm339, %v7622
      %7659 = vst.msk [vmem:[#allocation2 + $0xe0] sm:$0xff] %vm339, %v7623
      %7660 = vst.msk [vmem:[#allocation2 + $0xe8] sm:$0xff] %vm339, %v7624
      %7661 = vst.msk [vmem:[#allocation2 + $0xf0] sm:$0xff] %vm339, %v7625
      %7662 = vst.msk [vmem:[#allocation2 + $0xf8] sm:$0xff] %vm339, %v7626
      %7663 = vst.msk [vmem:[#allocation2 + $0x100] sm:$0xff] %vm339, %v7627
      %7664 = vst.msk [vmem:[#allocation2 + $0x108] sm:$0xff] %vm339, %v7628
      %7665 = vst.msk [vmem:[#allocation2 + $0x110] sm:$0xff] %vm339, %v7629
      %7666 = vst.msk [vmem:[#allocation2 + $0x118] sm:$0xff] %vm339, %v7630
      %v7667 = vld [vmem:[#allocation3 + $0x26] sm:$0xff]
      %v7668 = vld [vmem:[#allocation3 + $0x2e] sm:$0xff]
      %v7669 = vld [vmem:[#allocation3 + $0x36] sm:$0xff]
      %v7670 = vld [vmem:[#allocation3 + $0x3e] sm:$0xff]
      %v7671 = vld [vmem:[#allocation3 + $0x46] sm:$0xff]
      %v7672 = vld [vmem:[#allocation3 + $0x4e] sm:$0xff]
      %v7673 = vld [vmem:[#allocation3 + $0x56] sm:$0xff]
      %v7674 = vld [vmem:[#allocation3 + $0x5e] sm:$0xff]
      %v7675 = vld [vmem:[#allocation3 + $0x66] sm:$0xff]
      %v7676 = vld [vmem:[#allocation3 + $0x6e] sm:$0xff]
      %v7677 = vld [vmem:[#allocation3 + $0x76] sm:$0xff]
      %v7678 = vld [vmem:[#allocation3 + $0x7e] sm:$0xff]
      %v7679 = vld [vmem:[#allocation3 + $0x86] sm:$0xff]
      %v7680 = vld [vmem:[#allocation3 + $0x8e] sm:$0xff]
      %v7681 = vld [vmem:[#allocation3 + $0x96] sm:$0xff]
      %v7682 = vld [vmem:[#allocation3 + $0x9e] sm:$0xff]
      %v7683 = vld [vmem:[#allocation3 + $0xa6] sm:$0xff]
      %v7684 = vld [vmem:[#allocation3 + $0xae] sm:$0xff]
      %v7685 = vld [vmem:[#allocation3 + $0xb6] sm:$0xff]
      %v7686 = vld [vmem:[#allocation3 + $0xbe] sm:$0xff]
      %v7687 = vld [vmem:[#allocation3 + $0xc6] sm:$0xff]
      %v7688 = vld [vmem:[#allocation3 + $0xce] sm:$0xff]
      %v7689 = vld [vmem:[#allocation3 + $0xd6] sm:$0xff]
      %v7690 = vld [vmem:[#allocation3 + $0xde] sm:$0xff]
      %v7691 = vld [vmem:[#allocation3 + $0xe6] sm:$0xff]
      %v7692 = vld [vmem:[#allocation3 + $0xee] sm:$0xff]
      %v7693 = vld [vmem:[#allocation3 + $0xf6] sm:$0xff]
      %v7694 = vld [vmem:[#allocation3 + $0xfe] sm:$0xff]
      %v7695 = vld [vmem:[#allocation3 + $0x106] sm:$0xff]
      %v7696 = vld [vmem:[#allocation3 + $0x10e] sm:$0xff]
      %v7697 = vld [vmem:[#allocation3 + $0x116] sm:$0xff]
      %v7698 = vld [vmem:[#allocation3 + $0x11e] sm:$0xff]
      %v7699 = vld [vmem:[#allocation3 + $0x126] sm:$0xff]
      %v7700 = vld [vmem:[#allocation3 + $0x12e] sm:$0xff]
      %v7701 = vld [vmem:[#allocation3 + $0x136] sm:$0xff]
      %v7702 = vld [vmem:[#allocation3 + $0x13e] sm:$0xff]
      %v7703 = vpack.c.bf16 %v7668, %v7667
      %v7704 = vpack.c.bf16 %v7670, %v7669
      %v7705 = vpack.c.bf16 %v7672, %v7671
      %v7706 = vpack.c.bf16 %v7674, %v7673
      %v7707 = vpack.c.bf16 %v7676, %v7675
      %v7708 = vpack.c.bf16 %v7678, %v7677
      %v7709 = vpack.c.bf16 %v7680, %v7679
      %v7710 = vpack.c.bf16 %v7682, %v7681
      %v7711 = vpack.c.bf16 %v7684, %v7683
      %v7712 = vpack.c.bf16 %v7686, %v7685
      %v7713 = vpack.c.bf16 %v7688, %v7687
      %v7714 = vpack.c.bf16 %v7690, %v7689
      %v7715 = vpack.c.bf16 %v7692, %v7691
      %v7716 = vpack.c.bf16 %v7694, %v7693
      %v7717 = vpack.c.bf16 %v7696, %v7695
      %v7718 = vpack.c.bf16 %v7698, %v7697
      %v7719 = vpack.c.bf16 %v7700, %v7699
      %v7720 = vpack.c.bf16 %v7702, %v7701
      %v7721 = vld [vmem:[#allocation2] sm:$0xff]
      %v7722 = vld [vmem:[#allocation2 + $0x8] sm:$0xff]
      %v7723 = vld [vmem:[#allocation2 + $0x10] sm:$0xff]
      %v7724 = vld [vmem:[#allocation2 + $0x18] sm:$0xff]
      %v7725 = vld [vmem:[#allocation2 + $0x20] sm:$0xff]
      %v7726 = vld [vmem:[#allocation2 + $0x28] sm:$0xff]
      %v7727 = vld [vmem:[#allocation2 + $0x30] sm:$0xff]
      %v7728 = vld [vmem:[#allocation2 + $0x38] sm:$0xff]
      %v7729 = vld [vmem:[#allocation2 + $0x40] sm:$0xff]
      %v7730 = vld [vmem:[#allocation2 + $0x48] sm:$0xff]
      %v7731 = vld [vmem:[#allocation2 + $0x50] sm:$0xff]
      %v7732 = vld [vmem:[#allocation2 + $0x58] sm:$0xff]
      %v7733 = vld [vmem:[#allocation2 + $0x60] sm:$0xff]
      %v7734 = vld [vmem:[#allocation2 + $0x68] sm:$0xff]
      %v7735 = vld [vmem:[#allocation2 + $0x70] sm:$0xff]
      %v7736 = vld [vmem:[#allocation2 + $0x78] sm:$0xff]
      %v7737 = vld [vmem:[#allocation2 + $0x80] sm:$0xff]
      %v7738 = vld [vmem:[#allocation2 + $0x88] sm:$0xff]
      %v7739 = vld [vmem:[#allocation2 + $0x90] sm:$0xff]
      %v7740 = vld [vmem:[#allocation2 + $0x98] sm:$0xff]
      %v7741 = vld [vmem:[#allocation2 + $0xa0] sm:$0xff]
      %v7742 = vld [vmem:[#allocation2 + $0xa8] sm:$0xff]
      %v7743 = vld [vmem:[#allocation2 + $0xb0] sm:$0xff]
      %v7744 = vld [vmem:[#allocation2 + $0xb8] sm:$0xff]
      %v7745 = vld [vmem:[#allocation2 + $0xc0] sm:$0xff]
      %v7746 = vld [vmem:[#allocation2 + $0xc8] sm:$0xff]
      %v7747 = vld [vmem:[#allocation2 + $0xd0] sm:$0xff]
      %v7748 = vld [vmem:[#allocation2 + $0xd8] sm:$0xff]
      %v7749 = vld [vmem:[#allocation2 + $0xe0] sm:$0xff]
      %v7750 = vld [vmem:[#allocation2 + $0xe8] sm:$0xff]
      %v7751 = vld [vmem:[#allocation2 + $0xf0] sm:$0xff]
      %v7752 = vld [vmem:[#allocation2 + $0xf8] sm:$0xff]
      %v7753 = vld [vmem:[#allocation2 + $0x100] sm:$0xff]
      %v7754 = vld [vmem:[#allocation2 + $0x108] sm:$0xff]
      %v7755 = vld [vmem:[#allocation2 + $0x110] sm:$0xff]
      %v7756 = vld [vmem:[#allocation2 + $0x118] sm:$0xff]
      %s7757 = scalar_lea.vmem %s3, 16
      %v7758 = vld [vmem:[%s7757] sm:$0x3]
      %v7760 = vsel %vm339, %v7703, 0
      %v7763 = vsel %vm339, %v7704, 0
      %v7766 = vsel %vm339, %v7705, 0
      %v7769 = vsel %vm339, %v7706, 0
      %v7772 = vsel %vm339, %v7707, 0
      %v7775 = vsel %vm339, %v7708, 0
      %v7778 = vsel %vm339, %v7709, 0
      %v7781 = vsel %vm339, %v7710, 0
      %v7784 = vsel %vm339, %v7711, 0
      %v7787 = vsel %vm339, %v7712, 0
      %v7790 = vsel %vm339, %v7713, 0
      %v7793 = vsel %vm339, %v7714, 0
      %v7796 = vsel %vm339, %v7715, 0
      %v7799 = vsel %vm339, %v7716, 0
      %v7802 = vsel %vm339, %v7717, 0
      %v7805 = vsel %vm339, %v7718, 0
      %v7808 = vsel %vm339, %v7719, 0
      %v7811 = vsel %vm339, %v7720, 0
      %v7814 = vsel %vm565, %v7758, 0
      %7816 = vmatprep.subr.bf16.mxu0 0
      %7817 = vmatpush1.bf16.msra.mxu0 0
      %7818 = vmatprep.subr.bf16.mxu0 0
      %7819 = vmatpush1.bf16.msra.mxu0 0
      %7820 = vmatprep.subr.bf16.mxu0 0
      %7821 = vmatpush1.bf16.msra.mxu0 0
      %7822 = vmatprep.subr.bf16.mxu0 0
      %7823 = vmatpush1.bf16.msra.mxu0 0
      %7824 = vmatprep.subr.bf16.mxu0 0
      %7825 = vmatpush1.bf16.msra.mxu0 0
      %7826 = vmatprep.subr.bf16.mxu0 0
      %7827 = vmatpush1.bf16.msra.mxu0 0
      %7828 = vmatprep.subr.bf16.mxu0 0
      %7829 = vmatpush1.bf16.msra.mxu0 0
      %7830 = vmatprep.subr.bf16.mxu0 0
      %7831 = vmatpush1.bf16.msra.mxu0 %v7814
      %7832 = vmatprep.subr.bf16.mxu0 0
      %7833 = vmatpush2.bf16.msra.mxu0 0
      %7834 = vmatprep.subr.bf16.mxu0 0
      %7835 = vmatpush2.bf16.msra.mxu0 0
      %7836 = vmatprep.subr.bf16.mxu0 0
      %7837 = vmatpush2.bf16.msra.mxu0 0
      %7838 = vmatprep.subr.bf16.mxu0 0
      %7839 = vmatpush2.bf16.msra.mxu0 0
      %7840 = vmatprep.subr.bf16.mxu0 0
      %7841 = vmatpush2.bf16.msra.mxu0 0
      %7842 = vmatprep.subr.bf16.mxu0 0
      %7843 = vmatpush2.bf16.msra.mxu0 0
      %7844 = vmatprep.subr.bf16.mxu0 0
      %7845 = vmatpush2.bf16.msra.mxu0 0
      %7846 = vmatprep.subr.bf16.mxu0 0
      %7847 = vmatpush2.bf16.msra.mxu0 0
      %7848 = vmatprep.mubr.bf16.mxu0 0
      %7849 = vmatmul.mubr.bf16.gmra.mxu0 %v7760
      %v7850 = vpop.f32.mrf.mxu0
      %v7851 = vadd.f32 0.0, %v7850
      %v7852 = vpop.f32.mrf.mxu0
      %v7853 = vpop.f32.mrf.mxu0
      %v7854 = vadd.f32 0.0, %v7853
      %v7855 = vpop.f32.mrf.mxu0
      %7856 = vmatprep.mubr.bf16.mxu0 0
      %7857 = vmatmul.mubr.bf16.gmra.mxu0 %v7763
      %v7858 = vpop.f32.mrf.mxu0
      %v7859 = vadd.f32 0.0, %v7858
      %v7860 = vpop.f32.mrf.mxu0
      %v7861 = vpop.f32.mrf.mxu0
      %v7862 = vadd.f32 0.0, %v7861
      %v7863 = vpop.f32.mrf.mxu0
      %7864 = vmatprep.mubr.bf16.mxu0 0
      %7865 = vmatmul.mubr.bf16.gmra.mxu0 %v7766
      %v7866 = vpop.f32.mrf.mxu0
      %v7867 = vadd.f32 0.0, %v7866
      %v7868 = vpop.f32.mrf.mxu0
      %v7869 = vpop.f32.mrf.mxu0
      %v7870 = vadd.f32 0.0, %v7869
      %v7871 = vpop.f32.mrf.mxu0
      %7872 = vmatprep.mubr.bf16.mxu0 0
      %7873 = vmatmul.mubr.bf16.gmra.mxu0 %v7769
      %v7874 = vpop.f32.mrf.mxu0
      %v7875 = vadd.f32 0.0, %v7874
      %v7876 = vpop.f32.mrf.mxu0
      %v7877 = vpop.f32.mrf.mxu0
      %v7878 = vadd.f32 0.0, %v7877
      %v7879 = vpop.f32.mrf.mxu0
      %7880 = vmatprep.mubr.bf16.mxu0 0
      %7881 = vmatmul.mubr.bf16.gmra.mxu0 %v7772
      %v7882 = vpop.f32.mrf.mxu0
      %v7883 = vadd.f32 0.0, %v7882
      %v7884 = vpop.f32.mrf.mxu0
      %v7885 = vpop.f32.mrf.mxu0
      %v7886 = vadd.f32 0.0, %v7885
      %v7887 = vpop.f32.mrf.mxu0
      %7888 = vmatprep.mubr.bf16.mxu0 0
      %7889 = vmatmul.mubr.bf16.gmra.mxu0 %v7775
      %v7890 = vpop.f32.mrf.mxu0
      %v7891 = vadd.f32 0.0, %v7890
      %v7892 = vpop.f32.mrf.mxu0
      %v7893 = vpop.f32.mrf.mxu0
      %v7894 = vadd.f32 0.0, %v7893
      %v7895 = vpop.f32.mrf.mxu0
      %7896 = vmatprep.mubr.bf16.mxu0 0
      %7897 = vmatmul.mubr.bf16.gmra.mxu0 %v7778
      %v7898 = vpop.f32.mrf.mxu0
      %v7899 = vadd.f32 0.0, %v7898
      %v7900 = vpop.f32.mrf.mxu0
      %v7901 = vpop.f32.mrf.mxu0
      %v7902 = vadd.f32 0.0, %v7901
      %v7903 = vpop.f32.mrf.mxu0
      %7904 = vmatprep.mubr.bf16.mxu0 0
      %7905 = vmatmul.mubr.bf16.gmra.mxu0 %v7781
      %v7906 = vpop.f32.mrf.mxu0
      %v7907 = vadd.f32 0.0, %v7906
      %v7908 = vpop.f32.mrf.mxu0
      %v7909 = vpop.f32.mrf.mxu0
      %v7910 = vadd.f32 0.0, %v7909
      %v7911 = vpop.f32.mrf.mxu0
      %7912 = vmatprep.mubr.bf16.mxu0 0
      %7913 = vmatmul.mubr.bf16.gmra.mxu0 %v7784
      %v7914 = vpop.f32.mrf.mxu0
      %v7915 = vadd.f32 0.0, %v7914
      %v7916 = vpop.f32.mrf.mxu0
      %v7917 = vpop.f32.mrf.mxu0
      %v7918 = vadd.f32 0.0, %v7917
      %v7919 = vpop.f32.mrf.mxu0
      %7920 = vmatprep.mubr.bf16.mxu0 0
      %7921 = vmatmul.mubr.bf16.gmra.mxu0 %v7787
      %v7922 = vpop.f32.mrf.mxu0
      %v7923 = vadd.f32 0.0, %v7922
      %v7924 = vpop.f32.mrf.mxu0
      %v7925 = vpop.f32.mrf.mxu0
      %v7926 = vadd.f32 0.0, %v7925
      %v7927 = vpop.f32.mrf.mxu0
      %7928 = vmatprep.mubr.bf16.mxu0 0
      %7929 = vmatmul.mubr.bf16.gmra.mxu0 %v7790
      %v7930 = vpop.f32.mrf.mxu0
      %v7931 = vadd.f32 0.0, %v7930
      %v7932 = vpop.f32.mrf.mxu0
      %v7933 = vpop.f32.mrf.mxu0
      %v7934 = vadd.f32 0.0, %v7933
      %v7935 = vpop.f32.mrf.mxu0
      %7936 = vmatprep.mubr.bf16.mxu0 0
      %7937 = vmatmul.mubr.bf16.gmra.mxu0 %v7793
      %v7938 = vpop.f32.mrf.mxu0
      %v7939 = vadd.f32 0.0, %v7938
      %v7940 = vpop.f32.mrf.mxu0
      %v7941 = vpop.f32.mrf.mxu0
      %v7942 = vadd.f32 0.0, %v7941
      %v7943 = vpop.f32.mrf.mxu0
      %7944 = vmatprep.mubr.bf16.mxu0 0
      %7945 = vmatmul.mubr.bf16.gmra.mxu0 %v7796
      %v7946 = vpop.f32.mrf.mxu0
      %v7947 = vadd.f32 0.0, %v7946
      %v7948 = vpop.f32.mrf.mxu0
      %v7949 = vpop.f32.mrf.mxu0
      %v7950 = vadd.f32 0.0, %v7949
      %v7951 = vpop.f32.mrf.mxu0
      %7952 = vmatprep.mubr.bf16.mxu0 0
      %7953 = vmatmul.mubr.bf16.gmra.mxu0 %v7799
      %v7954 = vpop.f32.mrf.mxu0
      %v7955 = vadd.f32 0.0, %v7954
      %v7956 = vpop.f32.mrf.mxu0
      %v7957 = vpop.f32.mrf.mxu0
      %v7958 = vadd.f32 0.0, %v7957
      %v7959 = vpop.f32.mrf.mxu0
      %7960 = vmatprep.mubr.bf16.mxu0 0
      %7961 = vmatmul.mubr.bf16.gmra.mxu0 %v7802
      %v7962 = vpop.f32.mrf.mxu0
      %v7963 = vadd.f32 0.0, %v7962
      %v7964 = vpop.f32.mrf.mxu0
      %v7965 = vpop.f32.mrf.mxu0
      %v7966 = vadd.f32 0.0, %v7965
      %v7967 = vpop.f32.mrf.mxu0
      %7968 = vmatprep.mubr.bf16.mxu0 0
      %7969 = vmatmul.mubr.bf16.gmra.mxu0 %v7805
      %v7970 = vpop.f32.mrf.mxu0
      %v7971 = vadd.f32 0.0, %v7970
      %v7972 = vpop.f32.mrf.mxu0
      %v7973 = vpop.f32.mrf.mxu0
      %v7974 = vadd.f32 0.0, %v7973
      %v7975 = vpop.f32.mrf.mxu0
      %7976 = vmatprep.mubr.bf16.mxu0 0
      %7977 = vmatmul.mubr.bf16.gmra.mxu0 %v7808
      %v7978 = vpop.f32.mrf.mxu0
      %v7979 = vadd.f32 0.0, %v7978
      %v7980 = vpop.f32.mrf.mxu0
      %v7981 = vpop.f32.mrf.mxu0
      %v7982 = vadd.f32 0.0, %v7981
      %v7983 = vpop.f32.mrf.mxu0
      %7984 = vmatprep.mubr.bf16.mxu0 0
      %7985 = vmatmul.mubr.bf16.gmra.mxu0 %v7811
      %v7986 = vpop.f32.mrf.mxu0
      %v7987 = vadd.f32 0.0, %v7986
      %v7988 = vpop.f32.mrf.mxu0
      %v7989 = vpop.f32.mrf.mxu0
      %v7990 = vadd.f32 0.0, %v7989
      %v7991 = vpop.f32.mrf.mxu0
      %7992 = vdwg.mxu0
      %v7993 = vadd.f32 %v7721, %v7851
      %v7994 = vadd.f32 %v7722, %v7854
      %v7995 = vadd.f32 %v7723, %v7859
      %v7996 = vadd.f32 %v7724, %v7862
      %v7997 = vadd.f32 %v7725, %v7867
      %v7998 = vadd.f32 %v7726, %v7870
      %v7999 = vadd.f32 %v7727, %v7875
      %v8000 = vadd.f32 %v7728, %v7878
      %v8001 = vadd.f32 %v7729, %v7883
      %v8002 = vadd.f32 %v7730, %v7886
      %v8003 = vadd.f32 %v7731, %v7891
      %v8004 = vadd.f32 %v7732, %v7894
      %v8005 = vadd.f32 %v7733, %v7899
      %v8006 = vadd.f32 %v7734, %v7902
      %v8007 = vadd.f32 %v7735, %v7907
      %v8008 = vadd.f32 %v7736, %v7910
      %v8009 = vadd.f32 %v7737, %v7915
      %v8010 = vadd.f32 %v7738, %v7918
      %v8011 = vadd.f32 %v7739, %v7923
      %v8012 = vadd.f32 %v7740, %v7926
      %v8013 = vadd.f32 %v7741, %v7931
      %v8014 = vadd.f32 %v7742, %v7934
      %v8015 = vadd.f32 %v7743, %v7939
      %v8016 = vadd.f32 %v7744, %v7942
      %v8017 = vadd.f32 %v7745, %v7947
      %v8018 = vadd.f32 %v7746, %v7950
      %v8019 = vadd.f32 %v7747, %v7955
      %v8020 = vadd.f32 %v7748, %v7958
      %v8021 = vadd.f32 %v7749, %v7963
      %v8022 = vadd.f32 %v7750, %v7966
      %v8023 = vadd.f32 %v7751, %v7971
      %v8024 = vadd.f32 %v7752, %v7974
      %v8025 = vadd.f32 %v7753, %v7979
      %v8026 = vadd.f32 %v7754, %v7982
      %v8027 = vadd.f32 %v7755, %v7987
      %v8028 = vadd.f32 %v7756, %v7990
      %8029 = vst.msk [vmem:[#allocation2] sm:$0xff] %vm339, %v7993
      %8030 = vst.msk [vmem:[#allocation2 + $0x8] sm:$0xff] %vm339, %v7994
      %8031 = vst.msk [vmem:[#allocation2 + $0x10] sm:$0xff] %vm339, %v7995
      %8032 = vst.msk [vmem:[#allocation2 + $0x18] sm:$0xff] %vm339, %v7996
      %8033 = vst.msk [vmem:[#allocation2 + $0x20] sm:$0xff] %vm339, %v7997
      %8034 = vst.msk [vmem:[#allocation2 + $0x28] sm:$0xff] %vm339, %v7998
      %8035 = vst.msk [vmem:[#allocation2 + $0x30] sm:$0xff] %vm339, %v7999
      %8036 = vst.msk [vmem:[#allocation2 + $0x38] sm:$0xff] %vm339, %v8000
      %8037 = vst.msk [vmem:[#allocation2 + $0x40] sm:$0xff] %vm339, %v8001
      %8038 = vst.msk [vmem:[#allocation2 + $0x48] sm:$0xff] %vm339, %v8002
      %8039 = vst.msk [vmem:[#allocation2 + $0x50] sm:$0xff] %vm339, %v8003
      %8040 = vst.msk [vmem:[#allocation2 + $0x58] sm:$0xff] %vm339, %v8004
      %8041 = vst.msk [vmem:[#allocation2 + $0x60] sm:$0xff] %vm339, %v8005
      %8042 = vst.msk [vmem:[#allocation2 + $0x68] sm:$0xff] %vm339, %v8006
      %8043 = vst.msk [vmem:[#allocation2 + $0x70] sm:$0xff] %vm339, %v8007
      %8044 = vst.msk [vmem:[#allocation2 + $0x78] sm:$0xff] %vm339, %v8008
      %8045 = vst.msk [vmem:[#allocation2 + $0x80] sm:$0xff] %vm339, %v8009
      %8046 = vst.msk [vmem:[#allocation2 + $0x88] sm:$0xff] %vm339, %v8010
      %8047 = vst.msk [vmem:[#allocation2 + $0x90] sm:$0xff] %vm339, %v8011
      %8048 = vst.msk [vmem:[#allocation2 + $0x98] sm:$0xff] %vm339, %v8012
      %8049 = vst.msk [vmem:[#allocation2 + $0xa0] sm:$0xff] %vm339, %v8013
      %8050 = vst.msk [vmem:[#allocation2 + $0xa8] sm:$0xff] %vm339, %v8014
      %8051 = vst.msk [vmem:[#allocation2 + $0xb0] sm:$0xff] %vm339, %v8015
      %8052 = vst.msk [vmem:[#allocation2 + $0xb8] sm:$0xff] %vm339, %v8016
      %8053 = vst.msk [vmem:[#allocation2 + $0xc0] sm:$0xff] %vm339, %v8017
      %8054 = vst.msk [vmem:[#allocation2 + $0xc8] sm:$0xff] %vm339, %v8018
      %8055 = vst.msk [vmem:[#allocation2 + $0xd0] sm:$0xff] %vm339, %v8019
      %8056 = vst.msk [vmem:[#allocation2 + $0xd8] sm:$0xff] %vm339, %v8020
      %8057 = vst.msk [vmem:[#allocation2 + $0xe0] sm:$0xff] %vm339, %v8021
      %8058 = vst.msk [vmem:[#allocation2 + $0xe8] sm:$0xff] %vm339, %v8022
      %8059 = vst.msk [vmem:[#allocation2 + $0xf0] sm:$0xff] %vm339, %v8023
      %8060 = vst.msk [vmem:[#allocation2 + $0xf8] sm:$0xff] %vm339, %v8024
      %8061 = vst.msk [vmem:[#allocation2 + $0x100] sm:$0xff] %vm339, %v8025
      %8062 = vst.msk [vmem:[#allocation2 + $0x108] sm:$0xff] %vm339, %v8026
      %8063 = vst.msk [vmem:[#allocation2 + $0x110] sm:$0xff] %vm339, %v8027
      %8064 = vst.msk [vmem:[#allocation2 + $0x118] sm:$0xff] %vm339, %v8028
      %v8065 = vld [vmem:[#allocation2] sm:$0xff]
      %v8066 = vld [vmem:[#allocation2 + $0x8] sm:$0xff]
      %v8067 = vld [vmem:[#allocation2 + $0x10] sm:$0xff]
      %v8068 = vld [vmem:[#allocation2 + $0x18] sm:$0xff]
      %v8069 = vld [vmem:[#allocation2 + $0x20] sm:$0xff]
      %v8070 = vld [vmem:[#allocation2 + $0x28] sm:$0xff]
      %v8071 = vld [vmem:[#allocation2 + $0x30] sm:$0xff]
      %v8072 = vld [vmem:[#allocation2 + $0x38] sm:$0xff]
      %v8073 = vld [vmem:[#allocation2 + $0x40] sm:$0xff]
      %v8074 = vld [vmem:[#allocation2 + $0x48] sm:$0xff]
      %v8075 = vld [vmem:[#allocation2 + $0x50] sm:$0xff]
      %v8076 = vld [vmem:[#allocation2 + $0x58] sm:$0xff]
      %v8077 = vld [vmem:[#allocation2 + $0x60] sm:$0xff]
      %v8078 = vld [vmem:[#allocation2 + $0x68] sm:$0xff]
      %v8079 = vld [vmem:[#allocation2 + $0x70] sm:$0xff]
      %v8080 = vld [vmem:[#allocation2 + $0x78] sm:$0xff]
      %v8081 = vld [vmem:[#allocation2 + $0x80] sm:$0xff]
      %v8082 = vld [vmem:[#allocation2 + $0x88] sm:$0xff]
      %v8083 = vld [vmem:[#allocation2 + $0x90] sm:$0xff]
      %v8084 = vld [vmem:[#allocation2 + $0x98] sm:$0xff]
      %v8085 = vld [vmem:[#allocation2 + $0xa0] sm:$0xff]
      %v8086 = vld [vmem:[#allocation2 + $0xa8] sm:$0xff]
      %v8087 = vld [vmem:[#allocation2 + $0xb0] sm:$0xff]
      %v8088 = vld [vmem:[#allocation2 + $0xb8] sm:$0xff]
      %v8089 = vld [vmem:[#allocation2 + $0xc0] sm:$0xff]
      %v8090 = vld [vmem:[#allocation2 + $0xc8] sm:$0xff]
      %v8091 = vld [vmem:[#allocation2 + $0xd0] sm:$0xff]
      %v8092 = vld [vmem:[#allocation2 + $0xd8] sm:$0xff]
      %v8093 = vld [vmem:[#allocation2 + $0xe0] sm:$0xff]
      %v8094 = vld [vmem:[#allocation2 + $0xe8] sm:$0xff]
      %v8095 = vld [vmem:[#allocation2 + $0xf0] sm:$0xff]
      %v8096 = vld [vmem:[#allocation2 + $0xf8] sm:$0xff]
      %v8097 = vld [vmem:[#allocation2 + $0x100] sm:$0xff]
      %v8098 = vld [vmem:[#allocation2 + $0x108] sm:$0xff]
      %v8099 = vld [vmem:[#allocation2 + $0x110] sm:$0xff]
      %v8100 = vld [vmem:[#allocation2 + $0x118] sm:$0xff]
      %v8101 = vld [vmem:[%s4] sm:$0x1]
      %v8103 = vlaneseq
      %v8104 = vshrl.u32 %v8103, 7
      %v8105 = vsub.s32 0, %v8104
      %v8106 = vrot.slane %v8101, %v8105
      %v8108 = vadd.f32 %v8065, %v8106
      %v8109 = vadd.f32 %v8066, %v8106
      %v8110 = vadd.f32 %v8067, %v8106
      %v8111 = vadd.f32 %v8068, %v8106
      %v8112 = vadd.f32 %v8069, %v8106
      %v8113 = vadd.f32 %v8070, %v8106
      %v8114 = vadd.f32 %v8071, %v8106
      %v8115 = vadd.f32 %v8072, %v8106
      %v8116 = vadd.f32 %v8073, %v8106
      %v8117 = vadd.f32 %v8074, %v8106
      %v8118 = vadd.f32 %v8075, %v8106
      %v8119 = vadd.f32 %v8076, %v8106
      %v8120 = vadd.f32 %v8077, %v8106
      %v8121 = vadd.f32 %v8078, %v8106
      %v8122 = vadd.f32 %v8079, %v8106
      %v8123 = vadd.f32 %v8080, %v8106
      %v8124 = vadd.f32 %v8081, %v8106
      %v8125 = vadd.f32 %v8082, %v8106
      %v8126 = vadd.f32 %v8083, %v8106
      %v8127 = vadd.f32 %v8084, %v8106
      %v8128 = vadd.f32 %v8085, %v8106
      %v8129 = vadd.f32 %v8086, %v8106
      %v8130 = vadd.f32 %v8087, %v8106
      %v8131 = vadd.f32 %v8088, %v8106
      %v8132 = vadd.f32 %v8089, %v8106
      %v8133 = vadd.f32 %v8090, %v8106
      %v8134 = vadd.f32 %v8091, %v8106
      %v8135 = vadd.f32 %v8092, %v8106
      %v8136 = vadd.f32 %v8093, %v8106
      %v8137 = vadd.f32 %v8094, %v8106
      %v8138 = vadd.f32 %v8095, %v8106
      %v8139 = vadd.f32 %v8096, %v8106
      %v8140 = vadd.f32 %v8097, %v8106
      %v8141 = vadd.f32 %v8098, %v8106
      %v8142 = vadd.f32 %v8099, %v8106
      %v8143 = vadd.f32 %v8100, %v8106
      %v8144 = vmax.f32 %v8108, 0.0
      %v8145 = vmax.f32 %v8109, 0.0
      %v8146 = vmax.f32 %v8110, 0.0
      %v8147 = vmax.f32 %v8111, 0.0
      %v8148 = vmax.f32 %v8112, 0.0
      %v8149 = vmax.f32 %v8113, 0.0
      %v8150 = vmax.f32 %v8114, 0.0
      %v8151 = vmax.f32 %v8115, 0.0
      %v8152 = vmax.f32 %v8116, 0.0
      %v8153 = vmax.f32 %v8117, 0.0
      %v8154 = vmax.f32 %v8118, 0.0
      %v8155 = vmax.f32 %v8119, 0.0
      %v8156 = vmax.f32 %v8120, 0.0
      %v8157 = vmax.f32 %v8121, 0.0
      %v8158 = vmax.f32 %v8122, 0.0
      %v8159 = vmax.f32 %v8123, 0.0
      %v8160 = vmax.f32 %v8124, 0.0
      %v8161 = vmax.f32 %v8125, 0.0
      %v8162 = vmax.f32 %v8126, 0.0
      %v8163 = vmax.f32 %v8127, 0.0
      %v8164 = vmax.f32 %v8128, 0.0
      %v8165 = vmax.f32 %v8129, 0.0
      %v8166 = vmax.f32 %v8130, 0.0
      %v8167 = vmax.f32 %v8131, 0.0
      %v8168 = vmax.f32 %v8132, 0.0
      %v8169 = vmax.f32 %v8133, 0.0
      %v8170 = vmax.f32 %v8134, 0.0
      %v8171 = vmax.f32 %v8135, 0.0
      %v8172 = vmax.f32 %v8136, 0.0
      %v8173 = vmax.f32 %v8137, 0.0
      %v8174 = vmax.f32 %v8138, 0.0
      %v8175 = vmax.f32 %v8139, 0.0
      %v8176 = vmax.f32 %v8140, 0.0
      %v8177 = vmax.f32 %v8141, 0.0
      %v8178 = vmax.f32 %v8142, 0.0
      %v8179 = vmax.f32 %v8143, 0.0
      %v8180 = vld [vmem:[#allocation4 + $0x13] sm:$0xff]
      %v8181 = vld [vmem:[#allocation4 + $0x1b] sm:$0xff]
      %v8182 = vld [vmem:[#allocation4 + $0x23] sm:$0xff]
      %v8183 = vld [vmem:[#allocation4 + $0x2b] sm:$0xff]
      %v8184 = vld [vmem:[#allocation4 + $0x33] sm:$0xff]
      %v8185 = vld [vmem:[#allocation4 + $0x3b] sm:$0xff]
      %v8186 = vld [vmem:[#allocation4 + $0x43] sm:$0xff]
      %v8187 = vld [vmem:[#allocation4 + $0x4b] sm:$0xff]
      %v8188 = vld [vmem:[#allocation4 + $0x53] sm:$0xff]
      %v8189 = vld [vmem:[#allocation4 + $0x5b] sm:$0xff]
      %v8190 = vld [vmem:[#allocation4 + $0x63] sm:$0xff]
      %v8191 = vld [vmem:[#allocation4 + $0x6b] sm:$0xff]
      %v8192 = vld [vmem:[#allocation4 + $0x73] sm:$0xff]
      %v8193 = vld [vmem:[#allocation4 + $0x7b] sm:$0xff]
      %v8194 = vld [vmem:[#allocation4 + $0x83] sm:$0xff]
      %v8195 = vld [vmem:[#allocation4 + $0x8b] sm:$0xff]
      %v8196 = vld [vmem:[#allocation4 + $0x93] sm:$0xff]
      %v8197 = vld [vmem:[#allocation4 + $0x9b] sm:$0xff]
      %v8198 = vld [vmem:[#allocation4 + $0xa3] sm:$0xff]
      %v8199 = vld [vmem:[#allocation4 + $0xab] sm:$0xff]
      %v8200 = vld [vmem:[#allocation4 + $0xb3] sm:$0xff]
      %v8201 = vld [vmem:[#allocation4 + $0xbb] sm:$0xff]
      %v8202 = vld [vmem:[#allocation4 + $0xc3] sm:$0xff]
      %v8203 = vld [vmem:[#allocation4 + $0xcb] sm:$0xff]
      %v8204 = vld [vmem:[#allocation4 + $0xd3] sm:$0xff]
      %v8205 = vld [vmem:[#allocation4 + $0xdb] sm:$0xff]
      %v8206 = vld [vmem:[#allocation4 + $0xe3] sm:$0xff]
      %v8207 = vld [vmem:[#allocation4 + $0xeb] sm:$0xff]
      %v8208 = vld [vmem:[#allocation4 + $0xf3] sm:$0xff]
      %v8209 = vld [vmem:[#allocation4 + $0xfb] sm:$0xff]
      %v8210 = vld [vmem:[#allocation4 + $0x103] sm:$0xff]
      %v8211 = vld [vmem:[#allocation4 + $0x10b] sm:$0xff]
      %v8212 = vld [vmem:[#allocation4 + $0x113] sm:$0xff]
      %v8213 = vld [vmem:[#allocation4 + $0x11b] sm:$0xff]
      %v8214 = vld [vmem:[#allocation4 + $0x123] sm:$0xff]
      %v8215 = vld [vmem:[#allocation4 + $0x12b] sm:$0xff]
      %v8216 = vadd.f32 %v8144, %v8180
      %v8217 = vadd.f32 %v8145, %v8181
      %v8218 = vadd.f32 %v8146, %v8182
      %v8219 = vadd.f32 %v8147, %v8183
      %v8220 = vadd.f32 %v8148, %v8184
      %v8221 = vadd.f32 %v8149, %v8185
      %v8222 = vadd.f32 %v8150, %v8186
      %v8223 = vadd.f32 %v8151, %v8187
      %v8224 = vadd.f32 %v8152, %v8188
      %v8225 = vadd.f32 %v8153, %v8189
      %v8226 = vadd.f32 %v8154, %v8190
      %v8227 = vadd.f32 %v8155, %v8191
      %v8228 = vadd.f32 %v8156, %v8192
      %v8229 = vadd.f32 %v8157, %v8193
      %v8230 = vadd.f32 %v8158, %v8194
      %v8231 = vadd.f32 %v8159, %v8195
      %v8232 = vadd.f32 %v8160, %v8196
      %v8233 = vadd.f32 %v8161, %v8197
      %v8234 = vadd.f32 %v8162, %v8198
      %v8235 = vadd.f32 %v8163, %v8199
      %v8236 = vadd.f32 %v8164, %v8200
      %v8237 = vadd.f32 %v8165, %v8201
      %v8238 = vadd.f32 %v8166, %v8202
      %v8239 = vadd.f32 %v8167, %v8203
      %v8240 = vadd.f32 %v8168, %v8204
      %v8241 = vadd.f32 %v8169, %v8205
      %v8242 = vadd.f32 %v8170, %v8206
      %v8243 = vadd.f32 %v8171, %v8207
      %v8244 = vadd.f32 %v8172, %v8208
      %v8245 = vadd.f32 %v8173, %v8209
      %v8246 = vadd.f32 %v8174, %v8210
      %v8247 = vadd.f32 %v8175, %v8211
      %v8248 = vadd.f32 %v8176, %v8212
      %v8249 = vadd.f32 %v8177, %v8213
      %v8250 = vadd.f32 %v8178, %v8214
      %v8251 = vadd.f32 %v8179, %v8215
      %v8252 = vmax.f32 %v8216, 0.0
      %v8253 = vmax.f32 %v8217, 0.0
      %v8254 = vmax.f32 %v8218, 0.0
      %v8255 = vmax.f32 %v8219, 0.0
      %v8256 = vmax.f32 %v8220, 0.0
      %v8257 = vmax.f32 %v8221, 0.0
      %v8258 = vmax.f32 %v8222, 0.0
      %v8259 = vmax.f32 %v8223, 0.0
      %v8260 = vmax.f32 %v8224, 0.0
      %v8261 = vmax.f32 %v8225, 0.0
      %v8262 = vmax.f32 %v8226, 0.0
      %v8263 = vmax.f32 %v8227, 0.0
      %v8264 = vmax.f32 %v8228, 0.0
      %v8265 = vmax.f32 %v8229, 0.0
      %v8266 = vmax.f32 %v8230, 0.0
      %v8267 = vmax.f32 %v8231, 0.0
      %v8268 = vmax.f32 %v8232, 0.0
      %v8269 = vmax.f32 %v8233, 0.0
      %v8270 = vmax.f32 %v8234, 0.0
      %v8271 = vmax.f32 %v8235, 0.0
      %v8272 = vmax.f32 %v8236, 0.0
      %v8273 = vmax.f32 %v8237, 0.0
      %v8274 = vmax.f32 %v8238, 0.0
      %v8275 = vmax.f32 %v8239, 0.0
      %v8276 = vmax.f32 %v8240, 0.0
      %v8277 = vmax.f32 %v8241, 0.0
      %v8278 = vmax.f32 %v8242, 0.0
      %v8279 = vmax.f32 %v8243, 0.0
      %v8280 = vmax.f32 %v8244, 0.0
      %v8281 = vmax.f32 %v8245, 0.0
      %v8282 = vmax.f32 %v8246, 0.0
      %v8283 = vmax.f32 %v8247, 0.0
      %v8284 = vmax.f32 %v8248, 0.0
      %v8285 = vmax.f32 %v8249, 0.0
      %v8286 = vmax.f32 %v8250, 0.0
      %v8287 = vmax.f32 %v8251, 0.0
      %8288 = vst.msk [vmem:[%s251] sm:$0xff] %vm339, %v8252
      %8289 = vst.msk [vmem:[%s251 + $0x8] sm:$0xff] %vm339, %v8253
      %8290 = vst.msk [vmem:[%s251 + $0x10] sm:$0xff] %vm339, %v8254
      %8291 = vst.msk [vmem:[%s251 + $0x18] sm:$0xff] %vm339, %v8255
      %8292 = vst.msk [vmem:[%s251 + $0x20] sm:$0xff] %vm339, %v8256
      %8293 = vst.msk [vmem:[%s251 + $0x28] sm:$0xff] %vm339, %v8257
      %8294 = vst.msk [vmem:[%s251 + $0x30] sm:$0xff] %vm339, %v8258
      %8295 = vst.msk [vmem:[%s251 + $0x38] sm:$0xff] %vm339, %v8259
      %8296 = vst.msk [vmem:[%s251 + $0x40] sm:$0xff] %vm339, %v8260
      %8297 = vst.msk [vmem:[%s251 + $0x48] sm:$0xff] %vm339, %v8261
      %8298 = vst.msk [vmem:[%s251 + $0x50] sm:$0xff] %vm339, %v8262
      %8299 = vst.msk [vmem:[%s251 + $0x58] sm:$0xff] %vm339, %v8263
      %8300 = vst.msk [vmem:[%s251 + $0x60] sm:$0xff] %vm339, %v8264
      %8301 = vst.msk [vmem:[%s251 + $0x68] sm:$0xff] %vm339, %v8265
      %8302 = vst.msk [vmem:[%s251 + $0x70] sm:$0xff] %vm339, %v8266
      %8303 = vst.msk [vmem:[%s251 + $0x78] sm:$0xff] %vm339, %v8267
      %8304 = vst.msk [vmem:[%s251 + $0x80] sm:$0xff] %vm339, %v8268
      %8305 = vst.msk [vmem:[%s251 + $0x88] sm:$0xff] %vm339, %v8269
      %8306 = vst.msk [vmem:[%s251 + $0x90] sm:$0xff] %vm339, %v8270
      %8307 = vst.msk [vmem:[%s251 + $0x98] sm:$0xff] %vm339, %v8271
      %8308 = vst.msk [vmem:[%s251 + $0xa0] sm:$0xff] %vm339, %v8272
      %8309 = vst.msk [vmem:[%s251 + $0xa8] sm:$0xff] %vm339, %v8273
      %8310 = vst.msk [vmem:[%s251 + $0xb0] sm:$0xff] %vm339, %v8274
      %8311 = vst.msk [vmem:[%s251 + $0xb8] sm:$0xff] %vm339, %v8275
      %8312 = vst.msk [vmem:[%s251 + $0xc0] sm:$0xff] %vm339, %v8276
      %8313 = vst.msk [vmem:[%s251 + $0xc8] sm:$0xff] %vm339, %v8277
      %8314 = vst.msk [vmem:[%s251 + $0xd0] sm:$0xff] %vm339, %v8278
      %8315 = vst.msk [vmem:[%s251 + $0xd8] sm:$0xff] %vm339, %v8279
      %8316 = vst.msk [vmem:[%s251 + $0xe0] sm:$0xff] %vm339, %v8280
      %8317 = vst.msk [vmem:[%s251 + $0xe8] sm:$0xff] %vm339, %v8281
      %8318 = vst.msk [vmem:[%s251 + $0xf0] sm:$0xff] %vm339, %v8282
      %8319 = vst.msk [vmem:[%s251 + $0xf8] sm:$0xff] %vm339, %v8283
      %8320 = vst.msk [vmem:[%s251 + $0x100] sm:$0xff] %vm339, %v8284
      %8321 = vst.msk [vmem:[%s251 + $0x108] sm:$0xff] %vm339, %v8285
      %8322 = vst.msk [vmem:[%s251 + $0x110] sm:$0xff] %vm339, %v8286
      %8323 = vst.msk [vmem:[%s251 + $0x118] sm:$0xff] %vm339, %v8287
      %p8324 = scmp.lt.s32.totalorder %s17, 1
      %s8325 = scalar_select %p8324, %s17, 1
      %s8326 = smul.addr %s8325, 36
      %s8327 = smul.addr %s8326, 8
      %s8328 = scalar_lea.vmem %s6, %s8327
      // Predicated region
      $region45: #{basic_block_forward.1} parent=43 // pred_check
        %p8329 = pneg %p166
      $region46: #{basic_block_forward.1} parent=43 // pred_check_branch
        %8331 = sbr.rel (%p8329) target = $region48
      $region47: #{basic_block_forward.1} parent=43 // pred_region
        _
      $region48: #{basic_block_forward.1} parent=43 // pred_fallthru
        _
    $region44: #{basic_block_forward.1} parent=5 // pred_fallthru
      _
    %p8332 = scmp.le.s32.totalorder 2, %s12
    // Predicated region
    $region49: #{basic_block_forward.1} parent=5 // pred_check
      %p8333 = pneg %p8332
    $region50: #{basic_block_forward.1} parent=5 // pred_check_branch
      %8335 = sbr.rel (%p8333) target = $region52
    $region51: #{basic_block_forward.1} parent=5 // pred_region
      %s8336 = ssub.s32 %s12, 2
      // Predicated region
      $region53: #{basic_block_forward.1} parent=51 // pred_check
        %p8337 = pneg %p172
      $region54: #{basic_block_forward.1} parent=51 // pred_check_branch
        %8339 = sbr.rel (%p8337) target = $region56
      $region55: #{basic_block_forward.1} parent=51 // pred_region
        %p8340 = scmp.lt.s32.totalorder %s18, 1
        %s8341 = scalar_select %p8340, %s18, 1
        %s8342 = smul.addr %s8341, 36
        %s8343 = smul.addr %s8342, 8
        %s8344 = scalar_lea.vmem %s6, %s8343
      $region56: #{basic_block_forward.1} parent=51 // pred_fallthru
        _
    $region52: #{basic_block_forward.1} parent=5 // pred_fallthru
      _
  $region6: #{basic_block_forward.1} parent=0 // loop_footer
    %s16 = sadd.s32 1, %s12
  $region7: #{basic_block_forward.1} parent=0 // loop_footer_branch
    %11 = sbr.rel target = $region3
  $region8: #{basic_block_forward.1} parent=0 // loop_exit
    _

</llo_original>
